<compile_context>
chip_gen: v7x
topology: tpu7x:2x2x1
jax: 0.10.0
libtpu: 0.0.40
codegen_flags: <defaults>
</compile_context>

<pallas_src>
import jax
import jax.numpy as jnp
from jax import lax
from jax.experimental import pallas as pl
from jax.experimental.pallas import tpu as pltpu

T = 736          # time samples
H = 2            # electrode rows (depthwise kernel height 2 -> collapses to 1)
C1 = 16          # conv1 output channels
C2 = 32          # depthwise / separable channels
K1 = 51          # conv1 temporal kernel
PAD1 = 25
K3 = 15          # separable conv temporal kernel
PAD3 = 7
P1_W = 4         # avgpool1 window
P2_W = 8         # avgpool2 window
T1 = T // P1_W   # 184
T2 = T1 // P2_W  # 23
TP = T1 + 2 * PAD3   # 198: pool1 output incl. conv3 zero padding
BT = 8           # samples processed per grid step
ALPHA = 1.0      # ELU alpha
BN_EPS = 1e-5

HIGHEST = jax.lax.Precision.HIGHEST


def eegnet_kernel(s_ref, wf_ref, bf_ref, p1_ref, w3s_ref, b3_ref,
                  wt0_ref, wt1_ref, seg_ref, bclf_ref, o_ref):
    wf = wf_ref[...]                        # (C2, H*K1)  bf16, fused conv1+dw+BN
    bf = bf_ref[...]                        # (C2, 1)     fused bias

    def elu(v):
        # exp argument clamped so the (discarded) positive branch cannot overflow
        return jnp.where(v > 0, v, ALPHA * (jnp.exp(jnp.minimum(v, 0.0)) - 1.0))

    # ---- fused conv1 + BN1 + depthwise + BN2, then ELU (one matmul / sample) ----
    ys = []
    for s in range(BT):
        y = jnp.dot(wf, s_ref[s], preferred_element_type=jnp.float32)   # (C2, T)
        ys.append(elu(y + bf))
    y_all = jnp.concatenate(ys, axis=0)     # (BT*C2, T)  samples stacked on sublanes

    # ---- avgPool1 (1,4) + conv3 zero padding, batched over all samples ----
    yp = jnp.dot(y_all, p1_ref[...],
                 preferred_element_type=jnp.float32)                    # (BT*C2, TP)
    # dropout p = 0.0 -> identity

    # ---- separableConv3 + BN3 + ELU: one (C2, K3*C2)@(K3*C2, T1) matmul / sample ----
    w3s = w3s_ref[...]                      # (C2, K3*C2)
    b3 = b3_ref[...]                        # (C2, 1)
    zs = []
    for s in range(BT):
        yps = yp[s * C2:(s + 1) * C2, :]                                # (C2, TP)
        stk = jnp.concatenate([yps[:, k:k + T1] for k in range(K3)],
                              axis=0)                                   # (K3*C2, T1)
        z = jnp.dot(w3s, stk, preferred_element_type=jnp.float32) + b3  # (C2, T1)
        zs.append(elu(z))
    z_all = jnp.concatenate(zs, axis=0)     # (BT*C2, T1)

    # ---- avgPool2 + flatten + Linear (pool folded into wt0/wt1 in the wrapper) ----
    r0 = jnp.sum(z_all * wt0_ref[...], axis=1, keepdims=True)           # (BT*C2, 1)
    r1 = jnp.sum(z_all * wt1_ref[...], axis=1, keepdims=True)           # (BT*C2, 1)
    r = jnp.concatenate([r0, r1], axis=1)                               # (BT*C2, 2)
    logits = jnp.dot(seg_ref[...], r,
                     preferred_element_type=jnp.float32)                # (BT, 2)
    o_ref[...] = logits + bclf_ref[...]


def init_params(key):
    ks = jax.random.split(key, 11)
    p = {}
    p["w1"] = jax.random.normal(ks[0], (C1, 1, 1, K1), jnp.float32) * 0.1
    p["g1"] = 1.0 + 0.1 * jax.random.normal(ks[1], (C1,), jnp.float32)
    p["be1"] = 0.1 * jax.random.normal(ks[2], (C1,), jnp.float32)
    p["rm1"] = jnp.zeros((C1,), jnp.float32)
    p["rv1"] = jnp.ones((C1,), jnp.float32)
    p["w2"] = jax.random.normal(ks[3], (C2, 1, 2, 1), jnp.float32) * 0.3
    p["g2"] = 1.0 + 0.1 * jax.random.normal(ks[4], (C2,), jnp.float32)
    p["be2"] = 0.1 * jax.random.normal(ks[5], (C2,), jnp.float32)
    p["rm2"] = jnp.zeros((C2,), jnp.float32)
    p["rv2"] = jnp.ones((C2,), jnp.float32)
    p["w3"] = jax.random.normal(ks[6], (C2, C2, 1, K3), jnp.float32) * 0.05
    p["g3"] = 1.0 + 0.1 * jax.random.normal(ks[7], (C2,), jnp.float32)
    p["be3"] = 0.1 * jax.random.normal(ks[8], (C2,), jnp.float32)
    p["rm3"] = jnp.zeros((C2,), jnp.float32)
    p["rv3"] = jnp.ones((C2,), jnp.float32)
    p["wclf"] = jax.random.normal(ks[9], (2, C2 * T2), jnp.float32) * 0.05
    p["bclf"] = 0.1 * jax.random.normal(ks[10], (2,), jnp.float32)
    return p


def eegnet_forward(x, p):
    B = x.shape[0]
    nb = -(-B // BT)
    bpad = nb * BT

    # ---- fold BatchNorm (eval-mode running statistics) into scales / biases ----
    # TODO(synk): training-mode BatchNorm (per-batch statistics) is not
    # reproduced; running stats are folded into the conv weights instead.
    def fold(g, be, rm, rv):
        s = g / jnp.sqrt(rv + BN_EPS)
        return s, be - rm * s

    s1, b1 = fold(p["g1"], p["be1"], p["rm1"], p["rv1"])
    s2, b2 = fold(p["g2"], p["be2"], p["rm2"], p["rv2"])
    s3, b3 = fold(p["g3"], p["be3"], p["rm3"], p["rv3"])

    # conv1 + BN1 + depthwise + BN2 -> single fused (C2, H*K1) weight + bias
    w1m = p["w1"].reshape(C1, K1)
    w2m = p["w2"].reshape(C2, H)                       # depthwise taps (row0, row1)
    cin = jnp.arange(C2) // (C2 // C1)                 # depthwise input channel map
    wf = (s2[:, None, None] * w2m[:, :, None]
          * s1[cin][:, None, None] * w1m[cin][:, None, :])        # (C2, H, K1)
    wf = wf.reshape(C2, H * K1).astype(jnp.bfloat16)
    bf = (s2 * (w2m[:, 0] + w2m[:, 1]) * b1[cin] + b2).reshape(C2, 1)

    # separableConv3 with BN3 scale folded, stacked over taps: (C2, K3*C2)
    w3stk = jnp.transpose(p["w3"][:, :, 0, :], (0, 2, 1))          # (out, k, in)
    w3stk = (w3stk * s3[:, None, None]).reshape(C2, K3 * C2)
    b3c = b3.reshape(C2, 1)

    # avgPool1 (1,4) as a matmul whose output is already zero-padded by PAD3
    t1_idx = jnp.arange(TP) - PAD3
    p1m = ((jnp.arange(T)[:, None] // P1_W) == t1_idx[None, :]
           ).astype(jnp.float32) / P1_W                            # (T, TP)

    # avgPool2 (1,8) + flatten + Linear folded into per-(channel, t1) weights
    wcf = jnp.repeat(p["wclf"].reshape(2, C2, T2), P2_W, axis=-1) / P2_W  # (2,C2,T1)
    wt0 = jnp.tile(wcf[0], (BT, 1))                                # (BT*C2, T1)
    wt1 = jnp.tile(wcf[1], (BT, 1))
    seg = (jnp.arange(BT)[:, None] == jnp.arange(BT * C2)[None, :] // C2
           ).astype(jnp.float32)                                   # (BT, BT*C2)
    bclf = p["bclf"].reshape(1, 2)

    # im2col for the fused temporal conv, precomputed in XLA (hoisted out of the
    # kernel):  S[b, r*K1 + k, t] = xpad[b, r, t + k]
    xr = x.reshape(B, H, T).astype(jnp.float32)
    xr = jnp.pad(xr, ((0, bpad - B), (0, 0), (PAD1, PAD1)))
    gidx = jnp.arange(K1)[:, None] + jnp.arange(T)[None, :]        # (K1, T)
    s_im2col = xr[:, :, gidx].reshape(bpad, H * K1, T).astype(jnp.bfloat16)

    out = pl.pallas_call(
        eegnet_kernel,
        out_shape=jax.ShapeDtypeStruct((bpad, 2), jnp.float32),
        grid_spec=pltpu.PrefetchScalarGridSpec(
            num_scalar_prefetch=0,
            grid=(nb,),
            in_specs=[
                pl.BlockSpec((BT, H * K1, T), lambda i: (i, 0, 0)),   # im2col block
                pl.BlockSpec((C2, H * K1), lambda i: (0, 0)),         # fused weight
                pl.BlockSpec((C2, 1), lambda i: (0, 0)),              # fused bias
                pl.BlockSpec((T, TP), lambda i: (0, 0)),              # pool1 matrix
                pl.BlockSpec((C2, K3 * C2), lambda i: (0, 0)),        # conv3 stacked
                pl.BlockSpec((C2, 1), lambda i: (0, 0)),              # bn3 bias
                pl.BlockSpec((BT * C2, T1), lambda i: (0, 0)),        # clf weights o=0
                pl.BlockSpec((BT * C2, T1), lambda i: (0, 0)),        # clf weights o=1
                pl.BlockSpec((BT, BT * C2), lambda i: (0, 0)),        # segment-sum
                pl.BlockSpec((1, 2), lambda i: (0, 0)),               # clf bias
            ],
            out_specs=pl.BlockSpec((BT, 2), lambda i: (i, 0)),
        ),
        compiler_params=pltpu.CompilerParams(
            dimension_semantics=("parallel",),
            vmem_limit_bytes=32 * 1024 * 1024),
    )(s_im2col, wf, bf, p1m, w3stk, b3c, wt0, wt1, seg, bclf)
    return out[:B]


def reference_forward(x, p):
    """Pure-JAX reference mirroring the PyTorch forward (eval-mode BN)."""
    B = x.shape[0]
    dn = ("NCHW", "OIHW", "NCHW")

    def bn(h, g, be, rm, rv, c):
        s = g / jnp.sqrt(rv + BN_EPS)
        return h * s.reshape(1, c, 1, 1) + (be - rm * s).reshape(1, c, 1, 1)

    def elu(v):
        return jnp.where(v > 0, v, ALPHA * (jnp.exp(v) - 1.0))

    h = lax.conv_general_dilated(x, p["w1"], (1, 1), [(0, 0), (PAD1, PAD1)],
                                 dimension_numbers=dn, precision=HIGHEST)
    h = bn(h, p["g1"], p["be1"], p["rm1"], p["rv1"], C1)
    h = lax.conv_general_dilated(h, p["w2"], (1, 1), [(0, 0), (0, 0)],
                                 dimension_numbers=dn, feature_group_count=C1,
                                 precision=HIGHEST)
    h = bn(h, p["g2"], p["be2"], p["rm2"], p["rv2"], C2)
    h = elu(h)
    h = h.reshape(B, C2, 1, T1, P1_W).mean(-1)
    h = lax.conv_general_dilated(h, p["w3"], (1, 1), [(0, 0), (PAD3, PAD3)],
                                 dimension_numbers=dn, precision=HIGHEST)
    h = bn(h, p["g3"], p["be3"], p["rm3"], p["rv3"], C2)
    h = elu(h)
    h = h.reshape(B, C2, 1, T2, P2_W).mean(-1)
    flat = h.reshape(B, -1)
    return jnp.dot(flat, p["wclf"].T, precision=HIGHEST) + p["bclf"]


if __name__ == "__main__":
    key = jax.random.PRNGKey(0)
    pkey, xkey = jax.random.split(key)
    params = init_params(pkey)
    B = 2
    x = jax.random.normal(xkey, (B, 1, H, T), jnp.float32)

    out = jax.block_until_ready(eegnet_forward(x, params))
    ref = jax.block_until_ready(reference_forward(x, params))

    # Tolerance relaxed vs. the HIGHEST-precision reference: the kernel now runs
    # the matmuls at default (single-pass bf16) MXU precision per the perf review.
    if not bool(jnp.allclose(out, ref, atol=2e-2, rtol=2e-2)):
        raise AssertionError(f"mismatch: pallas={out} reference={ref}")
    print("KERNEL_OK")
</pallas_src>

<mosaic_0001>
module attributes {stable_mosaic.version = 11 : i64} {
  func.func @eegnet_kernel(%arg0: i32, %arg1: memref<8x102x736xbf16, #tpu.memory_space<vmem>>, %arg2: memref<32x102xbf16, #tpu.memory_space<vmem>>, %arg3: memref<32x1xf32, #tpu.memory_space<vmem>>, %arg4: memref<736x198xf32, #tpu.memory_space<vmem>>, %arg5: memref<32x480xf32, #tpu.memory_space<vmem>>, %arg6: memref<32x1xf32, #tpu.memory_space<vmem>>, %arg7: memref<256x184xf32, #tpu.memory_space<vmem>>, %arg8: memref<256x184xf32, #tpu.memory_space<vmem>>, %arg9: memref<8x256xf32, #tpu.memory_space<vmem>>, %arg10: memref<1x2xf32, #tpu.memory_space<vmem>>, %arg11: memref<8x2xf32, #tpu.memory_space<vmem>>) attributes {dimension_semantics = [#tpu.dimension_semantics<parallel>], iteration_bounds = array<i64: 1>, scalar_prefetch = 0 : i64, scratch_operands = 0 : i64, tpu.core_type = #tpu.core_type<tc>, window_params = [{transform_indices = @transform_0, window_bounds = array<i64: 8, 102, 736>}, {pipeline_mode = #tpu.pipeline_mode<synchronous>, transform_indices = @transform_1, window_bounds = array<i64: 32, 102>}, {pipeline_mode = #tpu.pipeline_mode<synchronous>, transform_indices = @transform_2, window_bounds = array<i64: 32, 1>}, {pipeline_mode = #tpu.pipeline_mode<synchronous>, transform_indices = @transform_3, window_bounds = array<i64: 736, 198>}, {pipeline_mode = #tpu.pipeline_mode<synchronous>, transform_indices = @transform_4, window_bounds = array<i64: 32, 480>}, {pipeline_mode = #tpu.pipeline_mode<synchronous>, transform_indices = @transform_5, window_bounds = array<i64: 32, 1>}, {pipeline_mode = #tpu.pipeline_mode<synchronous>, transform_indices = @transform_6, window_bounds = array<i64: 256, 184>}, {pipeline_mode = #tpu.pipeline_mode<synchronous>, transform_indices = @transform_7, window_bounds = array<i64: 256, 184>}, {pipeline_mode = #tpu.pipeline_mode<synchronous>, transform_indices = @transform_8, window_bounds = array<i64: 8, 256>}, {pipeline_mode = #tpu.pipeline_mode<synchronous>, transform_indices = @transform_9, window_bounds = array<i64: 1, 2>}, {transform_indices = @transform_10, window_bounds = array<i64: 8, 2>}]} {
    %c0 = arith.constant 0 : index
    %c0_0 = arith.constant 0 : index
    %0 = vector.load %arg2[%c0, %c0_0] : memref<32x102xbf16, #tpu.memory_space<vmem>>, vector<32x102xbf16>
    %c0_1 = arith.constant 0 : index
    %c0_2 = arith.constant 0 : index
    %1 = vector.load %arg3[%c0_1, %c0_2] : memref<32x1xf32, #tpu.memory_space<vmem>>, vector<32x1xf32>
    %c0_3 = arith.constant 0 : index
    %c0_4 = arith.constant 0 : index
    %c0_5 = arith.constant 0 : index
    %2 = vector.load %arg1[%c0_3, %c0_4, %c0_5] : memref<8x102x736xbf16, #tpu.memory_space<vmem>>, vector<1x102x736xbf16>
    %3 = vector.shape_cast %2 : vector<1x102x736xbf16> to vector<102x736xbf16>
    %cst = arith.constant dense<0.000000e+00> : vector<32x736xf32>
    %4 = tpu.matmul %0, %3, %cst {dimension_numbers = #tpu.dot_dimension_numbers<[1], [0], [0], [1], [0, 0, 1, 1], [], []>} : vector<32x102xbf16>, vector<102x736xbf16>, vector<32x736xf32> -> vector<32x736xf32>
    %5 = vector.broadcast %1 : vector<32x1xf32> to vector<32x736xf32>
    %6 = arith.addf %4, %5 : vector<32x736xf32>
    %cst_6 = arith.constant 0.000000e+00 : f32
    %7 = vector.broadcast %cst_6 : f32 to vector<32x736xf32>
    %8 = arith.cmpf ogt, %6, %7 : vector<32x736xf32>
    %cst_7 = arith.constant 0.000000e+00 : f32
    %9 = vector.broadcast %cst_7 : f32 to vector<32x736xf32>
    %10 = arith.minimumf %6, %9 : vector<32x736xf32>
    %11 = math.exp %10 : vector<32x736xf32>
    %cst_8 = arith.constant 1.000000e+00 : f32
    %12 = vector.broadcast %cst_8 : f32 to vector<32x736xf32>
    %13 = arith.subf %11, %12 : vector<32x736xf32>
    %cst_9 = arith.constant 1.000000e+00 : f32
    %14 = vector.broadcast %cst_9 : f32 to vector<32x736xf32>
    %15 = arith.mulf %14, %13 : vector<32x736xf32>
    %16 = arith.select %8, %6, %15 : vector<32x736xi1>, vector<32x736xf32>
    %c1 = arith.constant 1 : index
    %c0_10 = arith.constant 0 : index
    %c0_11 = arith.constant 0 : index
    %17 = vector.load %arg1[%c1, %c0_10, %c0_11] : memref<8x102x736xbf16, #tpu.memory_space<vmem>>, vector<1x102x736xbf16>
    %18 = vector.shape_cast %17 : vector<1x102x736xbf16> to vector<102x736xbf16>
    %cst_12 = arith.constant dense<0.000000e+00> : vector<32x736xf32>
    %19 = tpu.matmul %0, %18, %cst_12 {dimension_numbers = #tpu.dot_dimension_numbers<[1], [0], [0], [1], [0, 0, 1, 1], [], []>} : vector<32x102xbf16>, vector<102x736xbf16>, vector<32x736xf32> -> vector<32x736xf32>
    %20 = vector.broadcast %1 : vector<32x1xf32> to vector<32x736xf32>
    %21 = arith.addf %19, %20 : vector<32x736xf32>
    %cst_13 = arith.constant 0.000000e+00 : f32
    %22 = vector.broadcast %cst_13 : f32 to vector<32x736xf32>
    %23 = arith.cmpf ogt, %21, %22 : vector<32x736xf32>
    %cst_14 = arith.constant 0.000000e+00 : f32
    %24 = vector.broadcast %cst_14 : f32 to vector<32x736xf32>
    %25 = arith.minimumf %21, %24 : vector<32x736xf32>
    %26 = math.exp %25 : vector<32x736xf32>
    %cst_15 = arith.constant 1.000000e+00 : f32
    %27 = vector.broadcast %cst_15 : f32 to vector<32x736xf32>
    %28 = arith.subf %26, %27 : vector<32x736xf32>
    %cst_16 = arith.constant 1.000000e+00 : f32
    %29 = vector.broadcast %cst_16 : f32 to vector<32x736xf32>
    %30 = arith.mulf %29, %28 : vector<32x736xf32>
    %31 = arith.select %23, %21, %30 : vector<32x736xi1>, vector<32x736xf32>
    %c2 = arith.constant 2 : index
    %c0_17 = arith.constant 0 : index
    %c0_18 = arith.constant 0 : index
    %32 = vector.load %arg1[%c2, %c0_17, %c0_18] : memref<8x102x736xbf16, #tpu.memory_space<vmem>>, vector<1x102x736xbf16>
    %33 = vector.shape_cast %32 : vector<1x102x736xbf16> to vector<102x736xbf16>
    %cst_19 = arith.constant dense<0.000000e+00> : vector<32x736xf32>
    %34 = tpu.matmul %0, %33, %cst_19 {dimension_numbers = #tpu.dot_dimension_numbers<[1], [0], [0], [1], [0, 0, 1, 1], [], []>} : vector<32x102xbf16>, vector<102x736xbf16>, vector<32x736xf32> -> vector<32x736xf32>
    %35 = vector.broadcast %1 : vector<32x1xf32> to vector<32x736xf32>
    %36 = arith.addf %34, %35 : vector<32x736xf32>
    %cst_20 = arith.constant 0.000000e+00 : f32
    %37 = vector.broadcast %cst_20 : f32 to vector<32x736xf32>
    %38 = arith.cmpf ogt, %36, %37 : vector<32x736xf32>
    %cst_21 = arith.constant 0.000000e+00 : f32
    %39 = vector.broadcast %cst_21 : f32 to vector<32x736xf32>
    %40 = arith.minimumf %36, %39 : vector<32x736xf32>
    %41 = math.exp %40 : vector<32x736xf32>
    %cst_22 = arith.constant 1.000000e+00 : f32
    %42 = vector.broadcast %cst_22 : f32 to vector<32x736xf32>
    %43 = arith.subf %41, %42 : vector<32x736xf32>
    %cst_23 = arith.constant 1.000000e+00 : f32
    %44 = vector.broadcast %cst_23 : f32 to vector<32x736xf32>
    %45 = arith.mulf %44, %43 : vector<32x736xf32>
    %46 = arith.select %38, %36, %45 : vector<32x736xi1>, vector<32x736xf32>
    %c3 = arith.constant 3 : index
    %c0_24 = arith.constant 0 : index
    %c0_25 = arith.constant 0 : index
    %47 = vector.load %arg1[%c3, %c0_24, %c0_25] : memref<8x102x736xbf16, #tpu.memory_space<vmem>>, vector<1x102x736xbf16>
    %48 = vector.shape_cast %47 : vector<1x102x736xbf16> to vector<102x736xbf16>
    %cst_26 = arith.constant dense<0.000000e+00> : vector<32x736xf32>
    %49 = tpu.matmul %0, %48, %cst_26 {dimension_numbers = #tpu.dot_dimension_numbers<[1], [0], [0], [1], [0, 0, 1, 1], [], []>} : vector<32x102xbf16>, vector<102x736xbf16>, vector<32x736xf32> -> vector<32x736xf32>
    %50 = vector.broadcast %1 : vector<32x1xf32> to vector<32x736xf32>
    %51 = arith.addf %49, %50 : vector<32x736xf32>
    %cst_27 = arith.constant 0.000000e+00 : f32
    %52 = vector.broadcast %cst_27 : f32 to vector<32x736xf32>
    %53 = arith.cmpf ogt, %51, %52 : vector<32x736xf32>
    %cst_28 = arith.constant 0.000000e+00 : f32
    %54 = vector.broadcast %cst_28 : f32 to vector<32x736xf32>
    %55 = arith.minimumf %51, %54 : vector<32x736xf32>
    %56 = math.exp %55 : vector<32x736xf32>
    %cst_29 = arith.constant 1.000000e+00 : f32
    %57 = vector.broadcast %cst_29 : f32 to vector<32x736xf32>
    %58 = arith.subf %56, %57 : vector<32x736xf32>
    %cst_30 = arith.constant 1.000000e+00 : f32
    %59 = vector.broadcast %cst_30 : f32 to vector<32x736xf32>
    %60 = arith.mulf %59, %58 : vector<32x736xf32>
    %61 = arith.select %53, %51, %60 : vector<32x736xi1>, vector<32x736xf32>
    %c4 = arith.constant 4 : index
    %c0_31 = arith.constant 0 : index
    %c0_32 = arith.constant 0 : index
    %62 = vector.load %arg1[%c4, %c0_31, %c0_32] : memref<8x102x736xbf16, #tpu.memory_space<vmem>>, vector<1x102x736xbf16>
    %63 = vector.shape_cast %62 : vector<1x102x736xbf16> to vector<102x736xbf16>
    %cst_33 = arith.constant dense<0.000000e+00> : vector<32x736xf32>
    %64 = tpu.matmul %0, %63, %cst_33 {dimension_numbers = #tpu.dot_dimension_numbers<[1], [0], [0], [1], [0, 0, 1, 1], [], []>} : vector<32x102xbf16>, vector<102x736xbf16>, vector<32x736xf32> -> vector<32x736xf32>
    %65 = vector.broadcast %1 : vector<32x1xf32> to vector<32x736xf32>
    %66 = arith.addf %64, %65 : vector<32x736xf32>
    %cst_34 = arith.constant 0.000000e+00 : f32
    %67 = vector.broadcast %cst_34 : f32 to vector<32x736xf32>
    %68 = arith.cmpf ogt, %66, %67 : vector<32x736xf32>
    %cst_35 = arith.constant 0.000000e+00 : f32
    %69 = vector.broadcast %cst_35 : f32 to vector<32x736xf32>
    %70 = arith.minimumf %66, %69 : vector<32x736xf32>
    %71 = math.exp %70 : vector<32x736xf32>
    %cst_36 = arith.constant 1.000000e+00 : f32
    %72 = vector.broadcast %cst_36 : f32 to vector<32x736xf32>
    %73 = arith.subf %71, %72 : vector<32x736xf32>
    %cst_37 = arith.constant 1.000000e+00 : f32
    %74 = vector.broadcast %cst_37 : f32 to vector<32x736xf32>
    %75 = arith.mulf %74, %73 : vector<32x736xf32>
    %76 = arith.select %68, %66, %75 : vector<32x736xi1>, vector<32x736xf32>
    %c5 = arith.constant 5 : index
    %c0_38 = arith.constant 0 : index
    %c0_39 = arith.constant 0 : index
    %77 = vector.load %arg1[%c5, %c0_38, %c0_39] : memref<8x102x736xbf16, #tpu.memory_space<vmem>>, vector<1x102x736xbf16>
    %78 = vector.shape_cast %77 : vector<1x102x736xbf16> to vector<102x736xbf16>
    %cst_40 = arith.constant dense<0.000000e+00> : vector<32x736xf32>
    %79 = tpu.matmul %0, %78, %cst_40 {dimension_numbers = #tpu.dot_dimension_numbers<[1], [0], [0], [1], [0, 0, 1, 1], [], []>} : vector<32x102xbf16>, vector<102x736xbf16>, vector<32x736xf32> -> vector<32x736xf32>
    %80 = vector.broadcast %1 : vector<32x1xf32> to vector<32x736xf32>
    %81 = arith.addf %79, %80 : vector<32x736xf32>
    %cst_41 = arith.constant 0.000000e+00 : f32
    %82 = vector.broadcast %cst_41 : f32 to vector<32x736xf32>
    %83 = arith.cmpf ogt, %81, %82 : vector<32x736xf32>
    %cst_42 = arith.constant 0.000000e+00 : f32
    %84 = vector.broadcast %cst_42 : f32 to vector<32x736xf32>
    %85 = arith.minimumf %81, %84 : vector<32x736xf32>
    %86 = math.exp %85 : vector<32x736xf32>
    %cst_43 = arith.constant 1.000000e+00 : f32
    %87 = vector.broadcast %cst_43 : f32 to vector<32x736xf32>
    %88 = arith.subf %86, %87 : vector<32x736xf32>
    %cst_44 = arith.constant 1.000000e+00 : f32
    %89 = vector.broadcast %cst_44 : f32 to vector<32x736xf32>
    %90 = arith.mulf %89, %88 : vector<32x736xf32>
    %91 = arith.select %83, %81, %90 : vector<32x736xi1>, vector<32x736xf32>
    %c6 = arith.constant 6 : index
    %c0_45 = arith.constant 0 : index
    %c0_46 = arith.constant 0 : index
    %92 = vector.load %arg1[%c6, %c0_45, %c0_46] : memref<8x102x736xbf16, #tpu.memory_space<vmem>>, vector<1x102x736xbf16>
    %93 = vector.shape_cast %92 : vector<1x102x736xbf16> to vector<102x736xbf16>
    %cst_47 = arith.constant dense<0.000000e+00> : vector<32x736xf32>
    %94 = tpu.matmul %0, %93, %cst_47 {dimension_numbers = #tpu.dot_dimension_numbers<[1], [0], [0], [1], [0, 0, 1, 1], [], []>} : vector<32x102xbf16>, vector<102x736xbf16>, vector<32x736xf32> -> vector<32x736xf32>
    %95 = vector.broadcast %1 : vector<32x1xf32> to vector<32x736xf32>
    %96 = arith.addf %94, %95 : vector<32x736xf32>
    %cst_48 = arith.constant 0.000000e+00 : f32
    %97 = vector.broadcast %cst_48 : f32 to vector<32x736xf32>
    %98 = arith.cmpf ogt, %96, %97 : vector<32x736xf32>
    %cst_49 = arith.constant 0.000000e+00 : f32
    %99 = vector.broadcast %cst_49 : f32 to vector<32x736xf32>
    %100 = arith.minimumf %96, %99 : vector<32x736xf32>
    %101 = math.exp %100 : vector<32x736xf32>
    %cst_50 = arith.constant 1.000000e+00 : f32
    %102 = vector.broadcast %cst_50 : f32 to vector<32x736xf32>
    %103 = arith.subf %101, %102 : vector<32x736xf32>
    %cst_51 = arith.constant 1.000000e+00 : f32
    %104 = vector.broadcast %cst_51 : f32 to vector<32x736xf32>
    %105 = arith.mulf %104, %103 : vector<32x736xf32>
    %106 = arith.select %98, %96, %105 : vector<32x736xi1>, vector<32x736xf32>
    %c7 = arith.constant 7 : index
    %c0_52 = arith.constant 0 : index
    %c0_53 = arith.constant 0 : index
    %107 = vector.load %arg1[%c7, %c0_52, %c0_53] : memref<8x102x736xbf16, #tpu.memory_space<vmem>>, vector<1x102x736xbf16>
    %108 = vector.shape_cast %107 : vector<1x102x736xbf16> to vector<102x736xbf16>
    %cst_54 = arith.constant dense<0.000000e+00> : vector<32x736xf32>
    %109 = tpu.matmul %0, %108, %cst_54 {dimension_numbers = #tpu.dot_dimension_numbers<[1], [0], [0], [1], [0, 0, 1, 1], [], []>} : vector<32x102xbf16>, vector<102x736xbf16>, vector<32x736xf32> -> vector<32x736xf32>
    %110 = vector.broadcast %1 : vector<32x1xf32> to vector<32x736xf32>
    %111 = arith.addf %109, %110 : vector<32x736xf32>
    %cst_55 = arith.constant 0.000000e+00 : f32
    %112 = vector.broadcast %cst_55 : f32 to vector<32x736xf32>
    %113 = arith.cmpf ogt, %111, %112 : vector<32x736xf32>
    %cst_56 = arith.constant 0.000000e+00 : f32
    %114 = vector.broadcast %cst_56 : f32 to vector<32x736xf32>
    %115 = arith.minimumf %111, %114 : vector<32x736xf32>
    %116 = math.exp %115 : vector<32x736xf32>
    %cst_57 = arith.constant 1.000000e+00 : f32
    %117 = vector.broadcast %cst_57 : f32 to vector<32x736xf32>
    %118 = arith.subf %116, %117 : vector<32x736xf32>
    %cst_58 = arith.constant 1.000000e+00 : f32
    %119 = vector.broadcast %cst_58 : f32 to vector<32x736xf32>
    %120 = arith.mulf %119, %118 : vector<32x736xf32>
    %121 = arith.select %113, %111, %120 : vector<32x736xi1>, vector<32x736xf32>
    %122 = tpu.concatenate %16, %31, %46, %61, %76, %91, %106, %121 in 0 : vector<32x736xf32>, vector<32x736xf32>, vector<32x736xf32>, vector<32x736xf32>, vector<32x736xf32>, vector<32x736xf32>, vector<32x736xf32>, vector<32x736xf32> -> vector<256x736xf32>
    %c0_59 = arith.constant 0 : index
    %c0_60 = arith.constant 0 : index
    %123 = vector.load %arg4[%c0_59, %c0_60] : memref<736x198xf32, #tpu.memory_space<vmem>>, vector<736x198xf32>
    %cst_61 = arith.constant dense<0.000000e+00> : vector<256x198xf32>
    %124 = tpu.matmul %122, %123, %cst_61 {dimension_numbers = #tpu.dot_dimension_numbers<[1], [0], [0], [1], [0, 0, 1, 1], [], []>} : vector<256x736xf32>, vector<736x198xf32>, vector<256x198xf32> -> vector<256x198xf32>
    %c0_62 = arith.constant 0 : index
    %c0_63 = arith.constant 0 : index
    %125 = vector.load %arg5[%c0_62, %c0_63] : memref<32x480xf32, #tpu.memory_space<vmem>>, vector<32x480xf32>
    %c0_64 = arith.constant 0 : index
    %c0_65 = arith.constant 0 : index
    %126 = vector.load %arg6[%c0_64, %c0_65] : memref<32x1xf32, #tpu.memory_space<vmem>>, vector<32x1xf32>
    %127 = vector.extract_strided_slice %124 {offsets = [0, 0], sizes = [32, 198], strides = [1, 1]} : vector<256x198xf32> to vector<32x198xf32>
    %128 = vector.extract_strided_slice %127 {offsets = [0, 0], sizes = [32, 184], strides = [1, 1]} : vector<32x198xf32> to vector<32x184xf32>
    %129 = vector.extract_strided_slice %127 {offsets = [0, 1], sizes = [32, 184], strides = [1, 1]} : vector<32x198xf32> to vector<32x184xf32>
    %130 = vector.extract_strided_slice %127 {offsets = [0, 2], sizes = [32, 184], strides = [1, 1]} : vector<32x198xf32> to vector<32x184xf32>
    %131 = vector.extract_strided_slice %127 {offsets = [0, 3], sizes = [32, 184], strides = [1, 1]} : vector<32x198xf32> to vector<32x184xf32>
    %132 = vector.extract_strided_slice %127 {offsets = [0, 4], sizes = [32, 184], strides = [1, 1]} : vector<32x198xf32> to vector<32x184xf32>
    %133 = vector.extract_strided_slice %127 {offsets = [0, 5], sizes = [32, 184], strides = [1, 1]} : vector<32x198xf32> to vector<32x184xf32>
    %134 = vector.extract_strided_slice %127 {offsets = [0, 6], sizes = [32, 184], strides = [1, 1]} : vector<32x198xf32> to vector<32x184xf32>
    %135 = vector.extract_strided_slice %127 {offsets = [0, 7], sizes = [32, 184], strides = [1, 1]} : vector<32x198xf32> to vector<32x184xf32>
    %136 = vector.extract_strided_slice %127 {offsets = [0, 8], sizes = [32, 184], strides = [1, 1]} : vector<32x198xf32> to vector<32x184xf32>
    %137 = vector.extract_strided_slice %127 {offsets = [0, 9], sizes = [32, 184], strides = [1, 1]} : vector<32x198xf32> to vector<32x184xf32>
    %138 = vector.extract_strided_slice %127 {offsets = [0, 10], sizes = [32, 184], strides = [1, 1]} : vector<32x198xf32> to vector<32x184xf32>
    %139 = vector.extract_strided_slice %127 {offsets = [0, 11], sizes = [32, 184], strides = [1, 1]} : vector<32x198xf32> to vector<32x184xf32>
    %140 = vector.extract_strided_slice %127 {offsets = [0, 12], sizes = [32, 184], strides = [1, 1]} : vector<32x198xf32> to vector<32x184xf32>
    %141 = vector.extract_strided_slice %127 {offsets = [0, 13], sizes = [32, 184], strides = [1, 1]} : vector<32x198xf32> to vector<32x184xf32>
    %142 = vector.extract_strided_slice %127 {offsets = [0, 14], sizes = [32, 184], strides = [1, 1]} : vector<32x198xf32> to vector<32x184xf32>
    %143 = tpu.concatenate %128, %129, %130, %131, %132, %133, %134, %135, %136, %137, %138, %139, %140, %141, %142 in 0 : vector<32x184xf32>, vector<32x184xf32>, vector<32x184xf32>, vector<32x184xf32>, vector<32x184xf32>, vector<32x184xf32>, vector<32x184xf32>, vector<32x184xf32>, vector<32x184xf32>, vector<32x184xf32>, vector<32x184xf32>, vector<32x184xf32>, vector<32x184xf32>, vector<32x184xf32>, vector<32x184xf32> -> vector<480x184xf32>
    %cst_66 = arith.constant dense<0.000000e+00> : vector<32x184xf32>
    %144 = tpu.matmul %125, %143, %cst_66 {dimension_numbers = #tpu.dot_dimension_numbers<[1], [0], [0], [1], [0, 0, 1, 1], [], []>} : vector<32x480xf32>, vector<480x184xf32>, vector<32x184xf32> -> vector<32x184xf32>
    %145 = vector.broadcast %126 : vector<32x1xf32> to vector<32x184xf32>
    %146 = arith.addf %144, %145 : vector<32x184xf32>
    %cst_67 = arith.constant 0.000000e+00 : f32
    %147 = vector.broadcast %cst_67 : f32 to vector<32x184xf32>
    %148 = arith.cmpf ogt, %146, %147 : vector<32x184xf32>
    %cst_68 = arith.constant 0.000000e+00 : f32
    %149 = vector.broadcast %cst_68 : f32 to vector<32x184xf32>
    %150 = arith.minimumf %146, %149 : vector<32x184xf32>
    %151 = math.exp %150 : vector<32x184xf32>
    %cst_69 = arith.constant 1.000000e+00 : f32
    %152 = vector.broadcast %cst_69 : f32 to vector<32x184xf32>
    %153 = arith.subf %151, %152 : vector<32x184xf32>
    %cst_70 = arith.constant 1.000000e+00 : f32
    %154 = vector.broadcast %cst_70 : f32 to vector<32x184xf32>
    %155 = arith.mulf %154, %153 : vector<32x184xf32>
    %156 = arith.select %148, %146, %155 : vector<32x184xi1>, vector<32x184xf32>
    %157 = vector.extract_strided_slice %124 {offsets = [32, 0], sizes = [32, 198], strides = [1, 1]} : vector<256x198xf32> to vector<32x198xf32>
    %158 = vector.extract_strided_slice %157 {offsets = [0, 0], sizes = [32, 184], strides = [1, 1]} : vector<32x198xf32> to vector<32x184xf32>
    %159 = vector.extract_strided_slice %157 {offsets = [0, 1], sizes = [32, 184], strides = [1, 1]} : vector<32x198xf32> to vector<32x184xf32>
    %160 = vector.extract_strided_slice %157 {offsets = [0, 2], sizes = [32, 184], strides = [1, 1]} : vector<32x198xf32> to vector<32x184xf32>
    %161 = vector.extract_strided_slice %157 {offsets = [0, 3], sizes = [32, 184], strides = [1, 1]} : vector<32x198xf32> to vector<32x184xf32>
    %162 = vector.extract_strided_slice %157 {offsets = [0, 4], sizes = [32, 184], strides = [1, 1]} : vector<32x198xf32> to vector<32x184xf32>
    %163 = vector.extract_strided_slice %157 {offsets = [0, 5], sizes = [32, 184], strides = [1, 1]} : vector<32x198xf32> to vector<32x184xf32>
    %164 = vector.extract_strided_slice %157 {offsets = [0, 6], sizes = [32, 184], strides = [1, 1]} : vector<32x198xf32> to vector<32x184xf32>
    %165 = vector.extract_strided_slice %157 {offsets = [0, 7], sizes = [32, 184], strides = [1, 1]} : vector<32x198xf32> to vector<32x184xf32>
    %166 = vector.extract_strided_slice %157 {offsets = [0, 8], sizes = [32, 184], strides = [1, 1]} : vector<32x198xf32> to vector<32x184xf32>
    %167 = vector.extract_strided_slice %157 {offsets = [0, 9], sizes = [32, 184], strides = [1, 1]} : vector<32x198xf32> to vector<32x184xf32>
    %168 = vector.extract_strided_slice %157 {offsets = [0, 10], sizes = [32, 184], strides = [1, 1]} : vector<32x198xf32> to vector<32x184xf32>
    %169 = vector.extract_strided_slice %157 {offsets = [0, 11], sizes = [32, 184], strides = [1, 1]} : vector<32x198xf32> to vector<32x184xf32>
    %170 = vector.extract_strided_slice %157 {offsets = [0, 12], sizes = [32, 184], strides = [1, 1]} : vector<32x198xf32> to vector<32x184xf32>
    %171 = vector.extract_strided_slice %157 {offsets = [0, 13], sizes = [32, 184], strides = [1, 1]} : vector<32x198xf32> to vector<32x184xf32>
    %172 = vector.extract_strided_slice %157 {offsets = [0, 14], sizes = [32, 184], strides = [1, 1]} : vector<32x198xf32> to vector<32x184xf32>
    %173 = tpu.concatenate %158, %159, %160, %161, %162, %163, %164, %165, %166, %167, %168, %169, %170, %171, %172 in 0 : vector<32x184xf32>, vector<32x184xf32>, vector<32x184xf32>, vector<32x184xf32>, vector<32x184xf32>, vector<32x184xf32>, vector<32x184xf32>, vector<32x184xf32>, vector<32x184xf32>, vector<32x184xf32>, vector<32x184xf32>, vector<32x184xf32>, vector<32x184xf32>, vector<32x184xf32>, vector<32x184xf32> -> vector<480x184xf32>
    %cst_71 = arith.constant dense<0.000000e+00> : vector<32x184xf32>
    %174 = tpu.matmul %125, %173, %cst_71 {dimension_numbers = #tpu.dot_dimension_numbers<[1], [0], [0], [1], [0, 0, 1, 1], [], []>} : vector<32x480xf32>, vector<480x184xf32>, vector<32x184xf32> -> vector<32x184xf32>
    %175 = vector.broadcast %126 : vector<32x1xf32> to vector<32x184xf32>
    %176 = arith.addf %174, %175 : vector<32x184xf32>
    %cst_72 = arith.constant 0.000000e+00 : f32
    %177 = vector.broadcast %cst_72 : f32 to vector<32x184xf32>
    %178 = arith.cmpf ogt, %176, %177 : vector<32x184xf32>
    %cst_73 = arith.constant 0.000000e+00 : f32
    %179 = vector.broadcast %cst_73 : f32 to vector<32x184xf32>
    %180 = arith.minimumf %176, %179 : vector<32x184xf32>
    %181 = math.exp %180 : vector<32x184xf32>
    %cst_74 = arith.constant 1.000000e+00 : f32
    %182 = vector.broadcast %cst_74 : f32 to vector<32x184xf32>
    %183 = arith.subf %181, %182 : vector<32x184xf32>
    %cst_75 = arith.constant 1.000000e+00 : f32
    %184 = vector.broadcast %cst_75 : f32 to vector<32x184xf32>
    %185 = arith.mulf %184, %183 : vector<32x184xf32>
    %186 = arith.select %178, %176, %185 : vector<32x184xi1>, vector<32x184xf32>
    %187 = vector.extract_strided_slice %124 {offsets = [64, 0], sizes = [32, 198], strides = [1, 1]} : vector<256x198xf32> to vector<32x198xf32>
    %188 = vector.extract_strided_slice %187 {offsets = [0, 0], sizes = [32, 184], strides = [1, 1]} : vector<32x198xf32> to vector<32x184xf32>
    %189 = vector.extract_strided_slice %187 {offsets = [0, 1], sizes = [32, 184], strides = [1, 1]} : vector<32x198xf32> to vector<32x184xf32>
    %190 = vector.extract_strided_slice %187 {offsets = [0, 2], sizes = [32, 184], strides = [1, 1]} : vector<32x198xf32> to vector<32x184xf32>
    %191 = vector.extract_strided_slice %187 {offsets = [0, 3], sizes = [32, 184], strides = [1, 1]} : vector<32x198xf32> to vector<32x184xf32>
    %192 = vector.extract_strided_slice %187 {offsets = [0, 4], sizes = [32, 184], strides = [1, 1]} : vector<32x198xf32> to vector<32x184xf32>
    %193 = vector.extract_strided_slice %187 {offsets = [0, 5], sizes = [32, 184], strides = [1, 1]} : vector<32x198xf32> to vector<32x184xf32>
    %194 = vector.extract_strided_slice %187 {offsets = [0, 6], sizes = [32, 184], strides = [1, 1]} : vector<32x198xf32> to vector<32x184xf32>
    %195 = vector.extract_strided_slice %187 {offsets = [0, 7], sizes = [32, 184], strides = [1, 1]} : vector<32x198xf32> to vector<32x184xf32>
    %196 = vector.extract_strided_slice %187 {offsets = [0, 8], sizes = [32, 184], strides = [1, 1]} : vector<32x198xf32> to vector<32x184xf32>
    %197 = vector.extract_strided_slice %187 {offsets = [0, 9], sizes = [32, 184], strides = [1, 1]} : vector<32x198xf32> to vector<32x184xf32>
    %198 = vector.extract_strided_slice %187 {offsets = [0, 10], sizes = [32, 184], strides = [1, 1]} : vector<32x198xf32> to vector<32x184xf32>
    %199 = vector.extract_strided_slice %187 {offsets = [0, 11], sizes = [32, 184], strides = [1, 1]} : vector<32x198xf32> to vector<32x184xf32>
    %200 = vector.extract_strided_slice %187 {offsets = [0, 12], sizes = [32, 184], strides = [1, 1]} : vector<32x198xf32> to vector<32x184xf32>
    %201 = vector.extract_strided_slice %187 {offsets = [0, 13], sizes = [32, 184], strides = [1, 1]} : vector<32x198xf32> to vector<32x184xf32>
    %202 = vector.extract_strided_slice %187 {offsets = [0, 14], sizes = [32, 184], strides = [1, 1]} : vector<32x198xf32> to vector<32x184xf32>
    %203 = tpu.concatenate %188, %189, %190, %191, %192, %193, %194, %195, %196, %197, %198, %199, %200, %201, %202 in 0 : vector<32x184xf32>, vector<32x184xf32>, vector<32x184xf32>, vector<32x184xf32>, vector<32x184xf32>, vector<32x184xf32>, vector<32x184xf32>, vector<32x184xf32>, vector<32x184xf32>, vector<32x184xf32>, vector<32x184xf32>, vector<32x184xf32>, vector<32x184xf32>, vector<32x184xf32>, vector<32x184xf32> -> vector<480x184xf32>
    %cst_76 = arith.constant dense<0.000000e+00> : vector<32x184xf32>
    %204 = tpu.matmul %125, %203, %cst_76 {dimension_numbers = #tpu.dot_dimension_numbers<[1], [0], [0], [1], [0, 0, 1, 1], [], []>} : vector<32x480xf32>, vector<480x184xf32>, vector<32x184xf32> -> vector<32x184xf32>
    %205 = vector.broadcast %126 : vector<32x1xf32> to vector<32x184xf32>
    %206 = arith.addf %204, %205 : vector<32x184xf32>
    %cst_77 = arith.constant 0.000000e+00 : f32
    %207 = vector.broadcast %cst_77 : f32 to vector<32x184xf32>
    %208 = arith.cmpf ogt, %206, %207 : vector<32x184xf32>
    %cst_78 = arith.constant 0.000000e+00 : f32
    %209 = vector.broadcast %cst_78 : f32 to vector<32x184xf32>
    %210 = arith.minimumf %206, %209 : vector<32x184xf32>
    %211 = math.exp %210 : vector<32x184xf32>
    %cst_79 = arith.constant 1.000000e+00 : f32
    %212 = vector.broadcast %cst_79 : f32 to vector<32x184xf32>
    %213 = arith.subf %211, %212 : vector<32x184xf32>
    %cst_80 = arith.constant 1.000000e+00 : f32
    %214 = vector.broadcast %cst_80 : f32 to vector<32x184xf32>
    %215 = arith.mulf %214, %213 : vector<32x184xf32>
    %216 = arith.select %208, %206, %215 : vector<32x184xi1>, vector<32x184xf32>
    %217 = vector.extract_strided_slice %124 {offsets = [96, 0], sizes = [32, 198], strides = [1, 1]} : vector<256x198xf32> to vector<32x198xf32>
    %218 = vector.extract_strided_slice %217 {offsets = [0, 0], sizes = [32, 184], strides = [1, 1]} : vector<32x198xf32> to vector<32x184xf32>
    %219 = vector.extract_strided_slice %217 {offsets = [0, 1], sizes = [32, 184], strides = [1, 1]} : vector<32x198xf32> to vector<32x184xf32>
    %220 = vector.extract_strided_slice %217 {offsets = [0, 2], sizes = [32, 184], strides = [1, 1]} : vector<32x198xf32> to vector<32x184xf32>
    %221 = vector.extract_strided_slice %217 {offsets = [0, 3], sizes = [32, 184], strides = [1, 1]} : vector<32x198xf32> to vector<32x184xf32>
    %222 = vector.extract_strided_slice %217 {offsets = [0, 4], sizes = [32, 184], strides = [1, 1]} : vector<32x198xf32> to vector<32x184xf32>
    %223 = vector.extract_strided_slice %217 {offsets = [0, 5], sizes = [32, 184], strides = [1, 1]} : vector<32x198xf32> to vector<32x184xf32>
    %224 = vector.extract_strided_slice %217 {offsets = [0, 6], sizes = [32, 184], strides = [1, 1]} : vector<32x198xf32> to vector<32x184xf32>
    %225 = vector.extract_strided_slice %217 {offsets = [0, 7], sizes = [32, 184], strides = [1, 1]} : vector<32x198xf32> to vector<32x184xf32>
    %226 = vector.extract_strided_slice %217 {offsets = [0, 8], sizes = [32, 184], strides = [1, 1]} : vector<32x198xf32> to vector<32x184xf32>
    %227 = vector.extract_strided_slice %217 {offsets = [0, 9], sizes = [32, 184], strides = [1, 1]} : vector<32x198xf32> to vector<32x184xf32>
    %228 = vector.extract_strided_slice %217 {offsets = [0, 10], sizes = [32, 184], strides = [1, 1]} : vector<32x198xf32> to vector<32x184xf32>
    %229 = vector.extract_strided_slice %217 {offsets = [0, 11], sizes = [32, 184], strides = [1, 1]} : vector<32x198xf32> to vector<32x184xf32>
    %230 = vector.extract_strided_slice %217 {offsets = [0, 12], sizes = [32, 184], strides = [1, 1]} : vector<32x198xf32> to vector<32x184xf32>
    %231 = vector.extract_strided_slice %217 {offsets = [0, 13], sizes = [32, 184], strides = [1, 1]} : vector<32x198xf32> to vector<32x184xf32>
    %232 = vector.extract_strided_slice %217 {offsets = [0, 14], sizes = [32, 184], strides = [1, 1]} : vector<32x198xf32> to vector<32x184xf32>
    %233 = tpu.concatenate %218, %219, %220, %221, %222, %223, %224, %225, %226, %227, %228, %229, %230, %231, %232 in 0 : vector<32x184xf32>, vector<32x184xf32>, vector<32x184xf32>, vector<32x184xf32>, vector<32x184xf32>, vector<32x184xf32>, vector<32x184xf32>, vector<32x184xf32>, vector<32x184xf32>, vector<32x184xf32>, vector<32x184xf32>, vector<32x184xf32>, vector<32x184xf32>, vector<32x184xf32>, vector<32x184xf32> -> vector<480x184xf32>
    %cst_81 = arith.constant dense<0.000000e+00> : vector<32x184xf32>
    %234 = tpu.matmul %125, %233, %cst_81 {dimension_numbers = #tpu.dot_dimension_numbers<[1], [0], [0], [1], [0, 0, 1, 1], [], []>} : vector<32x480xf32>, vector<480x184xf32>, vector<32x184xf32> -> vector<32x184xf32>
    %235 = vector.broadcast %126 : vector<32x1xf32> to vector<32x184xf32>
    %236 = arith.addf %234, %235 : vector<32x184xf32>
    %cst_82 = arith.constant 0.000000e+00 : f32
    %237 = vector.broadcast %cst_82 : f32 to vector<32x184xf32>
    %238 = arith.cmpf ogt, %236, %237 : vector<32x184xf32>
    %cst_83 = arith.constant 0.000000e+00 : f32
    %239 = vector.broadcast %cst_83 : f32 to vector<32x184xf32>
    %240 = arith.minimumf %236, %239 : vector<32x184xf32>
    %241 = math.exp %240 : vector<32x184xf32>
    %cst_84 = arith.constant 1.000000e+00 : f32
    %242 = vector.broadcast %cst_84 : f32 to vector<32x184xf32>
    %243 = arith.subf %241, %242 : vector<32x184xf32>
    %cst_85 = arith.constant 1.000000e+00 : f32
    %244 = vector.broadcast %cst_85 : f32 to vector<32x184xf32>
    %245 = arith.mulf %244, %243 : vector<32x184xf32>
    %246 = arith.select %238, %236, %245 : vector<32x184xi1>, vector<32x184xf32>
    %247 = vector.extract_strided_slice %124 {offsets = [128, 0], sizes = [32, 198], strides = [1, 1]} : vector<256x198xf32> to vector<32x198xf32>
    %248 = vector.extract_strided_slice %247 {offsets = [0, 0], sizes = [32, 184], strides = [1, 1]} : vector<32x198xf32> to vector<32x184xf32>
    %249 = vector.extract_strided_slice %247 {offsets = [0, 1], sizes = [32, 184], strides = [1, 1]} : vector<32x198xf32> to vector<32x184xf32>
    %250 = vector.extract_strided_slice %247 {offsets = [0, 2], sizes = [32, 184], strides = [1, 1]} : vector<32x198xf32> to vector<32x184xf32>
    %251 = vector.extract_strided_slice %247 {offsets = [0, 3], sizes = [32, 184], strides = [1, 1]} : vector<32x198xf32> to vector<32x184xf32>
    %252 = vector.extract_strided_slice %247 {offsets = [0, 4], sizes = [32, 184], strides = [1, 1]} : vector<32x198xf32> to vector<32x184xf32>
    %253 = vector.extract_strided_slice %247 {offsets = [0, 5], sizes = [32, 184], strides = [1, 1]} : vector<32x198xf32> to vector<32x184xf32>
    %254 = vector.extract_strided_slice %247 {offsets = [0, 6], sizes = [32, 184], strides = [1, 1]} : vector<32x198xf32> to vector<32x184xf32>
    %255 = vector.extract_strided_slice %247 {offsets = [0, 7], sizes = [32, 184], strides = [1, 1]} : vector<32x198xf32> to vector<32x184xf32>
    %256 = vector.extract_strided_slice %247 {offsets = [0, 8], sizes = [32, 184], strides = [1, 1]} : vector<32x198xf32> to vector<32x184xf32>
    %257 = vector.extract_strided_slice %247 {offsets = [0, 9], sizes = [32, 184], strides = [1, 1]} : vector<32x198xf32> to vector<32x184xf32>
    %258 = vector.extract_strided_slice %247 {offsets = [0, 10], sizes = [32, 184], strides = [1, 1]} : vector<32x198xf32> to vector<32x184xf32>
    %259 = vector.extract_strided_slice %247 {offsets = [0, 11], sizes = [32, 184], strides = [1, 1]} : vector<32x198xf32> to vector<32x184xf32>
    %260 = vector.extract_strided_slice %247 {offsets = [0, 12], sizes = [32, 184], strides = [1, 1]} : vector<32x198xf32> to vector<32x184xf32>
    %261 = vector.extract_strided_slice %247 {offsets = [0, 13], sizes = [32, 184], strides = [1, 1]} : vector<32x198xf32> to vector<32x184xf32>
    %262 = vector.extract_strided_slice %247 {offsets = [0, 14], sizes = [32, 184], strides = [1, 1]} : vector<32x198xf32> to vector<32x184xf32>
    %263 = tpu.concatenate %248, %249, %250, %251, %252, %253, %254, %255, %256, %257, %258, %259, %260, %261, %262 in 0 : vector<32x184xf32>, vector<32x184xf32>, vector<32x184xf32>, vector<32x184xf32>, vector<32x184xf32>, vector<32x184xf32>, vector<32x184xf32>, vector<32x184xf32>, vector<32x184xf32>, vector<32x184xf32>, vector<32x184xf32>, vector<32x184xf32>, vector<32x184xf32>, vector<32x184xf32>, vector<32x184xf32> -> vector<480x184xf32>
    %cst_86 = arith.constant dense<0.000000e+00> : vector<32x184xf32>
    %264 = tpu.matmul %125, %263, %cst_86 {dimension_numbers = #tpu.dot_dimension_numbers<[1], [0], [0], [1], [0, 0, 1, 1], [], []>} : vector<32x480xf32>, vector<480x184xf32>, vector<32x184xf32> -> vector<32x184xf32>
    %265 = vector.broadcast %126 : vector<32x1xf32> to vector<32x184xf32>
    %266 = arith.addf %264, %265 : vector<32x184xf32>
    %cst_87 = arith.constant 0.000000e+00 : f32
    %267 = vector.broadcast %cst_87 : f32 to vector<32x184xf32>
    %268 = arith.cmpf ogt, %266, %267 : vector<32x184xf32>
    %cst_88 = arith.constant 0.000000e+00 : f32
    %269 = vector.broadcast %cst_88 : f32 to vector<32x184xf32>
    %270 = arith.minimumf %266, %269 : vector<32x184xf32>
    %271 = math.exp %270 : vector<32x184xf32>
    %cst_89 = arith.constant 1.000000e+00 : f32
    %272 = vector.broadcast %cst_89 : f32 to vector<32x184xf32>
    %273 = arith.subf %271, %272 : vector<32x184xf32>
    %cst_90 = arith.constant 1.000000e+00 : f32
    %274 = vector.broadcast %cst_90 : f32 to vector<32x184xf32>
    %275 = arith.mulf %274, %273 : vector<32x184xf32>
    %276 = arith.select %268, %266, %275 : vector<32x184xi1>, vector<32x184xf32>
    %277 = vector.extract_strided_slice %124 {offsets = [160, 0], sizes = [32, 198], strides = [1, 1]} : vector<256x198xf32> to vector<32x198xf32>
    %278 = vector.extract_strided_slice %277 {offsets = [0, 0], sizes = [32, 184], strides = [1, 1]} : vector<32x198xf32> to vector<32x184xf32>
    %279 = vector.extract_strided_slice %277 {offsets = [0, 1], sizes = [32, 184], strides = [1, 1]} : vector<32x198xf32> to vector<32x184xf32>
    %280 = vector.extract_strided_slice %277 {offsets = [0, 2], sizes = [32, 184], strides = [1, 1]} : vector<32x198xf32> to vector<32x184xf32>
    %281 = vector.extract_strided_slice %277 {offsets = [0, 3], sizes = [32, 184], strides = [1, 1]} : vector<32x198xf32> to vector<32x184xf32>
    %282 = vector.extract_strided_slice %277 {offsets = [0, 4], sizes = [32, 184], strides = [1, 1]} : vector<32x198xf32> to vector<32x184xf32>
    %283 = vector.extract_strided_slice %277 {offsets = [0, 5], sizes = [32, 184], strides = [1, 1]} : vector<32x198xf32> to vector<32x184xf32>
    %284 = vector.extract_strided_slice %277 {offsets = [0, 6], sizes = [32, 184], strides = [1, 1]} : vector<32x198xf32> to vector<32x184xf32>
    %285 = vector.extract_strided_slice %277 {offsets = [0, 7], sizes = [32, 184], strides = [1, 1]} : vector<32x198xf32> to vector<32x184xf32>
    %286 = vector.extract_strided_slice %277 {offsets = [0, 8], sizes = [32, 184], strides = [1, 1]} : vector<32x198xf32> to vector<32x184xf32>
    %287 = vector.extract_strided_slice %277 {offsets = [0, 9], sizes = [32, 184], strides = [1, 1]} : vector<32x198xf32> to vector<32x184xf32>
    %288 = vector.extract_strided_slice %277 {offsets = [0, 10], sizes = [32, 184], strides = [1, 1]} : vector<32x198xf32> to vector<32x184xf32>
    %289 = vector.extract_strided_slice %277 {offsets = [0, 11], sizes = [32, 184], strides = [1, 1]} : vector<32x198xf32> to vector<32x184xf32>
    %290 = vector.extract_strided_slice %277 {offsets = [0, 12], sizes = [32, 184], strides = [1, 1]} : vector<32x198xf32> to vector<32x184xf32>
    %291 = vector.extract_strided_slice %277 {offsets = [0, 13], sizes = [32, 184], strides = [1, 1]} : vector<32x198xf32> to vector<32x184xf32>
    %292 = vector.extract_strided_slice %277 {offsets = [0, 14], sizes = [32, 184], strides = [1, 1]} : vector<32x198xf32> to vector<32x184xf32>
    %293 = tpu.concatenate %278, %279, %280, %281, %282, %283, %284, %285, %286, %287, %288, %289, %290, %291, %292 in 0 : vector<32x184xf32>, vector<32x184xf32>, vector<32x184xf32>, vector<32x184xf32>, vector<32x184xf32>, vector<32x184xf32>, vector<32x184xf32>, vector<32x184xf32>, vector<32x184xf32>, vector<32x184xf32>, vector<32x184xf32>, vector<32x184xf32>, vector<32x184xf32>, vector<32x184xf32>, vector<32x184xf32> -> vector<480x184xf32>
    %cst_91 = arith.constant dense<0.000000e+00> : vector<32x184xf32>
    %294 = tpu.matmul %125, %293, %cst_91 {dimension_numbers = #tpu.dot_dimension_numbers<[1], [0], [0], [1], [0, 0, 1, 1], [], []>} : vector<32x480xf32>, vector<480x184xf32>, vector<32x184xf32> -> vector<32x184xf32>
    %295 = vector.broadcast %126 : vector<32x1xf32> to vector<32x184xf32>
    %296 = arith.addf %294, %295 : vector<32x184xf32>
    %cst_92 = arith.constant 0.000000e+00 : f32
    %297 = vector.broadcast %cst_92 : f32 to vector<32x184xf32>
    %298 = arith.cmpf ogt, %296, %297 : vector<32x184xf32>
    %cst_93 = arith.constant 0.000000e+00 : f32
    %299 = vector.broadcast %cst_93 : f32 to vector<32x184xf32>
    %300 = arith.minimumf %296, %299 : vector<32x184xf32>
    %301 = math.exp %300 : vector<32x184xf32>
    %cst_94 = arith.constant 1.000000e+00 : f32
    %302 = vector.broadcast %cst_94 : f32 to vector<32x184xf32>
    %303 = arith.subf %301, %302 : vector<32x184xf32>
    %cst_95 = arith.constant 1.000000e+00 : f32
    %304 = vector.broadcast %cst_95 : f32 to vector<32x184xf32>
    %305 = arith.mulf %304, %303 : vector<32x184xf32>
    %306 = arith.select %298, %296, %305 : vector<32x184xi1>, vector<32x184xf32>
    %307 = vector.extract_strided_slice %124 {offsets = [192, 0], sizes = [32, 198], strides = [1, 1]} : vector<256x198xf32> to vector<32x198xf32>
    %308 = vector.extract_strided_slice %307 {offsets = [0, 0], sizes = [32, 184], strides = [1, 1]} : vector<32x198xf32> to vector<32x184xf32>
    %309 = vector.extract_strided_slice %307 {offsets = [0, 1], sizes = [32, 184], strides = [1, 1]} : vector<32x198xf32> to vector<32x184xf32>
    %310 = vector.extract_strided_slice %307 {offsets = [0, 2], sizes = [32, 184], strides = [1, 1]} : vector<32x198xf32> to vector<32x184xf32>
    %311 = vector.extract_strided_slice %307 {offsets = [0, 3], sizes = [32, 184], strides = [1, 1]} : vector<32x198xf32> to vector<32x184xf32>
    %312 = vector.extract_strided_slice %307 {offsets = [0, 4], sizes = [32, 184], strides = [1, 1]} : vector<32x198xf32> to vector<32x184xf32>
    %313 = vector.extract_strided_slice %307 {offsets = [0, 5], sizes = [32, 184], strides = [1, 1]} : vector<32x198xf32> to vector<32x184xf32>
    %314 = vector.extract_strided_slice %307 {offsets = [0, 6], sizes = [32, 184], strides = [1, 1]} : vector<32x198xf32> to vector<32x184xf32>
    %315 = vector.extract_strided_slice %307 {offsets = [0, 7], sizes = [32, 184], strides = [1, 1]} : vector<32x198xf32> to vector<32x184xf32>
    %316 = vector.extract_strided_slice %307 {offsets = [0, 8], sizes = [32, 184], strides = [1, 1]} : vector<32x198xf32> to vector<32x184xf32>
    %317 = vector.extract_strided_slice %307 {offsets = [0, 9], sizes = [32, 184], strides = [1, 1]} : vector<32x198xf32> to vector<32x184xf32>
    %318 = vector.extract_strided_slice %307 {offsets = [0, 10], sizes = [32, 184], strides = [1, 1]} : vector<32x198xf32> to vector<32x184xf32>
    %319 = vector.extract_strided_slice %307 {offsets = [0, 11], sizes = [32, 184], strides = [1, 1]} : vector<32x198xf32> to vector<32x184xf32>
    %320 = vector.extract_strided_slice %307 {offsets = [0, 12], sizes = [32, 184], strides = [1, 1]} : vector<32x198xf32> to vector<32x184xf32>
    %321 = vector.extract_strided_slice %307 {offsets = [0, 13], sizes = [32, 184], strides = [1, 1]} : vector<32x198xf32> to vector<32x184xf32>
    %322 = vector.extract_strided_slice %307 {offsets = [0, 14], sizes = [32, 184], strides = [1, 1]} : vector<32x198xf32> to vector<32x184xf32>
    %323 = tpu.concatenate %308, %309, %310, %311, %312, %313, %314, %315, %316, %317, %318, %319, %320, %321, %322 in 0 : vector<32x184xf32>, vector<32x184xf32>, vector<32x184xf32>, vector<32x184xf32>, vector<32x184xf32>, vector<32x184xf32>, vector<32x184xf32>, vector<32x184xf32>, vector<32x184xf32>, vector<32x184xf32>, vector<32x184xf32>, vector<32x184xf32>, vector<32x184xf32>, vector<32x184xf32>, vector<32x184xf32> -> vector<480x184xf32>
    %cst_96 = arith.constant dense<0.000000e+00> : vector<32x184xf32>
    %324 = tpu.matmul %125, %323, %cst_96 {dimension_numbers = #tpu.dot_dimension_numbers<[1], [0], [0], [1], [0, 0, 1, 1], [], []>} : vector<32x480xf32>, vector<480x184xf32>, vector<32x184xf32> -> vector<32x184xf32>
    %325 = vector.broadcast %126 : vector<32x1xf32> to vector<32x184xf32>
    %326 = arith.addf %324, %325 : vector<32x184xf32>
    %cst_97 = arith.constant 0.000000e+00 : f32
    %327 = vector.broadcast %cst_97 : f32 to vector<32x184xf32>
    %328 = arith.cmpf ogt, %326, %327 : vector<32x184xf32>
    %cst_98 = arith.constant 0.000000e+00 : f32
    %329 = vector.broadcast %cst_98 : f32 to vector<32x184xf32>
    %330 = arith.minimumf %326, %329 : vector<32x184xf32>
    %331 = math.exp %330 : vector<32x184xf32>
    %cst_99 = arith.constant 1.000000e+00 : f32
    %332 = vector.broadcast %cst_99 : f32 to vector<32x184xf32>
    %333 = arith.subf %331, %332 : vector<32x184xf32>
    %cst_100 = arith.constant 1.000000e+00 : f32
    %334 = vector.broadcast %cst_100 : f32 to vector<32x184xf32>
    %335 = arith.mulf %334, %333 : vector<32x184xf32>
    %336 = arith.select %328, %326, %335 : vector<32x184xi1>, vector<32x184xf32>
    %337 = vector.extract_strided_slice %124 {offsets = [224, 0], sizes = [32, 198], strides = [1, 1]} : vector<256x198xf32> to vector<32x198xf32>
    %338 = vector.extract_strided_slice %337 {offsets = [0, 0], sizes = [32, 184], strides = [1, 1]} : vector<32x198xf32> to vector<32x184xf32>
    %339 = vector.extract_strided_slice %337 {offsets = [0, 1], sizes = [32, 184], strides = [1, 1]} : vector<32x198xf32> to vector<32x184xf32>
    %340 = vector.extract_strided_slice %337 {offsets = [0, 2], sizes = [32, 184], strides = [1, 1]} : vector<32x198xf32> to vector<32x184xf32>
    %341 = vector.extract_strided_slice %337 {offsets = [0, 3], sizes = [32, 184], strides = [1, 1]} : vector<32x198xf32> to vector<32x184xf32>
    %342 = vector.extract_strided_slice %337 {offsets = [0, 4], sizes = [32, 184], strides = [1, 1]} : vector<32x198xf32> to vector<32x184xf32>
    %343 = vector.extract_strided_slice %337 {offsets = [0, 5], sizes = [32, 184], strides = [1, 1]} : vector<32x198xf32> to vector<32x184xf32>
    %344 = vector.extract_strided_slice %337 {offsets = [0, 6], sizes = [32, 184], strides = [1, 1]} : vector<32x198xf32> to vector<32x184xf32>
    %345 = vector.extract_strided_slice %337 {offsets = [0, 7], sizes = [32, 184], strides = [1, 1]} : vector<32x198xf32> to vector<32x184xf32>
    %346 = vector.extract_strided_slice %337 {offsets = [0, 8], sizes = [32, 184], strides = [1, 1]} : vector<32x198xf32> to vector<32x184xf32>
    %347 = vector.extract_strided_slice %337 {offsets = [0, 9], sizes = [32, 184], strides = [1, 1]} : vector<32x198xf32> to vector<32x184xf32>
    %348 = vector.extract_strided_slice %337 {offsets = [0, 10], sizes = [32, 184], strides = [1, 1]} : vector<32x198xf32> to vector<32x184xf32>
    %349 = vector.extract_strided_slice %337 {offsets = [0, 11], sizes = [32, 184], strides = [1, 1]} : vector<32x198xf32> to vector<32x184xf32>
    %350 = vector.extract_strided_slice %337 {offsets = [0, 12], sizes = [32, 184], strides = [1, 1]} : vector<32x198xf32> to vector<32x184xf32>
    %351 = vector.extract_strided_slice %337 {offsets = [0, 13], sizes = [32, 184], strides = [1, 1]} : vector<32x198xf32> to vector<32x184xf32>
    %352 = vector.extract_strided_slice %337 {offsets = [0, 14], sizes = [32, 184], strides = [1, 1]} : vector<32x198xf32> to vector<32x184xf32>
    %353 = tpu.concatenate %338, %339, %340, %341, %342, %343, %344, %345, %346, %347, %348, %349, %350, %351, %352 in 0 : vector<32x184xf32>, vector<32x184xf32>, vector<32x184xf32>, vector<32x184xf32>, vector<32x184xf32>, vector<32x184xf32>, vector<32x184xf32>, vector<32x184xf32>, vector<32x184xf32>, vector<32x184xf32>, vector<32x184xf32>, vector<32x184xf32>, vector<32x184xf32>, vector<32x184xf32>, vector<32x184xf32> -> vector<480x184xf32>
    %cst_101 = arith.constant dense<0.000000e+00> : vector<32x184xf32>
    %354 = tpu.matmul %125, %353, %cst_101 {dimension_numbers = #tpu.dot_dimension_numbers<[1], [0], [0], [1], [0, 0, 1, 1], [], []>} : vector<32x480xf32>, vector<480x184xf32>, vector<32x184xf32> -> vector<32x184xf32>
    %355 = vector.broadcast %126 : vector<32x1xf32> to vector<32x184xf32>
    %356 = arith.addf %354, %355 : vector<32x184xf32>
    %cst_102 = arith.constant 0.000000e+00 : f32
    %357 = vector.broadcast %cst_102 : f32 to vector<32x184xf32>
    %358 = arith.cmpf ogt, %356, %357 : vector<32x184xf32>
    %cst_103 = arith.constant 0.000000e+00 : f32
    %359 = vector.broadcast %cst_103 : f32 to vector<32x184xf32>
    %360 = arith.minimumf %356, %359 : vector<32x184xf32>
    %361 = math.exp %360 : vector<32x184xf32>
    %cst_104 = arith.constant 1.000000e+00 : f32
    %362 = vector.broadcast %cst_104 : f32 to vector<32x184xf32>
    %363 = arith.subf %361, %362 : vector<32x184xf32>
    %cst_105 = arith.constant 1.000000e+00 : f32
    %364 = vector.broadcast %cst_105 : f32 to vector<32x184xf32>
    %365 = arith.mulf %364, %363 : vector<32x184xf32>
    %366 = arith.select %358, %356, %365 : vector<32x184xi1>, vector<32x184xf32>
    %367 = tpu.concatenate %156, %186, %216, %246, %276, %306, %336, %366 in 0 : vector<32x184xf32>, vector<32x184xf32>, vector<32x184xf32>, vector<32x184xf32>, vector<32x184xf32>, vector<32x184xf32>, vector<32x184xf32>, vector<32x184xf32> -> vector<256x184xf32>
    %c0_106 = arith.constant 0 : index
    %c0_107 = arith.constant 0 : index
    %368 = vector.load %arg7[%c0_106, %c0_107] : memref<256x184xf32, #tpu.memory_space<vmem>>, vector<256x184xf32>
    %369 = arith.mulf %367, %368 : vector<256x184xf32>
    %cst_108 = arith.constant dense<0.000000e+00> : vector<256xf32>
    %370 = vector.multi_reduction <add>, %369, %cst_108 [1] : vector<256x184xf32> to vector<256xf32>
    %371 = vector.shape_cast %370 : vector<256xf32> to vector<256x1xf32>
    %c0_109 = arith.constant 0 : index
    %c0_110 = arith.constant 0 : index
    %372 = vector.load %arg8[%c0_109, %c0_110] : memref<256x184xf32, #tpu.memory_space<vmem>>, vector<256x184xf32>
    %373 = arith.mulf %367, %372 : vector<256x184xf32>
    %cst_111 = arith.constant dense<0.000000e+00> : vector<256xf32>
    %374 = vector.multi_reduction <add>, %373, %cst_111 [1] : vector<256x184xf32> to vector<256xf32>
    %375 = vector.shape_cast %374 : vector<256xf32> to vector<256x1xf32>
    %376 = tpu.concatenate %371, %375 in 1 : vector<256x1xf32>, vector<256x1xf32> -> vector<256x2xf32>
    %c0_112 = arith.constant 0 : index
    %c0_113 = arith.constant 0 : index
    %377 = vector.load %arg9[%c0_112, %c0_113] : memref<8x256xf32, #tpu.memory_space<vmem>>, vector<8x256xf32>
    %cst_114 = arith.constant dense<0.000000e+00> : vector<8x2xf32>
    %378 = tpu.matmul %377, %376, %cst_114 {dimension_numbers = #tpu.dot_dimension_numbers<[1], [0], [0], [1], [0, 0, 1, 1], [], []>} : vector<8x256xf32>, vector<256x2xf32>, vector<8x2xf32> -> vector<8x2xf32>
    %c0_115 = arith.constant 0 : index
    %c0_116 = arith.constant 0 : index
    %379 = vector.load %arg10[%c0_115, %c0_116] : memref<1x2xf32, #tpu.memory_space<vmem>>, vector<1x2xf32>
    %380 = vector.broadcast %379 : vector<1x2xf32> to vector<8x2xf32>
    %381 = arith.addf %378, %380 : vector<8x2xf32>
    %c0_117 = arith.constant 0 : index
    %c0_118 = arith.constant 0 : index
    %382 = vector.load %arg11[%c0_117, %c0_118] : memref<8x2xf32, #tpu.memory_space<vmem>>, vector<8x2xf32>
    tpu.vector_store %arg11[%c0_117, %c0_118], %381 {strides = array<i32>} : memref<8x2xf32, #tpu.memory_space<vmem>>, vector<8x2xf32>,
    return
  }
  func.func @transform_0(%arg0: i32) -> (i32, i32, i32) {
    %c0_i32 = arith.constant 0 : i32
    %c0_i32_0 = arith.constant 0 : i32
    %c0_i32_1 = arith.constant 0 : i32
    return %arg0, %c0_i32, %c0_i32_0 : i32, i32, i32
  }
  func.func @transform_1(%arg0: i32) -> (i32, i32) {
    %c0_i32 = arith.constant 0 : i32
    %c0_i32_0 = arith.constant 0 : i32
    %c0_i32_1 = arith.constant 0 : i32
    return %c0_i32, %c0_i32_0 : i32, i32
  }
  func.func @transform_2(%arg0: i32) -> (i32, i32) {
    %c0_i32 = arith.constant 0 : i32
    %c0_i32_0 = arith.constant 0 : i32
    %c0_i32_1 = arith.constant 0 : i32
    return %c0_i32, %c0_i32_0 : i32, i32
  }
  func.func @transform_3(%arg0: i32) -> (i32, i32) {
    %c0_i32 = arith.constant 0 : i32
    %c0_i32_0 = arith.constant 0 : i32
    %c0_i32_1 = arith.constant 0 : i32
    return %c0_i32, %c0_i32_0 : i32, i32
  }
  func.func @transform_4(%arg0: i32) -> (i32, i32) {
    %c0_i32 = arith.constant 0 : i32
    %c0_i32_0 = arith.constant 0 : i32
    %c0_i32_1 = arith.constant 0 : i32
    return %c0_i32, %c0_i32_0 : i32, i32
  }
  func.func @transform_5(%arg0: i32) -> (i32, i32) {
    %c0_i32 = arith.constant 0 : i32
    %c0_i32_0 = arith.constant 0 : i32
    %c0_i32_1 = arith.constant 0 : i32
    return %c0_i32, %c0_i32_0 : i32, i32
  }
  func.func @transform_6(%arg0: i32) -> (i32, i32) {
    %c0_i32 = arith.constant 0 : i32
    %c0_i32_0 = arith.constant 0 : i32
    %c0_i32_1 = arith.constant 0 : i32
    return %c0_i32, %c0_i32_0 : i32, i32
  }
  func.func @transform_7(%arg0: i32) -> (i32, i32) {
    %c0_i32 = arith.constant 0 : i32
    %c0_i32_0 = arith.constant 0 : i32
    %c0_i32_1 = arith.constant 0 : i32
    return %c0_i32, %c0_i32_0 : i32, i32
  }
  func.func @transform_8(%arg0: i32) -> (i32, i32) {
    %c0_i32 = arith.constant 0 : i32
    %c0_i32_0 = arith.constant 0 : i32
    %c0_i32_1 = arith.constant 0 : i32
    return %c0_i32, %c0_i32_0 : i32, i32
  }
  func.func @transform_9(%arg0: i32) -> (i32, i32) {
    %c0_i32 = arith.constant 0 : i32
    %c0_i32_0 = arith.constant 0 : i32
    %c0_i32_1 = arith.constant 0 : i32
    return %c0_i32, %c0_i32_0 : i32, i32
  }
  func.func @transform_10(%arg0: i32) -> (i32, i32) {
    %c0_i32 = arith.constant 0 : i32
    %c0_i32_0 = arith.constant 0 : i32
    return %arg0, %c0_i32 : i32, i32
  }
}

</mosaic_0001>

<llo_original>
// kernel: tpu_custom_call.1
$region0: #{tpu_custom_call.1}
  #allocation0 [shape = 'u32[]', space=smem, size = 0x4, offset = 0x4, fixed_abs, tag = 'smem constant byte address 0x4 - core index']
  #allocation1 [shape = 'u32[144,128]{1,0:T(1,128)}', space=vmem, size = 0x12000, scoped, tag = 'internal scratch']
  %s0 = inlined_call_operand.vmem [shape: bf16[8,102,736], index: 0, kind: input, shape index: {}]
  %s1 = inlined_call_operand.vmem [shape: bf16[32,102], index: 1, kind: input, shape index: {}]
  %s2 = inlined_call_operand.vmem [shape: f32[32,1], index: 2, kind: input, shape index: {}]
  %s3 = inlined_call_operand.vmem [shape: f32[736,198], index: 3, kind: input, shape index: {}]
  %s4 = inlined_call_operand.vmem [shape: f32[32,480], index: 4, kind: input, shape index: {}]
  %s5 = inlined_call_operand.vmem [shape: f32[32,1], index: 5, kind: input, shape index: {}]
  %s6 = inlined_call_operand.vmem [shape: f32[256,184], index: 6, kind: input, shape index: {}]
  %s7 = inlined_call_operand.vmem [shape: f32[256,184], index: 7, kind: input, shape index: {}]
  %s8 = inlined_call_operand.vmem [shape: f32[8,256], index: 8, kind: input, shape index: {}]
  %s9 = inlined_call_operand.vmem [shape: f32[1,2], index: 9, kind: input, shape index: {}]
  %s10 = inlined_call_operand.vmem [shape: f32[8,2], index: 10, kind: output, shape index: {}]
  %s11 = sld [smem:[#allocation0]]
  $region50: #{tpu_custom_call.1} parent=0
    _
  %s13 = ssub.s32 1, %s11
  %s14 = scalar_select 0, %s13, %s11
  // Predicated region
  $region2: #{tpu_custom_call.1} parent=0 // pred_check
    _
  $region3: #{tpu_custom_call.1} parent=0 // pred_check_branch
    %16 = sbr.rel (0) target = $region5
  $region4: #{tpu_custom_call.1} parent=0 // pred_region
    _
  $region5: #{tpu_custom_call.1} parent=0 // pred_fallthru
    _
  // Predicated region
  $region6: #{tpu_custom_call.1} parent=0 // pred_check
    _
  $region7: #{tpu_custom_call.1} parent=0 // pred_check_branch
    %18 = sbr.rel (0) target = $region9
  $region8: #{tpu_custom_call.1} parent=0 // pred_region
    _
  $region9: #{tpu_custom_call.1} parent=0 // pred_fallthru
    _
  // Predicated region
  $region10: #{tpu_custom_call.1} parent=0 // pred_check
    _
  $region11: #{tpu_custom_call.1} parent=0 // pred_check_branch
    %20 = sbr.rel (0) target = $region13
  $region12: #{tpu_custom_call.1} parent=0 // pred_region
    _
  $region13: #{tpu_custom_call.1} parent=0 // pred_fallthru
    _
  // Predicated region
  $region14: #{tpu_custom_call.1} parent=0 // pred_check
    _
  $region15: #{tpu_custom_call.1} parent=0 // pred_check_branch
    %22 = sbr.rel (0) target = $region17
  $region16: #{tpu_custom_call.1} parent=0 // pred_region
    _
  $region17: #{tpu_custom_call.1} parent=0 // pred_fallthru
    _
  // Predicated region
  $region18: #{tpu_custom_call.1} parent=0 // pred_check
    _
  $region19: #{tpu_custom_call.1} parent=0 // pred_check_branch
    %24 = sbr.rel (0) target = $region21
  $region20: #{tpu_custom_call.1} parent=0 // pred_region
    _
  $region21: #{tpu_custom_call.1} parent=0 // pred_fallthru
    _
  // Predicated region
  $region22: #{tpu_custom_call.1} parent=0 // pred_check
    _
  $region23: #{tpu_custom_call.1} parent=0 // pred_check_branch
    %26 = sbr.rel (0) target = $region25
  $region24: #{tpu_custom_call.1} parent=0 // pred_region
    _
  $region25: #{tpu_custom_call.1} parent=0 // pred_fallthru
    _
  // Predicated region
  $region26: #{tpu_custom_call.1} parent=0 // pred_check
    _
  $region27: #{tpu_custom_call.1} parent=0 // pred_check_branch
    %28 = sbr.rel (0) target = $region29
  $region28: #{tpu_custom_call.1} parent=0 // pred_region
    _
  $region29: #{tpu_custom_call.1} parent=0 // pred_fallthru
    _
  // Predicated region
  $region30: #{tpu_custom_call.1} parent=0 // pred_check
    _
  $region31: #{tpu_custom_call.1} parent=0 // pred_check_branch
    %30 = sbr.rel (0) target = $region33
  $region32: #{tpu_custom_call.1} parent=0 // pred_region
    _
  $region33: #{tpu_custom_call.1} parent=0 // pred_fallthru
    _
  // Predicated region
  $region34: #{tpu_custom_call.1} parent=0 // pred_check
    _
  $region35: #{tpu_custom_call.1} parent=0 // pred_check_branch
    %32 = sbr.rel (0) target = $region37
  $region36: #{tpu_custom_call.1} parent=0 // pred_region
    _
  $region37: #{tpu_custom_call.1} parent=0 // pred_fallthru
    _
  // Predicated region
  $region38: #{tpu_custom_call.1} parent=0 // pred_check
    _
  $region39: #{tpu_custom_call.1} parent=0 // pred_check_branch
    %34 = sbr.rel (0) target = $region41
  $region40: #{tpu_custom_call.1} parent=0 // pred_region
    _
  $region41: #{tpu_custom_call.1} parent=0 // pred_fallthru
    _
  %v36 = vld [vmem:[%s1] sm:$0xf]
  %v37 = vld [vmem:[%s1 + $0x4] sm:$0xf]
  %v38 = vld [vmem:[%s1 + $0x8] sm:$0xf]
  %v39 = vld [vmem:[%s1 + $0xc] sm:$0xf]
  %v40 = vld [vmem:[%s2] sm:$0xff]
  %v41 = vld [vmem:[%s2 + $0x8] sm:$0xff]
  %v42 = vld [vmem:[%s2 + $0x10] sm:$0xff]
  %v43 = vld [vmem:[%s2 + $0x18] sm:$0xff]
  %v44 = vld [vmem:[%s0] sm:$0xff]
  %v45 = vld [vmem:[%s0 + $0x8] sm:$0xff]
  %v46 = vld [vmem:[%s0 + $0x10] sm:$0xff]
  %v47 = vld [vmem:[%s0 + $0x18] sm:$0xff]
  %v48 = vld [vmem:[%s0 + $0x20] sm:$0xff]
  %v49 = vld [vmem:[%s0 + $0x28] sm:$0xff]
  %v50 = vld [vmem:[%s0 + $0x30] sm:$0xff]
  %v51 = vld [vmem:[%s0 + $0x38] sm:$0xff]
  %v52 = vld [vmem:[%s0 + $0x40] sm:$0xff]
  %v53 = vld [vmem:[%s0 + $0x48] sm:$0xff]
  %v54 = vld [vmem:[%s0 + $0x50] sm:$0xff]
  %v55 = vld [vmem:[%s0 + $0x58] sm:$0xff]
  %v56 = vld [vmem:[%s0 + $0x60] sm:$0xff]
  %v57 = vld [vmem:[%s0 + $0x68] sm:$0xff]
  %v58 = vld [vmem:[%s0 + $0x70] sm:$0xff]
  %v59 = vld [vmem:[%s0 + $0x78] sm:$0xff]
  %v60 = vld [vmem:[%s0 + $0x80] sm:$0xff]
  %v61 = vld [vmem:[%s0 + $0x88] sm:$0xff]
  %v62 = vld [vmem:[%s0 + $0x90] sm:$0xff]
  %v63 = vld [vmem:[%s0 + $0x98] sm:$0xff]
  %v64 = vld [vmem:[%s0 + $0xa0] sm:$0xff]
  %v65 = vld [vmem:[%s0 + $0xa8] sm:$0xff]
  %v66 = vld [vmem:[%s0 + $0xb0] sm:$0xff]
  %v67 = vld [vmem:[%s0 + $0xb8] sm:$0xff]
  %v68 = vld [vmem:[%s0 + $0xc0] sm:$0xff]
  %v69 = vld [vmem:[%s0 + $0xc8] sm:$0xff]
  %v70 = vld [vmem:[%s0 + $0xd0] sm:$0xff]
  %v71 = vld [vmem:[%s0 + $0xd8] sm:$0xff]
  %v72 = vld [vmem:[%s0 + $0xe0] sm:$0xff]
  %v73 = vld [vmem:[%s0 + $0xe8] sm:$0xff]
  %v74 = vld [vmem:[%s0 + $0xf0] sm:$0xff]
  %v75 = vld [vmem:[%s0 + $0xf8] sm:$0xff]
  %v76 = vld [vmem:[%s0 + $0x100] sm:$0xff]
  %v77 = vld [vmem:[%s0 + $0x108] sm:$0xff]
  %v78 = vld [vmem:[%s0 + $0x110] sm:$0xff]
  %v79 = vld [vmem:[%s0 + $0x118] sm:$0xff]
  %v80 = vld [vmem:[%s0 + $0x120] sm:$0x77]
  %v81 = vld [vmem:[%s0 + $0x128] sm:$0x77]
  %v82 = vld [vmem:[%s0 + $0x130] sm:$0x77]
  %84 = vset.pattern.permute.xlu0 0
  %85 = vperm.xlu0 %84, %v40
  %v86 = vpop.permute.xlu0 %85
  %89 = vset.pattern.permute.xlu0 0
  %90 = vperm.xlu0 %89, %v41
  %v91 = vpop.permute.xlu0 %90
  %94 = vset.pattern.permute.xlu0 0
  %95 = vperm.xlu0 %94, %v42
  %v96 = vpop.permute.xlu0 %95
  %99 = vset.pattern.permute.xlu0 0
  %100 = vperm.xlu0 %99, %v43
  %v101 = vpop.permute.xlu0 %100
  %v107 = vunpack.c.l.b16 %v36
  %v108 = vunpack.c.l.b16 %v37
  %v109 = vunpack.c.l.b16 %v38
  %v110 = vunpack.c.l.b16 %v39
  %v111 = vpack.c.b16 %v108, %v107
  %v112 = vpack.c.b16 %v110, %v109
  %v152 = vunpack.c.l.b16 %v44
  %v153 = vunpack.c.h.b16 %v44
  %v154 = vunpack.c.l.b16 %v45
  %v155 = vunpack.c.h.b16 %v45
  %v156 = vunpack.c.l.b16 %v46
  %v157 = vunpack.c.h.b16 %v46
  %v158 = vunpack.c.l.b16 %v47
  %v159 = vunpack.c.h.b16 %v47
  %v160 = vunpack.c.l.b16 %v48
  %v161 = vunpack.c.h.b16 %v48
  %v162 = vunpack.c.l.b16 %v49
  %v163 = vunpack.c.h.b16 %v49
  %v164 = vunpack.c.l.b16 %v50
  %v165 = vunpack.c.h.b16 %v50
  %v166 = vunpack.c.l.b16 %v51
  %v167 = vunpack.c.h.b16 %v51
  %v168 = vunpack.c.l.b16 %v52
  %v169 = vunpack.c.h.b16 %v52
  %v170 = vunpack.c.l.b16 %v53
  %v171 = vunpack.c.h.b16 %v53
  %v172 = vunpack.c.l.b16 %v54
  %v173 = vunpack.c.h.b16 %v54
  %v174 = vunpack.c.l.b16 %v55
  %v175 = vunpack.c.h.b16 %v55
  %v176 = vunpack.c.l.b16 %v56
  %v177 = vunpack.c.h.b16 %v56
  %v178 = vunpack.c.l.b16 %v57
  %v179 = vunpack.c.h.b16 %v57
  %v180 = vunpack.c.l.b16 %v58
  %v181 = vunpack.c.h.b16 %v58
  %v182 = vunpack.c.l.b16 %v59
  %v183 = vunpack.c.h.b16 %v59
  %v184 = vunpack.c.l.b16 %v60
  %v185 = vunpack.c.h.b16 %v60
  %v186 = vunpack.c.l.b16 %v61
  %v187 = vunpack.c.h.b16 %v61
  %v188 = vunpack.c.l.b16 %v62
  %v189 = vunpack.c.h.b16 %v62
  %v190 = vunpack.c.l.b16 %v63
  %v191 = vunpack.c.h.b16 %v63
  %v192 = vunpack.c.l.b16 %v64
  %v193 = vunpack.c.h.b16 %v64
  %v194 = vunpack.c.l.b16 %v65
  %v195 = vunpack.c.h.b16 %v65
  %v196 = vunpack.c.l.b16 %v66
  %v197 = vunpack.c.h.b16 %v66
  %v198 = vunpack.c.l.b16 %v67
  %v199 = vunpack.c.h.b16 %v67
  %v200 = vunpack.c.l.b16 %v68
  %v201 = vunpack.c.h.b16 %v68
  %v202 = vunpack.c.l.b16 %v69
  %v203 = vunpack.c.h.b16 %v69
  %v204 = vunpack.c.l.b16 %v70
  %v205 = vunpack.c.h.b16 %v70
  %v206 = vunpack.c.l.b16 %v71
  %v207 = vunpack.c.h.b16 %v71
  %v208 = vunpack.c.l.b16 %v72
  %v209 = vunpack.c.h.b16 %v72
  %v210 = vunpack.c.l.b16 %v73
  %v211 = vunpack.c.h.b16 %v73
  %v212 = vunpack.c.l.b16 %v74
  %v213 = vunpack.c.h.b16 %v74
  %v214 = vunpack.c.l.b16 %v75
  %v215 = vunpack.c.h.b16 %v75
  %v216 = vunpack.c.l.b16 %v76
  %v217 = vunpack.c.h.b16 %v76
  %v218 = vunpack.c.l.b16 %v77
  %v219 = vunpack.c.h.b16 %v77
  %v220 = vunpack.c.l.b16 %v78
  %v221 = vunpack.c.h.b16 %v78
  %v222 = vunpack.c.l.b16 %v79
  %v223 = vunpack.c.h.b16 %v79
  %v224 = vunpack.c.l.b16 %v80
  %v225 = vunpack.c.h.b16 %v80
  %v226 = vunpack.c.l.b16 %v81
  %v227 = vunpack.c.h.b16 %v81
  %v228 = vunpack.c.l.b16 %v82
  %v229 = vunpack.c.h.b16 %v82
  %v230 = vpack.c.b16 %v158, %v152
  %v231 = vpack.c.b16 %v159, %v153
  %v232 = vpack.c.b16 %v160, %v154
  %v233 = vpack.c.b16 %v161, %v155
  %v234 = vpack.c.b16 %v162, %v156
  %v235 = vpack.c.b16 %v163, %v157
  %v236 = vpack.c.b16 %v170, %v164
  %v237 = vpack.c.b16 %v171, %v165
  %v238 = vpack.c.b16 %v172, %v166
  %v239 = vpack.c.b16 %v173, %v167
  %v240 = vpack.c.b16 %v174, %v168
  %v241 = vpack.c.b16 %v175, %v169
  %v242 = vpack.c.b16 %v182, %v176
  %v243 = vpack.c.b16 %v183, %v177
  %v244 = vpack.c.b16 %v184, %v178
  %v245 = vpack.c.b16 %v185, %v179
  %v246 = vpack.c.b16 %v186, %v180
  %v247 = vpack.c.b16 %v187, %v181
  %v248 = vpack.c.b16 %v194, %v188
  %v249 = vpack.c.b16 %v195, %v189
  %v250 = vpack.c.b16 %v196, %v190
  %v251 = vpack.c.b16 %v197, %v191
  %v252 = vpack.c.b16 %v198, %v192
  %v253 = vpack.c.b16 %v199, %v193
  %v254 = vpack.c.b16 %v206, %v200
  %v255 = vpack.c.b16 %v207, %v201
  %v256 = vpack.c.b16 %v208, %v202
  %v257 = vpack.c.b16 %v209, %v203
  %v258 = vpack.c.b16 %v210, %v204
  %v259 = vpack.c.b16 %v211, %v205
  %v260 = vpack.c.b16 %v218, %v212
  %v261 = vpack.c.b16 %v219, %v213
  %v262 = vpack.c.b16 %v220, %v214
  %v263 = vpack.c.b16 %v221, %v215
  %v264 = vpack.c.b16 %v222, %v216
  %v265 = vpack.c.b16 %v223, %v217
  %v266 = vpack.c.b16 %v224, %v224
  %v267 = vpack.c.b16 %v225, %v225
  %v268 = vpack.c.b16 %v226, %v226
  %v269 = vpack.c.b16 %v227, %v227
  %v270 = vpack.c.b16 %v228, %v228
  %v271 = vpack.c.b16 %v229, %v229
  %vm308 = vcmask 834560
  %v310 = vsel %vm308, %v111, 0
  %v313 = vsel %vm308, %v112, 0
  %vm315 = vcmask 1042432
  %v317 = vsel %vm315, %v266, 0
  %v320 = vsel %vm315, %v267, 0
  %v323 = vsel %vm315, %v268, 0
  %v326 = vsel %vm315, %v269, 0
  %v329 = vsel %vm315, %v270, 0
  %v332 = vsel %vm315, %v271, 0
  %334 = vmatprep.subr.bf16.mxu0 %v231
  %335 = vmatpush1.bf16.msra.mxu0 %v230
  %336 = vmatprep.subr.bf16.mxu0 %v237
  %337 = vmatpush1.bf16.msra.mxu0 %v236
  %338 = vmatprep.subr.bf16.mxu0 %v243
  %339 = vmatpush1.bf16.msra.mxu0 %v242
  %340 = vmatprep.subr.bf16.mxu0 %v249
  %341 = vmatpush1.bf16.msra.mxu0 %v248
  %342 = vmatprep.subr.bf16.mxu0 %v255
  %343 = vmatpush1.bf16.msra.mxu0 %v254
  %344 = vmatprep.subr.bf16.mxu0 %v261
  %345 = vmatpush1.bf16.msra.mxu0 %v260
  %346 = vmatprep.subr.bf16.mxu0 %v320
  %347 = vmatpush1.bf16.msra.mxu0 %v317
  %348 = vmatprep.subr.bf16.mxu0 0
  %349 = vmatpush1.bf16.msra.mxu0 0
  %350 = vmatprep.subr.bf16.mxu0 0
  %351 = vmatpush1.bf16.msra.mxu0 0
  %352 = vmatprep.subr.bf16.mxu0 0
  %353 = vmatpush1.bf16.msra.mxu0 0
  %354 = vmatprep.subr.bf16.mxu0 0
  %355 = vmatpush1.bf16.msra.mxu0 0
  %356 = vmatprep.subr.bf16.mxu0 0
  %357 = vmatpush1.bf16.msra.mxu0 0
  %358 = vmatprep.subr.bf16.mxu0 0
  %359 = vmatpush1.bf16.msra.mxu0 0
  %360 = vmatprep.subr.bf16.mxu0 0
  %361 = vmatpush1.bf16.msra.mxu0 0
  %362 = vmatprep.subr.bf16.mxu0 0
  %363 = vmatpush1.bf16.msra.mxu0 0
  %364 = vmatprep.subr.bf16.mxu0 0
  %365 = vmatpush1.bf16.msra.mxu0 0
  %366 = vmatprep.mubr.bf16.mxu0 0
  %367 = vmatmul.mubr.bf16.gmra.mrb[0].mxu0 %v310
  %v368 = vpop.f32.mrb[0].mxu0
  %v369 = vadd.f32 %v86, %v368
  %v370 = vpop.f32.mrb[0].mxu0
  %v371 = vadd.f32 %v86, %v370
  %v372 = vpop.f32.mrb[0].mxu0
  %v373 = vadd.f32 %v91, %v372
  %v374 = vpop.f32.mrb[0].mxu0
  %v375 = vadd.f32 %v91, %v374
  %376 = vmatprep.mubr.bf16.mxu0 0
  %377 = vmatmul.mubr.bf16.gmra.mrb[0].mxu0 %v313
  %v378 = vpop.f32.mrb[0].mxu0
  %v379 = vadd.f32 %v96, %v378
  %v380 = vpop.f32.mrb[0].mxu0
  %v381 = vadd.f32 %v96, %v380
  %v382 = vpop.f32.mrb[0].mxu0
  %v383 = vadd.f32 %v101, %v382
  %v384 = vpop.f32.mrb[0].mxu0
  %v385 = vadd.f32 %v101, %v384
  %386 = vdwg.mxu0
  %387 = vmatprep.subr.bf16.mxu0 %v233
  %388 = vmatpush1.bf16.msra.mxu0 %v232
  %389 = vmatprep.subr.bf16.mxu0 %v239
  %390 = vmatpush1.bf16.msra.mxu0 %v238
  %391 = vmatprep.subr.bf16.mxu0 %v245
  %392 = vmatpush1.bf16.msra.mxu0 %v244
  %393 = vmatprep.subr.bf16.mxu0 %v251
  %394 = vmatpush1.bf16.msra.mxu0 %v250
  %395 = vmatprep.subr.bf16.mxu0 %v257
  %396 = vmatpush1.bf16.msra.mxu0 %v256
  %397 = vmatprep.subr.bf16.mxu0 %v263
  %398 = vmatpush1.bf16.msra.mxu0 %v262
  %399 = vmatprep.subr.bf16.mxu0 %v326
  %400 = vmatpush1.bf16.msra.mxu0 %v323
  %401 = vmatprep.subr.bf16.mxu0 0
  %402 = vmatpush1.bf16.msra.mxu0 0
  %403 = vmatprep.subr.bf16.mxu0 0
  %404 = vmatpush1.bf16.msra.mxu0 0
  %405 = vmatprep.subr.bf16.mxu0 0
  %406 = vmatpush1.bf16.msra.mxu0 0
  %407 = vmatprep.subr.bf16.mxu0 0
  %408 = vmatpush1.bf16.msra.mxu0 0
  %409 = vmatprep.subr.bf16.mxu0 0
  %410 = vmatpush1.bf16.msra.mxu0 0
  %411 = vmatprep.subr.bf16.mxu0 0
  %412 = vmatpush1.bf16.msra.mxu0 0
  %413 = vmatprep.subr.bf16.mxu0 0
  %414 = vmatpush1.bf16.msra.mxu0 0
  %415 = vmatprep.subr.bf16.mxu0 0
  %416 = vmatpush1.bf16.msra.mxu0 0
  %417 = vmatprep.subr.bf16.mxu0 0
  %418 = vmatpush1.bf16.msra.mxu0 0
  %419 = vmatprep.mubr.bf16.mxu0 0
  %420 = vmatmul.mubr.bf16.gmra.mrb[0].mxu0 %v310
  %v421 = vpop.f32.mrb[0].mxu0
  %v422 = vadd.f32 %v86, %v421
  %v423 = vpop.f32.mrb[0].mxu0
  %v424 = vadd.f32 %v86, %v423
  %v425 = vpop.f32.mrb[0].mxu0
  %v426 = vadd.f32 %v91, %v425
  %v427 = vpop.f32.mrb[0].mxu0
  %v428 = vadd.f32 %v91, %v427
  %429 = vmatprep.mubr.bf16.mxu0 0
  %430 = vmatmul.mubr.bf16.gmra.mrb[0].mxu0 %v313
  %v431 = vpop.f32.mrb[0].mxu0
  %v432 = vadd.f32 %v96, %v431
  %v433 = vpop.f32.mrb[0].mxu0
  %v434 = vadd.f32 %v96, %v433
  %v435 = vpop.f32.mrb[0].mxu0
  %v436 = vadd.f32 %v101, %v435
  %v437 = vpop.f32.mrb[0].mxu0
  %v438 = vadd.f32 %v101, %v437
  %439 = vdwg.mxu0
  %440 = vmatprep.subr.bf16.mxu0 %v235
  %441 = vmatpush1.bf16.msra.mxu0 %v234
  %442 = vmatprep.subr.bf16.mxu0 %v241
  %443 = vmatpush1.bf16.msra.mxu0 %v240
  %444 = vmatprep.subr.bf16.mxu0 %v247
  %445 = vmatpush1.bf16.msra.mxu0 %v246
  %446 = vmatprep.subr.bf16.mxu0 %v253
  %447 = vmatpush1.bf16.msra.mxu0 %v252
  %448 = vmatprep.subr.bf16.mxu0 %v259
  %449 = vmatpush1.bf16.msra.mxu0 %v258
  %450 = vmatprep.subr.bf16.mxu0 %v265
  %451 = vmatpush1.bf16.msra.mxu0 %v264
  %452 = vmatprep.subr.bf16.mxu0 %v332
  %453 = vmatpush1.bf16.msra.mxu0 %v329
  %454 = vmatprep.subr.bf16.mxu0 0
  %455 = vmatpush1.bf16.msra.mxu0 0
  %456 = vmatprep.subr.bf16.mxu0 0
  %457 = vmatpush1.bf16.msra.mxu0 0
  %458 = vmatprep.subr.bf16.mxu0 0
  %459 = vmatpush1.bf16.msra.mxu0 0
  %460 = vmatprep.subr.bf16.mxu0 0
  %461 = vmatpush1.bf16.msra.mxu0 0
  %462 = vmatprep.subr.bf16.mxu0 0
  %463 = vmatpush1.bf16.msra.mxu0 0
  %464 = vmatprep.subr.bf16.mxu0 0
  %465 = vmatpush1.bf16.msra.mxu0 0
  %466 = vmatprep.subr.bf16.mxu0 0
  %467 = vmatpush1.bf16.msra.mxu0 0
  %468 = vmatprep.subr.bf16.mxu0 0
  %469 = vmatpush1.bf16.msra.mxu0 0
  %470 = vmatprep.subr.bf16.mxu0 0
  %471 = vmatpush1.bf16.msra.mxu0 0
  %472 = vmatprep.mubr.bf16.mxu0 0
  %473 = vmatmul.mubr.bf16.gmra.mrb[0].mxu0 %v310
  %v474 = vpop.f32.mrb[0].mxu0
  %v475 = vadd.f32 %v86, %v474
  %v476 = vpop.f32.mrb[0].mxu0
  %v477 = vadd.f32 %v86, %v476
  %v478 = vpop.f32.mrb[0].mxu0
  %v479 = vadd.f32 %v91, %v478
  %v480 = vpop.f32.mrb[0].mxu0
  %v481 = vadd.f32 %v91, %v480
  %482 = vmatprep.mubr.bf16.mxu0 0
  %483 = vmatmul.mubr.bf16.gmra.mrb[0].mxu0 %v313
  %v484 = vpop.f32.mrb[0].mxu0
  %v485 = vadd.f32 %v96, %v484
  %v486 = vpop.f32.mrb[0].mxu0
  %v487 = vadd.f32 %v96, %v486
  %v488 = vpop.f32.mrb[0].mxu0
  %v489 = vadd.f32 %v101, %v488
  %v490 = vpop.f32.mrb[0].mxu0
  %v491 = vadd.f32 %v101, %v490
  %492 = vdwg.mxu0
  %vm493 = vcmp.gt.f32.partialorder %v369, 0.0
  %vm494 = vcmp.gt.f32.partialorder %v371, 0.0
  %vm495 = vcmp.gt.f32.partialorder %v422, 0.0
  %vm496 = vcmp.gt.f32.partialorder %v424, 0.0
  %vm497 = vcmp.gt.f32.partialorder %v475, 0.0
  %vm498 = vcmp.gt.f32.partialorder %v477, 0.0
  %vm499 = vcmp.gt.f32.partialorder %v373, 0.0
  %vm500 = vcmp.gt.f32.partialorder %v375, 0.0
  %vm501 = vcmp.gt.f32.partialorder %v426, 0.0
  %vm502 = vcmp.gt.f32.partialorder %v428, 0.0
  %vm503 = vcmp.gt.f32.partialorder %v479, 0.0
  %vm504 = vcmp.gt.f32.partialorder %v481, 0.0
  %vm505 = vcmp.gt.f32.partialorder %v379, 0.0
  %vm506 = vcmp.gt.f32.partialorder %v381, 0.0
  %vm507 = vcmp.gt.f32.partialorder %v432, 0.0
  %vm508 = vcmp.gt.f32.partialorder %v434, 0.0
  %vm509 = vcmp.gt.f32.partialorder %v485, 0.0
  %vm510 = vcmp.gt.f32.partialorder %v487, 0.0
  %vm511 = vcmp.gt.f32.partialorder %v383, 0.0
  %vm512 = vcmp.gt.f32.partialorder %v385, 0.0
  %vm513 = vcmp.gt.f32.partialorder %v436, 0.0
  %vm514 = vcmp.gt.f32.partialorder %v438, 0.0
  %vm515 = vcmp.gt.f32.partialorder %v489, 0.0
  %vm516 = vcmp.gt.f32.partialorder %v491, 0.0
  %v517 = vmin.f32 %v369, 0.0
  %v518 = vmin.f32 %v371, 0.0
  %v519 = vmin.f32 %v422, 0.0
  %v520 = vmin.f32 %v424, 0.0
  %v521 = vmin.f32 %v475, 0.0
  %v522 = vmin.f32 %v477, 0.0
  %v523 = vmin.f32 %v373, 0.0
  %v524 = vmin.f32 %v375, 0.0
  %v525 = vmin.f32 %v426, 0.0
  %v526 = vmin.f32 %v428, 0.0
  %v527 = vmin.f32 %v479, 0.0
  %v528 = vmin.f32 %v481, 0.0
  %v529 = vmin.f32 %v379, 0.0
  %v530 = vmin.f32 %v381, 0.0
  %v531 = vmin.f32 %v432, 0.0
  %v532 = vmin.f32 %v434, 0.0
  %v533 = vmin.f32 %v485, 0.0
  %v534 = vmin.f32 %v487, 0.0
  %v535 = vmin.f32 %v383, 0.0
  %v536 = vmin.f32 %v385, 0.0
  %v537 = vmin.f32 %v436, 0.0
  %v538 = vmin.f32 %v438, 0.0
  %v539 = vmin.f32 %v489, 0.0
  %v540 = vmin.f32 %v491, 0.0
  %v541 = vmul.f32 %v517, 1.442695
  %v542 = vpow.pop %v541
  %v543 = vmul.f32 %v518, 1.442695
  %v544 = vpow.pop %v543
  %v545 = vmul.f32 %v519, 1.442695
  %v546 = vpow.pop %v545
  %v547 = vmul.f32 %v520, 1.442695
  %v548 = vpow.pop %v547
  %v549 = vmul.f32 %v521, 1.442695
  %v550 = vpow.pop %v549
  %v551 = vmul.f32 %v522, 1.442695
  %v552 = vpow.pop %v551
  %v553 = vmul.f32 %v523, 1.442695
  %v554 = vpow.pop %v553
  %v555 = vmul.f32 %v524, 1.442695
  %v556 = vpow.pop %v555
  %v557 = vmul.f32 %v525, 1.442695
  %v558 = vpow.pop %v557
  %v559 = vmul.f32 %v526, 1.442695
  %v560 = vpow.pop %v559
  %v561 = vmul.f32 %v527, 1.442695
  %v562 = vpow.pop %v561
  %v563 = vmul.f32 %v528, 1.442695
  %v564 = vpow.pop %v563
  %v565 = vmul.f32 %v529, 1.442695
  %v566 = vpow.pop %v565
  %v567 = vmul.f32 %v530, 1.442695
  %v568 = vpow.pop %v567
  %v569 = vmul.f32 %v531, 1.442695
  %v570 = vpow.pop %v569
  %v571 = vmul.f32 %v532, 1.442695
  %v572 = vpow.pop %v571
  %v573 = vmul.f32 %v533, 1.442695
  %v574 = vpow.pop %v573
  %v575 = vmul.f32 %v534, 1.442695
  %v576 = vpow.pop %v575
  %v577 = vmul.f32 %v535, 1.442695
  %v578 = vpow.pop %v577
  %v579 = vmul.f32 %v536, 1.442695
  %v580 = vpow.pop %v579
  %v581 = vmul.f32 %v537, 1.442695
  %v582 = vpow.pop %v581
  %v583 = vmul.f32 %v538, 1.442695
  %v584 = vpow.pop %v583
  %v585 = vmul.f32 %v539, 1.442695
  %v586 = vpow.pop %v585
  %v587 = vmul.f32 %v540, 1.442695
  %v588 = vpow.pop %v587
  %v589 = vsub.f32 %v542, 1.0
  %v590 = vsub.f32 %v544, 1.0
  %v591 = vsub.f32 %v546, 1.0
  %v592 = vsub.f32 %v548, 1.0
  %v593 = vsub.f32 %v550, 1.0
  %v594 = vsub.f32 %v552, 1.0
  %v595 = vsub.f32 %v554, 1.0
  %v596 = vsub.f32 %v556, 1.0
  %v597 = vsub.f32 %v558, 1.0
  %v598 = vsub.f32 %v560, 1.0
  %v599 = vsub.f32 %v562, 1.0
  %v600 = vsub.f32 %v564, 1.0
  %v601 = vsub.f32 %v566, 1.0
  %v602 = vsub.f32 %v568, 1.0
  %v603 = vsub.f32 %v570, 1.0
  %v604 = vsub.f32 %v572, 1.0
  %v605 = vsub.f32 %v574, 1.0
  %v606 = vsub.f32 %v576, 1.0
  %v607 = vsub.f32 %v578, 1.0
  %v608 = vsub.f32 %v580, 1.0
  %v609 = vsub.f32 %v582, 1.0
  %v610 = vsub.f32 %v584, 1.0
  %v611 = vsub.f32 %v586, 1.0
  %v612 = vsub.f32 %v588, 1.0
  %v613 = vsel %vm493, %v369, %v589
  %v614 = vsel %vm494, %v371, %v590
  %v615 = vsel %vm495, %v422, %v591
  %v616 = vsel %vm496, %v424, %v592
  %v617 = vsel %vm497, %v475, %v593
  %v618 = vsel %vm498, %v477, %v594
  %v619 = vsel %vm499, %v373, %v595
  %v620 = vsel %vm500, %v375, %v596
  %v621 = vsel %vm501, %v426, %v597
  %v622 = vsel %vm502, %v428, %v598
  %v623 = vsel %vm503, %v479, %v599
  %v624 = vsel %vm504, %v481, %v600
  %v625 = vsel %vm505, %v379, %v601
  %v626 = vsel %vm506, %v381, %v602
  %v627 = vsel %vm507, %v432, %v603
  %v628 = vsel %vm508, %v434, %v604
  %v629 = vsel %vm509, %v485, %v605
  %v630 = vsel %vm510, %v487, %v606
  %v631 = vsel %vm511, %v383, %v607
  %v632 = vsel %vm512, %v385, %v608
  %v633 = vsel %vm513, %v436, %v609
  %v634 = vsel %vm514, %v438, %v610
  %v635 = vsel %vm515, %v489, %v611
  %v636 = vsel %vm516, %v491, %v612
  %s637 = scalar_lea.vmem %s0, 312
  %v638 = vld [vmem:[%s637] sm:$0xff]
  %v639 = vld [vmem:[%s637 + $0x8] sm:$0xff]
  %v640 = vld [vmem:[%s637 + $0x10] sm:$0xff]
  %v641 = vld [vmem:[%s637 + $0x18] sm:$0xff]
  %v642 = vld [vmem:[%s637 + $0x20] sm:$0xff]
  %v643 = vld [vmem:[%s637 + $0x28] sm:$0xff]
  %v644 = vld [vmem:[%s637 + $0x30] sm:$0xff]
  %v645 = vld [vmem:[%s637 + $0x38] sm:$0xff]
  %v646 = vld [vmem:[%s637 + $0x40] sm:$0xff]
  %v647 = vld [vmem:[%s637 + $0x48] sm:$0xff]
  %v648 = vld [vmem:[%s637 + $0x50] sm:$0xff]
  %v649 = vld [vmem:[%s637 + $0x58] sm:$0xff]
  %v650 = vld [vmem:[%s637 + $0x60] sm:$0xff]
  %v651 = vld [vmem:[%s637 + $0x68] sm:$0xff]
  %v652 = vld [vmem:[%s637 + $0x70] sm:$0xff]
  %v653 = vld [vmem:[%s637 + $0x78] sm:$0xff]
  %v654 = vld [vmem:[%s637 + $0x80] sm:$0xff]
  %v655 = vld [vmem:[%s637 + $0x88] sm:$0xff]
  %v656 = vld [vmem:[%s637 + $0x90] sm:$0xff]
  %v657 = vld [vmem:[%s637 + $0x98] sm:$0xff]
  %v658 = vld [vmem:[%s637 + $0xa0] sm:$0xff]
  %v659 = vld [vmem:[%s637 + $0xa8] sm:$0xff]
  %v660 = vld [vmem:[%s637 + $0xb0] sm:$0xff]
  %v661 = vld [vmem:[%s637 + $0xb8] sm:$0xff]
  %v662 = vld [vmem:[%s637 + $0xc0] sm:$0xff]
  %v663 = vld [vmem:[%s637 + $0xc8] sm:$0xff]
  %v664 = vld [vmem:[%s637 + $0xd0] sm:$0xff]
  %v665 = vld [vmem:[%s637 + $0xd8] sm:$0xff]
  %v666 = vld [vmem:[%s637 + $0xe0] sm:$0xff]
  %v667 = vld [vmem:[%s637 + $0xe8] sm:$0xff]
  %v668 = vld [vmem:[%s637 + $0xf0] sm:$0xff]
  %v669 = vld [vmem:[%s637 + $0xf8] sm:$0xff]
  %v670 = vld [vmem:[%s637 + $0x100] sm:$0xff]
  %v671 = vld [vmem:[%s637 + $0x108] sm:$0xff]
  %v672 = vld [vmem:[%s637 + $0x110] sm:$0xff]
  %v673 = vld [vmem:[%s637 + $0x118] sm:$0xff]
  %v674 = vld [vmem:[%s637 + $0x120] sm:$0x77]
  %v675 = vld [vmem:[%s637 + $0x128] sm:$0x77]
  %v676 = vld [vmem:[%s637 + $0x130] sm:$0x77]
  %v716 = vunpack.c.l.b16 %v638
  %v717 = vunpack.c.h.b16 %v638
  %v718 = vunpack.c.l.b16 %v639
  %v719 = vunpack.c.h.b16 %v639
  %v720 = vunpack.c.l.b16 %v640
  %v721 = vunpack.c.h.b16 %v640
  %v722 = vunpack.c.l.b16 %v641
  %v723 = vunpack.c.h.b16 %v641
  %v724 = vunpack.c.l.b16 %v642
  %v725 = vunpack.c.h.b16 %v642
  %v726 = vunpack.c.l.b16 %v643
  %v727 = vunpack.c.h.b16 %v643
  %v728 = vunpack.c.l.b16 %v644
  %v729 = vunpack.c.h.b16 %v644
  %v730 = vunpack.c.l.b16 %v645
  %v731 = vunpack.c.h.b16 %v645
  %v732 = vunpack.c.l.b16 %v646
  %v733 = vunpack.c.h.b16 %v646
  %v734 = vunpack.c.l.b16 %v647
  %v735 = vunpack.c.h.b16 %v647
  %v736 = vunpack.c.l.b16 %v648
  %v737 = vunpack.c.h.b16 %v648
  %v738 = vunpack.c.l.b16 %v649
  %v739 = vunpack.c.h.b16 %v649
  %v740 = vunpack.c.l.b16 %v650
  %v741 = vunpack.c.h.b16 %v650
  %v742 = vunpack.c.l.b16 %v651
  %v743 = vunpack.c.h.b16 %v651
  %v744 = vunpack.c.l.b16 %v652
  %v745 = vunpack.c.h.b16 %v652
  %v746 = vunpack.c.l.b16 %v653
  %v747 = vunpack.c.h.b16 %v653
  %v748 = vunpack.c.l.b16 %v654
  %v749 = vunpack.c.h.b16 %v654
  %v750 = vunpack.c.l.b16 %v655
  %v751 = vunpack.c.h.b16 %v655
  %v752 = vunpack.c.l.b16 %v656
  %v753 = vunpack.c.h.b16 %v656
  %v754 = vunpack.c.l.b16 %v657
  %v755 = vunpack.c.h.b16 %v657
  %v756 = vunpack.c.l.b16 %v658
  %v757 = vunpack.c.h.b16 %v658
  %v758 = vunpack.c.l.b16 %v659
  %v759 = vunpack.c.h.b16 %v659
  %v760 = vunpack.c.l.b16 %v660
  %v761 = vunpack.c.h.b16 %v660
  %v762 = vunpack.c.l.b16 %v661
  %v763 = vunpack.c.h.b16 %v661
  %v764 = vunpack.c.l.b16 %v662
  %v765 = vunpack.c.h.b16 %v662
  %v766 = vunpack.c.l.b16 %v663
  %v767 = vunpack.c.h.b16 %v663
  %v768 = vunpack.c.l.b16 %v664
  %v769 = vunpack.c.h.b16 %v664
  %v770 = vunpack.c.l.b16 %v665
  %v771 = vunpack.c.h.b16 %v665
  %v772 = vunpack.c.l.b16 %v666
  %v773 = vunpack.c.h.b16 %v666
  %v774 = vunpack.c.l.b16 %v667
  %v775 = vunpack.c.h.b16 %v667
  %v776 = vunpack.c.l.b16 %v668
  %v777 = vunpack.c.h.b16 %v668
  %v778 = vunpack.c.l.b16 %v669
  %v779 = vunpack.c.h.b16 %v669
  %v780 = vunpack.c.l.b16 %v670
  %v781 = vunpack.c.h.b16 %v670
  %v782 = vunpack.c.l.b16 %v671
  %v783 = vunpack.c.h.b16 %v671
  %v784 = vunpack.c.l.b16 %v672
  %v785 = vunpack.c.h.b16 %v672
  %v786 = vunpack.c.l.b16 %v673
  %v787 = vunpack.c.h.b16 %v673
  %v788 = vunpack.c.l.b16 %v674
  %v789 = vunpack.c.h.b16 %v674
  %v790 = vunpack.c.l.b16 %v675
  %v791 = vunpack.c.h.b16 %v675
  %v792 = vunpack.c.l.b16 %v676
  %v793 = vunpack.c.h.b16 %v676
  %v794 = vpack.c.b16 %v722, %v716
  %v795 = vpack.c.b16 %v723, %v717
  %v796 = vpack.c.b16 %v724, %v718
  %v797 = vpack.c.b16 %v725, %v719
  %v798 = vpack.c.b16 %v726, %v720
  %v799 = vpack.c.b16 %v727, %v721
  %v800 = vpack.c.b16 %v734, %v728
  %v801 = vpack.c.b16 %v735, %v729
  %v802 = vpack.c.b16 %v736, %v730
  %v803 = vpack.c.b16 %v737, %v731
  %v804 = vpack.c.b16 %v738, %v732
  %v805 = vpack.c.b16 %v739, %v733
  %v806 = vpack.c.b16 %v746, %v740
  %v807 = vpack.c.b16 %v747, %v741
  %v808 = vpack.c.b16 %v748, %v742
  %v809 = vpack.c.b16 %v749, %v743
  %v810 = vpack.c.b16 %v750, %v744
  %v811 = vpack.c.b16 %v751, %v745
  %v812 = vpack.c.b16 %v758, %v752
  %v813 = vpack.c.b16 %v759, %v753
  %v814 = vpack.c.b16 %v760, %v754
  %v815 = vpack.c.b16 %v761, %v755
  %v816 = vpack.c.b16 %v762, %v756
  %v817 = vpack.c.b16 %v763, %v757
  %v818 = vpack.c.b16 %v770, %v764
  %v819 = vpack.c.b16 %v771, %v765
  %v820 = vpack.c.b16 %v772, %v766
  %v821 = vpack.c.b16 %v773, %v767
  %v822 = vpack.c.b16 %v774, %v768
  %v823 = vpack.c.b16 %v775, %v769
  %v824 = vpack.c.b16 %v782, %v776
  %v825 = vpack.c.b16 %v783, %v777
  %v826 = vpack.c.b16 %v784, %v778
  %v827 = vpack.c.b16 %v785, %v779
  %v828 = vpack.c.b16 %v786, %v780
  %v829 = vpack.c.b16 %v787, %v781
  %v830 = vpack.c.b16 %v788, %v788
  %v831 = vpack.c.b16 %v789, %v789
  %v832 = vpack.c.b16 %v790, %v790
  %v833 = vpack.c.b16 %v791, %v791
  %v834 = vpack.c.b16 %v792, %v792
  %v835 = vpack.c.b16 %v793, %v793
  %v873 = vsel %vm315, %v830, 0
  %v876 = vsel %vm315, %v831, 0
  %v879 = vsel %vm315, %v832, 0
  %v882 = vsel %vm315, %v833, 0
  %v885 = vsel %vm315, %v834, 0
  %v888 = vsel %vm315, %v835, 0
  %890 = vmatprep.subr.bf16.mxu0 %v795
  %891 = vmatpush1.bf16.msra.mxu0 %v794
  %892 = vmatprep.subr.bf16.mxu0 %v801
  %893 = vmatpush1.bf16.msra.mxu0 %v800
  %894 = vmatprep.subr.bf16.mxu0 %v807
  %895 = vmatpush1.bf16.msra.mxu0 %v806
  %896 = vmatprep.subr.bf16.mxu0 %v813
  %897 = vmatpush1.bf16.msra.mxu0 %v812
  %898 = vmatprep.subr.bf16.mxu0 %v819
  %899 = vmatpush1.bf16.msra.mxu0 %v818
  %900 = vmatprep.subr.bf16.mxu0 %v825
  %901 = vmatpush1.bf16.msra.mxu0 %v824
  %902 = vmatprep.subr.bf16.mxu0 %v876
  %903 = vmatpush1.bf16.msra.mxu0 %v873
  %904 = vmatprep.subr.bf16.mxu0 0
  %905 = vmatpush1.bf16.msra.mxu0 0
  %906 = vmatprep.subr.bf16.mxu0 0
  %907 = vmatpush1.bf16.msra.mxu0 0
  %908 = vmatprep.subr.bf16.mxu0 0
  %909 = vmatpush1.bf16.msra.mxu0 0
  %910 = vmatprep.subr.bf16.mxu0 0
  %911 = vmatpush1.bf16.msra.mxu0 0
  %912 = vmatprep.subr.bf16.mxu0 0
  %913 = vmatpush1.bf16.msra.mxu0 0
  %914 = vmatprep.subr.bf16.mxu0 0
  %915 = vmatpush1.bf16.msra.mxu0 0
  %916 = vmatprep.subr.bf16.mxu0 0
  %917 = vmatpush1.bf16.msra.mxu0 0
  %918 = vmatprep.subr.bf16.mxu0 0
  %919 = vmatpush1.bf16.msra.mxu0 0
  %920 = vmatprep.subr.bf16.mxu0 0
  %921 = vmatpush1.bf16.msra.mxu0 0
  %922 = vmatprep.mubr.bf16.mxu0 0
  %923 = vmatmul.mubr.bf16.gmra.mrb[0].mxu0 %v310
  %v924 = vpop.f32.mrb[0].mxu0
  %v925 = vadd.f32 %v86, %v924
  %v926 = vpop.f32.mrb[0].mxu0
  %v927 = vadd.f32 %v86, %v926
  %v928 = vpop.f32.mrb[0].mxu0
  %v929 = vadd.f32 %v91, %v928
  %v930 = vpop.f32.mrb[0].mxu0
  %v931 = vadd.f32 %v91, %v930
  %932 = vmatprep.mubr.bf16.mxu0 0
  %933 = vmatmul.mubr.bf16.gmra.mrb[0].mxu0 %v313
  %v934 = vpop.f32.mrb[0].mxu0
  %v935 = vadd.f32 %v96, %v934
  %v936 = vpop.f32.mrb[0].mxu0
  %v937 = vadd.f32 %v96, %v936
  %v938 = vpop.f32.mrb[0].mxu0
  %v939 = vadd.f32 %v101, %v938
  %v940 = vpop.f32.mrb[0].mxu0
  %v941 = vadd.f32 %v101, %v940
  %942 = vdwg.mxu0
  %943 = vmatprep.subr.bf16.mxu0 %v797
  %944 = vmatpush1.bf16.msra.mxu0 %v796
  %945 = vmatprep.subr.bf16.mxu0 %v803
  %946 = vmatpush1.bf16.msra.mxu0 %v802
  %947 = vmatprep.subr.bf16.mxu0 %v809
  %948 = vmatpush1.bf16.msra.mxu0 %v808
  %949 = vmatprep.subr.bf16.mxu0 %v815
  %950 = vmatpush1.bf16.msra.mxu0 %v814
  %951 = vmatprep.subr.bf16.mxu0 %v821
  %952 = vmatpush1.bf16.msra.mxu0 %v820
  %953 = vmatprep.subr.bf16.mxu0 %v827
  %954 = vmatpush1.bf16.msra.mxu0 %v826
  %955 = vmatprep.subr.bf16.mxu0 %v882
  %956 = vmatpush1.bf16.msra.mxu0 %v879
  %957 = vmatprep.subr.bf16.mxu0 0
  %958 = vmatpush1.bf16.msra.mxu0 0
  %959 = vmatprep.subr.bf16.mxu0 0
  %960 = vmatpush1.bf16.msra.mxu0 0
  %961 = vmatprep.subr.bf16.mxu0 0
  %962 = vmatpush1.bf16.msra.mxu0 0
  %963 = vmatprep.subr.bf16.mxu0 0
  %964 = vmatpush1.bf16.msra.mxu0 0
  %965 = vmatprep.subr.bf16.mxu0 0
  %966 = vmatpush1.bf16.msra.mxu0 0
  %967 = vmatprep.subr.bf16.mxu0 0
  %968 = vmatpush1.bf16.msra.mxu0 0
  %969 = vmatprep.subr.bf16.mxu0 0
  %970 = vmatpush1.bf16.msra.mxu0 0
  %971 = vmatprep.subr.bf16.mxu0 0
  %972 = vmatpush1.bf16.msra.mxu0 0
  %973 = vmatprep.subr.bf16.mxu0 0
  %974 = vmatpush1.bf16.msra.mxu0 0
  %975 = vmatprep.mubr.bf16.mxu0 0
  %976 = vmatmul.mubr.bf16.gmra.mrb[0].mxu0 %v310
  %v977 = vpop.f32.mrb[0].mxu0
  %v978 = vadd.f32 %v86, %v977
  %v979 = vpop.f32.mrb[0].mxu0
  %v980 = vadd.f32 %v86, %v979
  %v981 = vpop.f32.mrb[0].mxu0
  %v982 = vadd.f32 %v91, %v981
  %v983 = vpop.f32.mrb[0].mxu0
  %v984 = vadd.f32 %v91, %v983
  %985 = vmatprep.mubr.bf16.mxu0 0
  %986 = vmatmul.mubr.bf16.gmra.mrb[0].mxu0 %v313
  %v987 = vpop.f32.mrb[0].mxu0
  %v988 = vadd.f32 %v96, %v987
  %v989 = vpop.f32.mrb[0].mxu0
  %v990 = vadd.f32 %v96, %v989
  %v991 = vpop.f32.mrb[0].mxu0
  %v992 = vadd.f32 %v101, %v991
  %v993 = vpop.f32.mrb[0].mxu0
  %v994 = vadd.f32 %v101, %v993
  %995 = vdwg.mxu0
  %996 = vmatprep.subr.bf16.mxu0 %v799
  %997 = vmatpush1.bf16.msra.mxu0 %v798
  %998 = vmatprep.subr.bf16.mxu0 %v805
  %999 = vmatpush1.bf16.msra.mxu0 %v804
  %1000 = vmatprep.subr.bf16.mxu0 %v811
  %1001 = vmatpush1.bf16.msra.mxu0 %v810
  %1002 = vmatprep.subr.bf16.mxu0 %v817
  %1003 = vmatpush1.bf16.msra.mxu0 %v816
  %1004 = vmatprep.subr.bf16.mxu0 %v823
  %1005 = vmatpush1.bf16.msra.mxu0 %v822
  %1006 = vmatprep.subr.bf16.mxu0 %v829
  %1007 = vmatpush1.bf16.msra.mxu0 %v828
  %1008 = vmatprep.subr.bf16.mxu0 %v888
  %1009 = vmatpush1.bf16.msra.mxu0 %v885
  %1010 = vmatprep.subr.bf16.mxu0 0
  %1011 = vmatpush1.bf16.msra.mxu0 0
  %1012 = vmatprep.subr.bf16.mxu0 0
  %1013 = vmatpush1.bf16.msra.mxu0 0
  %1014 = vmatprep.subr.bf16.mxu0 0
  %1015 = vmatpush1.bf16.msra.mxu0 0
  %1016 = vmatprep.subr.bf16.mxu0 0
  %1017 = vmatpush1.bf16.msra.mxu0 0
  %1018 = vmatprep.subr.bf16.mxu0 0
  %1019 = vmatpush1.bf16.msra.mxu0 0
  %1020 = vmatprep.subr.bf16.mxu0 0
  %1021 = vmatpush1.bf16.msra.mxu0 0
  %1022 = vmatprep.subr.bf16.mxu0 0
  %1023 = vmatpush1.bf16.msra.mxu0 0
  %1024 = vmatprep.subr.bf16.mxu0 0
  %1025 = vmatpush1.bf16.msra.mxu0 0
  %1026 = vmatprep.subr.bf16.mxu0 0
  %1027 = vmatpush1.bf16.msra.mxu0 0
  %1028 = vmatprep.mubr.bf16.mxu0 0
  %1029 = vmatmul.mubr.bf16.gmra.mrb[0].mxu0 %v310
  %v1030 = vpop.f32.mrb[0].mxu0
  %v1031 = vadd.f32 %v86, %v1030
  %v1032 = vpop.f32.mrb[0].mxu0
  %v1033 = vadd.f32 %v86, %v1032
  %v1034 = vpop.f32.mrb[0].mxu0
  %v1035 = vadd.f32 %v91, %v1034
  %v1036 = vpop.f32.mrb[0].mxu0
  %v1037 = vadd.f32 %v91, %v1036
  %1038 = vmatprep.mubr.bf16.mxu0 0
  %1039 = vmatmul.mubr.bf16.gmra.mrb[0].mxu0 %v313
  %v1040 = vpop.f32.mrb[0].mxu0
  %v1041 = vadd.f32 %v96, %v1040
  %v1042 = vpop.f32.mrb[0].mxu0
  %v1043 = vadd.f32 %v96, %v1042
  %v1044 = vpop.f32.mrb[0].mxu0
  %v1045 = vadd.f32 %v101, %v1044
  %v1046 = vpop.f32.mrb[0].mxu0
  %v1047 = vadd.f32 %v101, %v1046
  %1048 = vdwg.mxu0
  %vm1049 = vcmp.gt.f32.partialorder %v925, 0.0
  %vm1050 = vcmp.gt.f32.partialorder %v927, 0.0
  %vm1051 = vcmp.gt.f32.partialorder %v978, 0.0
  %vm1052 = vcmp.gt.f32.partialorder %v980, 0.0
  %vm1053 = vcmp.gt.f32.partialorder %v1031, 0.0
  %vm1054 = vcmp.gt.f32.partialorder %v1033, 0.0
  %vm1055 = vcmp.gt.f32.partialorder %v929, 0.0
  %vm1056 = vcmp.gt.f32.partialorder %v931, 0.0
  %vm1057 = vcmp.gt.f32.partialorder %v982, 0.0
  %vm1058 = vcmp.gt.f32.partialorder %v984, 0.0
  %vm1059 = vcmp.gt.f32.partialorder %v1035, 0.0
  %vm1060 = vcmp.gt.f32.partialorder %v1037, 0.0
  %vm1061 = vcmp.gt.f32.partialorder %v935, 0.0
  %vm1062 = vcmp.gt.f32.partialorder %v937, 0.0
  %vm1063 = vcmp.gt.f32.partialorder %v988, 0.0
  %vm1064 = vcmp.gt.f32.partialorder %v990, 0.0
  %vm1065 = vcmp.gt.f32.partialorder %v1041, 0.0
  %vm1066 = vcmp.gt.f32.partialorder %v1043, 0.0
  %vm1067 = vcmp.gt.f32.partialorder %v939, 0.0
  %vm1068 = vcmp.gt.f32.partialorder %v941, 0.0
  %vm1069 = vcmp.gt.f32.partialorder %v992, 0.0
  %vm1070 = vcmp.gt.f32.partialorder %v994, 0.0
  %vm1071 = vcmp.gt.f32.partialorder %v1045, 0.0
  %vm1072 = vcmp.gt.f32.partialorder %v1047, 0.0
  %v1073 = vmin.f32 %v925, 0.0
  %v1074 = vmin.f32 %v927, 0.0
  %v1075 = vmin.f32 %v978, 0.0
  %v1076 = vmin.f32 %v980, 0.0
  %v1077 = vmin.f32 %v1031, 0.0
  %v1078 = vmin.f32 %v1033, 0.0
  %v1079 = vmin.f32 %v929, 0.0
  %v1080 = vmin.f32 %v931, 0.0
  %v1081 = vmin.f32 %v982, 0.0
  %v1082 = vmin.f32 %v984, 0.0
  %v1083 = vmin.f32 %v1035, 0.0
  %v1084 = vmin.f32 %v1037, 0.0
  %v1085 = vmin.f32 %v935, 0.0
  %v1086 = vmin.f32 %v937, 0.0
  %v1087 = vmin.f32 %v988, 0.0
  %v1088 = vmin.f32 %v990, 0.0
  %v1089 = vmin.f32 %v1041, 0.0
  %v1090 = vmin.f32 %v1043, 0.0
  %v1091 = vmin.f32 %v939, 0.0
  %v1092 = vmin.f32 %v941, 0.0
  %v1093 = vmin.f32 %v992, 0.0
  %v1094 = vmin.f32 %v994, 0.0
  %v1095 = vmin.f32 %v1045, 0.0
  %v1096 = vmin.f32 %v1047, 0.0
  %v1097 = vmul.f32 %v1073, 1.442695
  %v1098 = vpow.pop %v1097
  %v1099 = vmul.f32 %v1074, 1.442695
  %v1100 = vpow.pop %v1099
  %v1101 = vmul.f32 %v1075, 1.442695
  %v1102 = vpow.pop %v1101
  %v1103 = vmul.f32 %v1076, 1.442695
  %v1104 = vpow.pop %v1103
  %v1105 = vmul.f32 %v1077, 1.442695
  %v1106 = vpow.pop %v1105
  %v1107 = vmul.f32 %v1078, 1.442695
  %v1108 = vpow.pop %v1107
  %v1109 = vmul.f32 %v1079, 1.442695
  %v1110 = vpow.pop %v1109
  %v1111 = vmul.f32 %v1080, 1.442695
  %v1112 = vpow.pop %v1111
  %v1113 = vmul.f32 %v1081, 1.442695
  %v1114 = vpow.pop %v1113
  %v1115 = vmul.f32 %v1082, 1.442695
  %v1116 = vpow.pop %v1115
  %v1117 = vmul.f32 %v1083, 1.442695
  %v1118 = vpow.pop %v1117
  %v1119 = vmul.f32 %v1084, 1.442695
  %v1120 = vpow.pop %v1119
  %v1121 = vmul.f32 %v1085, 1.442695
  %v1122 = vpow.pop %v1121
  %v1123 = vmul.f32 %v1086, 1.442695
  %v1124 = vpow.pop %v1123
  %v1125 = vmul.f32 %v1087, 1.442695
  %v1126 = vpow.pop %v1125
  %v1127 = vmul.f32 %v1088, 1.442695
  %v1128 = vpow.pop %v1127
  %v1129 = vmul.f32 %v1089, 1.442695
  %v1130 = vpow.pop %v1129
  %v1131 = vmul.f32 %v1090, 1.442695
  %v1132 = vpow.pop %v1131
  %v1133 = vmul.f32 %v1091, 1.442695
  %v1134 = vpow.pop %v1133
  %v1135 = vmul.f32 %v1092, 1.442695
  %v1136 = vpow.pop %v1135
  %v1137 = vmul.f32 %v1093, 1.442695
  %v1138 = vpow.pop %v1137
  %v1139 = vmul.f32 %v1094, 1.442695
  %v1140 = vpow.pop %v1139
  %v1141 = vmul.f32 %v1095, 1.442695
  %v1142 = vpow.pop %v1141
  %v1143 = vmul.f32 %v1096, 1.442695
  %v1144 = vpow.pop %v1143
  %v1145 = vsub.f32 %v1098, 1.0
  %v1146 = vsub.f32 %v1100, 1.0
  %v1147 = vsub.f32 %v1102, 1.0
  %v1148 = vsub.f32 %v1104, 1.0
  %v1149 = vsub.f32 %v1106, 1.0
  %v1150 = vsub.f32 %v1108, 1.0
  %v1151 = vsub.f32 %v1110, 1.0
  %v1152 = vsub.f32 %v1112, 1.0
  %v1153 = vsub.f32 %v1114, 1.0
  %v1154 = vsub.f32 %v1116, 1.0
  %v1155 = vsub.f32 %v1118, 1.0
  %v1156 = vsub.f32 %v1120, 1.0
  %v1157 = vsub.f32 %v1122, 1.0
  %v1158 = vsub.f32 %v1124, 1.0
  %v1159 = vsub.f32 %v1126, 1.0
  %v1160 = vsub.f32 %v1128, 1.0
  %v1161 = vsub.f32 %v1130, 1.0
  %v1162 = vsub.f32 %v1132, 1.0
  %v1163 = vsub.f32 %v1134, 1.0
  %v1164 = vsub.f32 %v1136, 1.0
  %v1165 = vsub.f32 %v1138, 1.0
  %v1166 = vsub.f32 %v1140, 1.0
  %v1167 = vsub.f32 %v1142, 1.0
  %v1168 = vsub.f32 %v1144, 1.0
  %v1169 = vsel %vm1049, %v925, %v1145
  %v1170 = vsel %vm1050, %v927, %v1146
  %v1171 = vsel %vm1051, %v978, %v1147
  %v1172 = vsel %vm1052, %v980, %v1148
  %v1173 = vsel %vm1053, %v1031, %v1149
  %v1174 = vsel %vm1054, %v1033, %v1150
  %v1175 = vsel %vm1055, %v929, %v1151
  %v1176 = vsel %vm1056, %v931, %v1152
  %v1177 = vsel %vm1057, %v982, %v1153
  %v1178 = vsel %vm1058, %v984, %v1154
  %v1179 = vsel %vm1059, %v1035, %v1155
  %v1180 = vsel %vm1060, %v1037, %v1156
  %v1181 = vsel %vm1061, %v935, %v1157
  %v1182 = vsel %vm1062, %v937, %v1158
  %v1183 = vsel %vm1063, %v988, %v1159
  %v1184 = vsel %vm1064, %v990, %v1160
  %v1185 = vsel %vm1065, %v1041, %v1161
  %v1186 = vsel %vm1066, %v1043, %v1162
  %v1187 = vsel %vm1067, %v939, %v1163
  %v1188 = vsel %vm1068, %v941, %v1164
  %v1189 = vsel %vm1069, %v992, %v1165
  %v1190 = vsel %vm1070, %v994, %v1166
  %v1191 = vsel %vm1071, %v1045, %v1167
  %v1192 = vsel %vm1072, %v1047, %v1168
  %s1193 = scalar_lea.vmem %s0, 624
  %v1194 = vld [vmem:[%s1193] sm:$0xff]
  %v1195 = vld [vmem:[%s1193 + $0x8] sm:$0xff]
  %v1196 = vld [vmem:[%s1193 + $0x10] sm:$0xff]
  %v1197 = vld [vmem:[%s1193 + $0x18] sm:$0xff]
  %v1198 = vld [vmem:[%s1193 + $0x20] sm:$0xff]
  %v1199 = vld [vmem:[%s1193 + $0x28] sm:$0xff]
  %v1200 = vld [vmem:[%s1193 + $0x30] sm:$0xff]
  %v1201 = vld [vmem:[%s1193 + $0x38] sm:$0xff]
  %v1202 = vld [vmem:[%s1193 + $0x40] sm:$0xff]
  %v1203 = vld [vmem:[%s1193 + $0x48] sm:$0xff]
  %v1204 = vld [vmem:[%s1193 + $0x50] sm:$0xff]
  %v1205 = vld [vmem:[%s1193 + $0x58] sm:$0xff]
  %v1206 = vld [vmem:[%s1193 + $0x60] sm:$0xff]
  %v1207 = vld [vmem:[%s1193 + $0x68] sm:$0xff]
  %v1208 = vld [vmem:[%s1193 + $0x70] sm:$0xff]
  %v1209 = vld [vmem:[%s1193 + $0x78] sm:$0xff]
  %v1210 = vld [vmem:[%s1193 + $0x80] sm:$0xff]
  %v1211 = vld [vmem:[%s1193 + $0x88] sm:$0xff]
  %v1212 = vld [vmem:[%s1193 + $0x90] sm:$0xff]
  %v1213 = vld [vmem:[%s1193 + $0x98] sm:$0xff]
  %v1214 = vld [vmem:[%s1193 + $0xa0] sm:$0xff]
  %v1215 = vld [vmem:[%s1193 + $0xa8] sm:$0xff]
  %v1216 = vld [vmem:[%s1193 + $0xb0] sm:$0xff]
  %v1217 = vld [vmem:[%s1193 + $0xb8] sm:$0xff]
  %v1218 = vld [vmem:[%s1193 + $0xc0] sm:$0xff]
  %v1219 = vld [vmem:[%s1193 + $0xc8] sm:$0xff]
  %v1220 = vld [vmem:[%s1193 + $0xd0] sm:$0xff]
  %v1221 = vld [vmem:[%s1193 + $0xd8] sm:$0xff]
  %v1222 = vld [vmem:[%s1193 + $0xe0] sm:$0xff]
  %v1223 = vld [vmem:[%s1193 + $0xe8] sm:$0xff]
  %v1224 = vld [vmem:[%s1193 + $0xf0] sm:$0xff]
  %v1225 = vld [vmem:[%s1193 + $0xf8] sm:$0xff]
  %v1226 = vld [vmem:[%s1193 + $0x100] sm:$0xff]
  %v1227 = vld [vmem:[%s1193 + $0x108] sm:$0xff]
  %v1228 = vld [vmem:[%s1193 + $0x110] sm:$0xff]
  %v1229 = vld [vmem:[%s1193 + $0x118] sm:$0xff]
  %v1230 = vld [vmem:[%s1193 + $0x120] sm:$0x77]
  %v1231 = vld [vmem:[%s1193 + $0x128] sm:$0x77]
  %v1232 = vld [vmem:[%s1193 + $0x130] sm:$0x77]
  %v1272 = vunpack.c.l.b16 %v1194
  %v1273 = vunpack.c.h.b16 %v1194
  %v1274 = vunpack.c.l.b16 %v1195
  %v1275 = vunpack.c.h.b16 %v1195
  %v1276 = vunpack.c.l.b16 %v1196
  %v1277 = vunpack.c.h.b16 %v1196
  %v1278 = vunpack.c.l.b16 %v1197
  %v1279 = vunpack.c.h.b16 %v1197
  %v1280 = vunpack.c.l.b16 %v1198
  %v1281 = vunpack.c.h.b16 %v1198
  %v1282 = vunpack.c.l.b16 %v1199
  %v1283 = vunpack.c.h.b16 %v1199
  %v1284 = vunpack.c.l.b16 %v1200
  %v1285 = vunpack.c.h.b16 %v1200
  %v1286 = vunpack.c.l.b16 %v1201
  %v1287 = vunpack.c.h.b16 %v1201
  %v1288 = vunpack.c.l.b16 %v1202
  %v1289 = vunpack.c.h.b16 %v1202
  %v1290 = vunpack.c.l.b16 %v1203
  %v1291 = vunpack.c.h.b16 %v1203
  %v1292 = vunpack.c.l.b16 %v1204
  %v1293 = vunpack.c.h.b16 %v1204
  %v1294 = vunpack.c.l.b16 %v1205
  %v1295 = vunpack.c.h.b16 %v1205
  %v1296 = vunpack.c.l.b16 %v1206
  %v1297 = vunpack.c.h.b16 %v1206
  %v1298 = vunpack.c.l.b16 %v1207
  %v1299 = vunpack.c.h.b16 %v1207
  %v1300 = vunpack.c.l.b16 %v1208
  %v1301 = vunpack.c.h.b16 %v1208
  %v1302 = vunpack.c.l.b16 %v1209
  %v1303 = vunpack.c.h.b16 %v1209
  %v1304 = vunpack.c.l.b16 %v1210
  %v1305 = vunpack.c.h.b16 %v1210
  %v1306 = vunpack.c.l.b16 %v1211
  %v1307 = vunpack.c.h.b16 %v1211
  %v1308 = vunpack.c.l.b16 %v1212
  %v1309 = vunpack.c.h.b16 %v1212
  %v1310 = vunpack.c.l.b16 %v1213
  %v1311 = vunpack.c.h.b16 %v1213
  %v1312 = vunpack.c.l.b16 %v1214
  %v1313 = vunpack.c.h.b16 %v1214
  %v1314 = vunpack.c.l.b16 %v1215
  %v1315 = vunpack.c.h.b16 %v1215
  %v1316 = vunpack.c.l.b16 %v1216
  %v1317 = vunpack.c.h.b16 %v1216
  %v1318 = vunpack.c.l.b16 %v1217
  %v1319 = vunpack.c.h.b16 %v1217
  %v1320 = vunpack.c.l.b16 %v1218
  %v1321 = vunpack.c.h.b16 %v1218
  %v1322 = vunpack.c.l.b16 %v1219
  %v1323 = vunpack.c.h.b16 %v1219
  %v1324 = vunpack.c.l.b16 %v1220
  %v1325 = vunpack.c.h.b16 %v1220
  %v1326 = vunpack.c.l.b16 %v1221
  %v1327 = vunpack.c.h.b16 %v1221
  %v1328 = vunpack.c.l.b16 %v1222
  %v1329 = vunpack.c.h.b16 %v1222
  %v1330 = vunpack.c.l.b16 %v1223
  %v1331 = vunpack.c.h.b16 %v1223
  %v1332 = vunpack.c.l.b16 %v1224
  %v1333 = vunpack.c.h.b16 %v1224
  %v1334 = vunpack.c.l.b16 %v1225
  %v1335 = vunpack.c.h.b16 %v1225
  %v1336 = vunpack.c.l.b16 %v1226
  %v1337 = vunpack.c.h.b16 %v1226
  %v1338 = vunpack.c.l.b16 %v1227
  %v1339 = vunpack.c.h.b16 %v1227
  %v1340 = vunpack.c.l.b16 %v1228
  %v1341 = vunpack.c.h.b16 %v1228
  %v1342 = vunpack.c.l.b16 %v1229
  %v1343 = vunpack.c.h.b16 %v1229
  %v1344 = vunpack.c.l.b16 %v1230
  %v1345 = vunpack.c.h.b16 %v1230
  %v1346 = vunpack.c.l.b16 %v1231
  %v1347 = vunpack.c.h.b16 %v1231
  %v1348 = vunpack.c.l.b16 %v1232
  %v1349 = vunpack.c.h.b16 %v1232
  %v1350 = vpack.c.b16 %v1278, %v1272
  %v1351 = vpack.c.b16 %v1279, %v1273
  %v1352 = vpack.c.b16 %v1280, %v1274
  %v1353 = vpack.c.b16 %v1281, %v1275
  %v1354 = vpack.c.b16 %v1282, %v1276
  %v1355 = vpack.c.b16 %v1283, %v1277
  %v1356 = vpack.c.b16 %v1290, %v1284
  %v1357 = vpack.c.b16 %v1291, %v1285
  %v1358 = vpack.c.b16 %v1292, %v1286
  %v1359 = vpack.c.b16 %v1293, %v1287
  %v1360 = vpack.c.b16 %v1294, %v1288
  %v1361 = vpack.c.b16 %v1295, %v1289
  %v1362 = vpack.c.b16 %v1302, %v1296
  %v1363 = vpack.c.b16 %v1303, %v1297
  %v1364 = vpack.c.b16 %v1304, %v1298
  %v1365 = vpack.c.b16 %v1305, %v1299
  %v1366 = vpack.c.b16 %v1306, %v1300
  %v1367 = vpack.c.b16 %v1307, %v1301
  %v1368 = vpack.c.b16 %v1314, %v1308
  %v1369 = vpack.c.b16 %v1315, %v1309
  %v1370 = vpack.c.b16 %v1316, %v1310
  %v1371 = vpack.c.b16 %v1317, %v1311
  %v1372 = vpack.c.b16 %v1318, %v1312
  %v1373 = vpack.c.b16 %v1319, %v1313
  %v1374 = vpack.c.b16 %v1326, %v1320
  %v1375 = vpack.c.b16 %v1327, %v1321
  %v1376 = vpack.c.b16 %v1328, %v1322
  %v1377 = vpack.c.b16 %v1329, %v1323
  %v1378 = vpack.c.b16 %v1330, %v1324
  %v1379 = vpack.c.b16 %v1331, %v1325
  %v1380 = vpack.c.b16 %v1338, %v1332
  %v1381 = vpack.c.b16 %v1339, %v1333
  %v1382 = vpack.c.b16 %v1340, %v1334
  %v1383 = vpack.c.b16 %v1341, %v1335
  %v1384 = vpack.c.b16 %v1342, %v1336
  %v1385 = vpack.c.b16 %v1343, %v1337
  %v1386 = vpack.c.b16 %v1344, %v1344
  %v1387 = vpack.c.b16 %v1345, %v1345
  %v1388 = vpack.c.b16 %v1346, %v1346
  %v1389 = vpack.c.b16 %v1347, %v1347
  %v1390 = vpack.c.b16 %v1348, %v1348
  %v1391 = vpack.c.b16 %v1349, %v1349
  %v1429 = vsel %vm315, %v1386, 0
  %v1432 = vsel %vm315, %v1387, 0
  %v1435 = vsel %vm315, %v1388, 0
  %v1438 = vsel %vm315, %v1389, 0
  %v1441 = vsel %vm315, %v1390, 0
  %v1444 = vsel %vm315, %v1391, 0
  %1446 = vmatprep.subr.bf16.mxu0 %v1351
  %1447 = vmatpush1.bf16.msra.mxu0 %v1350
  %1448 = vmatprep.subr.bf16.mxu0 %v1357
  %1449 = vmatpush1.bf16.msra.mxu0 %v1356
  %1450 = vmatprep.subr.bf16.mxu0 %v1363
  %1451 = vmatpush1.bf16.msra.mxu0 %v1362
  %1452 = vmatprep.subr.bf16.mxu0 %v1369
  %1453 = vmatpush1.bf16.msra.mxu0 %v1368
  %1454 = vmatprep.subr.bf16.mxu0 %v1375
  %1455 = vmatpush1.bf16.msra.mxu0 %v1374
  %1456 = vmatprep.subr.bf16.mxu0 %v1381
  %1457 = vmatpush1.bf16.msra.mxu0 %v1380
  %1458 = vmatprep.subr.bf16.mxu0 %v1432
  %1459 = vmatpush1.bf16.msra.mxu0 %v1429
  %1460 = vmatprep.subr.bf16.mxu0 0
  %1461 = vmatpush1.bf16.msra.mxu0 0
  %1462 = vmatprep.subr.bf16.mxu0 0
  %1463 = vmatpush1.bf16.msra.mxu0 0
  %1464 = vmatprep.subr.bf16.mxu0 0
  %1465 = vmatpush1.bf16.msra.mxu0 0
  %1466 = vmatprep.subr.bf16.mxu0 0
  %1467 = vmatpush1.bf16.msra.mxu0 0
  %1468 = vmatprep.subr.bf16.mxu0 0
  %1469 = vmatpush1.bf16.msra.mxu0 0
  %1470 = vmatprep.subr.bf16.mxu0 0
  %1471 = vmatpush1.bf16.msra.mxu0 0
  %1472 = vmatprep.subr.bf16.mxu0 0
  %1473 = vmatpush1.bf16.msra.mxu0 0
  %1474 = vmatprep.subr.bf16.mxu0 0
  %1475 = vmatpush1.bf16.msra.mxu0 0
  %1476 = vmatprep.subr.bf16.mxu0 0
  %1477 = vmatpush1.bf16.msra.mxu0 0
  %1478 = vmatprep.mubr.bf16.mxu0 0
  %1479 = vmatmul.mubr.bf16.gmra.mrb[0].mxu0 %v310
  %v1480 = vpop.f32.mrb[0].mxu0
  %v1481 = vadd.f32 %v86, %v1480
  %v1482 = vpop.f32.mrb[0].mxu0
  %v1483 = vadd.f32 %v86, %v1482
  %v1484 = vpop.f32.mrb[0].mxu0
  %v1485 = vadd.f32 %v91, %v1484
  %v1486 = vpop.f32.mrb[0].mxu0
  %v1487 = vadd.f32 %v91, %v1486
  %1488 = vmatprep.mubr.bf16.mxu0 0
  %1489 = vmatmul.mubr.bf16.gmra.mrb[0].mxu0 %v313
  %v1490 = vpop.f32.mrb[0].mxu0
  %v1491 = vadd.f32 %v96, %v1490
  %v1492 = vpop.f32.mrb[0].mxu0
  %v1493 = vadd.f32 %v96, %v1492
  %v1494 = vpop.f32.mrb[0].mxu0
  %v1495 = vadd.f32 %v101, %v1494
  %v1496 = vpop.f32.mrb[0].mxu0
  %v1497 = vadd.f32 %v101, %v1496
  %1498 = vdwg.mxu0
  %1499 = vmatprep.subr.bf16.mxu0 %v1353
  %1500 = vmatpush1.bf16.msra.mxu0 %v1352
  %1501 = vmatprep.subr.bf16.mxu0 %v1359
  %1502 = vmatpush1.bf16.msra.mxu0 %v1358
  %1503 = vmatprep.subr.bf16.mxu0 %v1365
  %1504 = vmatpush1.bf16.msra.mxu0 %v1364
  %1505 = vmatprep.subr.bf16.mxu0 %v1371
  %1506 = vmatpush1.bf16.msra.mxu0 %v1370
  %1507 = vmatprep.subr.bf16.mxu0 %v1377
  %1508 = vmatpush1.bf16.msra.mxu0 %v1376
  %1509 = vmatprep.subr.bf16.mxu0 %v1383
  %1510 = vmatpush1.bf16.msra.mxu0 %v1382
  %1511 = vmatprep.subr.bf16.mxu0 %v1438
  %1512 = vmatpush1.bf16.msra.mxu0 %v1435
  %1513 = vmatprep.subr.bf16.mxu0 0
  %1514 = vmatpush1.bf16.msra.mxu0 0
  %1515 = vmatprep.subr.bf16.mxu0 0
  %1516 = vmatpush1.bf16.msra.mxu0 0
  %1517 = vmatprep.subr.bf16.mxu0 0
  %1518 = vmatpush1.bf16.msra.mxu0 0
  %1519 = vmatprep.subr.bf16.mxu0 0
  %1520 = vmatpush1.bf16.msra.mxu0 0
  %1521 = vmatprep.subr.bf16.mxu0 0
  %1522 = vmatpush1.bf16.msra.mxu0 0
  %1523 = vmatprep.subr.bf16.mxu0 0
  %1524 = vmatpush1.bf16.msra.mxu0 0
  %1525 = vmatprep.subr.bf16.mxu0 0
  %1526 = vmatpush1.bf16.msra.mxu0 0
  %1527 = vmatprep.subr.bf16.mxu0 0
  %1528 = vmatpush1.bf16.msra.mxu0 0
  %1529 = vmatprep.subr.bf16.mxu0 0
  %1530 = vmatpush1.bf16.msra.mxu0 0
  %1531 = vmatprep.mubr.bf16.mxu0 0
  %1532 = vmatmul.mubr.bf16.gmra.mrb[0].mxu0 %v310
  %v1533 = vpop.f32.mrb[0].mxu0
  %v1534 = vadd.f32 %v86, %v1533
  %v1535 = vpop.f32.mrb[0].mxu0
  %v1536 = vadd.f32 %v86, %v1535
  %v1537 = vpop.f32.mrb[0].mxu0
  %v1538 = vadd.f32 %v91, %v1537
  %v1539 = vpop.f32.mrb[0].mxu0
  %v1540 = vadd.f32 %v91, %v1539
  %1541 = vmatprep.mubr.bf16.mxu0 0
  %1542 = vmatmul.mubr.bf16.gmra.mrb[0].mxu0 %v313
  %v1543 = vpop.f32.mrb[0].mxu0
  %v1544 = vadd.f32 %v96, %v1543
  %v1545 = vpop.f32.mrb[0].mxu0
  %v1546 = vadd.f32 %v96, %v1545
  %v1547 = vpop.f32.mrb[0].mxu0
  %v1548 = vadd.f32 %v101, %v1547
  %v1549 = vpop.f32.mrb[0].mxu0
  %v1550 = vadd.f32 %v101, %v1549
  %1551 = vdwg.mxu0
  %1552 = vmatprep.subr.bf16.mxu0 %v1355
  %1553 = vmatpush1.bf16.msra.mxu0 %v1354
  %1554 = vmatprep.subr.bf16.mxu0 %v1361
  %1555 = vmatpush1.bf16.msra.mxu0 %v1360
  %1556 = vmatprep.subr.bf16.mxu0 %v1367
  %1557 = vmatpush1.bf16.msra.mxu0 %v1366
  %1558 = vmatprep.subr.bf16.mxu0 %v1373
  %1559 = vmatpush1.bf16.msra.mxu0 %v1372
  %1560 = vmatprep.subr.bf16.mxu0 %v1379
  %1561 = vmatpush1.bf16.msra.mxu0 %v1378
  %1562 = vmatprep.subr.bf16.mxu0 %v1385
  %1563 = vmatpush1.bf16.msra.mxu0 %v1384
  %1564 = vmatprep.subr.bf16.mxu0 %v1444
  %1565 = vmatpush1.bf16.msra.mxu0 %v1441
  %1566 = vmatprep.subr.bf16.mxu0 0
  %1567 = vmatpush1.bf16.msra.mxu0 0
  %1568 = vmatprep.subr.bf16.mxu0 0
  %1569 = vmatpush1.bf16.msra.mxu0 0
  %1570 = vmatprep.subr.bf16.mxu0 0
  %1571 = vmatpush1.bf16.msra.mxu0 0
  %1572 = vmatprep.subr.bf16.mxu0 0
  %1573 = vmatpush1.bf16.msra.mxu0 0
  %1574 = vmatprep.subr.bf16.mxu0 0
  %1575 = vmatpush1.bf16.msra.mxu0 0
  %1576 = vmatprep.subr.bf16.mxu0 0
  %1577 = vmatpush1.bf16.msra.mxu0 0
  %1578 = vmatprep.subr.bf16.mxu0 0
  %1579 = vmatpush1.bf16.msra.mxu0 0
  %1580 = vmatprep.subr.bf16.mxu0 0
  %1581 = vmatpush1.bf16.msra.mxu0 0
  %1582 = vmatprep.subr.bf16.mxu0 0
  %1583 = vmatpush1.bf16.msra.mxu0 0
  %1584 = vmatprep.mubr.bf16.mxu0 0
  %1585 = vmatmul.mubr.bf16.gmra.mrb[0].mxu0 %v310
  %v1586 = vpop.f32.mrb[0].mxu0
  %v1587 = vadd.f32 %v86, %v1586
  %v1588 = vpop.f32.mrb[0].mxu0
  %v1589 = vadd.f32 %v86, %v1588
  %v1590 = vpop.f32.mrb[0].mxu0
  %v1591 = vadd.f32 %v91, %v1590
  %v1592 = vpop.f32.mrb[0].mxu0
  %v1593 = vadd.f32 %v91, %v1592
  %1594 = vmatprep.mubr.bf16.mxu0 0
  %1595 = vmatmul.mubr.bf16.gmra.mrb[0].mxu0 %v313
  %v1596 = vpop.f32.mrb[0].mxu0
  %v1597 = vadd.f32 %v96, %v1596
  %v1598 = vpop.f32.mrb[0].mxu0
  %v1599 = vadd.f32 %v96, %v1598
  %v1600 = vpop.f32.mrb[0].mxu0
  %v1601 = vadd.f32 %v101, %v1600
  %v1602 = vpop.f32.mrb[0].mxu0
  %v1603 = vadd.f32 %v101, %v1602
  %1604 = vdwg.mxu0
  %vm1605 = vcmp.gt.f32.partialorder %v1481, 0.0
  %vm1606 = vcmp.gt.f32.partialorder %v1483, 0.0
  %vm1607 = vcmp.gt.f32.partialorder %v1534, 0.0
  %vm1608 = vcmp.gt.f32.partialorder %v1536, 0.0
  %vm1609 = vcmp.gt.f32.partialorder %v1587, 0.0
  %vm1610 = vcmp.gt.f32.partialorder %v1589, 0.0
  %vm1611 = vcmp.gt.f32.partialorder %v1485, 0.0
  %vm1612 = vcmp.gt.f32.partialorder %v1487, 0.0
  %vm1613 = vcmp.gt.f32.partialorder %v1538, 0.0
  %vm1614 = vcmp.gt.f32.partialorder %v1540, 0.0
  %vm1615 = vcmp.gt.f32.partialorder %v1591, 0.0
  %vm1616 = vcmp.gt.f32.partialorder %v1593, 0.0
  %vm1617 = vcmp.gt.f32.partialorder %v1491, 0.0
  %vm1618 = vcmp.gt.f32.partialorder %v1493, 0.0
  %vm1619 = vcmp.gt.f32.partialorder %v1544, 0.0
  %vm1620 = vcmp.gt.f32.partialorder %v1546, 0.0
  %vm1621 = vcmp.gt.f32.partialorder %v1597, 0.0
  %vm1622 = vcmp.gt.f32.partialorder %v1599, 0.0
  %vm1623 = vcmp.gt.f32.partialorder %v1495, 0.0
  %vm1624 = vcmp.gt.f32.partialorder %v1497, 0.0
  %vm1625 = vcmp.gt.f32.partialorder %v1548, 0.0
  %vm1626 = vcmp.gt.f32.partialorder %v1550, 0.0
  %vm1627 = vcmp.gt.f32.partialorder %v1601, 0.0
  %vm1628 = vcmp.gt.f32.partialorder %v1603, 0.0
  %v1629 = vmin.f32 %v1481, 0.0
  %v1630 = vmin.f32 %v1483, 0.0
  %v1631 = vmin.f32 %v1534, 0.0
  %v1632 = vmin.f32 %v1536, 0.0
  %v1633 = vmin.f32 %v1587, 0.0
  %v1634 = vmin.f32 %v1589, 0.0
  %v1635 = vmin.f32 %v1485, 0.0
  %v1636 = vmin.f32 %v1487, 0.0
  %v1637 = vmin.f32 %v1538, 0.0
  %v1638 = vmin.f32 %v1540, 0.0
  %v1639 = vmin.f32 %v1591, 0.0
  %v1640 = vmin.f32 %v1593, 0.0
  %v1641 = vmin.f32 %v1491, 0.0
  %v1642 = vmin.f32 %v1493, 0.0
  %v1643 = vmin.f32 %v1544, 0.0
  %v1644 = vmin.f32 %v1546, 0.0
  %v1645 = vmin.f32 %v1597, 0.0
  %v1646 = vmin.f32 %v1599, 0.0
  %v1647 = vmin.f32 %v1495, 0.0
  %v1648 = vmin.f32 %v1497, 0.0
  %v1649 = vmin.f32 %v1548, 0.0
  %v1650 = vmin.f32 %v1550, 0.0
  %v1651 = vmin.f32 %v1601, 0.0
  %v1652 = vmin.f32 %v1603, 0.0
  %v1653 = vmul.f32 %v1629, 1.442695
  %v1654 = vpow.pop %v1653
  %v1655 = vmul.f32 %v1630, 1.442695
  %v1656 = vpow.pop %v1655
  %v1657 = vmul.f32 %v1631, 1.442695
  %v1658 = vpow.pop %v1657
  %v1659 = vmul.f32 %v1632, 1.442695
  %v1660 = vpow.pop %v1659
  %v1661 = vmul.f32 %v1633, 1.442695
  %v1662 = vpow.pop %v1661
  %v1663 = vmul.f32 %v1634, 1.442695
  %v1664 = vpow.pop %v1663
  %v1665 = vmul.f32 %v1635, 1.442695
  %v1666 = vpow.pop %v1665
  %v1667 = vmul.f32 %v1636, 1.442695
  %v1668 = vpow.pop %v1667
  %v1669 = vmul.f32 %v1637, 1.442695
  %v1670 = vpow.pop %v1669
  %v1671 = vmul.f32 %v1638, 1.442695
  %v1672 = vpow.pop %v1671
  %v1673 = vmul.f32 %v1639, 1.442695
  %v1674 = vpow.pop %v1673
  %v1675 = vmul.f32 %v1640, 1.442695
  %v1676 = vpow.pop %v1675
  %v1677 = vmul.f32 %v1641, 1.442695
  %v1678 = vpow.pop %v1677
  %v1679 = vmul.f32 %v1642, 1.442695
  %v1680 = vpow.pop %v1679
  %v1681 = vmul.f32 %v1643, 1.442695
  %v1682 = vpow.pop %v1681
  %v1683 = vmul.f32 %v1644, 1.442695
  %v1684 = vpow.pop %v1683
  %v1685 = vmul.f32 %v1645, 1.442695
  %v1686 = vpow.pop %v1685
  %v1687 = vmul.f32 %v1646, 1.442695
  %v1688 = vpow.pop %v1687
  %v1689 = vmul.f32 %v1647, 1.442695
  %v1690 = vpow.pop %v1689
  %v1691 = vmul.f32 %v1648, 1.442695
  %v1692 = vpow.pop %v1691
  %v1693 = vmul.f32 %v1649, 1.442695
  %v1694 = vpow.pop %v1693
  %v1695 = vmul.f32 %v1650, 1.442695
  %v1696 = vpow.pop %v1695
  %v1697 = vmul.f32 %v1651, 1.442695
  %v1698 = vpow.pop %v1697
  %v1699 = vmul.f32 %v1652, 1.442695
  %v1700 = vpow.pop %v1699
  %v1701 = vsub.f32 %v1654, 1.0
  %v1702 = vsub.f32 %v1656, 1.0
  %v1703 = vsub.f32 %v1658, 1.0
  %v1704 = vsub.f32 %v1660, 1.0
  %v1705 = vsub.f32 %v1662, 1.0
  %v1706 = vsub.f32 %v1664, 1.0
  %v1707 = vsub.f32 %v1666, 1.0
  %v1708 = vsub.f32 %v1668, 1.0
  %v1709 = vsub.f32 %v1670, 1.0
  %v1710 = vsub.f32 %v1672, 1.0
  %v1711 = vsub.f32 %v1674, 1.0
  %v1712 = vsub.f32 %v1676, 1.0
  %v1713 = vsub.f32 %v1678, 1.0
  %v1714 = vsub.f32 %v1680, 1.0
  %v1715 = vsub.f32 %v1682, 1.0
  %v1716 = vsub.f32 %v1684, 1.0
  %v1717 = vsub.f32 %v1686, 1.0
  %v1718 = vsub.f32 %v1688, 1.0
  %v1719 = vsub.f32 %v1690, 1.0
  %v1720 = vsub.f32 %v1692, 1.0
  %v1721 = vsub.f32 %v1694, 1.0
  %v1722 = vsub.f32 %v1696, 1.0
  %v1723 = vsub.f32 %v1698, 1.0
  %v1724 = vsub.f32 %v1700, 1.0
  %v1725 = vsel %vm1605, %v1481, %v1701
  %v1726 = vsel %vm1606, %v1483, %v1702
  %v1727 = vsel %vm1607, %v1534, %v1703
  %v1728 = vsel %vm1608, %v1536, %v1704
  %v1729 = vsel %vm1609, %v1587, %v1705
  %v1730 = vsel %vm1610, %v1589, %v1706
  %v1731 = vsel %vm1611, %v1485, %v1707
  %v1732 = vsel %vm1612, %v1487, %v1708
  %v1733 = vsel %vm1613, %v1538, %v1709
  %v1734 = vsel %vm1614, %v1540, %v1710
  %v1735 = vsel %vm1615, %v1591, %v1711
  %v1736 = vsel %vm1616, %v1593, %v1712
  %v1737 = vsel %vm1617, %v1491, %v1713
  %v1738 = vsel %vm1618, %v1493, %v1714
  %v1739 = vsel %vm1619, %v1544, %v1715
  %v1740 = vsel %vm1620, %v1546, %v1716
  %v1741 = vsel %vm1621, %v1597, %v1717
  %v1742 = vsel %vm1622, %v1599, %v1718
  %v1743 = vsel %vm1623, %v1495, %v1719
  %v1744 = vsel %vm1624, %v1497, %v1720
  %v1745 = vsel %vm1625, %v1548, %v1721
  %v1746 = vsel %vm1626, %v1550, %v1722
  %v1747 = vsel %vm1627, %v1601, %v1723
  %v1748 = vsel %vm1628, %v1603, %v1724
  %s1749 = scalar_lea.vmem %s0, 936
  %v1750 = vld [vmem:[%s1749] sm:$0xff]
  %v1751 = vld [vmem:[%s1749 + $0x8] sm:$0xff]
  %v1752 = vld [vmem:[%s1749 + $0x10] sm:$0xff]
  %v1753 = vld [vmem:[%s1749 + $0x18] sm:$0xff]
  %v1754 = vld [vmem:[%s1749 + $0x20] sm:$0xff]
  %v1755 = vld [vmem:[%s1749 + $0x28] sm:$0xff]
  %v1756 = vld [vmem:[%s1749 + $0x30] sm:$0xff]
  %v1757 = vld [vmem:[%s1749 + $0x38] sm:$0xff]
  %v1758 = vld [vmem:[%s1749 + $0x40] sm:$0xff]
  %v1759 = vld [vmem:[%s1749 + $0x48] sm:$0xff]
  %v1760 = vld [vmem:[%s1749 + $0x50] sm:$0xff]
  %v1761 = vld [vmem:[%s1749 + $0x58] sm:$0xff]
  %v1762 = vld [vmem:[%s1749 + $0x60] sm:$0xff]
  %v1763 = vld [vmem:[%s1749 + $0x68] sm:$0xff]
  %v1764 = vld [vmem:[%s1749 + $0x70] sm:$0xff]
  %v1765 = vld [vmem:[%s1749 + $0x78] sm:$0xff]
  %v1766 = vld [vmem:[%s1749 + $0x80] sm:$0xff]
  %v1767 = vld [vmem:[%s1749 + $0x88] sm:$0xff]
  %v1768 = vld [vmem:[%s1749 + $0x90] sm:$0xff]
  %v1769 = vld [vmem:[%s1749 + $0x98] sm:$0xff]
  %v1770 = vld [vmem:[%s1749 + $0xa0] sm:$0xff]
  %v1771 = vld [vmem:[%s1749 + $0xa8] sm:$0xff]
  %v1772 = vld [vmem:[%s1749 + $0xb0] sm:$0xff]
  %v1773 = vld [vmem:[%s1749 + $0xb8] sm:$0xff]
  %v1774 = vld [vmem:[%s1749 + $0xc0] sm:$0xff]
  %v1775 = vld [vmem:[%s1749 + $0xc8] sm:$0xff]
  %v1776 = vld [vmem:[%s1749 + $0xd0] sm:$0xff]
  %v1777 = vld [vmem:[%s1749 + $0xd8] sm:$0xff]
  %v1778 = vld [vmem:[%s1749 + $0xe0] sm:$0xff]
  %v1779 = vld [vmem:[%s1749 + $0xe8] sm:$0xff]
  %v1780 = vld [vmem:[%s1749 + $0xf0] sm:$0xff]
  %v1781 = vld [vmem:[%s1749 + $0xf8] sm:$0xff]
  %v1782 = vld [vmem:[%s1749 + $0x100] sm:$0xff]
  %v1783 = vld [vmem:[%s1749 + $0x108] sm:$0xff]
  %v1784 = vld [vmem:[%s1749 + $0x110] sm:$0xff]
  %v1785 = vld [vmem:[%s1749 + $0x118] sm:$0xff]
  %v1786 = vld [vmem:[%s1749 + $0x120] sm:$0x77]
  %v1787 = vld [vmem:[%s1749 + $0x128] sm:$0x77]
  %v1788 = vld [vmem:[%s1749 + $0x130] sm:$0x77]
  %v1828 = vunpack.c.l.b16 %v1750
  %v1829 = vunpack.c.h.b16 %v1750
  %v1830 = vunpack.c.l.b16 %v1751
  %v1831 = vunpack.c.h.b16 %v1751
  %v1832 = vunpack.c.l.b16 %v1752
  %v1833 = vunpack.c.h.b16 %v1752
  %v1834 = vunpack.c.l.b16 %v1753
  %v1835 = vunpack.c.h.b16 %v1753
  %v1836 = vunpack.c.l.b16 %v1754
  %v1837 = vunpack.c.h.b16 %v1754
  %v1838 = vunpack.c.l.b16 %v1755
  %v1839 = vunpack.c.h.b16 %v1755
  %v1840 = vunpack.c.l.b16 %v1756
  %v1841 = vunpack.c.h.b16 %v1756
  %v1842 = vunpack.c.l.b16 %v1757
  %v1843 = vunpack.c.h.b16 %v1757
  %v1844 = vunpack.c.l.b16 %v1758
  %v1845 = vunpack.c.h.b16 %v1758
  %v1846 = vunpack.c.l.b16 %v1759
  %v1847 = vunpack.c.h.b16 %v1759
  %v1848 = vunpack.c.l.b16 %v1760
  %v1849 = vunpack.c.h.b16 %v1760
  %v1850 = vunpack.c.l.b16 %v1761
  %v1851 = vunpack.c.h.b16 %v1761
  %v1852 = vunpack.c.l.b16 %v1762
  %v1853 = vunpack.c.h.b16 %v1762
  %v1854 = vunpack.c.l.b16 %v1763
  %v1855 = vunpack.c.h.b16 %v1763
  %v1856 = vunpack.c.l.b16 %v1764
  %v1857 = vunpack.c.h.b16 %v1764
  %v1858 = vunpack.c.l.b16 %v1765
  %v1859 = vunpack.c.h.b16 %v1765
  %v1860 = vunpack.c.l.b16 %v1766
  %v1861 = vunpack.c.h.b16 %v1766
  %v1862 = vunpack.c.l.b16 %v1767
  %v1863 = vunpack.c.h.b16 %v1767
  %v1864 = vunpack.c.l.b16 %v1768
  %v1865 = vunpack.c.h.b16 %v1768
  %v1866 = vunpack.c.l.b16 %v1769
  %v1867 = vunpack.c.h.b16 %v1769
  %v1868 = vunpack.c.l.b16 %v1770
  %v1869 = vunpack.c.h.b16 %v1770
  %v1870 = vunpack.c.l.b16 %v1771
  %v1871 = vunpack.c.h.b16 %v1771
  %v1872 = vunpack.c.l.b16 %v1772
  %v1873 = vunpack.c.h.b16 %v1772
  %v1874 = vunpack.c.l.b16 %v1773
  %v1875 = vunpack.c.h.b16 %v1773
  %v1876 = vunpack.c.l.b16 %v1774
  %v1877 = vunpack.c.h.b16 %v1774
  %v1878 = vunpack.c.l.b16 %v1775
  %v1879 = vunpack.c.h.b16 %v1775
  %v1880 = vunpack.c.l.b16 %v1776
  %v1881 = vunpack.c.h.b16 %v1776
  %v1882 = vunpack.c.l.b16 %v1777
  %v1883 = vunpack.c.h.b16 %v1777
  %v1884 = vunpack.c.l.b16 %v1778
  %v1885 = vunpack.c.h.b16 %v1778
  %v1886 = vunpack.c.l.b16 %v1779
  %v1887 = vunpack.c.h.b16 %v1779
  %v1888 = vunpack.c.l.b16 %v1780
  %v1889 = vunpack.c.h.b16 %v1780
  %v1890 = vunpack.c.l.b16 %v1781
  %v1891 = vunpack.c.h.b16 %v1781
  %v1892 = vunpack.c.l.b16 %v1782
  %v1893 = vunpack.c.h.b16 %v1782
  %v1894 = vunpack.c.l.b16 %v1783
  %v1895 = vunpack.c.h.b16 %v1783
  %v1896 = vunpack.c.l.b16 %v1784
  %v1897 = vunpack.c.h.b16 %v1784
  %v1898 = vunpack.c.l.b16 %v1785
  %v1899 = vunpack.c.h.b16 %v1785
  %v1900 = vunpack.c.l.b16 %v1786
  %v1901 = vunpack.c.h.b16 %v1786
  %v1902 = vunpack.c.l.b16 %v1787
  %v1903 = vunpack.c.h.b16 %v1787
  %v1904 = vunpack.c.l.b16 %v1788
  %v1905 = vunpack.c.h.b16 %v1788
  %v1906 = vpack.c.b16 %v1834, %v1828
  %v1907 = vpack.c.b16 %v1835, %v1829
  %v1908 = vpack.c.b16 %v1836, %v1830
  %v1909 = vpack.c.b16 %v1837, %v1831
  %v1910 = vpack.c.b16 %v1838, %v1832
  %v1911 = vpack.c.b16 %v1839, %v1833
  %v1912 = vpack.c.b16 %v1846, %v1840
  %v1913 = vpack.c.b16 %v1847, %v1841
  %v1914 = vpack.c.b16 %v1848, %v1842
  %v1915 = vpack.c.b16 %v1849, %v1843
  %v1916 = vpack.c.b16 %v1850, %v1844
  %v1917 = vpack.c.b16 %v1851, %v1845
  %v1918 = vpack.c.b16 %v1858, %v1852
  %v1919 = vpack.c.b16 %v1859, %v1853
  %v1920 = vpack.c.b16 %v1860, %v1854
  %v1921 = vpack.c.b16 %v1861, %v1855
  %v1922 = vpack.c.b16 %v1862, %v1856
  %v1923 = vpack.c.b16 %v1863, %v1857
  %v1924 = vpack.c.b16 %v1870, %v1864
  %v1925 = vpack.c.b16 %v1871, %v1865
  %v1926 = vpack.c.b16 %v1872, %v1866
  %v1927 = vpack.c.b16 %v1873, %v1867
  %v1928 = vpack.c.b16 %v1874, %v1868
  %v1929 = vpack.c.b16 %v1875, %v1869
  %v1930 = vpack.c.b16 %v1882, %v1876
  %v1931 = vpack.c.b16 %v1883, %v1877
  %v1932 = vpack.c.b16 %v1884, %v1878
  %v1933 = vpack.c.b16 %v1885, %v1879
  %v1934 = vpack.c.b16 %v1886, %v1880
  %v1935 = vpack.c.b16 %v1887, %v1881
  %v1936 = vpack.c.b16 %v1894, %v1888
  %v1937 = vpack.c.b16 %v1895, %v1889
  %v1938 = vpack.c.b16 %v1896, %v1890
  %v1939 = vpack.c.b16 %v1897, %v1891
  %v1940 = vpack.c.b16 %v1898, %v1892
  %v1941 = vpack.c.b16 %v1899, %v1893
  %v1942 = vpack.c.b16 %v1900, %v1900
  %v1943 = vpack.c.b16 %v1901, %v1901
  %v1944 = vpack.c.b16 %v1902, %v1902
  %v1945 = vpack.c.b16 %v1903, %v1903
  %v1946 = vpack.c.b16 %v1904, %v1904
  %v1947 = vpack.c.b16 %v1905, %v1905
  %v1985 = vsel %vm315, %v1942, 0
  %v1988 = vsel %vm315, %v1943, 0
  %v1991 = vsel %vm315, %v1944, 0
  %v1994 = vsel %vm315, %v1945, 0
  %v1997 = vsel %vm315, %v1946, 0
  %v2000 = vsel %vm315, %v1947, 0
  %2002 = vmatprep.subr.bf16.mxu0 %v1907
  %2003 = vmatpush1.bf16.msra.mxu0 %v1906
  %2004 = vmatprep.subr.bf16.mxu0 %v1913
  %2005 = vmatpush1.bf16.msra.mxu0 %v1912
  %2006 = vmatprep.subr.bf16.mxu0 %v1919
  %2007 = vmatpush1.bf16.msra.mxu0 %v1918
  %2008 = vmatprep.subr.bf16.mxu0 %v1925
  %2009 = vmatpush1.bf16.msra.mxu0 %v1924
  %2010 = vmatprep.subr.bf16.mxu0 %v1931
  %2011 = vmatpush1.bf16.msra.mxu0 %v1930
  %2012 = vmatprep.subr.bf16.mxu0 %v1937
  %2013 = vmatpush1.bf16.msra.mxu0 %v1936
  %2014 = vmatprep.subr.bf16.mxu0 %v1988
  %2015 = vmatpush1.bf16.msra.mxu0 %v1985
  %2016 = vmatprep.subr.bf16.mxu0 0
  %2017 = vmatpush1.bf16.msra.mxu0 0
  %2018 = vmatprep.subr.bf16.mxu0 0
  %2019 = vmatpush1.bf16.msra.mxu0 0
  %2020 = vmatprep.subr.bf16.mxu0 0
  %2021 = vmatpush1.bf16.msra.mxu0 0
  %2022 = vmatprep.subr.bf16.mxu0 0
  %2023 = vmatpush1.bf16.msra.mxu0 0
  %2024 = vmatprep.subr.bf16.mxu0 0
  %2025 = vmatpush1.bf16.msra.mxu0 0
  %2026 = vmatprep.subr.bf16.mxu0 0
  %2027 = vmatpush1.bf16.msra.mxu0 0
  %2028 = vmatprep.subr.bf16.mxu0 0
  %2029 = vmatpush1.bf16.msra.mxu0 0
  %2030 = vmatprep.subr.bf16.mxu0 0
  %2031 = vmatpush1.bf16.msra.mxu0 0
  %2032 = vmatprep.subr.bf16.mxu0 0
  %2033 = vmatpush1.bf16.msra.mxu0 0
  %2034 = vmatprep.mubr.bf16.mxu0 0
  %2035 = vmatmul.mubr.bf16.gmra.mrb[0].mxu0 %v310
  %v2036 = vpop.f32.mrb[0].mxu0
  %v2037 = vadd.f32 %v86, %v2036
  %v2038 = vpop.f32.mrb[0].mxu0
  %v2039 = vadd.f32 %v86, %v2038
  %v2040 = vpop.f32.mrb[0].mxu0
  %v2041 = vadd.f32 %v91, %v2040
  %v2042 = vpop.f32.mrb[0].mxu0
  %v2043 = vadd.f32 %v91, %v2042
  %2044 = vmatprep.mubr.bf16.mxu0 0
  %2045 = vmatmul.mubr.bf16.gmra.mrb[0].mxu0 %v313
  %v2046 = vpop.f32.mrb[0].mxu0
  %v2047 = vadd.f32 %v96, %v2046
  %v2048 = vpop.f32.mrb[0].mxu0
  %v2049 = vadd.f32 %v96, %v2048
  %v2050 = vpop.f32.mrb[0].mxu0
  %v2051 = vadd.f32 %v101, %v2050
  %v2052 = vpop.f32.mrb[0].mxu0
  %v2053 = vadd.f32 %v101, %v2052
  %2054 = vdwg.mxu0
  %2055 = vmatprep.subr.bf16.mxu0 %v1909
  %2056 = vmatpush1.bf16.msra.mxu0 %v1908
  %2057 = vmatprep.subr.bf16.mxu0 %v1915
  %2058 = vmatpush1.bf16.msra.mxu0 %v1914
  %2059 = vmatprep.subr.bf16.mxu0 %v1921
  %2060 = vmatpush1.bf16.msra.mxu0 %v1920
  %2061 = vmatprep.subr.bf16.mxu0 %v1927
  %2062 = vmatpush1.bf16.msra.mxu0 %v1926
  %2063 = vmatprep.subr.bf16.mxu0 %v1933
  %2064 = vmatpush1.bf16.msra.mxu0 %v1932
  %2065 = vmatprep.subr.bf16.mxu0 %v1939
  %2066 = vmatpush1.bf16.msra.mxu0 %v1938
  %2067 = vmatprep.subr.bf16.mxu0 %v1994
  %2068 = vmatpush1.bf16.msra.mxu0 %v1991
  %2069 = vmatprep.subr.bf16.mxu0 0
  %2070 = vmatpush1.bf16.msra.mxu0 0
  %2071 = vmatprep.subr.bf16.mxu0 0
  %2072 = vmatpush1.bf16.msra.mxu0 0
  %2073 = vmatprep.subr.bf16.mxu0 0
  %2074 = vmatpush1.bf16.msra.mxu0 0
  %2075 = vmatprep.subr.bf16.mxu0 0
  %2076 = vmatpush1.bf16.msra.mxu0 0
  %2077 = vmatprep.subr.bf16.mxu0 0
  %2078 = vmatpush1.bf16.msra.mxu0 0
  %2079 = vmatprep.subr.bf16.mxu0 0
  %2080 = vmatpush1.bf16.msra.mxu0 0
  %2081 = vmatprep.subr.bf16.mxu0 0
  %2082 = vmatpush1.bf16.msra.mxu0 0
  %2083 = vmatprep.subr.bf16.mxu0 0
  %2084 = vmatpush1.bf16.msra.mxu0 0
  %2085 = vmatprep.subr.bf16.mxu0 0
  %2086 = vmatpush1.bf16.msra.mxu0 0
  %2087 = vmatprep.mubr.bf16.mxu0 0
  %2088 = vmatmul.mubr.bf16.gmra.mrb[0].mxu0 %v310
  %v2089 = vpop.f32.mrb[0].mxu0
  %v2090 = vadd.f32 %v86, %v2089
  %v2091 = vpop.f32.mrb[0].mxu0
  %v2092 = vadd.f32 %v86, %v2091
  %v2093 = vpop.f32.mrb[0].mxu0
  %v2094 = vadd.f32 %v91, %v2093
  %v2095 = vpop.f32.mrb[0].mxu0
  %v2096 = vadd.f32 %v91, %v2095
  %2097 = vmatprep.mubr.bf16.mxu0 0
  %2098 = vmatmul.mubr.bf16.gmra.mrb[0].mxu0 %v313
  %v2099 = vpop.f32.mrb[0].mxu0
  %v2100 = vadd.f32 %v96, %v2099
  %v2101 = vpop.f32.mrb[0].mxu0
  %v2102 = vadd.f32 %v96, %v2101
  %v2103 = vpop.f32.mrb[0].mxu0
  %v2104 = vadd.f32 %v101, %v2103
  %v2105 = vpop.f32.mrb[0].mxu0
  %v2106 = vadd.f32 %v101, %v2105
  %2107 = vdwg.mxu0
  %2108 = vmatprep.subr.bf16.mxu0 %v1911
  %2109 = vmatpush1.bf16.msra.mxu0 %v1910
  %2110 = vmatprep.subr.bf16.mxu0 %v1917
  %2111 = vmatpush1.bf16.msra.mxu0 %v1916
  %2112 = vmatprep.subr.bf16.mxu0 %v1923
  %2113 = vmatpush1.bf16.msra.mxu0 %v1922
  %2114 = vmatprep.subr.bf16.mxu0 %v1929
  %2115 = vmatpush1.bf16.msra.mxu0 %v1928
  %2116 = vmatprep.subr.bf16.mxu0 %v1935
  %2117 = vmatpush1.bf16.msra.mxu0 %v1934
  %2118 = vmatprep.subr.bf16.mxu0 %v1941
  %2119 = vmatpush1.bf16.msra.mxu0 %v1940
  %2120 = vmatprep.subr.bf16.mxu0 %v2000
  %2121 = vmatpush1.bf16.msra.mxu0 %v1997
  %2122 = vmatprep.subr.bf16.mxu0 0
  %2123 = vmatpush1.bf16.msra.mxu0 0
  %2124 = vmatprep.subr.bf16.mxu0 0
  %2125 = vmatpush1.bf16.msra.mxu0 0
  %2126 = vmatprep.subr.bf16.mxu0 0
  %2127 = vmatpush1.bf16.msra.mxu0 0
  %2128 = vmatprep.subr.bf16.mxu0 0
  %2129 = vmatpush1.bf16.msra.mxu0 0
  %2130 = vmatprep.subr.bf16.mxu0 0
  %2131 = vmatpush1.bf16.msra.mxu0 0
  %2132 = vmatprep.subr.bf16.mxu0 0
  %2133 = vmatpush1.bf16.msra.mxu0 0
  %2134 = vmatprep.subr.bf16.mxu0 0
  %2135 = vmatpush1.bf16.msra.mxu0 0
  %2136 = vmatprep.subr.bf16.mxu0 0
  %2137 = vmatpush1.bf16.msra.mxu0 0
  %2138 = vmatprep.subr.bf16.mxu0 0
  %2139 = vmatpush1.bf16.msra.mxu0 0
  %2140 = vmatprep.mubr.bf16.mxu0 0
  %2141 = vmatmul.mubr.bf16.gmra.mrb[0].mxu0 %v310
  %v2142 = vpop.f32.mrb[0].mxu0
  %v2143 = vadd.f32 %v86, %v2142
  %v2144 = vpop.f32.mrb[0].mxu0
  %v2145 = vadd.f32 %v86, %v2144
  %v2146 = vpop.f32.mrb[0].mxu0
  %v2147 = vadd.f32 %v91, %v2146
  %v2148 = vpop.f32.mrb[0].mxu0
  %v2149 = vadd.f32 %v91, %v2148
  %2150 = vmatprep.mubr.bf16.mxu0 0
  %2151 = vmatmul.mubr.bf16.gmra.mrb[0].mxu0 %v313
  %v2152 = vpop.f32.mrb[0].mxu0
  %v2153 = vadd.f32 %v96, %v2152
  %v2154 = vpop.f32.mrb[0].mxu0
  %v2155 = vadd.f32 %v96, %v2154
  %v2156 = vpop.f32.mrb[0].mxu0
  %v2157 = vadd.f32 %v101, %v2156
  %v2158 = vpop.f32.mrb[0].mxu0
  %v2159 = vadd.f32 %v101, %v2158
  %2160 = vdwg.mxu0
  %vm2161 = vcmp.gt.f32.partialorder %v2037, 0.0
  %vm2162 = vcmp.gt.f32.partialorder %v2039, 0.0
  %vm2163 = vcmp.gt.f32.partialorder %v2090, 0.0
  %vm2164 = vcmp.gt.f32.partialorder %v2092, 0.0
  %vm2165 = vcmp.gt.f32.partialorder %v2143, 0.0
  %vm2166 = vcmp.gt.f32.partialorder %v2145, 0.0
  %vm2167 = vcmp.gt.f32.partialorder %v2041, 0.0
  %vm2168 = vcmp.gt.f32.partialorder %v2043, 0.0
  %vm2169 = vcmp.gt.f32.partialorder %v2094, 0.0
  %vm2170 = vcmp.gt.f32.partialorder %v2096, 0.0
  %vm2171 = vcmp.gt.f32.partialorder %v2147, 0.0
  %vm2172 = vcmp.gt.f32.partialorder %v2149, 0.0
  %vm2173 = vcmp.gt.f32.partialorder %v2047, 0.0
  %vm2174 = vcmp.gt.f32.partialorder %v2049, 0.0
  %vm2175 = vcmp.gt.f32.partialorder %v2100, 0.0
  %vm2176 = vcmp.gt.f32.partialorder %v2102, 0.0
  %vm2177 = vcmp.gt.f32.partialorder %v2153, 0.0
  %vm2178 = vcmp.gt.f32.partialorder %v2155, 0.0
  %vm2179 = vcmp.gt.f32.partialorder %v2051, 0.0
  %vm2180 = vcmp.gt.f32.partialorder %v2053, 0.0
  %vm2181 = vcmp.gt.f32.partialorder %v2104, 0.0
  %vm2182 = vcmp.gt.f32.partialorder %v2106, 0.0
  %vm2183 = vcmp.gt.f32.partialorder %v2157, 0.0
  %vm2184 = vcmp.gt.f32.partialorder %v2159, 0.0
  %v2185 = vmin.f32 %v2037, 0.0
  %v2186 = vmin.f32 %v2039, 0.0
  %v2187 = vmin.f32 %v2090, 0.0
  %v2188 = vmin.f32 %v2092, 0.0
  %v2189 = vmin.f32 %v2143, 0.0
  %v2190 = vmin.f32 %v2145, 0.0
  %v2191 = vmin.f32 %v2041, 0.0
  %v2192 = vmin.f32 %v2043, 0.0
  %v2193 = vmin.f32 %v2094, 0.0
  %v2194 = vmin.f32 %v2096, 0.0
  %v2195 = vmin.f32 %v2147, 0.0
  %v2196 = vmin.f32 %v2149, 0.0
  %v2197 = vmin.f32 %v2047, 0.0
  %v2198 = vmin.f32 %v2049, 0.0
  %v2199 = vmin.f32 %v2100, 0.0
  %v2200 = vmin.f32 %v2102, 0.0
  %v2201 = vmin.f32 %v2153, 0.0
  %v2202 = vmin.f32 %v2155, 0.0
  %v2203 = vmin.f32 %v2051, 0.0
  %v2204 = vmin.f32 %v2053, 0.0
  %v2205 = vmin.f32 %v2104, 0.0
  %v2206 = vmin.f32 %v2106, 0.0
  %v2207 = vmin.f32 %v2157, 0.0
  %v2208 = vmin.f32 %v2159, 0.0
  %v2209 = vmul.f32 %v2185, 1.442695
  %v2210 = vpow.pop %v2209
  %v2211 = vmul.f32 %v2186, 1.442695
  %v2212 = vpow.pop %v2211
  %v2213 = vmul.f32 %v2187, 1.442695
  %v2214 = vpow.pop %v2213
  %v2215 = vmul.f32 %v2188, 1.442695
  %v2216 = vpow.pop %v2215
  %v2217 = vmul.f32 %v2189, 1.442695
  %v2218 = vpow.pop %v2217
  %v2219 = vmul.f32 %v2190, 1.442695
  %v2220 = vpow.pop %v2219
  %v2221 = vmul.f32 %v2191, 1.442695
  %v2222 = vpow.pop %v2221
  %v2223 = vmul.f32 %v2192, 1.442695
  %v2224 = vpow.pop %v2223
  %v2225 = vmul.f32 %v2193, 1.442695
  %v2226 = vpow.pop %v2225
  %v2227 = vmul.f32 %v2194, 1.442695
  %v2228 = vpow.pop %v2227
  %v2229 = vmul.f32 %v2195, 1.442695
  %v2230 = vpow.pop %v2229
  %v2231 = vmul.f32 %v2196, 1.442695
  %v2232 = vpow.pop %v2231
  %v2233 = vmul.f32 %v2197, 1.442695
  %v2234 = vpow.pop %v2233
  %v2235 = vmul.f32 %v2198, 1.442695
  %v2236 = vpow.pop %v2235
  %v2237 = vmul.f32 %v2199, 1.442695
  %v2238 = vpow.pop %v2237
  %v2239 = vmul.f32 %v2200, 1.442695
  %v2240 = vpow.pop %v2239
  %v2241 = vmul.f32 %v2201, 1.442695
  %v2242 = vpow.pop %v2241
  %v2243 = vmul.f32 %v2202, 1.442695
  %v2244 = vpow.pop %v2243
  %v2245 = vmul.f32 %v2203, 1.442695
  %v2246 = vpow.pop %v2245
  %v2247 = vmul.f32 %v2204, 1.442695
  %v2248 = vpow.pop %v2247
  %v2249 = vmul.f32 %v2205, 1.442695
  %v2250 = vpow.pop %v2249
  %v2251 = vmul.f32 %v2206, 1.442695
  %v2252 = vpow.pop %v2251
  %v2253 = vmul.f32 %v2207, 1.442695
  %v2254 = vpow.pop %v2253
  %v2255 = vmul.f32 %v2208, 1.442695
  %v2256 = vpow.pop %v2255
  %v2257 = vsub.f32 %v2210, 1.0
  %v2258 = vsub.f32 %v2212, 1.0
  %v2259 = vsub.f32 %v2214, 1.0
  %v2260 = vsub.f32 %v2216, 1.0
  %v2261 = vsub.f32 %v2218, 1.0
  %v2262 = vsub.f32 %v2220, 1.0
  %v2263 = vsub.f32 %v2222, 1.0
  %v2264 = vsub.f32 %v2224, 1.0
  %v2265 = vsub.f32 %v2226, 1.0
  %v2266 = vsub.f32 %v2228, 1.0
  %v2267 = vsub.f32 %v2230, 1.0
  %v2268 = vsub.f32 %v2232, 1.0
  %v2269 = vsub.f32 %v2234, 1.0
  %v2270 = vsub.f32 %v2236, 1.0
  %v2271 = vsub.f32 %v2238, 1.0
  %v2272 = vsub.f32 %v2240, 1.0
  %v2273 = vsub.f32 %v2242, 1.0
  %v2274 = vsub.f32 %v2244, 1.0
  %v2275 = vsub.f32 %v2246, 1.0
  %v2276 = vsub.f32 %v2248, 1.0
  %v2277 = vsub.f32 %v2250, 1.0
  %v2278 = vsub.f32 %v2252, 1.0
  %v2279 = vsub.f32 %v2254, 1.0
  %v2280 = vsub.f32 %v2256, 1.0
  %v2281 = vsel %vm2161, %v2037, %v2257
  %v2282 = vsel %vm2162, %v2039, %v2258
  %v2283 = vsel %vm2163, %v2090, %v2259
  %v2284 = vsel %vm2164, %v2092, %v2260
  %v2285 = vsel %vm2165, %v2143, %v2261
  %v2286 = vsel %vm2166, %v2145, %v2262
  %v2287 = vsel %vm2167, %v2041, %v2263
  %v2288 = vsel %vm2168, %v2043, %v2264
  %v2289 = vsel %vm2169, %v2094, %v2265
  %v2290 = vsel %vm2170, %v2096, %v2266
  %v2291 = vsel %vm2171, %v2147, %v2267
  %v2292 = vsel %vm2172, %v2149, %v2268
  %v2293 = vsel %vm2173, %v2047, %v2269
  %v2294 = vsel %vm2174, %v2049, %v2270
  %v2295 = vsel %vm2175, %v2100, %v2271
  %v2296 = vsel %vm2176, %v2102, %v2272
  %v2297 = vsel %vm2177, %v2153, %v2273
  %v2298 = vsel %vm2178, %v2155, %v2274
  %v2299 = vsel %vm2179, %v2051, %v2275
  %v2300 = vsel %vm2180, %v2053, %v2276
  %v2301 = vsel %vm2181, %v2104, %v2277
  %v2302 = vsel %vm2182, %v2106, %v2278
  %v2303 = vsel %vm2183, %v2157, %v2279
  %v2304 = vsel %vm2184, %v2159, %v2280
  %s2305 = scalar_lea.vmem %s0, 1248
  %v2306 = vld [vmem:[%s2305] sm:$0xff]
  %v2307 = vld [vmem:[%s2305 + $0x8] sm:$0xff]
  %v2308 = vld [vmem:[%s2305 + $0x10] sm:$0xff]
  %v2309 = vld [vmem:[%s2305 + $0x18] sm:$0xff]
  %v2310 = vld [vmem:[%s2305 + $0x20] sm:$0xff]
  %v2311 = vld [vmem:[%s2305 + $0x28] sm:$0xff]
  %v2312 = vld [vmem:[%s2305 + $0x30] sm:$0xff]
  %v2313 = vld [vmem:[%s2305 + $0x38] sm:$0xff]
  %v2314 = vld [vmem:[%s2305 + $0x40] sm:$0xff]
  %v2315 = vld [vmem:[%s2305 + $0x48] sm:$0xff]
  %v2316 = vld [vmem:[%s2305 + $0x50] sm:$0xff]
  %v2317 = vld [vmem:[%s2305 + $0x58] sm:$0xff]
  %v2318 = vld [vmem:[%s2305 + $0x60] sm:$0xff]
  %v2319 = vld [vmem:[%s2305 + $0x68] sm:$0xff]
  %v2320 = vld [vmem:[%s2305 + $0x70] sm:$0xff]
  %v2321 = vld [vmem:[%s2305 + $0x78] sm:$0xff]
  %v2322 = vld [vmem:[%s2305 + $0x80] sm:$0xff]
  %v2323 = vld [vmem:[%s2305 + $0x88] sm:$0xff]
  %v2324 = vld [vmem:[%s2305 + $0x90] sm:$0xff]
  %v2325 = vld [vmem:[%s2305 + $0x98] sm:$0xff]
  %v2326 = vld [vmem:[%s2305 + $0xa0] sm:$0xff]
  %v2327 = vld [vmem:[%s2305 + $0xa8] sm:$0xff]
  %v2328 = vld [vmem:[%s2305 + $0xb0] sm:$0xff]
  %v2329 = vld [vmem:[%s2305 + $0xb8] sm:$0xff]
  %v2330 = vld [vmem:[%s2305 + $0xc0] sm:$0xff]
  %v2331 = vld [vmem:[%s2305 + $0xc8] sm:$0xff]
  %v2332 = vld [vmem:[%s2305 + $0xd0] sm:$0xff]
  %v2333 = vld [vmem:[%s2305 + $0xd8] sm:$0xff]
  %v2334 = vld [vmem:[%s2305 + $0xe0] sm:$0xff]
  %v2335 = vld [vmem:[%s2305 + $0xe8] sm:$0xff]
  %v2336 = vld [vmem:[%s2305 + $0xf0] sm:$0xff]
  %v2337 = vld [vmem:[%s2305 + $0xf8] sm:$0xff]
  %v2338 = vld [vmem:[%s2305 + $0x100] sm:$0xff]
  %v2339 = vld [vmem:[%s2305 + $0x108] sm:$0xff]
  %v2340 = vld [vmem:[%s2305 + $0x110] sm:$0xff]
  %v2341 = vld [vmem:[%s2305 + $0x118] sm:$0xff]
  %v2342 = vld [vmem:[%s2305 + $0x120] sm:$0x77]
  %v2343 = vld [vmem:[%s2305 + $0x128] sm:$0x77]
  %v2344 = vld [vmem:[%s2305 + $0x130] sm:$0x77]
  %v2384 = vunpack.c.l.b16 %v2306
  %v2385 = vunpack.c.h.b16 %v2306
  %v2386 = vunpack.c.l.b16 %v2307
  %v2387 = vunpack.c.h.b16 %v2307
  %v2388 = vunpack.c.l.b16 %v2308
  %v2389 = vunpack.c.h.b16 %v2308
  %v2390 = vunpack.c.l.b16 %v2309
  %v2391 = vunpack.c.h.b16 %v2309
  %v2392 = vunpack.c.l.b16 %v2310
  %v2393 = vunpack.c.h.b16 %v2310
  %v2394 = vunpack.c.l.b16 %v2311
  %v2395 = vunpack.c.h.b16 %v2311
  %v2396 = vunpack.c.l.b16 %v2312
  %v2397 = vunpack.c.h.b16 %v2312
  %v2398 = vunpack.c.l.b16 %v2313
  %v2399 = vunpack.c.h.b16 %v2313
  %v2400 = vunpack.c.l.b16 %v2314
  %v2401 = vunpack.c.h.b16 %v2314
  %v2402 = vunpack.c.l.b16 %v2315
  %v2403 = vunpack.c.h.b16 %v2315
  %v2404 = vunpack.c.l.b16 %v2316
  %v2405 = vunpack.c.h.b16 %v2316
  %v2406 = vunpack.c.l.b16 %v2317
  %v2407 = vunpack.c.h.b16 %v2317
  %v2408 = vunpack.c.l.b16 %v2318
  %v2409 = vunpack.c.h.b16 %v2318
  %v2410 = vunpack.c.l.b16 %v2319
  %v2411 = vunpack.c.h.b16 %v2319
  %v2412 = vunpack.c.l.b16 %v2320
  %v2413 = vunpack.c.h.b16 %v2320
  %v2414 = vunpack.c.l.b16 %v2321
  %v2415 = vunpack.c.h.b16 %v2321
  %v2416 = vunpack.c.l.b16 %v2322
  %v2417 = vunpack.c.h.b16 %v2322
  %v2418 = vunpack.c.l.b16 %v2323
  %v2419 = vunpack.c.h.b16 %v2323
  %v2420 = vunpack.c.l.b16 %v2324
  %v2421 = vunpack.c.h.b16 %v2324
  %v2422 = vunpack.c.l.b16 %v2325
  %v2423 = vunpack.c.h.b16 %v2325
  %v2424 = vunpack.c.l.b16 %v2326
  %v2425 = vunpack.c.h.b16 %v2326
  %v2426 = vunpack.c.l.b16 %v2327
  %v2427 = vunpack.c.h.b16 %v2327
  %v2428 = vunpack.c.l.b16 %v2328
  %v2429 = vunpack.c.h.b16 %v2328
  %v2430 = vunpack.c.l.b16 %v2329
  %v2431 = vunpack.c.h.b16 %v2329
  %v2432 = vunpack.c.l.b16 %v2330
  %v2433 = vunpack.c.h.b16 %v2330
  %v2434 = vunpack.c.l.b16 %v2331
  %v2435 = vunpack.c.h.b16 %v2331
  %v2436 = vunpack.c.l.b16 %v2332
  %v2437 = vunpack.c.h.b16 %v2332
  %v2438 = vunpack.c.l.b16 %v2333
  %v2439 = vunpack.c.h.b16 %v2333
  %v2440 = vunpack.c.l.b16 %v2334
  %v2441 = vunpack.c.h.b16 %v2334
  %v2442 = vunpack.c.l.b16 %v2335
  %v2443 = vunpack.c.h.b16 %v2335
  %v2444 = vunpack.c.l.b16 %v2336
  %v2445 = vunpack.c.h.b16 %v2336
  %v2446 = vunpack.c.l.b16 %v2337
  %v2447 = vunpack.c.h.b16 %v2337
  %v2448 = vunpack.c.l.b16 %v2338
  %v2449 = vunpack.c.h.b16 %v2338
  %v2450 = vunpack.c.l.b16 %v2339
  %v2451 = vunpack.c.h.b16 %v2339
  %v2452 = vunpack.c.l.b16 %v2340
  %v2453 = vunpack.c.h.b16 %v2340
  %v2454 = vunpack.c.l.b16 %v2341
  %v2455 = vunpack.c.h.b16 %v2341
  %v2456 = vunpack.c.l.b16 %v2342
  %v2457 = vunpack.c.h.b16 %v2342
  %v2458 = vunpack.c.l.b16 %v2343
  %v2459 = vunpack.c.h.b16 %v2343
  %v2460 = vunpack.c.l.b16 %v2344
  %v2461 = vunpack.c.h.b16 %v2344
  %v2462 = vpack.c.b16 %v2390, %v2384
  %v2463 = vpack.c.b16 %v2391, %v2385
  %v2464 = vpack.c.b16 %v2392, %v2386
  %v2465 = vpack.c.b16 %v2393, %v2387
  %v2466 = vpack.c.b16 %v2394, %v2388
  %v2467 = vpack.c.b16 %v2395, %v2389
  %v2468 = vpack.c.b16 %v2402, %v2396
  %v2469 = vpack.c.b16 %v2403, %v2397
  %v2470 = vpack.c.b16 %v2404, %v2398
  %v2471 = vpack.c.b16 %v2405, %v2399
  %v2472 = vpack.c.b16 %v2406, %v2400
  %v2473 = vpack.c.b16 %v2407, %v2401
  %v2474 = vpack.c.b16 %v2414, %v2408
  %v2475 = vpack.c.b16 %v2415, %v2409
  %v2476 = vpack.c.b16 %v2416, %v2410
  %v2477 = vpack.c.b16 %v2417, %v2411
  %v2478 = vpack.c.b16 %v2418, %v2412
  %v2479 = vpack.c.b16 %v2419, %v2413
  %v2480 = vpack.c.b16 %v2426, %v2420
  %v2481 = vpack.c.b16 %v2427, %v2421
  %v2482 = vpack.c.b16 %v2428, %v2422
  %v2483 = vpack.c.b16 %v2429, %v2423
  %v2484 = vpack.c.b16 %v2430, %v2424
  %v2485 = vpack.c.b16 %v2431, %v2425
  %v2486 = vpack.c.b16 %v2438, %v2432
  %v2487 = vpack.c.b16 %v2439, %v2433
  %v2488 = vpack.c.b16 %v2440, %v2434
  %v2489 = vpack.c.b16 %v2441, %v2435
  %v2490 = vpack.c.b16 %v2442, %v2436
  %v2491 = vpack.c.b16 %v2443, %v2437
  %v2492 = vpack.c.b16 %v2450, %v2444
  %v2493 = vpack.c.b16 %v2451, %v2445
  %v2494 = vpack.c.b16 %v2452, %v2446
  %v2495 = vpack.c.b16 %v2453, %v2447
  %v2496 = vpack.c.b16 %v2454, %v2448
  %v2497 = vpack.c.b16 %v2455, %v2449
  %v2498 = vpack.c.b16 %v2456, %v2456
  %v2499 = vpack.c.b16 %v2457, %v2457
  %v2500 = vpack.c.b16 %v2458, %v2458
  %v2501 = vpack.c.b16 %v2459, %v2459
  %v2502 = vpack.c.b16 %v2460, %v2460
  %v2503 = vpack.c.b16 %v2461, %v2461
  %v2541 = vsel %vm315, %v2498, 0
  %v2544 = vsel %vm315, %v2499, 0
  %v2547 = vsel %vm315, %v2500, 0
  %v2550 = vsel %vm315, %v2501, 0
  %v2553 = vsel %vm315, %v2502, 0
  %v2556 = vsel %vm315, %v2503, 0
  %2558 = vmatprep.subr.bf16.mxu0 %v2463
  %2559 = vmatpush1.bf16.msra.mxu0 %v2462
  %2560 = vmatprep.subr.bf16.mxu0 %v2469
  %2561 = vmatpush1.bf16.msra.mxu0 %v2468
  %2562 = vmatprep.subr.bf16.mxu0 %v2475
  %2563 = vmatpush1.bf16.msra.mxu0 %v2474
  %2564 = vmatprep.subr.bf16.mxu0 %v2481
  %2565 = vmatpush1.bf16.msra.mxu0 %v2480
  %2566 = vmatprep.subr.bf16.mxu0 %v2487
  %2567 = vmatpush1.bf16.msra.mxu0 %v2486
  %2568 = vmatprep.subr.bf16.mxu0 %v2493
  %2569 = vmatpush1.bf16.msra.mxu0 %v2492
  %2570 = vmatprep.subr.bf16.mxu0 %v2544
  %2571 = vmatpush1.bf16.msra.mxu0 %v2541
  %2572 = vmatprep.subr.bf16.mxu0 0
  %2573 = vmatpush1.bf16.msra.mxu0 0
  %2574 = vmatprep.subr.bf16.mxu0 0
  %2575 = vmatpush1.bf16.msra.mxu0 0
  %2576 = vmatprep.subr.bf16.mxu0 0
  %2577 = vmatpush1.bf16.msra.mxu0 0
  %2578 = vmatprep.subr.bf16.mxu0 0
  %2579 = vmatpush1.bf16.msra.mxu0 0
  %2580 = vmatprep.subr.bf16.mxu0 0
  %2581 = vmatpush1.bf16.msra.mxu0 0
  %2582 = vmatprep.subr.bf16.mxu0 0
  %2583 = vmatpush1.bf16.msra.mxu0 0
  %2584 = vmatprep.subr.bf16.mxu0 0
  %2585 = vmatpush1.bf16.msra.mxu0 0
  %2586 = vmatprep.subr.bf16.mxu0 0
  %2587 = vmatpush1.bf16.msra.mxu0 0
  %2588 = vmatprep.subr.bf16.mxu0 0
  %2589 = vmatpush1.bf16.msra.mxu0 0
  %2590 = vmatprep.mubr.bf16.mxu0 0
  %2591 = vmatmul.mubr.bf16.gmra.mrb[0].mxu0 %v310
  %v2592 = vpop.f32.mrb[0].mxu0
  %v2593 = vadd.f32 %v86, %v2592
  %v2594 = vpop.f32.mrb[0].mxu0
  %v2595 = vadd.f32 %v86, %v2594
  %v2596 = vpop.f32.mrb[0].mxu0
  %v2597 = vadd.f32 %v91, %v2596
  %v2598 = vpop.f32.mrb[0].mxu0
  %v2599 = vadd.f32 %v91, %v2598
  %2600 = vmatprep.mubr.bf16.mxu0 0
  %2601 = vmatmul.mubr.bf16.gmra.mrb[0].mxu0 %v313
  %v2602 = vpop.f32.mrb[0].mxu0
  %v2603 = vadd.f32 %v96, %v2602
  %v2604 = vpop.f32.mrb[0].mxu0
  %v2605 = vadd.f32 %v96, %v2604
  %v2606 = vpop.f32.mrb[0].mxu0
  %v2607 = vadd.f32 %v101, %v2606
  %v2608 = vpop.f32.mrb[0].mxu0
  %v2609 = vadd.f32 %v101, %v2608
  %2610 = vdwg.mxu0
  %2611 = vmatprep.subr.bf16.mxu0 %v2465
  %2612 = vmatpush1.bf16.msra.mxu0 %v2464
  %2613 = vmatprep.subr.bf16.mxu0 %v2471
  %2614 = vmatpush1.bf16.msra.mxu0 %v2470
  %2615 = vmatprep.subr.bf16.mxu0 %v2477
  %2616 = vmatpush1.bf16.msra.mxu0 %v2476
  %2617 = vmatprep.subr.bf16.mxu0 %v2483
  %2618 = vmatpush1.bf16.msra.mxu0 %v2482
  %2619 = vmatprep.subr.bf16.mxu0 %v2489
  %2620 = vmatpush1.bf16.msra.mxu0 %v2488
  %2621 = vmatprep.subr.bf16.mxu0 %v2495
  %2622 = vmatpush1.bf16.msra.mxu0 %v2494
  %2623 = vmatprep.subr.bf16.mxu0 %v2550
  %2624 = vmatpush1.bf16.msra.mxu0 %v2547
  %2625 = vmatprep.subr.bf16.mxu0 0
  %2626 = vmatpush1.bf16.msra.mxu0 0
  %2627 = vmatprep.subr.bf16.mxu0 0
  %2628 = vmatpush1.bf16.msra.mxu0 0
  %2629 = vmatprep.subr.bf16.mxu0 0
  %2630 = vmatpush1.bf16.msra.mxu0 0
  %2631 = vmatprep.subr.bf16.mxu0 0
  %2632 = vmatpush1.bf16.msra.mxu0 0
  %2633 = vmatprep.subr.bf16.mxu0 0
  %2634 = vmatpush1.bf16.msra.mxu0 0
  %2635 = vmatprep.subr.bf16.mxu0 0
  %2636 = vmatpush1.bf16.msra.mxu0 0
  %2637 = vmatprep.subr.bf16.mxu0 0
  %2638 = vmatpush1.bf16.msra.mxu0 0
  %2639 = vmatprep.subr.bf16.mxu0 0
  %2640 = vmatpush1.bf16.msra.mxu0 0
  %2641 = vmatprep.subr.bf16.mxu0 0
  %2642 = vmatpush1.bf16.msra.mxu0 0
  %2643 = vmatprep.mubr.bf16.mxu0 0
  %2644 = vmatmul.mubr.bf16.gmra.mrb[0].mxu0 %v310
  %v2645 = vpop.f32.mrb[0].mxu0
  %v2646 = vadd.f32 %v86, %v2645
  %v2647 = vpop.f32.mrb[0].mxu0
  %v2648 = vadd.f32 %v86, %v2647
  %v2649 = vpop.f32.mrb[0].mxu0
  %v2650 = vadd.f32 %v91, %v2649
  %v2651 = vpop.f32.mrb[0].mxu0
  %v2652 = vadd.f32 %v91, %v2651
  %2653 = vmatprep.mubr.bf16.mxu0 0
  %2654 = vmatmul.mubr.bf16.gmra.mrb[0].mxu0 %v313
  %v2655 = vpop.f32.mrb[0].mxu0
  %v2656 = vadd.f32 %v96, %v2655
  %v2657 = vpop.f32.mrb[0].mxu0
  %v2658 = vadd.f32 %v96, %v2657
  %v2659 = vpop.f32.mrb[0].mxu0
  %v2660 = vadd.f32 %v101, %v2659
  %v2661 = vpop.f32.mrb[0].mxu0
  %v2662 = vadd.f32 %v101, %v2661
  %2663 = vdwg.mxu0
  %2664 = vmatprep.subr.bf16.mxu0 %v2467
  %2665 = vmatpush1.bf16.msra.mxu0 %v2466
  %2666 = vmatprep.subr.bf16.mxu0 %v2473
  %2667 = vmatpush1.bf16.msra.mxu0 %v2472
  %2668 = vmatprep.subr.bf16.mxu0 %v2479
  %2669 = vmatpush1.bf16.msra.mxu0 %v2478
  %2670 = vmatprep.subr.bf16.mxu0 %v2485
  %2671 = vmatpush1.bf16.msra.mxu0 %v2484
  %2672 = vmatprep.subr.bf16.mxu0 %v2491
  %2673 = vmatpush1.bf16.msra.mxu0 %v2490
  %2674 = vmatprep.subr.bf16.mxu0 %v2497
  %2675 = vmatpush1.bf16.msra.mxu0 %v2496
  %2676 = vmatprep.subr.bf16.mxu0 %v2556
  %2677 = vmatpush1.bf16.msra.mxu0 %v2553
  %2678 = vmatprep.subr.bf16.mxu0 0
  %2679 = vmatpush1.bf16.msra.mxu0 0
  %2680 = vmatprep.subr.bf16.mxu0 0
  %2681 = vmatpush1.bf16.msra.mxu0 0
  %2682 = vmatprep.subr.bf16.mxu0 0
  %2683 = vmatpush1.bf16.msra.mxu0 0
  %2684 = vmatprep.subr.bf16.mxu0 0
  %2685 = vmatpush1.bf16.msra.mxu0 0
  %2686 = vmatprep.subr.bf16.mxu0 0
  %2687 = vmatpush1.bf16.msra.mxu0 0
  %2688 = vmatprep.subr.bf16.mxu0 0
  %2689 = vmatpush1.bf16.msra.mxu0 0
  %2690 = vmatprep.subr.bf16.mxu0 0
  %2691 = vmatpush1.bf16.msra.mxu0 0
  %2692 = vmatprep.subr.bf16.mxu0 0
  %2693 = vmatpush1.bf16.msra.mxu0 0
  %2694 = vmatprep.subr.bf16.mxu0 0
  %2695 = vmatpush1.bf16.msra.mxu0 0
  %2696 = vmatprep.mubr.bf16.mxu0 0
  %2697 = vmatmul.mubr.bf16.gmra.mrb[0].mxu0 %v310
  %v2698 = vpop.f32.mrb[0].mxu0
  %v2699 = vadd.f32 %v86, %v2698
  %v2700 = vpop.f32.mrb[0].mxu0
  %v2701 = vadd.f32 %v86, %v2700
  %v2702 = vpop.f32.mrb[0].mxu0
  %v2703 = vadd.f32 %v91, %v2702
  %v2704 = vpop.f32.mrb[0].mxu0
  %v2705 = vadd.f32 %v91, %v2704
  %2706 = vmatprep.mubr.bf16.mxu0 0
  %2707 = vmatmul.mubr.bf16.gmra.mrb[0].mxu0 %v313
  %v2708 = vpop.f32.mrb[0].mxu0
  %v2709 = vadd.f32 %v96, %v2708
  %v2710 = vpop.f32.mrb[0].mxu0
  %v2711 = vadd.f32 %v96, %v2710
  %v2712 = vpop.f32.mrb[0].mxu0
  %v2713 = vadd.f32 %v101, %v2712
  %v2714 = vpop.f32.mrb[0].mxu0
  %v2715 = vadd.f32 %v101, %v2714
  %2716 = vdwg.mxu0
  %vm2717 = vcmp.gt.f32.partialorder %v2593, 0.0
  %vm2718 = vcmp.gt.f32.partialorder %v2595, 0.0
  %vm2719 = vcmp.gt.f32.partialorder %v2646, 0.0
  %vm2720 = vcmp.gt.f32.partialorder %v2648, 0.0
  %vm2721 = vcmp.gt.f32.partialorder %v2699, 0.0
  %vm2722 = vcmp.gt.f32.partialorder %v2701, 0.0
  %vm2723 = vcmp.gt.f32.partialorder %v2597, 0.0
  %vm2724 = vcmp.gt.f32.partialorder %v2599, 0.0
  %vm2725 = vcmp.gt.f32.partialorder %v2650, 0.0
  %vm2726 = vcmp.gt.f32.partialorder %v2652, 0.0
  %vm2727 = vcmp.gt.f32.partialorder %v2703, 0.0
  %vm2728 = vcmp.gt.f32.partialorder %v2705, 0.0
  %vm2729 = vcmp.gt.f32.partialorder %v2603, 0.0
  %vm2730 = vcmp.gt.f32.partialorder %v2605, 0.0
  %vm2731 = vcmp.gt.f32.partialorder %v2656, 0.0
  %vm2732 = vcmp.gt.f32.partialorder %v2658, 0.0
  %vm2733 = vcmp.gt.f32.partialorder %v2709, 0.0
  %vm2734 = vcmp.gt.f32.partialorder %v2711, 0.0
  %vm2735 = vcmp.gt.f32.partialorder %v2607, 0.0
  %vm2736 = vcmp.gt.f32.partialorder %v2609, 0.0
  %vm2737 = vcmp.gt.f32.partialorder %v2660, 0.0
  %vm2738 = vcmp.gt.f32.partialorder %v2662, 0.0
  %vm2739 = vcmp.gt.f32.partialorder %v2713, 0.0
  %vm2740 = vcmp.gt.f32.partialorder %v2715, 0.0
  %v2741 = vmin.f32 %v2593, 0.0
  %v2742 = vmin.f32 %v2595, 0.0
  %v2743 = vmin.f32 %v2646, 0.0
  %v2744 = vmin.f32 %v2648, 0.0
  %v2745 = vmin.f32 %v2699, 0.0
  %v2746 = vmin.f32 %v2701, 0.0
  %v2747 = vmin.f32 %v2597, 0.0
  %v2748 = vmin.f32 %v2599, 0.0
  %v2749 = vmin.f32 %v2650, 0.0
  %v2750 = vmin.f32 %v2652, 0.0
  %v2751 = vmin.f32 %v2703, 0.0
  %v2752 = vmin.f32 %v2705, 0.0
  %v2753 = vmin.f32 %v2603, 0.0
  %v2754 = vmin.f32 %v2605, 0.0
  %v2755 = vmin.f32 %v2656, 0.0
  %v2756 = vmin.f32 %v2658, 0.0
  %v2757 = vmin.f32 %v2709, 0.0
  %v2758 = vmin.f32 %v2711, 0.0
  %v2759 = vmin.f32 %v2607, 0.0
  %v2760 = vmin.f32 %v2609, 0.0
  %v2761 = vmin.f32 %v2660, 0.0
  %v2762 = vmin.f32 %v2662, 0.0
  %v2763 = vmin.f32 %v2713, 0.0
  %v2764 = vmin.f32 %v2715, 0.0
  %v2765 = vmul.f32 %v2741, 1.442695
  %v2766 = vpow.pop %v2765
  %v2767 = vmul.f32 %v2742, 1.442695
  %v2768 = vpow.pop %v2767
  %v2769 = vmul.f32 %v2743, 1.442695
  %v2770 = vpow.pop %v2769
  %v2771 = vmul.f32 %v2744, 1.442695
  %v2772 = vpow.pop %v2771
  %v2773 = vmul.f32 %v2745, 1.442695
  %v2774 = vpow.pop %v2773
  %v2775 = vmul.f32 %v2746, 1.442695
  %v2776 = vpow.pop %v2775
  %v2777 = vmul.f32 %v2747, 1.442695
  %v2778 = vpow.pop %v2777
  %v2779 = vmul.f32 %v2748, 1.442695
  %v2780 = vpow.pop %v2779
  %v2781 = vmul.f32 %v2749, 1.442695
  %v2782 = vpow.pop %v2781
  %v2783 = vmul.f32 %v2750, 1.442695
  %v2784 = vpow.pop %v2783
  %v2785 = vmul.f32 %v2751, 1.442695
  %v2786 = vpow.pop %v2785
  %v2787 = vmul.f32 %v2752, 1.442695
  %v2788 = vpow.pop %v2787
  %v2789 = vmul.f32 %v2753, 1.442695
  %v2790 = vpow.pop %v2789
  %v2791 = vmul.f32 %v2754, 1.442695
  %v2792 = vpow.pop %v2791
  %v2793 = vmul.f32 %v2755, 1.442695
  %v2794 = vpow.pop %v2793
  %v2795 = vmul.f32 %v2756, 1.442695
  %v2796 = vpow.pop %v2795
  %v2797 = vmul.f32 %v2757, 1.442695
  %v2798 = vpow.pop %v2797
  %v2799 = vmul.f32 %v2758, 1.442695
  %v2800 = vpow.pop %v2799
  %v2801 = vmul.f32 %v2759, 1.442695
  %v2802 = vpow.pop %v2801
  %v2803 = vmul.f32 %v2760, 1.442695
  %v2804 = vpow.pop %v2803
  %v2805 = vmul.f32 %v2761, 1.442695
  %v2806 = vpow.pop %v2805
  %v2807 = vmul.f32 %v2762, 1.442695
  %v2808 = vpow.pop %v2807
  %v2809 = vmul.f32 %v2763, 1.442695
  %v2810 = vpow.pop %v2809
  %v2811 = vmul.f32 %v2764, 1.442695
  %v2812 = vpow.pop %v2811
  %v2813 = vsub.f32 %v2766, 1.0
  %v2814 = vsub.f32 %v2768, 1.0
  %v2815 = vsub.f32 %v2770, 1.0
  %v2816 = vsub.f32 %v2772, 1.0
  %v2817 = vsub.f32 %v2774, 1.0
  %v2818 = vsub.f32 %v2776, 1.0
  %v2819 = vsub.f32 %v2778, 1.0
  %v2820 = vsub.f32 %v2780, 1.0
  %v2821 = vsub.f32 %v2782, 1.0
  %v2822 = vsub.f32 %v2784, 1.0
  %v2823 = vsub.f32 %v2786, 1.0
  %v2824 = vsub.f32 %v2788, 1.0
  %v2825 = vsub.f32 %v2790, 1.0
  %v2826 = vsub.f32 %v2792, 1.0
  %v2827 = vsub.f32 %v2794, 1.0
  %v2828 = vsub.f32 %v2796, 1.0
  %v2829 = vsub.f32 %v2798, 1.0
  %v2830 = vsub.f32 %v2800, 1.0
  %v2831 = vsub.f32 %v2802, 1.0
  %v2832 = vsub.f32 %v2804, 1.0
  %v2833 = vsub.f32 %v2806, 1.0
  %v2834 = vsub.f32 %v2808, 1.0
  %v2835 = vsub.f32 %v2810, 1.0
  %v2836 = vsub.f32 %v2812, 1.0
  %v2837 = vsel %vm2717, %v2593, %v2813
  %v2838 = vsel %vm2718, %v2595, %v2814
  %v2839 = vsel %vm2719, %v2646, %v2815
  %v2840 = vsel %vm2720, %v2648, %v2816
  %v2841 = vsel %vm2721, %v2699, %v2817
  %v2842 = vsel %vm2722, %v2701, %v2818
  %v2843 = vsel %vm2723, %v2597, %v2819
  %v2844 = vsel %vm2724, %v2599, %v2820
  %v2845 = vsel %vm2725, %v2650, %v2821
  %v2846 = vsel %vm2726, %v2652, %v2822
  %v2847 = vsel %vm2727, %v2703, %v2823
  %v2848 = vsel %vm2728, %v2705, %v2824
  %v2849 = vsel %vm2729, %v2603, %v2825
  %v2850 = vsel %vm2730, %v2605, %v2826
  %v2851 = vsel %vm2731, %v2656, %v2827
  %v2852 = vsel %vm2732, %v2658, %v2828
  %v2853 = vsel %vm2733, %v2709, %v2829
  %v2854 = vsel %vm2734, %v2711, %v2830
  %v2855 = vsel %vm2735, %v2607, %v2831
  %v2856 = vsel %vm2736, %v2609, %v2832
  %v2857 = vsel %vm2737, %v2660, %v2833
  %v2858 = vsel %vm2738, %v2662, %v2834
  %v2859 = vsel %vm2739, %v2713, %v2835
  %v2860 = vsel %vm2740, %v2715, %v2836
  %s2861 = scalar_lea.vmem %s0, 1560
  %v2862 = vld [vmem:[%s2861] sm:$0xff]
  %v2863 = vld [vmem:[%s2861 + $0x8] sm:$0xff]
  %v2864 = vld [vmem:[%s2861 + $0x10] sm:$0xff]
  %v2865 = vld [vmem:[%s2861 + $0x18] sm:$0xff]
  %v2866 = vld [vmem:[%s2861 + $0x20] sm:$0xff]
  %v2867 = vld [vmem:[%s2861 + $0x28] sm:$0xff]
  %v2868 = vld [vmem:[%s2861 + $0x30] sm:$0xff]
  %v2869 = vld [vmem:[%s2861 + $0x38] sm:$0xff]
  %v2870 = vld [vmem:[%s2861 + $0x40] sm:$0xff]
  %v2871 = vld [vmem:[%s2861 + $0x48] sm:$0xff]
  %v2872 = vld [vmem:[%s2861 + $0x50] sm:$0xff]
  %v2873 = vld [vmem:[%s2861 + $0x58] sm:$0xff]
  %v2874 = vld [vmem:[%s2861 + $0x60] sm:$0xff]
  %v2875 = vld [vmem:[%s2861 + $0x68] sm:$0xff]
  %v2876 = vld [vmem:[%s2861 + $0x70] sm:$0xff]
  %v2877 = vld [vmem:[%s2861 + $0x78] sm:$0xff]
  %v2878 = vld [vmem:[%s2861 + $0x80] sm:$0xff]
  %v2879 = vld [vmem:[%s2861 + $0x88] sm:$0xff]
  %v2880 = vld [vmem:[%s2861 + $0x90] sm:$0xff]
  %v2881 = vld [vmem:[%s2861 + $0x98] sm:$0xff]
  %v2882 = vld [vmem:[%s2861 + $0xa0] sm:$0xff]
  %v2883 = vld [vmem:[%s2861 + $0xa8] sm:$0xff]
  %v2884 = vld [vmem:[%s2861 + $0xb0] sm:$0xff]
  %v2885 = vld [vmem:[%s2861 + $0xb8] sm:$0xff]
  %v2886 = vld [vmem:[%s2861 + $0xc0] sm:$0xff]
  %v2887 = vld [vmem:[%s2861 + $0xc8] sm:$0xff]
  %v2888 = vld [vmem:[%s2861 + $0xd0] sm:$0xff]
  %v2889 = vld [vmem:[%s2861 + $0xd8] sm:$0xff]
  %v2890 = vld [vmem:[%s2861 + $0xe0] sm:$0xff]
  %v2891 = vld [vmem:[%s2861 + $0xe8] sm:$0xff]
  %v2892 = vld [vmem:[%s2861 + $0xf0] sm:$0xff]
  %v2893 = vld [vmem:[%s2861 + $0xf8] sm:$0xff]
  %v2894 = vld [vmem:[%s2861 + $0x100] sm:$0xff]
  %v2895 = vld [vmem:[%s2861 + $0x108] sm:$0xff]
  %v2896 = vld [vmem:[%s2861 + $0x110] sm:$0xff]
  %v2897 = vld [vmem:[%s2861 + $0x118] sm:$0xff]
  %v2898 = vld [vmem:[%s2861 + $0x120] sm:$0x77]
  %v2899 = vld [vmem:[%s2861 + $0x128] sm:$0x77]
  %v2900 = vld [vmem:[%s2861 + $0x130] sm:$0x77]
  %v2940 = vunpack.c.l.b16 %v2862
  %v2941 = vunpack.c.h.b16 %v2862
  %v2942 = vunpack.c.l.b16 %v2863
  %v2943 = vunpack.c.h.b16 %v2863
  %v2944 = vunpack.c.l.b16 %v2864
  %v2945 = vunpack.c.h.b16 %v2864
  %v2946 = vunpack.c.l.b16 %v2865
  %v2947 = vunpack.c.h.b16 %v2865
  %v2948 = vunpack.c.l.b16 %v2866
  %v2949 = vunpack.c.h.b16 %v2866
  %v2950 = vunpack.c.l.b16 %v2867
  %v2951 = vunpack.c.h.b16 %v2867
  %v2952 = vunpack.c.l.b16 %v2868
  %v2953 = vunpack.c.h.b16 %v2868
  %v2954 = vunpack.c.l.b16 %v2869
  %v2955 = vunpack.c.h.b16 %v2869
  %v2956 = vunpack.c.l.b16 %v2870
  %v2957 = vunpack.c.h.b16 %v2870
  %v2958 = vunpack.c.l.b16 %v2871
  %v2959 = vunpack.c.h.b16 %v2871
  %v2960 = vunpack.c.l.b16 %v2872
  %v2961 = vunpack.c.h.b16 %v2872
  %v2962 = vunpack.c.l.b16 %v2873
  %v2963 = vunpack.c.h.b16 %v2873
  %v2964 = vunpack.c.l.b16 %v2874
  %v2965 = vunpack.c.h.b16 %v2874
  %v2966 = vunpack.c.l.b16 %v2875
  %v2967 = vunpack.c.h.b16 %v2875
  %v2968 = vunpack.c.l.b16 %v2876
  %v2969 = vunpack.c.h.b16 %v2876
  %v2970 = vunpack.c.l.b16 %v2877
  %v2971 = vunpack.c.h.b16 %v2877
  %v2972 = vunpack.c.l.b16 %v2878
  %v2973 = vunpack.c.h.b16 %v2878
  %v2974 = vunpack.c.l.b16 %v2879
  %v2975 = vunpack.c.h.b16 %v2879
  %v2976 = vunpack.c.l.b16 %v2880
  %v2977 = vunpack.c.h.b16 %v2880
  %v2978 = vunpack.c.l.b16 %v2881
  %v2979 = vunpack.c.h.b16 %v2881
  %v2980 = vunpack.c.l.b16 %v2882
  %v2981 = vunpack.c.h.b16 %v2882
  %v2982 = vunpack.c.l.b16 %v2883
  %v2983 = vunpack.c.h.b16 %v2883
  %v2984 = vunpack.c.l.b16 %v2884
  %v2985 = vunpack.c.h.b16 %v2884
  %v2986 = vunpack.c.l.b16 %v2885
  %v2987 = vunpack.c.h.b16 %v2885
  %v2988 = vunpack.c.l.b16 %v2886
  %v2989 = vunpack.c.h.b16 %v2886
  %v2990 = vunpack.c.l.b16 %v2887
  %v2991 = vunpack.c.h.b16 %v2887
  %v2992 = vunpack.c.l.b16 %v2888
  %v2993 = vunpack.c.h.b16 %v2888
  %v2994 = vunpack.c.l.b16 %v2889
  %v2995 = vunpack.c.h.b16 %v2889
  %v2996 = vunpack.c.l.b16 %v2890
  %v2997 = vunpack.c.h.b16 %v2890
  %v2998 = vunpack.c.l.b16 %v2891
  %v2999 = vunpack.c.h.b16 %v2891
  %v3000 = vunpack.c.l.b16 %v2892
  %v3001 = vunpack.c.h.b16 %v2892
  %v3002 = vunpack.c.l.b16 %v2893
  %v3003 = vunpack.c.h.b16 %v2893
  %v3004 = vunpack.c.l.b16 %v2894
  %v3005 = vunpack.c.h.b16 %v2894
  %v3006 = vunpack.c.l.b16 %v2895
  %v3007 = vunpack.c.h.b16 %v2895
  %v3008 = vunpack.c.l.b16 %v2896
  %v3009 = vunpack.c.h.b16 %v2896
  %v3010 = vunpack.c.l.b16 %v2897
  %v3011 = vunpack.c.h.b16 %v2897
  %v3012 = vunpack.c.l.b16 %v2898
  %v3013 = vunpack.c.h.b16 %v2898
  %v3014 = vunpack.c.l.b16 %v2899
  %v3015 = vunpack.c.h.b16 %v2899
  %v3016 = vunpack.c.l.b16 %v2900
  %v3017 = vunpack.c.h.b16 %v2900
  %v3018 = vpack.c.b16 %v2946, %v2940
  %v3019 = vpack.c.b16 %v2947, %v2941
  %v3020 = vpack.c.b16 %v2948, %v2942
  %v3021 = vpack.c.b16 %v2949, %v2943
  %v3022 = vpack.c.b16 %v2950, %v2944
  %v3023 = vpack.c.b16 %v2951, %v2945
  %v3024 = vpack.c.b16 %v2958, %v2952
  %v3025 = vpack.c.b16 %v2959, %v2953
  %v3026 = vpack.c.b16 %v2960, %v2954
  %v3027 = vpack.c.b16 %v2961, %v2955
  %v3028 = vpack.c.b16 %v2962, %v2956
  %v3029 = vpack.c.b16 %v2963, %v2957
  %v3030 = vpack.c.b16 %v2970, %v2964
  %v3031 = vpack.c.b16 %v2971, %v2965
  %v3032 = vpack.c.b16 %v2972, %v2966
  %v3033 = vpack.c.b16 %v2973, %v2967
  %v3034 = vpack.c.b16 %v2974, %v2968
  %v3035 = vpack.c.b16 %v2975, %v2969
  %v3036 = vpack.c.b16 %v2982, %v2976
  %v3037 = vpack.c.b16 %v2983, %v2977
  %v3038 = vpack.c.b16 %v2984, %v2978
  %v3039 = vpack.c.b16 %v2985, %v2979
  %v3040 = vpack.c.b16 %v2986, %v2980
  %v3041 = vpack.c.b16 %v2987, %v2981
  %v3042 = vpack.c.b16 %v2994, %v2988
  %v3043 = vpack.c.b16 %v2995, %v2989
  %v3044 = vpack.c.b16 %v2996, %v2990
  %v3045 = vpack.c.b16 %v2997, %v2991
  %v3046 = vpack.c.b16 %v2998, %v2992
  %v3047 = vpack.c.b16 %v2999, %v2993
  %v3048 = vpack.c.b16 %v3006, %v3000
  %v3049 = vpack.c.b16 %v3007, %v3001
  %v3050 = vpack.c.b16 %v3008, %v3002
  %v3051 = vpack.c.b16 %v3009, %v3003
  %v3052 = vpack.c.b16 %v3010, %v3004
  %v3053 = vpack.c.b16 %v3011, %v3005
  %v3054 = vpack.c.b16 %v3012, %v3012
  %v3055 = vpack.c.b16 %v3013, %v3013
  %v3056 = vpack.c.b16 %v3014, %v3014
  %v3057 = vpack.c.b16 %v3015, %v3015
  %v3058 = vpack.c.b16 %v3016, %v3016
  %v3059 = vpack.c.b16 %v3017, %v3017
  %v3097 = vsel %vm315, %v3054, 0
  %v3100 = vsel %vm315, %v3055, 0
  %v3103 = vsel %vm315, %v3056, 0
  %v3106 = vsel %vm315, %v3057, 0
  %v3109 = vsel %vm315, %v3058, 0
  %v3112 = vsel %vm315, %v3059, 0
  %3114 = vmatprep.subr.bf16.mxu0 %v3019
  %3115 = vmatpush1.bf16.msra.mxu0 %v3018
  %3116 = vmatprep.subr.bf16.mxu0 %v3025
  %3117 = vmatpush1.bf16.msra.mxu0 %v3024
  %3118 = vmatprep.subr.bf16.mxu0 %v3031
  %3119 = vmatpush1.bf16.msra.mxu0 %v3030
  %3120 = vmatprep.subr.bf16.mxu0 %v3037
  %3121 = vmatpush1.bf16.msra.mxu0 %v3036
  %3122 = vmatprep.subr.bf16.mxu0 %v3043
  %3123 = vmatpush1.bf16.msra.mxu0 %v3042
  %3124 = vmatprep.subr.bf16.mxu0 %v3049
  %3125 = vmatpush1.bf16.msra.mxu0 %v3048
  %3126 = vmatprep.subr.bf16.mxu0 %v3100
  %3127 = vmatpush1.bf16.msra.mxu0 %v3097
  %3128 = vmatprep.subr.bf16.mxu0 0
  %3129 = vmatpush1.bf16.msra.mxu0 0
  %3130 = vmatprep.subr.bf16.mxu0 0
  %3131 = vmatpush1.bf16.msra.mxu0 0
  %3132 = vmatprep.subr.bf16.mxu0 0
  %3133 = vmatpush1.bf16.msra.mxu0 0
  %3134 = vmatprep.subr.bf16.mxu0 0
  %3135 = vmatpush1.bf16.msra.mxu0 0
  %3136 = vmatprep.subr.bf16.mxu0 0
  %3137 = vmatpush1.bf16.msra.mxu0 0
  %3138 = vmatprep.subr.bf16.mxu0 0
  %3139 = vmatpush1.bf16.msra.mxu0 0
  %3140 = vmatprep.subr.bf16.mxu0 0
  %3141 = vmatpush1.bf16.msra.mxu0 0
  %3142 = vmatprep.subr.bf16.mxu0 0
  %3143 = vmatpush1.bf16.msra.mxu0 0
  %3144 = vmatprep.subr.bf16.mxu0 0
  %3145 = vmatpush1.bf16.msra.mxu0 0
  %3146 = vmatprep.mubr.bf16.mxu0 0
  %3147 = vmatmul.mubr.bf16.gmra.mrb[0].mxu0 %v310
  %v3148 = vpop.f32.mrb[0].mxu0
  %v3149 = vadd.f32 %v86, %v3148
  %v3150 = vpop.f32.mrb[0].mxu0
  %v3151 = vadd.f32 %v86, %v3150
  %v3152 = vpop.f32.mrb[0].mxu0
  %v3153 = vadd.f32 %v91, %v3152
  %v3154 = vpop.f32.mrb[0].mxu0
  %v3155 = vadd.f32 %v91, %v3154
  %3156 = vmatprep.mubr.bf16.mxu0 0
  %3157 = vmatmul.mubr.bf16.gmra.mrb[0].mxu0 %v313
  %v3158 = vpop.f32.mrb[0].mxu0
  %v3159 = vadd.f32 %v96, %v3158
  %v3160 = vpop.f32.mrb[0].mxu0
  %v3161 = vadd.f32 %v96, %v3160
  %v3162 = vpop.f32.mrb[0].mxu0
  %v3163 = vadd.f32 %v101, %v3162
  %v3164 = vpop.f32.mrb[0].mxu0
  %v3165 = vadd.f32 %v101, %v3164
  %3166 = vdwg.mxu0
  %3167 = vmatprep.subr.bf16.mxu0 %v3021
  %3168 = vmatpush1.bf16.msra.mxu0 %v3020
  %3169 = vmatprep.subr.bf16.mxu0 %v3027
  %3170 = vmatpush1.bf16.msra.mxu0 %v3026
  %3171 = vmatprep.subr.bf16.mxu0 %v3033
  %3172 = vmatpush1.bf16.msra.mxu0 %v3032
  %3173 = vmatprep.subr.bf16.mxu0 %v3039
  %3174 = vmatpush1.bf16.msra.mxu0 %v3038
  %3175 = vmatprep.subr.bf16.mxu0 %v3045
  %3176 = vmatpush1.bf16.msra.mxu0 %v3044
  %3177 = vmatprep.subr.bf16.mxu0 %v3051
  %3178 = vmatpush1.bf16.msra.mxu0 %v3050
  %3179 = vmatprep.subr.bf16.mxu0 %v3106
  %3180 = vmatpush1.bf16.msra.mxu0 %v3103
  %3181 = vmatprep.subr.bf16.mxu0 0
  %3182 = vmatpush1.bf16.msra.mxu0 0
  %3183 = vmatprep.subr.bf16.mxu0 0
  %3184 = vmatpush1.bf16.msra.mxu0 0
  %3185 = vmatprep.subr.bf16.mxu0 0
  %3186 = vmatpush1.bf16.msra.mxu0 0
  %3187 = vmatprep.subr.bf16.mxu0 0
  %3188 = vmatpush1.bf16.msra.mxu0 0
  %3189 = vmatprep.subr.bf16.mxu0 0
  %3190 = vmatpush1.bf16.msra.mxu0 0
  %3191 = vmatprep.subr.bf16.mxu0 0
  %3192 = vmatpush1.bf16.msra.mxu0 0
  %3193 = vmatprep.subr.bf16.mxu0 0
  %3194 = vmatpush1.bf16.msra.mxu0 0
  %3195 = vmatprep.subr.bf16.mxu0 0
  %3196 = vmatpush1.bf16.msra.mxu0 0
  %3197 = vmatprep.subr.bf16.mxu0 0
  %3198 = vmatpush1.bf16.msra.mxu0 0
  %3199 = vmatprep.mubr.bf16.mxu0 0
  %3200 = vmatmul.mubr.bf16.gmra.mrb[0].mxu0 %v310
  %v3201 = vpop.f32.mrb[0].mxu0
  %v3202 = vadd.f32 %v86, %v3201
  %v3203 = vpop.f32.mrb[0].mxu0
  %v3204 = vadd.f32 %v86, %v3203
  %v3205 = vpop.f32.mrb[0].mxu0
  %v3206 = vadd.f32 %v91, %v3205
  %v3207 = vpop.f32.mrb[0].mxu0
  %v3208 = vadd.f32 %v91, %v3207
  %3209 = vmatprep.mubr.bf16.mxu0 0
  %3210 = vmatmul.mubr.bf16.gmra.mrb[0].mxu0 %v313
  %v3211 = vpop.f32.mrb[0].mxu0
  %v3212 = vadd.f32 %v96, %v3211
  %v3213 = vpop.f32.mrb[0].mxu0
  %v3214 = vadd.f32 %v96, %v3213
  %v3215 = vpop.f32.mrb[0].mxu0
  %v3216 = vadd.f32 %v101, %v3215
  %v3217 = vpop.f32.mrb[0].mxu0
  %v3218 = vadd.f32 %v101, %v3217
  %3219 = vdwg.mxu0
  %3220 = vmatprep.subr.bf16.mxu0 %v3023
  %3221 = vmatpush1.bf16.msra.mxu0 %v3022
  %3222 = vmatprep.subr.bf16.mxu0 %v3029
  %3223 = vmatpush1.bf16.msra.mxu0 %v3028
  %3224 = vmatprep.subr.bf16.mxu0 %v3035
  %3225 = vmatpush1.bf16.msra.mxu0 %v3034
  %3226 = vmatprep.subr.bf16.mxu0 %v3041
  %3227 = vmatpush1.bf16.msra.mxu0 %v3040
  %3228 = vmatprep.subr.bf16.mxu0 %v3047
  %3229 = vmatpush1.bf16.msra.mxu0 %v3046
  %3230 = vmatprep.subr.bf16.mxu0 %v3053
  %3231 = vmatpush1.bf16.msra.mxu0 %v3052
  %3232 = vmatprep.subr.bf16.mxu0 %v3112
  %3233 = vmatpush1.bf16.msra.mxu0 %v3109
  %3234 = vmatprep.subr.bf16.mxu0 0
  %3235 = vmatpush1.bf16.msra.mxu0 0
  %3236 = vmatprep.subr.bf16.mxu0 0
  %3237 = vmatpush1.bf16.msra.mxu0 0
  %3238 = vmatprep.subr.bf16.mxu0 0
  %3239 = vmatpush1.bf16.msra.mxu0 0
  %3240 = vmatprep.subr.bf16.mxu0 0
  %3241 = vmatpush1.bf16.msra.mxu0 0
  %3242 = vmatprep.subr.bf16.mxu0 0
  %3243 = vmatpush1.bf16.msra.mxu0 0
  %3244 = vmatprep.subr.bf16.mxu0 0
  %3245 = vmatpush1.bf16.msra.mxu0 0
  %3246 = vmatprep.subr.bf16.mxu0 0
  %3247 = vmatpush1.bf16.msra.mxu0 0
  %3248 = vmatprep.subr.bf16.mxu0 0
  %3249 = vmatpush1.bf16.msra.mxu0 0
  %3250 = vmatprep.subr.bf16.mxu0 0
  %3251 = vmatpush1.bf16.msra.mxu0 0
  %3252 = vmatprep.mubr.bf16.mxu0 0
  %3253 = vmatmul.mubr.bf16.gmra.mrb[0].mxu0 %v310
  %v3254 = vpop.f32.mrb[0].mxu0
  %v3255 = vadd.f32 %v86, %v3254
  %v3256 = vpop.f32.mrb[0].mxu0
  %v3257 = vadd.f32 %v86, %v3256
  %v3258 = vpop.f32.mrb[0].mxu0
  %v3259 = vadd.f32 %v91, %v3258
  %v3260 = vpop.f32.mrb[0].mxu0
  %v3261 = vadd.f32 %v91, %v3260
  %3262 = vmatprep.mubr.bf16.mxu0 0
  %3263 = vmatmul.mubr.bf16.gmra.mrb[0].mxu0 %v313
  %v3264 = vpop.f32.mrb[0].mxu0
  %v3265 = vadd.f32 %v96, %v3264
  %v3266 = vpop.f32.mrb[0].mxu0
  %v3267 = vadd.f32 %v96, %v3266
  %v3268 = vpop.f32.mrb[0].mxu0
  %v3269 = vadd.f32 %v101, %v3268
  %v3270 = vpop.f32.mrb[0].mxu0
  %v3271 = vadd.f32 %v101, %v3270
  %3272 = vdwg.mxu0
  %vm3273 = vcmp.gt.f32.partialorder %v3149, 0.0
  %vm3274 = vcmp.gt.f32.partialorder %v3151, 0.0
  %vm3275 = vcmp.gt.f32.partialorder %v3202, 0.0
  %vm3276 = vcmp.gt.f32.partialorder %v3204, 0.0
  %vm3277 = vcmp.gt.f32.partialorder %v3255, 0.0
  %vm3278 = vcmp.gt.f32.partialorder %v3257, 0.0
  %vm3279 = vcmp.gt.f32.partialorder %v3153, 0.0
  %vm3280 = vcmp.gt.f32.partialorder %v3155, 0.0
  %vm3281 = vcmp.gt.f32.partialorder %v3206, 0.0
  %vm3282 = vcmp.gt.f32.partialorder %v3208, 0.0
  %vm3283 = vcmp.gt.f32.partialorder %v3259, 0.0
  %vm3284 = vcmp.gt.f32.partialorder %v3261, 0.0
  %vm3285 = vcmp.gt.f32.partialorder %v3159, 0.0
  %vm3286 = vcmp.gt.f32.partialorder %v3161, 0.0
  %vm3287 = vcmp.gt.f32.partialorder %v3212, 0.0
  %vm3288 = vcmp.gt.f32.partialorder %v3214, 0.0
  %vm3289 = vcmp.gt.f32.partialorder %v3265, 0.0
  %vm3290 = vcmp.gt.f32.partialorder %v3267, 0.0
  %vm3291 = vcmp.gt.f32.partialorder %v3163, 0.0
  %vm3292 = vcmp.gt.f32.partialorder %v3165, 0.0
  %vm3293 = vcmp.gt.f32.partialorder %v3216, 0.0
  %vm3294 = vcmp.gt.f32.partialorder %v3218, 0.0
  %vm3295 = vcmp.gt.f32.partialorder %v3269, 0.0
  %vm3296 = vcmp.gt.f32.partialorder %v3271, 0.0
  %v3297 = vmin.f32 %v3149, 0.0
  %v3298 = vmin.f32 %v3151, 0.0
  %v3299 = vmin.f32 %v3202, 0.0
  %v3300 = vmin.f32 %v3204, 0.0
  %v3301 = vmin.f32 %v3255, 0.0
  %v3302 = vmin.f32 %v3257, 0.0
  %v3303 = vmin.f32 %v3153, 0.0
  %v3304 = vmin.f32 %v3155, 0.0
  %v3305 = vmin.f32 %v3206, 0.0
  %v3306 = vmin.f32 %v3208, 0.0
  %v3307 = vmin.f32 %v3259, 0.0
  %v3308 = vmin.f32 %v3261, 0.0
  %v3309 = vmin.f32 %v3159, 0.0
  %v3310 = vmin.f32 %v3161, 0.0
  %v3311 = vmin.f32 %v3212, 0.0
  %v3312 = vmin.f32 %v3214, 0.0
  %v3313 = vmin.f32 %v3265, 0.0
  %v3314 = vmin.f32 %v3267, 0.0
  %v3315 = vmin.f32 %v3163, 0.0
  %v3316 = vmin.f32 %v3165, 0.0
  %v3317 = vmin.f32 %v3216, 0.0
  %v3318 = vmin.f32 %v3218, 0.0
  %v3319 = vmin.f32 %v3269, 0.0
  %v3320 = vmin.f32 %v3271, 0.0
  %v3321 = vmul.f32 %v3297, 1.442695
  %v3322 = vpow.pop %v3321
  %v3323 = vmul.f32 %v3298, 1.442695
  %v3324 = vpow.pop %v3323
  %v3325 = vmul.f32 %v3299, 1.442695
  %v3326 = vpow.pop %v3325
  %v3327 = vmul.f32 %v3300, 1.442695
  %v3328 = vpow.pop %v3327
  %v3329 = vmul.f32 %v3301, 1.442695
  %v3330 = vpow.pop %v3329
  %v3331 = vmul.f32 %v3302, 1.442695
  %v3332 = vpow.pop %v3331
  %v3333 = vmul.f32 %v3303, 1.442695
  %v3334 = vpow.pop %v3333
  %v3335 = vmul.f32 %v3304, 1.442695
  %v3336 = vpow.pop %v3335
  %v3337 = vmul.f32 %v3305, 1.442695
  %v3338 = vpow.pop %v3337
  %v3339 = vmul.f32 %v3306, 1.442695
  %v3340 = vpow.pop %v3339
  %v3341 = vmul.f32 %v3307, 1.442695
  %v3342 = vpow.pop %v3341
  %v3343 = vmul.f32 %v3308, 1.442695
  %v3344 = vpow.pop %v3343
  %v3345 = vmul.f32 %v3309, 1.442695
  %v3346 = vpow.pop %v3345
  %v3347 = vmul.f32 %v3310, 1.442695
  %v3348 = vpow.pop %v3347
  %v3349 = vmul.f32 %v3311, 1.442695
  %v3350 = vpow.pop %v3349
  %v3351 = vmul.f32 %v3312, 1.442695
  %v3352 = vpow.pop %v3351
  %v3353 = vmul.f32 %v3313, 1.442695
  %v3354 = vpow.pop %v3353
  %v3355 = vmul.f32 %v3314, 1.442695
  %v3356 = vpow.pop %v3355
  %v3357 = vmul.f32 %v3315, 1.442695
  %v3358 = vpow.pop %v3357
  %v3359 = vmul.f32 %v3316, 1.442695
  %v3360 = vpow.pop %v3359
  %v3361 = vmul.f32 %v3317, 1.442695
  %v3362 = vpow.pop %v3361
  %v3363 = vmul.f32 %v3318, 1.442695
  %v3364 = vpow.pop %v3363
  %v3365 = vmul.f32 %v3319, 1.442695
  %v3366 = vpow.pop %v3365
  %v3367 = vmul.f32 %v3320, 1.442695
  %v3368 = vpow.pop %v3367
  %v3369 = vsub.f32 %v3322, 1.0
  %v3370 = vsub.f32 %v3324, 1.0
  %v3371 = vsub.f32 %v3326, 1.0
  %v3372 = vsub.f32 %v3328, 1.0
  %v3373 = vsub.f32 %v3330, 1.0
  %v3374 = vsub.f32 %v3332, 1.0
  %v3375 = vsub.f32 %v3334, 1.0
  %v3376 = vsub.f32 %v3336, 1.0
  %v3377 = vsub.f32 %v3338, 1.0
  %v3378 = vsub.f32 %v3340, 1.0
  %v3379 = vsub.f32 %v3342, 1.0
  %v3380 = vsub.f32 %v3344, 1.0
  %v3381 = vsub.f32 %v3346, 1.0
  %v3382 = vsub.f32 %v3348, 1.0
  %v3383 = vsub.f32 %v3350, 1.0
  %v3384 = vsub.f32 %v3352, 1.0
  %v3385 = vsub.f32 %v3354, 1.0
  %v3386 = vsub.f32 %v3356, 1.0
  %v3387 = vsub.f32 %v3358, 1.0
  %v3388 = vsub.f32 %v3360, 1.0
  %v3389 = vsub.f32 %v3362, 1.0
  %v3390 = vsub.f32 %v3364, 1.0
  %v3391 = vsub.f32 %v3366, 1.0
  %v3392 = vsub.f32 %v3368, 1.0
  %v3393 = vsel %vm3273, %v3149, %v3369
  %v3394 = vsel %vm3274, %v3151, %v3370
  %v3395 = vsel %vm3275, %v3202, %v3371
  %v3396 = vsel %vm3276, %v3204, %v3372
  %v3397 = vsel %vm3277, %v3255, %v3373
  %v3398 = vsel %vm3278, %v3257, %v3374
  %v3399 = vsel %vm3279, %v3153, %v3375
  %v3400 = vsel %vm3280, %v3155, %v3376
  %v3401 = vsel %vm3281, %v3206, %v3377
  %v3402 = vsel %vm3282, %v3208, %v3378
  %v3403 = vsel %vm3283, %v3259, %v3379
  %v3404 = vsel %vm3284, %v3261, %v3380
  %v3405 = vsel %vm3285, %v3159, %v3381
  %v3406 = vsel %vm3286, %v3161, %v3382
  %v3407 = vsel %vm3287, %v3212, %v3383
  %v3408 = vsel %vm3288, %v3214, %v3384
  %v3409 = vsel %vm3289, %v3265, %v3385
  %v3410 = vsel %vm3290, %v3267, %v3386
  %v3411 = vsel %vm3291, %v3163, %v3387
  %v3412 = vsel %vm3292, %v3165, %v3388
  %v3413 = vsel %vm3293, %v3216, %v3389
  %v3414 = vsel %vm3294, %v3218, %v3390
  %v3415 = vsel %vm3295, %v3269, %v3391
  %v3416 = vsel %vm3296, %v3271, %v3392
  %s3417 = scalar_lea.vmem %s0, 1872
  %v3418 = vld [vmem:[%s3417] sm:$0xff]
  %v3419 = vld [vmem:[%s3417 + $0x8] sm:$0xff]
  %v3420 = vld [vmem:[%s3417 + $0x10] sm:$0xff]
  %v3421 = vld [vmem:[%s3417 + $0x18] sm:$0xff]
  %v3422 = vld [vmem:[%s3417 + $0x20] sm:$0xff]
  %v3423 = vld [vmem:[%s3417 + $0x28] sm:$0xff]
  %v3424 = vld [vmem:[%s3417 + $0x30] sm:$0xff]
  %v3425 = vld [vmem:[%s3417 + $0x38] sm:$0xff]
  %v3426 = vld [vmem:[%s3417 + $0x40] sm:$0xff]
  %v3427 = vld [vmem:[%s3417 + $0x48] sm:$0xff]
  %v3428 = vld [vmem:[%s3417 + $0x50] sm:$0xff]
  %v3429 = vld [vmem:[%s3417 + $0x58] sm:$0xff]
  %v3430 = vld [vmem:[%s3417 + $0x60] sm:$0xff]
  %v3431 = vld [vmem:[%s3417 + $0x68] sm:$0xff]
  %v3432 = vld [vmem:[%s3417 + $0x70] sm:$0xff]
  %v3433 = vld [vmem:[%s3417 + $0x78] sm:$0xff]
  %v3434 = vld [vmem:[%s3417 + $0x80] sm:$0xff]
  %v3435 = vld [vmem:[%s3417 + $0x88] sm:$0xff]
  %v3436 = vld [vmem:[%s3417 + $0x90] sm:$0xff]
  %v3437 = vld [vmem:[%s3417 + $0x98] sm:$0xff]
  %v3438 = vld [vmem:[%s3417 + $0xa0] sm:$0xff]
  %v3439 = vld [vmem:[%s3417 + $0xa8] sm:$0xff]
  %v3440 = vld [vmem:[%s3417 + $0xb0] sm:$0xff]
  %v3441 = vld [vmem:[%s3417 + $0xb8] sm:$0xff]
  %v3442 = vld [vmem:[%s3417 + $0xc0] sm:$0xff]
  %v3443 = vld [vmem:[%s3417 + $0xc8] sm:$0xff]
  %v3444 = vld [vmem:[%s3417 + $0xd0] sm:$0xff]
  %v3445 = vld [vmem:[%s3417 + $0xd8] sm:$0xff]
  %v3446 = vld [vmem:[%s3417 + $0xe0] sm:$0xff]
  %v3447 = vld [vmem:[%s3417 + $0xe8] sm:$0xff]
  %v3448 = vld [vmem:[%s3417 + $0xf0] sm:$0xff]
  %v3449 = vld [vmem:[%s3417 + $0xf8] sm:$0xff]
  %v3450 = vld [vmem:[%s3417 + $0x100] sm:$0xff]
  %v3451 = vld [vmem:[%s3417 + $0x108] sm:$0xff]
  %v3452 = vld [vmem:[%s3417 + $0x110] sm:$0xff]
  %v3453 = vld [vmem:[%s3417 + $0x118] sm:$0xff]
  %v3454 = vld [vmem:[%s3417 + $0x120] sm:$0x77]
  %v3455 = vld [vmem:[%s3417 + $0x128] sm:$0x77]
  %v3456 = vld [vmem:[%s3417 + $0x130] sm:$0x77]
  %v3496 = vunpack.c.l.b16 %v3418
  %v3497 = vunpack.c.h.b16 %v3418
  %v3498 = vunpack.c.l.b16 %v3419
  %v3499 = vunpack.c.h.b16 %v3419
  %v3500 = vunpack.c.l.b16 %v3420
  %v3501 = vunpack.c.h.b16 %v3420
  %v3502 = vunpack.c.l.b16 %v3421
  %v3503 = vunpack.c.h.b16 %v3421
  %v3504 = vunpack.c.l.b16 %v3422
  %v3505 = vunpack.c.h.b16 %v3422
  %v3506 = vunpack.c.l.b16 %v3423
  %v3507 = vunpack.c.h.b16 %v3423
  %v3508 = vunpack.c.l.b16 %v3424
  %v3509 = vunpack.c.h.b16 %v3424
  %v3510 = vunpack.c.l.b16 %v3425
  %v3511 = vunpack.c.h.b16 %v3425
  %v3512 = vunpack.c.l.b16 %v3426
  %v3513 = vunpack.c.h.b16 %v3426
  %v3514 = vunpack.c.l.b16 %v3427
  %v3515 = vunpack.c.h.b16 %v3427
  %v3516 = vunpack.c.l.b16 %v3428
  %v3517 = vunpack.c.h.b16 %v3428
  %v3518 = vunpack.c.l.b16 %v3429
  %v3519 = vunpack.c.h.b16 %v3429
  %v3520 = vunpack.c.l.b16 %v3430
  %v3521 = vunpack.c.h.b16 %v3430
  %v3522 = vunpack.c.l.b16 %v3431
  %v3523 = vunpack.c.h.b16 %v3431
  %v3524 = vunpack.c.l.b16 %v3432
  %v3525 = vunpack.c.h.b16 %v3432
  %v3526 = vunpack.c.l.b16 %v3433
  %v3527 = vunpack.c.h.b16 %v3433
  %v3528 = vunpack.c.l.b16 %v3434
  %v3529 = vunpack.c.h.b16 %v3434
  %v3530 = vunpack.c.l.b16 %v3435
  %v3531 = vunpack.c.h.b16 %v3435
  %v3532 = vunpack.c.l.b16 %v3436
  %v3533 = vunpack.c.h.b16 %v3436
  %v3534 = vunpack.c.l.b16 %v3437
  %v3535 = vunpack.c.h.b16 %v3437
  %v3536 = vunpack.c.l.b16 %v3438
  %v3537 = vunpack.c.h.b16 %v3438
  %v3538 = vunpack.c.l.b16 %v3439
  %v3539 = vunpack.c.h.b16 %v3439
  %v3540 = vunpack.c.l.b16 %v3440
  %v3541 = vunpack.c.h.b16 %v3440
  %v3542 = vunpack.c.l.b16 %v3441
  %v3543 = vunpack.c.h.b16 %v3441
  %v3544 = vunpack.c.l.b16 %v3442
  %v3545 = vunpack.c.h.b16 %v3442
  %v3546 = vunpack.c.l.b16 %v3443
  %v3547 = vunpack.c.h.b16 %v3443
  %v3548 = vunpack.c.l.b16 %v3444
  %v3549 = vunpack.c.h.b16 %v3444
  %v3550 = vunpack.c.l.b16 %v3445
  %v3551 = vunpack.c.h.b16 %v3445
  %v3552 = vunpack.c.l.b16 %v3446
  %v3553 = vunpack.c.h.b16 %v3446
  %v3554 = vunpack.c.l.b16 %v3447
  %v3555 = vunpack.c.h.b16 %v3447
  %v3556 = vunpack.c.l.b16 %v3448
  %v3557 = vunpack.c.h.b16 %v3448
  %v3558 = vunpack.c.l.b16 %v3449
  %v3559 = vunpack.c.h.b16 %v3449
  %v3560 = vunpack.c.l.b16 %v3450
  %v3561 = vunpack.c.h.b16 %v3450
  %v3562 = vunpack.c.l.b16 %v3451
  %v3563 = vunpack.c.h.b16 %v3451
  %v3564 = vunpack.c.l.b16 %v3452
  %v3565 = vunpack.c.h.b16 %v3452
  %v3566 = vunpack.c.l.b16 %v3453
  %v3567 = vunpack.c.h.b16 %v3453
  %v3568 = vunpack.c.l.b16 %v3454
  %v3569 = vunpack.c.h.b16 %v3454
  %v3570 = vunpack.c.l.b16 %v3455
  %v3571 = vunpack.c.h.b16 %v3455
  %v3572 = vunpack.c.l.b16 %v3456
  %v3573 = vunpack.c.h.b16 %v3456
  %v3574 = vpack.c.b16 %v3502, %v3496
  %v3575 = vpack.c.b16 %v3503, %v3497
  %v3576 = vpack.c.b16 %v3504, %v3498
  %v3577 = vpack.c.b16 %v3505, %v3499
  %v3578 = vpack.c.b16 %v3506, %v3500
  %v3579 = vpack.c.b16 %v3507, %v3501
  %v3580 = vpack.c.b16 %v3514, %v3508
  %v3581 = vpack.c.b16 %v3515, %v3509
  %v3582 = vpack.c.b16 %v3516, %v3510
  %v3583 = vpack.c.b16 %v3517, %v3511
  %v3584 = vpack.c.b16 %v3518, %v3512
  %v3585 = vpack.c.b16 %v3519, %v3513
  %v3586 = vpack.c.b16 %v3526, %v3520
  %v3587 = vpack.c.b16 %v3527, %v3521
  %v3588 = vpack.c.b16 %v3528, %v3522
  %v3589 = vpack.c.b16 %v3529, %v3523
  %v3590 = vpack.c.b16 %v3530, %v3524
  %v3591 = vpack.c.b16 %v3531, %v3525
  %v3592 = vpack.c.b16 %v3538, %v3532
  %v3593 = vpack.c.b16 %v3539, %v3533
  %v3594 = vpack.c.b16 %v3540, %v3534
  %v3595 = vpack.c.b16 %v3541, %v3535
  %v3596 = vpack.c.b16 %v3542, %v3536
  %v3597 = vpack.c.b16 %v3543, %v3537
  %v3598 = vpack.c.b16 %v3550, %v3544
  %v3599 = vpack.c.b16 %v3551, %v3545
  %v3600 = vpack.c.b16 %v3552, %v3546
  %v3601 = vpack.c.b16 %v3553, %v3547
  %v3602 = vpack.c.b16 %v3554, %v3548
  %v3603 = vpack.c.b16 %v3555, %v3549
  %v3604 = vpack.c.b16 %v3562, %v3556
  %v3605 = vpack.c.b16 %v3563, %v3557
  %v3606 = vpack.c.b16 %v3564, %v3558
  %v3607 = vpack.c.b16 %v3565, %v3559
  %v3608 = vpack.c.b16 %v3566, %v3560
  %v3609 = vpack.c.b16 %v3567, %v3561
  %v3610 = vpack.c.b16 %v3568, %v3568
  %v3611 = vpack.c.b16 %v3569, %v3569
  %v3612 = vpack.c.b16 %v3570, %v3570
  %v3613 = vpack.c.b16 %v3571, %v3571
  %v3614 = vpack.c.b16 %v3572, %v3572
  %v3615 = vpack.c.b16 %v3573, %v3573
  %v3653 = vsel %vm315, %v3610, 0
  %v3656 = vsel %vm315, %v3611, 0
  %v3659 = vsel %vm315, %v3612, 0
  %v3662 = vsel %vm315, %v3613, 0
  %v3665 = vsel %vm315, %v3614, 0
  %v3668 = vsel %vm315, %v3615, 0
  %3670 = vmatprep.subr.bf16.mxu0 %v3575
  %3671 = vmatpush1.bf16.msra.mxu0 %v3574
  %3672 = vmatprep.subr.bf16.mxu0 %v3581
  %3673 = vmatpush1.bf16.msra.mxu0 %v3580
  %3674 = vmatprep.subr.bf16.mxu0 %v3587
  %3675 = vmatpush1.bf16.msra.mxu0 %v3586
  %3676 = vmatprep.subr.bf16.mxu0 %v3593
  %3677 = vmatpush1.bf16.msra.mxu0 %v3592
  %3678 = vmatprep.subr.bf16.mxu0 %v3599
  %3679 = vmatpush1.bf16.msra.mxu0 %v3598
  %3680 = vmatprep.subr.bf16.mxu0 %v3605
  %3681 = vmatpush1.bf16.msra.mxu0 %v3604
  %3682 = vmatprep.subr.bf16.mxu0 %v3656
  %3683 = vmatpush1.bf16.msra.mxu0 %v3653
  %3684 = vmatprep.subr.bf16.mxu0 0
  %3685 = vmatpush1.bf16.msra.mxu0 0
  %3686 = vmatprep.subr.bf16.mxu0 0
  %3687 = vmatpush1.bf16.msra.mxu0 0
  %3688 = vmatprep.subr.bf16.mxu0 0
  %3689 = vmatpush1.bf16.msra.mxu0 0
  %3690 = vmatprep.subr.bf16.mxu0 0
  %3691 = vmatpush1.bf16.msra.mxu0 0
  %3692 = vmatprep.subr.bf16.mxu0 0
  %3693 = vmatpush1.bf16.msra.mxu0 0
  %3694 = vmatprep.subr.bf16.mxu0 0
  %3695 = vmatpush1.bf16.msra.mxu0 0
  %3696 = vmatprep.subr.bf16.mxu0 0
  %3697 = vmatpush1.bf16.msra.mxu0 0
  %3698 = vmatprep.subr.bf16.mxu0 0
  %3699 = vmatpush1.bf16.msra.mxu0 0
  %3700 = vmatprep.subr.bf16.mxu0 0
  %3701 = vmatpush1.bf16.msra.mxu0 0
  %3702 = vmatprep.mubr.bf16.mxu0 0
  %3703 = vmatmul.mubr.bf16.gmra.mrb[0].mxu0 %v310
  %v3704 = vpop.f32.mrb[0].mxu0
  %v3705 = vadd.f32 %v86, %v3704
  %v3706 = vpop.f32.mrb[0].mxu0
  %v3707 = vadd.f32 %v86, %v3706
  %v3708 = vpop.f32.mrb[0].mxu0
  %v3709 = vadd.f32 %v91, %v3708
  %v3710 = vpop.f32.mrb[0].mxu0
  %v3711 = vadd.f32 %v91, %v3710
  %3712 = vmatprep.mubr.bf16.mxu0 0
  %3713 = vmatmul.mubr.bf16.gmra.mrb[0].mxu0 %v313
  %v3714 = vpop.f32.mrb[0].mxu0
  %v3715 = vadd.f32 %v96, %v3714
  %v3716 = vpop.f32.mrb[0].mxu0
  %v3717 = vadd.f32 %v96, %v3716
  %v3718 = vpop.f32.mrb[0].mxu0
  %v3719 = vadd.f32 %v101, %v3718
  %v3720 = vpop.f32.mrb[0].mxu0
  %v3721 = vadd.f32 %v101, %v3720
  %3722 = vdwg.mxu0
  %3723 = vmatprep.subr.bf16.mxu0 %v3577
  %3724 = vmatpush1.bf16.msra.mxu0 %v3576
  %3725 = vmatprep.subr.bf16.mxu0 %v3583
  %3726 = vmatpush1.bf16.msra.mxu0 %v3582
  %3727 = vmatprep.subr.bf16.mxu0 %v3589
  %3728 = vmatpush1.bf16.msra.mxu0 %v3588
  %3729 = vmatprep.subr.bf16.mxu0 %v3595
  %3730 = vmatpush1.bf16.msra.mxu0 %v3594
  %3731 = vmatprep.subr.bf16.mxu0 %v3601
  %3732 = vmatpush1.bf16.msra.mxu0 %v3600
  %3733 = vmatprep.subr.bf16.mxu0 %v3607
  %3734 = vmatpush1.bf16.msra.mxu0 %v3606
  %3735 = vmatprep.subr.bf16.mxu0 %v3662
  %3736 = vmatpush1.bf16.msra.mxu0 %v3659
  %3737 = vmatprep.subr.bf16.mxu0 0
  %3738 = vmatpush1.bf16.msra.mxu0 0
  %3739 = vmatprep.subr.bf16.mxu0 0
  %3740 = vmatpush1.bf16.msra.mxu0 0
  %3741 = vmatprep.subr.bf16.mxu0 0
  %3742 = vmatpush1.bf16.msra.mxu0 0
  %3743 = vmatprep.subr.bf16.mxu0 0
  %3744 = vmatpush1.bf16.msra.mxu0 0
  %3745 = vmatprep.subr.bf16.mxu0 0
  %3746 = vmatpush1.bf16.msra.mxu0 0
  %3747 = vmatprep.subr.bf16.mxu0 0
  %3748 = vmatpush1.bf16.msra.mxu0 0
  %3749 = vmatprep.subr.bf16.mxu0 0
  %3750 = vmatpush1.bf16.msra.mxu0 0
  %3751 = vmatprep.subr.bf16.mxu0 0
  %3752 = vmatpush1.bf16.msra.mxu0 0
  %3753 = vmatprep.subr.bf16.mxu0 0
  %3754 = vmatpush1.bf16.msra.mxu0 0
  %3755 = vmatprep.mubr.bf16.mxu0 0
  %3756 = vmatmul.mubr.bf16.gmra.mrb[0].mxu0 %v310
  %v3757 = vpop.f32.mrb[0].mxu0
  %v3758 = vadd.f32 %v86, %v3757
  %v3759 = vpop.f32.mrb[0].mxu0
  %v3760 = vadd.f32 %v86, %v3759
  %v3761 = vpop.f32.mrb[0].mxu0
  %v3762 = vadd.f32 %v91, %v3761
  %v3763 = vpop.f32.mrb[0].mxu0
  %v3764 = vadd.f32 %v91, %v3763
  %3765 = vmatprep.mubr.bf16.mxu0 0
  %3766 = vmatmul.mubr.bf16.gmra.mrb[0].mxu0 %v313
  %v3767 = vpop.f32.mrb[0].mxu0
  %v3768 = vadd.f32 %v96, %v3767
  %v3769 = vpop.f32.mrb[0].mxu0
  %v3770 = vadd.f32 %v96, %v3769
  %v3771 = vpop.f32.mrb[0].mxu0
  %v3772 = vadd.f32 %v101, %v3771
  %v3773 = vpop.f32.mrb[0].mxu0
  %v3774 = vadd.f32 %v101, %v3773
  %3775 = vdwg.mxu0
  %3776 = vmatprep.subr.bf16.mxu0 %v3579
  %3777 = vmatpush1.bf16.msra.mxu0 %v3578
  %3778 = vmatprep.subr.bf16.mxu0 %v3585
  %3779 = vmatpush1.bf16.msra.mxu0 %v3584
  %3780 = vmatprep.subr.bf16.mxu0 %v3591
  %3781 = vmatpush1.bf16.msra.mxu0 %v3590
  %3782 = vmatprep.subr.bf16.mxu0 %v3597
  %3783 = vmatpush1.bf16.msra.mxu0 %v3596
  %3784 = vmatprep.subr.bf16.mxu0 %v3603
  %3785 = vmatpush1.bf16.msra.mxu0 %v3602
  %3786 = vmatprep.subr.bf16.mxu0 %v3609
  %3787 = vmatpush1.bf16.msra.mxu0 %v3608
  %3788 = vmatprep.subr.bf16.mxu0 %v3668
  %3789 = vmatpush1.bf16.msra.mxu0 %v3665
  %3790 = vmatprep.subr.bf16.mxu0 0
  %3791 = vmatpush1.bf16.msra.mxu0 0
  %3792 = vmatprep.subr.bf16.mxu0 0
  %3793 = vmatpush1.bf16.msra.mxu0 0
  %3794 = vmatprep.subr.bf16.mxu0 0
  %3795 = vmatpush1.bf16.msra.mxu0 0
  %3796 = vmatprep.subr.bf16.mxu0 0
  %3797 = vmatpush1.bf16.msra.mxu0 0
  %3798 = vmatprep.subr.bf16.mxu0 0
  %3799 = vmatpush1.bf16.msra.mxu0 0
  %3800 = vmatprep.subr.bf16.mxu0 0
  %3801 = vmatpush1.bf16.msra.mxu0 0
  %3802 = vmatprep.subr.bf16.mxu0 0
  %3803 = vmatpush1.bf16.msra.mxu0 0
  %3804 = vmatprep.subr.bf16.mxu0 0
  %3805 = vmatpush1.bf16.msra.mxu0 0
  %3806 = vmatprep.subr.bf16.mxu0 0
  %3807 = vmatpush1.bf16.msra.mxu0 0
  %3808 = vmatprep.mubr.bf16.mxu0 0
  %3809 = vmatmul.mubr.bf16.gmra.mrb[0].mxu0 %v310
  %v3810 = vpop.f32.mrb[0].mxu0
  %v3811 = vadd.f32 %v86, %v3810
  %v3812 = vpop.f32.mrb[0].mxu0
  %v3813 = vadd.f32 %v86, %v3812
  %v3814 = vpop.f32.mrb[0].mxu0
  %v3815 = vadd.f32 %v91, %v3814
  %v3816 = vpop.f32.mrb[0].mxu0
  %v3817 = vadd.f32 %v91, %v3816
  %3818 = vmatprep.mubr.bf16.mxu0 0
  %3819 = vmatmul.mubr.bf16.gmra.mrb[0].mxu0 %v313
  %v3820 = vpop.f32.mrb[0].mxu0
  %v3821 = vadd.f32 %v96, %v3820
  %v3822 = vpop.f32.mrb[0].mxu0
  %v3823 = vadd.f32 %v96, %v3822
  %v3824 = vpop.f32.mrb[0].mxu0
  %v3825 = vadd.f32 %v101, %v3824
  %v3826 = vpop.f32.mrb[0].mxu0
  %v3827 = vadd.f32 %v101, %v3826
  %3828 = vdwg.mxu0
  %vm3829 = vcmp.gt.f32.partialorder %v3705, 0.0
  %vm3830 = vcmp.gt.f32.partialorder %v3707, 0.0
  %vm3831 = vcmp.gt.f32.partialorder %v3758, 0.0
  %vm3832 = vcmp.gt.f32.partialorder %v3760, 0.0
  %vm3833 = vcmp.gt.f32.partialorder %v3811, 0.0
  %vm3834 = vcmp.gt.f32.partialorder %v3813, 0.0
  %vm3835 = vcmp.gt.f32.partialorder %v3709, 0.0
  %vm3836 = vcmp.gt.f32.partialorder %v3711, 0.0
  %vm3837 = vcmp.gt.f32.partialorder %v3762, 0.0
  %vm3838 = vcmp.gt.f32.partialorder %v3764, 0.0
  %vm3839 = vcmp.gt.f32.partialorder %v3815, 0.0
  %vm3840 = vcmp.gt.f32.partialorder %v3817, 0.0
  %vm3841 = vcmp.gt.f32.partialorder %v3715, 0.0
  %vm3842 = vcmp.gt.f32.partialorder %v3717, 0.0
  %vm3843 = vcmp.gt.f32.partialorder %v3768, 0.0
  %vm3844 = vcmp.gt.f32.partialorder %v3770, 0.0
  %vm3845 = vcmp.gt.f32.partialorder %v3821, 0.0
  %vm3846 = vcmp.gt.f32.partialorder %v3823, 0.0
  %vm3847 = vcmp.gt.f32.partialorder %v3719, 0.0
  %vm3848 = vcmp.gt.f32.partialorder %v3721, 0.0
  %vm3849 = vcmp.gt.f32.partialorder %v3772, 0.0
  %vm3850 = vcmp.gt.f32.partialorder %v3774, 0.0
  %vm3851 = vcmp.gt.f32.partialorder %v3825, 0.0
  %vm3852 = vcmp.gt.f32.partialorder %v3827, 0.0
  %v3853 = vmin.f32 %v3705, 0.0
  %v3854 = vmin.f32 %v3707, 0.0
  %v3855 = vmin.f32 %v3758, 0.0
  %v3856 = vmin.f32 %v3760, 0.0
  %v3857 = vmin.f32 %v3811, 0.0
  %v3858 = vmin.f32 %v3813, 0.0
  %v3859 = vmin.f32 %v3709, 0.0
  %v3860 = vmin.f32 %v3711, 0.0
  %v3861 = vmin.f32 %v3762, 0.0
  %v3862 = vmin.f32 %v3764, 0.0
  %v3863 = vmin.f32 %v3815, 0.0
  %v3864 = vmin.f32 %v3817, 0.0
  %v3865 = vmin.f32 %v3715, 0.0
  %v3866 = vmin.f32 %v3717, 0.0
  %v3867 = vmin.f32 %v3768, 0.0
  %v3868 = vmin.f32 %v3770, 0.0
  %v3869 = vmin.f32 %v3821, 0.0
  %v3870 = vmin.f32 %v3823, 0.0
  %v3871 = vmin.f32 %v3719, 0.0
  %v3872 = vmin.f32 %v3721, 0.0
  %v3873 = vmin.f32 %v3772, 0.0
  %v3874 = vmin.f32 %v3774, 0.0
  %v3875 = vmin.f32 %v3825, 0.0
  %v3876 = vmin.f32 %v3827, 0.0
  %v3877 = vmul.f32 %v3853, 1.442695
  %v3878 = vpow.pop %v3877
  %v3879 = vmul.f32 %v3854, 1.442695
  %v3880 = vpow.pop %v3879
  %v3881 = vmul.f32 %v3855, 1.442695
  %v3882 = vpow.pop %v3881
  %v3883 = vmul.f32 %v3856, 1.442695
  %v3884 = vpow.pop %v3883
  %v3885 = vmul.f32 %v3857, 1.442695
  %v3886 = vpow.pop %v3885
  %v3887 = vmul.f32 %v3858, 1.442695
  %v3888 = vpow.pop %v3887
  %v3889 = vmul.f32 %v3859, 1.442695
  %v3890 = vpow.pop %v3889
  %v3891 = vmul.f32 %v3860, 1.442695
  %v3892 = vpow.pop %v3891
  %v3893 = vmul.f32 %v3861, 1.442695
  %v3894 = vpow.pop %v3893
  %v3895 = vmul.f32 %v3862, 1.442695
  %v3896 = vpow.pop %v3895
  %v3897 = vmul.f32 %v3863, 1.442695
  %v3898 = vpow.pop %v3897
  %v3899 = vmul.f32 %v3864, 1.442695
  %v3900 = vpow.pop %v3899
  %v3901 = vmul.f32 %v3865, 1.442695
  %v3902 = vpow.pop %v3901
  %v3903 = vmul.f32 %v3866, 1.442695
  %v3904 = vpow.pop %v3903
  %v3905 = vmul.f32 %v3867, 1.442695
  %v3906 = vpow.pop %v3905
  %v3907 = vmul.f32 %v3868, 1.442695
  %v3908 = vpow.pop %v3907
  %v3909 = vmul.f32 %v3869, 1.442695
  %v3910 = vpow.pop %v3909
  %v3911 = vmul.f32 %v3870, 1.442695
  %v3912 = vpow.pop %v3911
  %v3913 = vmul.f32 %v3871, 1.442695
  %v3914 = vpow.pop %v3913
  %v3915 = vmul.f32 %v3872, 1.442695
  %v3916 = vpow.pop %v3915
  %v3917 = vmul.f32 %v3873, 1.442695
  %v3918 = vpow.pop %v3917
  %v3919 = vmul.f32 %v3874, 1.442695
  %v3920 = vpow.pop %v3919
  %v3921 = vmul.f32 %v3875, 1.442695
  %v3922 = vpow.pop %v3921
  %v3923 = vmul.f32 %v3876, 1.442695
  %v3924 = vpow.pop %v3923
  %v3925 = vsub.f32 %v3878, 1.0
  %v3926 = vsub.f32 %v3880, 1.0
  %v3927 = vsub.f32 %v3882, 1.0
  %v3928 = vsub.f32 %v3884, 1.0
  %v3929 = vsub.f32 %v3886, 1.0
  %v3930 = vsub.f32 %v3888, 1.0
  %v3931 = vsub.f32 %v3890, 1.0
  %v3932 = vsub.f32 %v3892, 1.0
  %v3933 = vsub.f32 %v3894, 1.0
  %v3934 = vsub.f32 %v3896, 1.0
  %v3935 = vsub.f32 %v3898, 1.0
  %v3936 = vsub.f32 %v3900, 1.0
  %v3937 = vsub.f32 %v3902, 1.0
  %v3938 = vsub.f32 %v3904, 1.0
  %v3939 = vsub.f32 %v3906, 1.0
  %v3940 = vsub.f32 %v3908, 1.0
  %v3941 = vsub.f32 %v3910, 1.0
  %v3942 = vsub.f32 %v3912, 1.0
  %v3943 = vsub.f32 %v3914, 1.0
  %v3944 = vsub.f32 %v3916, 1.0
  %v3945 = vsub.f32 %v3918, 1.0
  %v3946 = vsub.f32 %v3920, 1.0
  %v3947 = vsub.f32 %v3922, 1.0
  %v3948 = vsub.f32 %v3924, 1.0
  %v3949 = vsel %vm3829, %v3705, %v3925
  %v3950 = vsel %vm3830, %v3707, %v3926
  %v3951 = vsel %vm3831, %v3758, %v3927
  %v3952 = vsel %vm3832, %v3760, %v3928
  %v3953 = vsel %vm3833, %v3811, %v3929
  %v3954 = vsel %vm3834, %v3813, %v3930
  %v3955 = vsel %vm3835, %v3709, %v3931
  %v3956 = vsel %vm3836, %v3711, %v3932
  %v3957 = vsel %vm3837, %v3762, %v3933
  %v3958 = vsel %vm3838, %v3764, %v3934
  %v3959 = vsel %vm3839, %v3815, %v3935
  %v3960 = vsel %vm3840, %v3817, %v3936
  %v3961 = vsel %vm3841, %v3715, %v3937
  %v3962 = vsel %vm3842, %v3717, %v3938
  %v3963 = vsel %vm3843, %v3768, %v3939
  %v3964 = vsel %vm3844, %v3770, %v3940
  %v3965 = vsel %vm3845, %v3821, %v3941
  %v3966 = vsel %vm3846, %v3823, %v3942
  %v3967 = vsel %vm3847, %v3719, %v3943
  %v3968 = vsel %vm3848, %v3721, %v3944
  %v3969 = vsel %vm3849, %v3772, %v3945
  %v3970 = vsel %vm3850, %v3774, %v3946
  %v3971 = vsel %vm3851, %v3825, %v3947
  %v3972 = vsel %vm3852, %v3827, %v3948
  %s3973 = scalar_lea.vmem %s0, 2184
  %v3974 = vld [vmem:[%s3973] sm:$0xff]
  %v3975 = vld [vmem:[%s3973 + $0x8] sm:$0xff]
  %v3976 = vld [vmem:[%s3973 + $0x10] sm:$0xff]
  %v3977 = vld [vmem:[%s3973 + $0x18] sm:$0xff]
  %v3978 = vld [vmem:[%s3973 + $0x20] sm:$0xff]
  %v3979 = vld [vmem:[%s3973 + $0x28] sm:$0xff]
  %v3980 = vld [vmem:[%s3973 + $0x30] sm:$0xff]
  %v3981 = vld [vmem:[%s3973 + $0x38] sm:$0xff]
  %v3982 = vld [vmem:[%s3973 + $0x40] sm:$0xff]
  %v3983 = vld [vmem:[%s3973 + $0x48] sm:$0xff]
  %v3984 = vld [vmem:[%s3973 + $0x50] sm:$0xff]
  %v3985 = vld [vmem:[%s3973 + $0x58] sm:$0xff]
  %v3986 = vld [vmem:[%s3973 + $0x60] sm:$0xff]
  %v3987 = vld [vmem:[%s3973 + $0x68] sm:$0xff]
  %v3988 = vld [vmem:[%s3973 + $0x70] sm:$0xff]
  %v3989 = vld [vmem:[%s3973 + $0x78] sm:$0xff]
  %v3990 = vld [vmem:[%s3973 + $0x80] sm:$0xff]
  %v3991 = vld [vmem:[%s3973 + $0x88] sm:$0xff]
  %v3992 = vld [vmem:[%s3973 + $0x90] sm:$0xff]
  %v3993 = vld [vmem:[%s3973 + $0x98] sm:$0xff]
  %v3994 = vld [vmem:[%s3973 + $0xa0] sm:$0xff]
  %v3995 = vld [vmem:[%s3973 + $0xa8] sm:$0xff]
  %v3996 = vld [vmem:[%s3973 + $0xb0] sm:$0xff]
  %v3997 = vld [vmem:[%s3973 + $0xb8] sm:$0xff]
  %v3998 = vld [vmem:[%s3973 + $0xc0] sm:$0xff]
  %v3999 = vld [vmem:[%s3973 + $0xc8] sm:$0xff]
  %v4000 = vld [vmem:[%s3973 + $0xd0] sm:$0xff]
  %v4001 = vld [vmem:[%s3973 + $0xd8] sm:$0xff]
  %v4002 = vld [vmem:[%s3973 + $0xe0] sm:$0xff]
  %v4003 = vld [vmem:[%s3973 + $0xe8] sm:$0xff]
  %v4004 = vld [vmem:[%s3973 + $0xf0] sm:$0xff]
  %v4005 = vld [vmem:[%s3973 + $0xf8] sm:$0xff]
  %v4006 = vld [vmem:[%s3973 + $0x100] sm:$0xff]
  %v4007 = vld [vmem:[%s3973 + $0x108] sm:$0xff]
  %v4008 = vld [vmem:[%s3973 + $0x110] sm:$0xff]
  %v4009 = vld [vmem:[%s3973 + $0x118] sm:$0xff]
  %v4010 = vld [vmem:[%s3973 + $0x120] sm:$0x77]
  %v4011 = vld [vmem:[%s3973 + $0x128] sm:$0x77]
  %v4012 = vld [vmem:[%s3973 + $0x130] sm:$0x77]
  %v4052 = vunpack.c.l.b16 %v3974
  %v4053 = vunpack.c.h.b16 %v3974
  %v4054 = vunpack.c.l.b16 %v3975
  %v4055 = vunpack.c.h.b16 %v3975
  %v4056 = vunpack.c.l.b16 %v3976
  %v4057 = vunpack.c.h.b16 %v3976
  %v4058 = vunpack.c.l.b16 %v3977
  %v4059 = vunpack.c.h.b16 %v3977
  %v4060 = vunpack.c.l.b16 %v3978
  %v4061 = vunpack.c.h.b16 %v3978
  %v4062 = vunpack.c.l.b16 %v3979
  %v4063 = vunpack.c.h.b16 %v3979
  %v4064 = vunpack.c.l.b16 %v3980
  %v4065 = vunpack.c.h.b16 %v3980
  %v4066 = vunpack.c.l.b16 %v3981
  %v4067 = vunpack.c.h.b16 %v3981
  %v4068 = vunpack.c.l.b16 %v3982
  %v4069 = vunpack.c.h.b16 %v3982
  %v4070 = vunpack.c.l.b16 %v3983
  %v4071 = vunpack.c.h.b16 %v3983
  %v4072 = vunpack.c.l.b16 %v3984
  %v4073 = vunpack.c.h.b16 %v3984
  %v4074 = vunpack.c.l.b16 %v3985
  %v4075 = vunpack.c.h.b16 %v3985
  %v4076 = vunpack.c.l.b16 %v3986
  %v4077 = vunpack.c.h.b16 %v3986
  %v4078 = vunpack.c.l.b16 %v3987
  %v4079 = vunpack.c.h.b16 %v3987
  %v4080 = vunpack.c.l.b16 %v3988
  %v4081 = vunpack.c.h.b16 %v3988
  %v4082 = vunpack.c.l.b16 %v3989
  %v4083 = vunpack.c.h.b16 %v3989
  %v4084 = vunpack.c.l.b16 %v3990
  %v4085 = vunpack.c.h.b16 %v3990
  %v4086 = vunpack.c.l.b16 %v3991
  %v4087 = vunpack.c.h.b16 %v3991
  %v4088 = vunpack.c.l.b16 %v3992
  %v4089 = vunpack.c.h.b16 %v3992
  %v4090 = vunpack.c.l.b16 %v3993
  %v4091 = vunpack.c.h.b16 %v3993
  %v4092 = vunpack.c.l.b16 %v3994
  %v4093 = vunpack.c.h.b16 %v3994
  %v4094 = vunpack.c.l.b16 %v3995
  %v4095 = vunpack.c.h.b16 %v3995
  %v4096 = vunpack.c.l.b16 %v3996
  %v4097 = vunpack.c.h.b16 %v3996
  %v4098 = vunpack.c.l.b16 %v3997
  %v4099 = vunpack.c.h.b16 %v3997
  %v4100 = vunpack.c.l.b16 %v3998
  %v4101 = vunpack.c.h.b16 %v3998
  %v4102 = vunpack.c.l.b16 %v3999
  %v4103 = vunpack.c.h.b16 %v3999
  %v4104 = vunpack.c.l.b16 %v4000
  %v4105 = vunpack.c.h.b16 %v4000
  %v4106 = vunpack.c.l.b16 %v4001
  %v4107 = vunpack.c.h.b16 %v4001
  %v4108 = vunpack.c.l.b16 %v4002
  %v4109 = vunpack.c.h.b16 %v4002
  %v4110 = vunpack.c.l.b16 %v4003
  %v4111 = vunpack.c.h.b16 %v4003
  %v4112 = vunpack.c.l.b16 %v4004
  %v4113 = vunpack.c.h.b16 %v4004
  %v4114 = vunpack.c.l.b16 %v4005
  %v4115 = vunpack.c.h.b16 %v4005
  %v4116 = vunpack.c.l.b16 %v4006
  %v4117 = vunpack.c.h.b16 %v4006
  %v4118 = vunpack.c.l.b16 %v4007
  %v4119 = vunpack.c.h.b16 %v4007
  %v4120 = vunpack.c.l.b16 %v4008
  %v4121 = vunpack.c.h.b16 %v4008
  %v4122 = vunpack.c.l.b16 %v4009
  %v4123 = vunpack.c.h.b16 %v4009
  %v4124 = vunpack.c.l.b16 %v4010
  %v4125 = vunpack.c.h.b16 %v4010
  %v4126 = vunpack.c.l.b16 %v4011
  %v4127 = vunpack.c.h.b16 %v4011
  %v4128 = vunpack.c.l.b16 %v4012
  %v4129 = vunpack.c.h.b16 %v4012
  %v4130 = vpack.c.b16 %v4058, %v4052
  %v4131 = vpack.c.b16 %v4059, %v4053
  %v4132 = vpack.c.b16 %v4060, %v4054
  %v4133 = vpack.c.b16 %v4061, %v4055
  %v4134 = vpack.c.b16 %v4062, %v4056
  %v4135 = vpack.c.b16 %v4063, %v4057
  %v4136 = vpack.c.b16 %v4070, %v4064
  %v4137 = vpack.c.b16 %v4071, %v4065
  %v4138 = vpack.c.b16 %v4072, %v4066
  %v4139 = vpack.c.b16 %v4073, %v4067
  %v4140 = vpack.c.b16 %v4074, %v4068
  %v4141 = vpack.c.b16 %v4075, %v4069
  %v4142 = vpack.c.b16 %v4082, %v4076
  %v4143 = vpack.c.b16 %v4083, %v4077
  %v4144 = vpack.c.b16 %v4084, %v4078
  %v4145 = vpack.c.b16 %v4085, %v4079
  %v4146 = vpack.c.b16 %v4086, %v4080
  %v4147 = vpack.c.b16 %v4087, %v4081
  %v4148 = vpack.c.b16 %v4094, %v4088
  %v4149 = vpack.c.b16 %v4095, %v4089
  %v4150 = vpack.c.b16 %v4096, %v4090
  %v4151 = vpack.c.b16 %v4097, %v4091
  %v4152 = vpack.c.b16 %v4098, %v4092
  %v4153 = vpack.c.b16 %v4099, %v4093
  %v4154 = vpack.c.b16 %v4106, %v4100
  %v4155 = vpack.c.b16 %v4107, %v4101
  %v4156 = vpack.c.b16 %v4108, %v4102
  %v4157 = vpack.c.b16 %v4109, %v4103
  %v4158 = vpack.c.b16 %v4110, %v4104
  %v4159 = vpack.c.b16 %v4111, %v4105
  %v4160 = vpack.c.b16 %v4118, %v4112
  %v4161 = vpack.c.b16 %v4119, %v4113
  %v4162 = vpack.c.b16 %v4120, %v4114
  %v4163 = vpack.c.b16 %v4121, %v4115
  %v4164 = vpack.c.b16 %v4122, %v4116
  %v4165 = vpack.c.b16 %v4123, %v4117
  %v4166 = vpack.c.b16 %v4124, %v4124
  %v4167 = vpack.c.b16 %v4125, %v4125
  %v4168 = vpack.c.b16 %v4126, %v4126
  %v4169 = vpack.c.b16 %v4127, %v4127
  %v4170 = vpack.c.b16 %v4128, %v4128
  %v4171 = vpack.c.b16 %v4129, %v4129
  %v4209 = vsel %vm315, %v4166, 0
  %v4212 = vsel %vm315, %v4167, 0
  %v4215 = vsel %vm315, %v4168, 0
  %v4218 = vsel %vm315, %v4169, 0
  %v4221 = vsel %vm315, %v4170, 0
  %v4224 = vsel %vm315, %v4171, 0
  %4226 = vmatprep.subr.bf16.mxu0 %v4131
  %4227 = vmatpush1.bf16.msra.mxu0 %v4130
  %4228 = vmatprep.subr.bf16.mxu0 %v4137
  %4229 = vmatpush1.bf16.msra.mxu0 %v4136
  %4230 = vmatprep.subr.bf16.mxu0 %v4143
  %4231 = vmatpush1.bf16.msra.mxu0 %v4142
  %4232 = vmatprep.subr.bf16.mxu0 %v4149
  %4233 = vmatpush1.bf16.msra.mxu0 %v4148
  %4234 = vmatprep.subr.bf16.mxu0 %v4155
  %4235 = vmatpush1.bf16.msra.mxu0 %v4154
  %4236 = vmatprep.subr.bf16.mxu0 %v4161
  %4237 = vmatpush1.bf16.msra.mxu0 %v4160
  %4238 = vmatprep.subr.bf16.mxu0 %v4212
  %4239 = vmatpush1.bf16.msra.mxu0 %v4209
  %4240 = vmatprep.subr.bf16.mxu0 0
  %4241 = vmatpush1.bf16.msra.mxu0 0
  %4242 = vmatprep.subr.bf16.mxu0 0
  %4243 = vmatpush1.bf16.msra.mxu0 0
  %4244 = vmatprep.subr.bf16.mxu0 0
  %4245 = vmatpush1.bf16.msra.mxu0 0
  %4246 = vmatprep.subr.bf16.mxu0 0
  %4247 = vmatpush1.bf16.msra.mxu0 0
  %4248 = vmatprep.subr.bf16.mxu0 0
  %4249 = vmatpush1.bf16.msra.mxu0 0
  %4250 = vmatprep.subr.bf16.mxu0 0
  %4251 = vmatpush1.bf16.msra.mxu0 0
  %4252 = vmatprep.subr.bf16.mxu0 0
  %4253 = vmatpush1.bf16.msra.mxu0 0
  %4254 = vmatprep.subr.bf16.mxu0 0
  %4255 = vmatpush1.bf16.msra.mxu0 0
  %4256 = vmatprep.subr.bf16.mxu0 0
  %4257 = vmatpush1.bf16.msra.mxu0 0
  %4258 = vmatprep.mubr.bf16.mxu0 0
  %4259 = vmatmul.mubr.bf16.gmra.mrb[0].mxu0 %v310
  %v4260 = vpop.f32.mrb[0].mxu0
  %v4261 = vadd.f32 %v86, %v4260
  %v4262 = vpop.f32.mrb[0].mxu0
  %v4263 = vadd.f32 %v86, %v4262
  %v4264 = vpop.f32.mrb[0].mxu0
  %v4265 = vadd.f32 %v91, %v4264
  %v4266 = vpop.f32.mrb[0].mxu0
  %v4267 = vadd.f32 %v91, %v4266
  %4268 = vmatprep.mubr.bf16.mxu0 0
  %4269 = vmatmul.mubr.bf16.gmra.mrb[0].mxu0 %v313
  %v4270 = vpop.f32.mrb[0].mxu0
  %v4271 = vadd.f32 %v96, %v4270
  %v4272 = vpop.f32.mrb[0].mxu0
  %v4273 = vadd.f32 %v96, %v4272
  %v4274 = vpop.f32.mrb[0].mxu0
  %v4275 = vadd.f32 %v101, %v4274
  %v4276 = vpop.f32.mrb[0].mxu0
  %v4277 = vadd.f32 %v101, %v4276
  %4278 = vdwg.mxu0
  %4279 = vmatprep.subr.bf16.mxu0 %v4133
  %4280 = vmatpush1.bf16.msra.mxu0 %v4132
  %4281 = vmatprep.subr.bf16.mxu0 %v4139
  %4282 = vmatpush1.bf16.msra.mxu0 %v4138
  %4283 = vmatprep.subr.bf16.mxu0 %v4145
  %4284 = vmatpush1.bf16.msra.mxu0 %v4144
  %4285 = vmatprep.subr.bf16.mxu0 %v4151
  %4286 = vmatpush1.bf16.msra.mxu0 %v4150
  %4287 = vmatprep.subr.bf16.mxu0 %v4157
  %4288 = vmatpush1.bf16.msra.mxu0 %v4156
  %4289 = vmatprep.subr.bf16.mxu0 %v4163
  %4290 = vmatpush1.bf16.msra.mxu0 %v4162
  %4291 = vmatprep.subr.bf16.mxu0 %v4218
  %4292 = vmatpush1.bf16.msra.mxu0 %v4215
  %4293 = vmatprep.subr.bf16.mxu0 0
  %4294 = vmatpush1.bf16.msra.mxu0 0
  %4295 = vmatprep.subr.bf16.mxu0 0
  %4296 = vmatpush1.bf16.msra.mxu0 0
  %4297 = vmatprep.subr.bf16.mxu0 0
  %4298 = vmatpush1.bf16.msra.mxu0 0
  %4299 = vmatprep.subr.bf16.mxu0 0
  %4300 = vmatpush1.bf16.msra.mxu0 0
  %4301 = vmatprep.subr.bf16.mxu0 0
  %4302 = vmatpush1.bf16.msra.mxu0 0
  %4303 = vmatprep.subr.bf16.mxu0 0
  %4304 = vmatpush1.bf16.msra.mxu0 0
  %4305 = vmatprep.subr.bf16.mxu0 0
  %4306 = vmatpush1.bf16.msra.mxu0 0
  %4307 = vmatprep.subr.bf16.mxu0 0
  %4308 = vmatpush1.bf16.msra.mxu0 0
  %4309 = vmatprep.subr.bf16.mxu0 0
  %4310 = vmatpush1.bf16.msra.mxu0 0
  %4311 = vmatprep.mubr.bf16.mxu0 0
  %4312 = vmatmul.mubr.bf16.gmra.mrb[0].mxu0 %v310
  %v4313 = vpop.f32.mrb[0].mxu0
  %v4314 = vadd.f32 %v86, %v4313
  %v4315 = vpop.f32.mrb[0].mxu0
  %v4316 = vadd.f32 %v86, %v4315
  %v4317 = vpop.f32.mrb[0].mxu0
  %v4318 = vadd.f32 %v91, %v4317
  %v4319 = vpop.f32.mrb[0].mxu0
  %v4320 = vadd.f32 %v91, %v4319
  %4321 = vmatprep.mubr.bf16.mxu0 0
  %4322 = vmatmul.mubr.bf16.gmra.mrb[0].mxu0 %v313
  %v4323 = vpop.f32.mrb[0].mxu0
  %v4324 = vadd.f32 %v96, %v4323
  %v4325 = vpop.f32.mrb[0].mxu0
  %v4326 = vadd.f32 %v96, %v4325
  %v4327 = vpop.f32.mrb[0].mxu0
  %v4328 = vadd.f32 %v101, %v4327
  %v4329 = vpop.f32.mrb[0].mxu0
  %v4330 = vadd.f32 %v101, %v4329
  %4331 = vdwg.mxu0
  %4332 = vmatprep.subr.bf16.mxu0 %v4135
  %4333 = vmatpush1.bf16.msra.mxu0 %v4134
  %4334 = vmatprep.subr.bf16.mxu0 %v4141
  %4335 = vmatpush1.bf16.msra.mxu0 %v4140
  %4336 = vmatprep.subr.bf16.mxu0 %v4147
  %4337 = vmatpush1.bf16.msra.mxu0 %v4146
  %4338 = vmatprep.subr.bf16.mxu0 %v4153
  %4339 = vmatpush1.bf16.msra.mxu0 %v4152
  %4340 = vmatprep.subr.bf16.mxu0 %v4159
  %4341 = vmatpush1.bf16.msra.mxu0 %v4158
  %4342 = vmatprep.subr.bf16.mxu0 %v4165
  %4343 = vmatpush1.bf16.msra.mxu0 %v4164
  %4344 = vmatprep.subr.bf16.mxu0 %v4224
  %4345 = vmatpush1.bf16.msra.mxu0 %v4221
  %4346 = vmatprep.subr.bf16.mxu0 0
  %4347 = vmatpush1.bf16.msra.mxu0 0
  %4348 = vmatprep.subr.bf16.mxu0 0
  %4349 = vmatpush1.bf16.msra.mxu0 0
  %4350 = vmatprep.subr.bf16.mxu0 0
  %4351 = vmatpush1.bf16.msra.mxu0 0
  %4352 = vmatprep.subr.bf16.mxu0 0
  %4353 = vmatpush1.bf16.msra.mxu0 0
  %4354 = vmatprep.subr.bf16.mxu0 0
  %4355 = vmatpush1.bf16.msra.mxu0 0
  %4356 = vmatprep.subr.bf16.mxu0 0
  %4357 = vmatpush1.bf16.msra.mxu0 0
  %4358 = vmatprep.subr.bf16.mxu0 0
  %4359 = vmatpush1.bf16.msra.mxu0 0
  %4360 = vmatprep.subr.bf16.mxu0 0
  %4361 = vmatpush1.bf16.msra.mxu0 0
  %4362 = vmatprep.subr.bf16.mxu0 0
  %4363 = vmatpush1.bf16.msra.mxu0 0
  %4364 = vmatprep.mubr.bf16.mxu0 0
  %4365 = vmatmul.mubr.bf16.gmra.mrb[0].mxu0 %v310
  %v4366 = vpop.f32.mrb[0].mxu0
  %v4367 = vadd.f32 %v86, %v4366
  %v4368 = vpop.f32.mrb[0].mxu0
  %v4369 = vadd.f32 %v86, %v4368
  %v4370 = vpop.f32.mrb[0].mxu0
  %v4371 = vadd.f32 %v91, %v4370
  %v4372 = vpop.f32.mrb[0].mxu0
  %v4373 = vadd.f32 %v91, %v4372
  %4374 = vmatprep.mubr.bf16.mxu0 0
  %4375 = vmatmul.mubr.bf16.gmra.mrb[0].mxu0 %v313
  %v4376 = vpop.f32.mrb[0].mxu0
  %v4377 = vadd.f32 %v96, %v4376
  %v4378 = vpop.f32.mrb[0].mxu0
  %v4379 = vadd.f32 %v96, %v4378
  %v4380 = vpop.f32.mrb[0].mxu0
  %v4381 = vadd.f32 %v101, %v4380
  %v4382 = vpop.f32.mrb[0].mxu0
  %v4383 = vadd.f32 %v101, %v4382
  %4384 = vdwg.mxu0
  %vm4385 = vcmp.gt.f32.partialorder %v4261, 0.0
  %vm4386 = vcmp.gt.f32.partialorder %v4263, 0.0
  %vm4387 = vcmp.gt.f32.partialorder %v4314, 0.0
  %vm4388 = vcmp.gt.f32.partialorder %v4316, 0.0
  %vm4389 = vcmp.gt.f32.partialorder %v4367, 0.0
  %vm4390 = vcmp.gt.f32.partialorder %v4369, 0.0
  %vm4391 = vcmp.gt.f32.partialorder %v4265, 0.0
  %vm4392 = vcmp.gt.f32.partialorder %v4267, 0.0
  %vm4393 = vcmp.gt.f32.partialorder %v4318, 0.0
  %vm4394 = vcmp.gt.f32.partialorder %v4320, 0.0
  %vm4395 = vcmp.gt.f32.partialorder %v4371, 0.0
  %vm4396 = vcmp.gt.f32.partialorder %v4373, 0.0
  %vm4397 = vcmp.gt.f32.partialorder %v4271, 0.0
  %vm4398 = vcmp.gt.f32.partialorder %v4273, 0.0
  %vm4399 = vcmp.gt.f32.partialorder %v4324, 0.0
  %vm4400 = vcmp.gt.f32.partialorder %v4326, 0.0
  %vm4401 = vcmp.gt.f32.partialorder %v4377, 0.0
  %vm4402 = vcmp.gt.f32.partialorder %v4379, 0.0
  %vm4403 = vcmp.gt.f32.partialorder %v4275, 0.0
  %vm4404 = vcmp.gt.f32.partialorder %v4277, 0.0
  %vm4405 = vcmp.gt.f32.partialorder %v4328, 0.0
  %vm4406 = vcmp.gt.f32.partialorder %v4330, 0.0
  %vm4407 = vcmp.gt.f32.partialorder %v4381, 0.0
  %vm4408 = vcmp.gt.f32.partialorder %v4383, 0.0
  %v4409 = vmin.f32 %v4261, 0.0
  %v4410 = vmin.f32 %v4263, 0.0
  %v4411 = vmin.f32 %v4314, 0.0
  %v4412 = vmin.f32 %v4316, 0.0
  %v4413 = vmin.f32 %v4367, 0.0
  %v4414 = vmin.f32 %v4369, 0.0
  %v4415 = vmin.f32 %v4265, 0.0
  %v4416 = vmin.f32 %v4267, 0.0
  %v4417 = vmin.f32 %v4318, 0.0
  %v4418 = vmin.f32 %v4320, 0.0
  %v4419 = vmin.f32 %v4371, 0.0
  %v4420 = vmin.f32 %v4373, 0.0
  %v4421 = vmin.f32 %v4271, 0.0
  %v4422 = vmin.f32 %v4273, 0.0
  %v4423 = vmin.f32 %v4324, 0.0
  %v4424 = vmin.f32 %v4326, 0.0
  %v4425 = vmin.f32 %v4377, 0.0
  %v4426 = vmin.f32 %v4379, 0.0
  %v4427 = vmin.f32 %v4275, 0.0
  %v4428 = vmin.f32 %v4277, 0.0
  %v4429 = vmin.f32 %v4328, 0.0
  %v4430 = vmin.f32 %v4330, 0.0
  %v4431 = vmin.f32 %v4381, 0.0
  %v4432 = vmin.f32 %v4383, 0.0
  %v4433 = vmul.f32 %v4409, 1.442695
  %v4434 = vpow.pop %v4433
  %v4435 = vmul.f32 %v4410, 1.442695
  %v4436 = vpow.pop %v4435
  %v4437 = vmul.f32 %v4411, 1.442695
  %v4438 = vpow.pop %v4437
  %v4439 = vmul.f32 %v4412, 1.442695
  %v4440 = vpow.pop %v4439
  %v4441 = vmul.f32 %v4413, 1.442695
  %v4442 = vpow.pop %v4441
  %v4443 = vmul.f32 %v4414, 1.442695
  %v4444 = vpow.pop %v4443
  %v4445 = vmul.f32 %v4415, 1.442695
  %v4446 = vpow.pop %v4445
  %v4447 = vmul.f32 %v4416, 1.442695
  %v4448 = vpow.pop %v4447
  %v4449 = vmul.f32 %v4417, 1.442695
  %v4450 = vpow.pop %v4449
  %v4451 = vmul.f32 %v4418, 1.442695
  %v4452 = vpow.pop %v4451
  %v4453 = vmul.f32 %v4419, 1.442695
  %v4454 = vpow.pop %v4453
  %v4455 = vmul.f32 %v4420, 1.442695
  %v4456 = vpow.pop %v4455
  %v4457 = vmul.f32 %v4421, 1.442695
  %v4458 = vpow.pop %v4457
  %v4459 = vmul.f32 %v4422, 1.442695
  %v4460 = vpow.pop %v4459
  %v4461 = vmul.f32 %v4423, 1.442695
  %v4462 = vpow.pop %v4461
  %v4463 = vmul.f32 %v4424, 1.442695
  %v4464 = vpow.pop %v4463
  %v4465 = vmul.f32 %v4425, 1.442695
  %v4466 = vpow.pop %v4465
  %v4467 = vmul.f32 %v4426, 1.442695
  %v4468 = vpow.pop %v4467
  %v4469 = vmul.f32 %v4427, 1.442695
  %v4470 = vpow.pop %v4469
  %v4471 = vmul.f32 %v4428, 1.442695
  %v4472 = vpow.pop %v4471
  %v4473 = vmul.f32 %v4429, 1.442695
  %v4474 = vpow.pop %v4473
  %v4475 = vmul.f32 %v4430, 1.442695
  %v4476 = vpow.pop %v4475
  %v4477 = vmul.f32 %v4431, 1.442695
  %v4478 = vpow.pop %v4477
  %v4479 = vmul.f32 %v4432, 1.442695
  %v4480 = vpow.pop %v4479
  %v4481 = vsub.f32 %v4434, 1.0
  %v4482 = vsub.f32 %v4436, 1.0
  %v4483 = vsub.f32 %v4438, 1.0
  %v4484 = vsub.f32 %v4440, 1.0
  %v4485 = vsub.f32 %v4442, 1.0
  %v4486 = vsub.f32 %v4444, 1.0
  %v4487 = vsub.f32 %v4446, 1.0
  %v4488 = vsub.f32 %v4448, 1.0
  %v4489 = vsub.f32 %v4450, 1.0
  %v4490 = vsub.f32 %v4452, 1.0
  %v4491 = vsub.f32 %v4454, 1.0
  %v4492 = vsub.f32 %v4456, 1.0
  %v4493 = vsub.f32 %v4458, 1.0
  %v4494 = vsub.f32 %v4460, 1.0
  %v4495 = vsub.f32 %v4462, 1.0
  %v4496 = vsub.f32 %v4464, 1.0
  %v4497 = vsub.f32 %v4466, 1.0
  %v4498 = vsub.f32 %v4468, 1.0
  %v4499 = vsub.f32 %v4470, 1.0
  %v4500 = vsub.f32 %v4472, 1.0
  %v4501 = vsub.f32 %v4474, 1.0
  %v4502 = vsub.f32 %v4476, 1.0
  %v4503 = vsub.f32 %v4478, 1.0
  %v4504 = vsub.f32 %v4480, 1.0
  %v4505 = vsel %vm4385, %v4261, %v4481
  %v4506 = vsel %vm4386, %v4263, %v4482
  %v4507 = vsel %vm4387, %v4314, %v4483
  %v4508 = vsel %vm4388, %v4316, %v4484
  %v4509 = vsel %vm4389, %v4367, %v4485
  %v4510 = vsel %vm4390, %v4369, %v4486
  %v4511 = vsel %vm4391, %v4265, %v4487
  %v4512 = vsel %vm4392, %v4267, %v4488
  %v4513 = vsel %vm4393, %v4318, %v4489
  %v4514 = vsel %vm4394, %v4320, %v4490
  %v4515 = vsel %vm4395, %v4371, %v4491
  %v4516 = vsel %vm4396, %v4373, %v4492
  %v4517 = vsel %vm4397, %v4271, %v4493
  %v4518 = vsel %vm4398, %v4273, %v4494
  %v4519 = vsel %vm4399, %v4324, %v4495
  %v4520 = vsel %vm4400, %v4326, %v4496
  %v4521 = vsel %vm4401, %v4377, %v4497
  %v4522 = vsel %vm4402, %v4379, %v4498
  %v4523 = vsel %vm4403, %v4275, %v4499
  %v4524 = vsel %vm4404, %v4277, %v4500
  %v4525 = vsel %vm4405, %v4328, %v4501
  %v4526 = vsel %vm4406, %v4330, %v4502
  %v4527 = vsel %vm4407, %v4381, %v4503
  %v4528 = vsel %vm4408, %v4383, %v4504
  %v4529 = vld [vmem:[%s3] sm:$0xff]
  %v4530 = vld [vmem:[%s3 + $0x8] sm:$0xff]
  %v4531 = vld [vmem:[%s3 + $0x10] sm:$0xff]
  %v4532 = vld [vmem:[%s3 + $0x18] sm:$0xff]
  %v4533 = vld [vmem:[%s3 + $0x20] sm:$0xff]
  %v4534 = vld [vmem:[%s3 + $0x28] sm:$0xff]
  %v4535 = vld [vmem:[%s3 + $0x30] sm:$0xff]
  %v4536 = vld [vmem:[%s3 + $0x38] sm:$0xff]
  %v4537 = vld [vmem:[%s3 + $0x40] sm:$0xff]
  %v4538 = vld [vmem:[%s3 + $0x48] sm:$0xff]
  %v4539 = vld [vmem:[%s3 + $0x50] sm:$0xff]
  %v4540 = vld [vmem:[%s3 + $0x58] sm:$0xff]
  %v4541 = vld [vmem:[%s3 + $0x60] sm:$0xff]
  %v4542 = vld [vmem:[%s3 + $0x68] sm:$0xff]
  %v4543 = vld [vmem:[%s3 + $0x70] sm:$0xff]
  %v4544 = vld [vmem:[%s3 + $0x78] sm:$0xff]
  %v4545 = vld [vmem:[%s3 + $0x80] sm:$0xff]
  %v4546 = vld [vmem:[%s3 + $0x88] sm:$0xff]
  %v4547 = vld [vmem:[%s3 + $0x90] sm:$0xff]
  %v4548 = vld [vmem:[%s3 + $0x98] sm:$0xff]
  %v4549 = vld [vmem:[%s3 + $0xa0] sm:$0xff]
  %v4550 = vld [vmem:[%s3 + $0xa8] sm:$0xff]
  %v4551 = vld [vmem:[%s3 + $0xb0] sm:$0xff]
  %v4552 = vld [vmem:[%s3 + $0xb8] sm:$0xff]
  %v4553 = vld [vmem:[%s3 + $0xc0] sm:$0xff]
  %v4554 = vld [vmem:[%s3 + $0xc8] sm:$0xff]
  %v4555 = vld [vmem:[%s3 + $0xd0] sm:$0xff]
  %v4556 = vld [vmem:[%s3 + $0xd8] sm:$0xff]
  %v4557 = vld [vmem:[%s3 + $0xe0] sm:$0xff]
  %v4558 = vld [vmem:[%s3 + $0xe8] sm:$0xff]
  %v4559 = vld [vmem:[%s3 + $0xf0] sm:$0xff]
  %v4560 = vld [vmem:[%s3 + $0xf8] sm:$0xff]
  %v4561 = vld [vmem:[%s3 + $0x100] sm:$0xff]
  %v4562 = vld [vmem:[%s3 + $0x108] sm:$0xff]
  %v4563 = vld [vmem:[%s3 + $0x110] sm:$0xff]
  %v4564 = vld [vmem:[%s3 + $0x118] sm:$0xff]
  %v4565 = vld [vmem:[%s3 + $0x120] sm:$0xff]
  %v4566 = vld [vmem:[%s3 + $0x128] sm:$0xff]
  %v4567 = vld [vmem:[%s3 + $0x130] sm:$0xff]
  %v4568 = vld [vmem:[%s3 + $0x138] sm:$0xff]
  %v4569 = vld [vmem:[%s3 + $0x140] sm:$0xff]
  %v4570 = vld [vmem:[%s3 + $0x148] sm:$0xff]
  %v4571 = vld [vmem:[%s3 + $0x150] sm:$0xff]
  %v4572 = vld [vmem:[%s3 + $0x158] sm:$0xff]
  %v4573 = vld [vmem:[%s3 + $0x160] sm:$0xff]
  %v4574 = vld [vmem:[%s3 + $0x168] sm:$0xff]
  %v4575 = vld [vmem:[%s3 + $0x170] sm:$0xff]
  %v4576 = vld [vmem:[%s3 + $0x178] sm:$0xff]
  %v4577 = vld [vmem:[%s3 + $0x180] sm:$0xff]
  %v4578 = vld [vmem:[%s3 + $0x188] sm:$0xff]
  %v4579 = vld [vmem:[%s3 + $0x190] sm:$0xff]
  %v4580 = vld [vmem:[%s3 + $0x198] sm:$0xff]
  %v4581 = vld [vmem:[%s3 + $0x1a0] sm:$0xff]
  %v4582 = vld [vmem:[%s3 + $0x1a8] sm:$0xff]
  %v4583 = vld [vmem:[%s3 + $0x1b0] sm:$0xff]
  %v4584 = vld [vmem:[%s3 + $0x1b8] sm:$0xff]
  %v4585 = vld [vmem:[%s3 + $0x1c0] sm:$0xff]
  %v4586 = vld [vmem:[%s3 + $0x1c8] sm:$0xff]
  %v4587 = vld [vmem:[%s3 + $0x1d0] sm:$0xff]
  %v4588 = vld [vmem:[%s3 + $0x1d8] sm:$0xff]
  %v4589 = vld [vmem:[%s3 + $0x1e0] sm:$0xff]
  %v4590 = vld [vmem:[%s3 + $0x1e8] sm:$0xff]
  %v4591 = vld [vmem:[%s3 + $0x1f0] sm:$0xff]
  %v4592 = vld [vmem:[%s3 + $0x1f8] sm:$0xff]
  %v4593 = vld [vmem:[%s3 + $0x200] sm:$0xff]
  %v4594 = vld [vmem:[%s3 + $0x208] sm:$0xff]
  %v4595 = vld [vmem:[%s3 + $0x210] sm:$0xff]
  %v4596 = vld [vmem:[%s3 + $0x218] sm:$0xff]
  %v4597 = vld [vmem:[%s3 + $0x220] sm:$0xff]
  %v4598 = vld [vmem:[%s3 + $0x228] sm:$0xff]
  %v4599 = vld [vmem:[%s3 + $0x230] sm:$0xff]
  %v4600 = vld [vmem:[%s3 + $0x238] sm:$0xff]
  %v4601 = vld [vmem:[%s3 + $0x240] sm:$0xff]
  %v4602 = vld [vmem:[%s3 + $0x248] sm:$0xff]
  %v4603 = vld [vmem:[%s3 + $0x250] sm:$0xff]
  %v4604 = vld [vmem:[%s3 + $0x258] sm:$0xff]
  %v4605 = vld [vmem:[%s3 + $0x260] sm:$0xff]
  %v4606 = vld [vmem:[%s3 + $0x268] sm:$0xff]
  %v4607 = vld [vmem:[%s3 + $0x270] sm:$0xff]
  %v4608 = vld [vmem:[%s3 + $0x278] sm:$0xff]
  %v4609 = vld [vmem:[%s3 + $0x280] sm:$0xff]
  %v4610 = vld [vmem:[%s3 + $0x288] sm:$0xff]
  %v4611 = vld [vmem:[%s3 + $0x290] sm:$0xff]
  %v4612 = vld [vmem:[%s3 + $0x298] sm:$0xff]
  %v4613 = vld [vmem:[%s3 + $0x2a0] sm:$0xff]
  %v4614 = vld [vmem:[%s3 + $0x2a8] sm:$0xff]
  %v4615 = vld [vmem:[%s3 + $0x2b0] sm:$0xff]
  %v4616 = vld [vmem:[%s3 + $0x2b8] sm:$0xff]
  %v4617 = vld [vmem:[%s3 + $0x2c0] sm:$0xff]
  %v4618 = vld [vmem:[%s3 + $0x2c8] sm:$0xff]
  %v4619 = vld [vmem:[%s3 + $0x2d0] sm:$0xff]
  %v4620 = vld [vmem:[%s3 + $0x2d8] sm:$0xff]
  %v4621 = vld [vmem:[%s3 + $0x2e0] sm:$0xff]
  %v4622 = vld [vmem:[%s3 + $0x2e8] sm:$0xff]
  %v4623 = vld [vmem:[%s3 + $0x2f0] sm:$0xff]
  %v4624 = vld [vmem:[%s3 + $0x2f8] sm:$0xff]
  %v4625 = vld [vmem:[%s3 + $0x300] sm:$0xff]
  %v4626 = vld [vmem:[%s3 + $0x308] sm:$0xff]
  %v4627 = vld [vmem:[%s3 + $0x310] sm:$0xff]
  %v4628 = vld [vmem:[%s3 + $0x318] sm:$0xff]
  %v4629 = vld [vmem:[%s3 + $0x320] sm:$0xff]
  %v4630 = vld [vmem:[%s3 + $0x328] sm:$0xff]
  %v4631 = vld [vmem:[%s3 + $0x330] sm:$0xff]
  %v4632 = vld [vmem:[%s3 + $0x338] sm:$0xff]
  %v4633 = vld [vmem:[%s3 + $0x340] sm:$0xff]
  %v4634 = vld [vmem:[%s3 + $0x348] sm:$0xff]
  %v4635 = vld [vmem:[%s3 + $0x350] sm:$0xff]
  %v4636 = vld [vmem:[%s3 + $0x358] sm:$0xff]
  %v4637 = vld [vmem:[%s3 + $0x360] sm:$0xff]
  %v4638 = vld [vmem:[%s3 + $0x368] sm:$0xff]
  %v4639 = vld [vmem:[%s3 + $0x370] sm:$0xff]
  %v4640 = vld [vmem:[%s3 + $0x378] sm:$0xff]
  %v4641 = vld [vmem:[%s3 + $0x380] sm:$0xff]
  %v4642 = vld [vmem:[%s3 + $0x388] sm:$0xff]
  %v4643 = vld [vmem:[%s3 + $0x390] sm:$0xff]
  %v4644 = vld [vmem:[%s3 + $0x398] sm:$0xff]
  %v4645 = vld [vmem:[%s3 + $0x3a0] sm:$0xff]
  %v4646 = vld [vmem:[%s3 + $0x3a8] sm:$0xff]
  %v4647 = vld [vmem:[%s3 + $0x3b0] sm:$0xff]
  %v4648 = vld [vmem:[%s3 + $0x3b8] sm:$0xff]
  %v4649 = vld [vmem:[%s3 + $0x3c0] sm:$0xff]
  %v4650 = vld [vmem:[%s3 + $0x3c8] sm:$0xff]
  %v4651 = vld [vmem:[%s3 + $0x3d0] sm:$0xff]
  %v4652 = vld [vmem:[%s3 + $0x3d8] sm:$0xff]
  %v4653 = vld [vmem:[%s3 + $0x3e0] sm:$0xff]
  %v4654 = vld [vmem:[%s3 + $0x3e8] sm:$0xff]
  %v4655 = vld [vmem:[%s3 + $0x3f0] sm:$0xff]
  %v4656 = vld [vmem:[%s3 + $0x3f8] sm:$0xff]
  %v4657 = vld [vmem:[%s3 + $0x400] sm:$0xff]
  %v4658 = vld [vmem:[%s3 + $0x408] sm:$0xff]
  %v4659 = vld [vmem:[%s3 + $0x410] sm:$0xff]
  %v4660 = vld [vmem:[%s3 + $0x418] sm:$0xff]
  %v4661 = vld [vmem:[%s3 + $0x420] sm:$0xff]
  %v4662 = vld [vmem:[%s3 + $0x428] sm:$0xff]
  %v4663 = vld [vmem:[%s3 + $0x430] sm:$0xff]
  %v4664 = vld [vmem:[%s3 + $0x438] sm:$0xff]
  %v4665 = vld [vmem:[%s3 + $0x440] sm:$0xff]
  %v4666 = vld [vmem:[%s3 + $0x448] sm:$0xff]
  %v4667 = vld [vmem:[%s3 + $0x450] sm:$0xff]
  %v4668 = vld [vmem:[%s3 + $0x458] sm:$0xff]
  %v4669 = vld [vmem:[%s3 + $0x460] sm:$0xff]
  %v4670 = vld [vmem:[%s3 + $0x468] sm:$0xff]
  %v4671 = vld [vmem:[%s3 + $0x470] sm:$0xff]
  %v4672 = vld [vmem:[%s3 + $0x478] sm:$0xff]
  %v4673 = vld [vmem:[%s3 + $0x480] sm:$0xff]
  %v4674 = vld [vmem:[%s3 + $0x488] sm:$0xff]
  %v4675 = vld [vmem:[%s3 + $0x490] sm:$0xff]
  %v4676 = vld [vmem:[%s3 + $0x498] sm:$0xff]
  %v4677 = vld [vmem:[%s3 + $0x4a0] sm:$0xff]
  %v4678 = vld [vmem:[%s3 + $0x4a8] sm:$0xff]
  %v4679 = vld [vmem:[%s3 + $0x4b0] sm:$0xff]
  %v4680 = vld [vmem:[%s3 + $0x4b8] sm:$0xff]
  %v4681 = vld [vmem:[%s3 + $0x4c0] sm:$0xff]
  %v4682 = vld [vmem:[%s3 + $0x4c8] sm:$0xff]
  %v4683 = vld [vmem:[%s3 + $0x4d0] sm:$0xff]
  %v4684 = vld [vmem:[%s3 + $0x4d8] sm:$0xff]
  %v4685 = vld [vmem:[%s3 + $0x4e0] sm:$0xff]
  %v4686 = vld [vmem:[%s3 + $0x4e8] sm:$0xff]
  %v4687 = vld [vmem:[%s3 + $0x4f0] sm:$0xff]
  %v4688 = vld [vmem:[%s3 + $0x4f8] sm:$0xff]
  %v4689 = vld [vmem:[%s3 + $0x500] sm:$0xff]
  %v4690 = vld [vmem:[%s3 + $0x508] sm:$0xff]
  %v4691 = vld [vmem:[%s3 + $0x510] sm:$0xff]
  %v4692 = vld [vmem:[%s3 + $0x518] sm:$0xff]
  %v4693 = vld [vmem:[%s3 + $0x520] sm:$0xff]
  %v4694 = vld [vmem:[%s3 + $0x528] sm:$0xff]
  %v4695 = vld [vmem:[%s3 + $0x530] sm:$0xff]
  %v4696 = vld [vmem:[%s3 + $0x538] sm:$0xff]
  %v4697 = vld [vmem:[%s3 + $0x540] sm:$0xff]
  %v4698 = vld [vmem:[%s3 + $0x548] sm:$0xff]
  %v4699 = vld [vmem:[%s3 + $0x550] sm:$0xff]
  %v4700 = vld [vmem:[%s3 + $0x558] sm:$0xff]
  %v4701 = vld [vmem:[%s3 + $0x560] sm:$0xff]
  %v4702 = vld [vmem:[%s3 + $0x568] sm:$0xff]
  %v4703 = vld [vmem:[%s3 + $0x570] sm:$0xff]
  %v4704 = vld [vmem:[%s3 + $0x578] sm:$0xff]
  %v4705 = vld [vmem:[%s3 + $0x580] sm:$0xff]
  %v4706 = vld [vmem:[%s3 + $0x588] sm:$0xff]
  %v4707 = vld [vmem:[%s3 + $0x590] sm:$0xff]
  %v4708 = vld [vmem:[%s3 + $0x598] sm:$0xff]
  %v4709 = vld [vmem:[%s3 + $0x5a0] sm:$0xff]
  %v4710 = vld [vmem:[%s3 + $0x5a8] sm:$0xff]
  %v4711 = vld [vmem:[%s3 + $0x5b0] sm:$0xff]
  %v4712 = vld [vmem:[%s3 + $0x5b8] sm:$0xff]
  %vm4713 = vcmask 785408
  %v4715 = vsel %vm4713, %v618, 0
  %v4718 = vsel %vm4713, %v624, 0
  %v4721 = vsel %vm4713, %v630, 0
  %v4724 = vsel %vm4713, %v636, 0
  %v4727 = vsel %vm4713, %v1174, 0
  %v4730 = vsel %vm4713, %v1180, 0
  %v4733 = vsel %vm4713, %v1186, 0
  %v4736 = vsel %vm4713, %v1192, 0
  %v4739 = vsel %vm4713, %v1730, 0
  %v4742 = vsel %vm4713, %v1736, 0
  %v4745 = vsel %vm4713, %v1742, 0
  %v4748 = vsel %vm4713, %v1748, 0
  %v4751 = vsel %vm4713, %v2286, 0
  %v4754 = vsel %vm4713, %v2292, 0
  %v4757 = vsel %vm4713, %v2298, 0
  %v4760 = vsel %vm4713, %v2304, 0
  %v4763 = vsel %vm4713, %v2842, 0
  %v4766 = vsel %vm4713, %v2848, 0
  %v4769 = vsel %vm4713, %v2854, 0
  %v4772 = vsel %vm4713, %v2860, 0
  %v4775 = vsel %vm4713, %v3398, 0
  %v4778 = vsel %vm4713, %v3404, 0
  %v4781 = vsel %vm4713, %v3410, 0
  %v4784 = vsel %vm4713, %v3416, 0
  %v4787 = vsel %vm4713, %v3954, 0
  %v4790 = vsel %vm4713, %v3960, 0
  %v4793 = vsel %vm4713, %v3966, 0
  %v4796 = vsel %vm4713, %v3972, 0
  %v4799 = vsel %vm4713, %v4510, 0
  %v4802 = vsel %vm4713, %v4516, 0
  %v4805 = vsel %vm4713, %v4522, 0
  %v4808 = vsel %vm4713, %v4528, 0
  %4810 = vmatprep.subr.mxu0 %v4530
  %4811 = vmatpush1.msra.mxu0 %v4529
  %4812 = vmatprep.subr.mxu0 %v4532
  %4813 = vmatpush1.msra.mxu0 %v4531
  %4814 = vmatprep.subr.mxu0 %v4534
  %4815 = vmatpush1.msra.mxu0 %v4533
  %4816 = vmatprep.subr.mxu0 %v4536
  %4817 = vmatpush1.msra.mxu0 %v4535
  %4818 = vmatprep.subr.mxu0 %v4538
  %4819 = vmatpush1.msra.mxu0 %v4537
  %4820 = vmatprep.subr.mxu0 %v4540
  %4821 = vmatpush1.msra.mxu0 %v4539
  %4822 = vmatprep.subr.mxu0 %v4542
  %4823 = vmatpush1.msra.mxu0 %v4541
  %4824 = vmatprep.subr.mxu0 %v4544
  %4825 = vmatpush1.msra.mxu0 %v4543
  %4826 = vmatprep.subr.mxu0 %v4546
  %4827 = vmatpush1.msra.mxu0 %v4545
  %4828 = vmatprep.subr.mxu0 %v4548
  %4829 = vmatpush1.msra.mxu0 %v4547
  %4830 = vmatprep.subr.mxu0 %v4550
  %4831 = vmatpush1.msra.mxu0 %v4549
  %4832 = vmatprep.subr.mxu0 %v4552
  %4833 = vmatpush1.msra.mxu0 %v4551
  %4834 = vmatprep.subr.mxu0 %v4554
  %4835 = vmatpush1.msra.mxu0 %v4553
  %4836 = vmatprep.subr.mxu0 %v4556
  %4837 = vmatpush1.msra.mxu0 %v4555
  %4838 = vmatprep.subr.mxu0 %v4558
  %4839 = vmatpush1.msra.mxu0 %v4557
  %4840 = vmatprep.subr.mxu0 %v4560
  %4841 = vmatpush1.msra.mxu0 %v4559
  %4842 = vmatprep.subr.mxu0 %v4562
  %4843 = vmatpush1.msra.mxu0 %v4561
  %4844 = vmatprep.subr.mxu0 %v4564
  %4845 = vmatpush1.msra.mxu0 %v4563
  %4846 = vmatprep.subr.mxu0 %v4566
  %4847 = vmatpush1.msra.mxu0 %v4565
  %4848 = vmatprep.subr.mxu0 %v4568
  %4849 = vmatpush1.msra.mxu0 %v4567
  %4850 = vmatprep.subr.mxu0 %v4570
  %4851 = vmatpush1.msra.mxu0 %v4569
  %4852 = vmatprep.subr.mxu0 %v4572
  %4853 = vmatpush1.msra.mxu0 %v4571
  %4854 = vmatprep.subr.mxu0 %v4574
  %4855 = vmatpush1.msra.mxu0 %v4573
  %4856 = vmatprep.subr.mxu0 %v4576
  %4857 = vmatpush1.msra.mxu0 %v4575
  %4858 = vmatprep.subr.mxu0 %v4578
  %4859 = vmatpush1.msra.mxu0 %v4577
  %4860 = vmatprep.subr.mxu0 %v4580
  %4861 = vmatpush1.msra.mxu0 %v4579
  %4862 = vmatprep.subr.mxu0 %v4582
  %4863 = vmatpush1.msra.mxu0 %v4581
  %4864 = vmatprep.subr.mxu0 %v4584
  %4865 = vmatpush1.msra.mxu0 %v4583
  %4866 = vmatprep.subr.mxu0 %v4586
  %4867 = vmatpush1.msra.mxu0 %v4585
  %4868 = vmatprep.subr.mxu0 %v4588
  %4869 = vmatpush1.msra.mxu0 %v4587
  %4870 = vmatprep.subr.mxu0 %v4590
  %4871 = vmatpush1.msra.mxu0 %v4589
  %4872 = vmatprep.subr.mxu0 %v4592
  %4873 = vmatpush1.msra.mxu0 %v4591
  %4874 = vmatprep.mubr.f32.mxu0 %v614
  %4875 = vmatmul.mubr.f32.gmra.mrb[0].mxu0 %v613
  %v4876 = vpop.f32.mrb[0].mxu0
  %v4877 = vadd.f32 0.0, %v4876
  %v4878 = vpop.f32.mrb[0].mxu0
  %v4879 = vadd.f32 0.0, %v4878
  %4880 = vmatprep.mubr.f32.mxu0 %v620
  %4881 = vmatmul.mubr.f32.gmra.mrb[0].mxu0 %v619
  %v4882 = vpop.f32.mrb[0].mxu0
  %v4883 = vadd.f32 0.0, %v4882
  %v4884 = vpop.f32.mrb[0].mxu0
  %v4885 = vadd.f32 0.0, %v4884
  %4886 = vmatprep.mubr.f32.mxu0 %v626
  %4887 = vmatmul.mubr.f32.gmra.mrb[0].mxu0 %v625
  %v4888 = vpop.f32.mrb[0].mxu0
  %v4889 = vadd.f32 0.0, %v4888
  %v4890 = vpop.f32.mrb[0].mxu0
  %v4891 = vadd.f32 0.0, %v4890
  %4892 = vmatprep.mubr.f32.mxu0 %v632
  %4893 = vmatmul.mubr.f32.gmra.mrb[0].mxu0 %v631
  %v4894 = vpop.f32.mrb[0].mxu0
  %v4895 = vadd.f32 0.0, %v4894
  %v4896 = vpop.f32.mrb[0].mxu0
  %v4897 = vadd.f32 0.0, %v4896
  %4898 = vmatprep.mubr.f32.mxu0 %v1170
  %4899 = vmatmul.mubr.f32.gmra.mrb[0].mxu0 %v1169
  %v4900 = vpop.f32.mrb[0].mxu0
  %v4901 = vadd.f32 0.0, %v4900
  %v4902 = vpop.f32.mrb[0].mxu0
  %v4903 = vadd.f32 0.0, %v4902
  %4904 = vmatprep.mubr.f32.mxu0 %v1176
  %4905 = vmatmul.mubr.f32.gmra.mrb[0].mxu0 %v1175
  %v4906 = vpop.f32.mrb[0].mxu0
  %v4907 = vadd.f32 0.0, %v4906
  %v4908 = vpop.f32.mrb[0].mxu0
  %v4909 = vadd.f32 0.0, %v4908
  %4910 = vmatprep.mubr.f32.mxu0 %v1182
  %4911 = vmatmul.mubr.f32.gmra.mrb[0].mxu0 %v1181
  %v4912 = vpop.f32.mrb[0].mxu0
  %v4913 = vadd.f32 0.0, %v4912
  %v4914 = vpop.f32.mrb[0].mxu0
  %v4915 = vadd.f32 0.0, %v4914
  %4916 = vmatprep.mubr.f32.mxu0 %v1188
  %4917 = vmatmul.mubr.f32.gmra.mrb[0].mxu0 %v1187
  %v4918 = vpop.f32.mrb[0].mxu0
  %v4919 = vadd.f32 0.0, %v4918
  %v4920 = vpop.f32.mrb[0].mxu0
  %v4921 = vadd.f32 0.0, %v4920
  %4922 = vmatprep.mubr.f32.mxu0 %v1726
  %4923 = vmatmul.mubr.f32.gmra.mrb[0].mxu0 %v1725
  %v4924 = vpop.f32.mrb[0].mxu0
  %v4925 = vadd.f32 0.0, %v4924
  %v4926 = vpop.f32.mrb[0].mxu0
  %v4927 = vadd.f32 0.0, %v4926
  %4928 = vmatprep.mubr.f32.mxu0 %v1732
  %4929 = vmatmul.mubr.f32.gmra.mrb[0].mxu0 %v1731
  %v4930 = vpop.f32.mrb[0].mxu0
  %v4931 = vadd.f32 0.0, %v4930
  %v4932 = vpop.f32.mrb[0].mxu0
  %v4933 = vadd.f32 0.0, %v4932
  %4934 = vmatprep.mubr.f32.mxu0 %v1738
  %4935 = vmatmul.mubr.f32.gmra.mrb[0].mxu0 %v1737
  %v4936 = vpop.f32.mrb[0].mxu0
  %v4937 = vadd.f32 0.0, %v4936
  %v4938 = vpop.f32.mrb[0].mxu0
  %v4939 = vadd.f32 0.0, %v4938
  %4940 = vmatprep.mubr.f32.mxu0 %v1744
  %4941 = vmatmul.mubr.f32.gmra.mrb[0].mxu0 %v1743
  %v4942 = vpop.f32.mrb[0].mxu0
  %v4943 = vadd.f32 0.0, %v4942
  %v4944 = vpop.f32.mrb[0].mxu0
  %v4945 = vadd.f32 0.0, %v4944
  %4946 = vmatprep.mubr.f32.mxu0 %v2282
  %4947 = vmatmul.mubr.f32.gmra.mrb[0].mxu0 %v2281
  %v4948 = vpop.f32.mrb[0].mxu0
  %v4949 = vadd.f32 0.0, %v4948
  %v4950 = vpop.f32.mrb[0].mxu0
  %v4951 = vadd.f32 0.0, %v4950
  %4952 = vmatprep.mubr.f32.mxu0 %v2288
  %4953 = vmatmul.mubr.f32.gmra.mrb[0].mxu0 %v2287
  %v4954 = vpop.f32.mrb[0].mxu0
  %v4955 = vadd.f32 0.0, %v4954
  %v4956 = vpop.f32.mrb[0].mxu0
  %v4957 = vadd.f32 0.0, %v4956
  %4958 = vmatprep.mubr.f32.mxu0 %v2294
  %4959 = vmatmul.mubr.f32.gmra.mrb[0].mxu0 %v2293
  %v4960 = vpop.f32.mrb[0].mxu0
  %v4961 = vadd.f32 0.0, %v4960
  %v4962 = vpop.f32.mrb[0].mxu0
  %v4963 = vadd.f32 0.0, %v4962
  %4964 = vmatprep.mubr.f32.mxu0 %v2300
  %4965 = vmatmul.mubr.f32.gmra.mrb[0].mxu0 %v2299
  %v4966 = vpop.f32.mrb[0].mxu0
  %v4967 = vadd.f32 0.0, %v4966
  %v4968 = vpop.f32.mrb[0].mxu0
  %v4969 = vadd.f32 0.0, %v4968
  %4970 = vmatprep.mubr.f32.mxu0 %v2838
  %4971 = vmatmul.mubr.f32.gmra.mrb[0].mxu0 %v2837
  %v4972 = vpop.f32.mrb[0].mxu0
  %v4973 = vadd.f32 0.0, %v4972
  %v4974 = vpop.f32.mrb[0].mxu0
  %v4975 = vadd.f32 0.0, %v4974
  %4976 = vmatprep.mubr.f32.mxu0 %v2844
  %4977 = vmatmul.mubr.f32.gmra.mrb[0].mxu0 %v2843
  %v4978 = vpop.f32.mrb[0].mxu0
  %v4979 = vadd.f32 0.0, %v4978
  %v4980 = vpop.f32.mrb[0].mxu0
  %v4981 = vadd.f32 0.0, %v4980
  %4982 = vmatprep.mubr.f32.mxu0 %v2850
  %4983 = vmatmul.mubr.f32.gmra.mrb[0].mxu0 %v2849
  %v4984 = vpop.f32.mrb[0].mxu0
  %v4985 = vadd.f32 0.0, %v4984
  %v4986 = vpop.f32.mrb[0].mxu0
  %v4987 = vadd.f32 0.0, %v4986
  %4988 = vmatprep.mubr.f32.mxu0 %v2856
  %4989 = vmatmul.mubr.f32.gmra.mrb[0].mxu0 %v2855
  %v4990 = vpop.f32.mrb[0].mxu0
  %v4991 = vadd.f32 0.0, %v4990
  %v4992 = vpop.f32.mrb[0].mxu0
  %v4993 = vadd.f32 0.0, %v4992
  %4994 = vmatprep.mubr.f32.mxu0 %v3394
  %4995 = vmatmul.mubr.f32.gmra.mrb[0].mxu0 %v3393
  %v4996 = vpop.f32.mrb[0].mxu0
  %v4997 = vadd.f32 0.0, %v4996
  %v4998 = vpop.f32.mrb[0].mxu0
  %v4999 = vadd.f32 0.0, %v4998
  %5000 = vmatprep.mubr.f32.mxu0 %v3400
  %5001 = vmatmul.mubr.f32.gmra.mrb[0].mxu0 %v3399
  %v5002 = vpop.f32.mrb[0].mxu0
  %v5003 = vadd.f32 0.0, %v5002
  %v5004 = vpop.f32.mrb[0].mxu0
  %v5005 = vadd.f32 0.0, %v5004
  %5006 = vmatprep.mubr.f32.mxu0 %v3406
  %5007 = vmatmul.mubr.f32.gmra.mrb[0].mxu0 %v3405
  %v5008 = vpop.f32.mrb[0].mxu0
  %v5009 = vadd.f32 0.0, %v5008
  %v5010 = vpop.f32.mrb[0].mxu0
  %v5011 = vadd.f32 0.0, %v5010
  %5012 = vmatprep.mubr.f32.mxu0 %v3412
  %5013 = vmatmul.mubr.f32.gmra.mrb[0].mxu0 %v3411
  %v5014 = vpop.f32.mrb[0].mxu0
  %v5015 = vadd.f32 0.0, %v5014
  %v5016 = vpop.f32.mrb[0].mxu0
  %v5017 = vadd.f32 0.0, %v5016
  %5018 = vmatprep.mubr.f32.mxu0 %v3950
  %5019 = vmatmul.mubr.f32.gmra.mrb[0].mxu0 %v3949
  %v5020 = vpop.f32.mrb[0].mxu0
  %v5021 = vadd.f32 0.0, %v5020
  %v5022 = vpop.f32.mrb[0].mxu0
  %v5023 = vadd.f32 0.0, %v5022
  %5024 = vmatprep.mubr.f32.mxu0 %v3956
  %5025 = vmatmul.mubr.f32.gmra.mrb[0].mxu0 %v3955
  %v5026 = vpop.f32.mrb[0].mxu0
  %v5027 = vadd.f32 0.0, %v5026
  %v5028 = vpop.f32.mrb[0].mxu0
  %v5029 = vadd.f32 0.0, %v5028
  %5030 = vmatprep.mubr.f32.mxu0 %v3962
  %5031 = vmatmul.mubr.f32.gmra.mrb[0].mxu0 %v3961
  %v5032 = vpop.f32.mrb[0].mxu0
  %v5033 = vadd.f32 0.0, %v5032
  %v5034 = vpop.f32.mrb[0].mxu0
  %v5035 = vadd.f32 0.0, %v5034
  %5036 = vmatprep.mubr.f32.mxu0 %v3968
  %5037 = vmatmul.mubr.f32.gmra.mrb[0].mxu0 %v3967
  %v5038 = vpop.f32.mrb[0].mxu0
  %v5039 = vadd.f32 0.0, %v5038
  %v5040 = vpop.f32.mrb[0].mxu0
  %v5041 = vadd.f32 0.0, %v5040
  %5042 = vmatprep.mubr.f32.mxu0 %v4506
  %5043 = vmatmul.mubr.f32.gmra.mrb[0].mxu0 %v4505
  %v5044 = vpop.f32.mrb[0].mxu0
  %v5045 = vadd.f32 0.0, %v5044
  %v5046 = vpop.f32.mrb[0].mxu0
  %v5047 = vadd.f32 0.0, %v5046
  %5048 = vmatprep.mubr.f32.mxu0 %v4512
  %5049 = vmatmul.mubr.f32.gmra.mrb[0].mxu0 %v4511
  %v5050 = vpop.f32.mrb[0].mxu0
  %v5051 = vadd.f32 0.0, %v5050
  %v5052 = vpop.f32.mrb[0].mxu0
  %v5053 = vadd.f32 0.0, %v5052
  %5054 = vmatprep.mubr.f32.mxu0 %v4518
  %5055 = vmatmul.mubr.f32.gmra.mrb[0].mxu0 %v4517
  %v5056 = vpop.f32.mrb[0].mxu0
  %v5057 = vadd.f32 0.0, %v5056
  %v5058 = vpop.f32.mrb[0].mxu0
  %v5059 = vadd.f32 0.0, %v5058
  %5060 = vmatprep.mubr.f32.mxu0 %v4524
  %5061 = vmatmul.mubr.f32.gmra.mrb[0].mxu0 %v4523
  %v5062 = vpop.f32.mrb[0].mxu0
  %v5063 = vadd.f32 0.0, %v5062
  %v5064 = vpop.f32.mrb[0].mxu0
  %v5065 = vadd.f32 0.0, %v5064
  %5066 = vdwg.mxu0
  %5067 = vmatprep.subr.mxu0 %v4594
  %5068 = vmatpush1.msra.mxu0 %v4593
  %5069 = vmatprep.subr.mxu0 %v4596
  %5070 = vmatpush1.msra.mxu0 %v4595
  %5071 = vmatprep.subr.mxu0 %v4598
  %5072 = vmatpush1.msra.mxu0 %v4597
  %5073 = vmatprep.subr.mxu0 %v4600
  %5074 = vmatpush1.msra.mxu0 %v4599
  %5075 = vmatprep.subr.mxu0 %v4602
  %5076 = vmatpush1.msra.mxu0 %v4601
  %5077 = vmatprep.subr.mxu0 %v4604
  %5078 = vmatpush1.msra.mxu0 %v4603
  %5079 = vmatprep.subr.mxu0 %v4606
  %5080 = vmatpush1.msra.mxu0 %v4605
  %5081 = vmatprep.subr.mxu0 %v4608
  %5082 = vmatpush1.msra.mxu0 %v4607
  %5083 = vmatprep.subr.mxu0 %v4610
  %5084 = vmatpush1.msra.mxu0 %v4609
  %5085 = vmatprep.subr.mxu0 %v4612
  %5086 = vmatpush1.msra.mxu0 %v4611
  %5087 = vmatprep.subr.mxu0 %v4614
  %5088 = vmatpush1.msra.mxu0 %v4613
  %5089 = vmatprep.subr.mxu0 %v4616
  %5090 = vmatpush1.msra.mxu0 %v4615
  %5091 = vmatprep.subr.mxu0 %v4618
  %5092 = vmatpush1.msra.mxu0 %v4617
  %5093 = vmatprep.subr.mxu0 %v4620
  %5094 = vmatpush1.msra.mxu0 %v4619
  %5095 = vmatprep.subr.mxu0 %v4622
  %5096 = vmatpush1.msra.mxu0 %v4621
  %5097 = vmatprep.subr.mxu0 %v4624
  %5098 = vmatpush1.msra.mxu0 %v4623
  %5099 = vmatprep.subr.mxu0 %v4626
  %5100 = vmatpush1.msra.mxu0 %v4625
  %5101 = vmatprep.subr.mxu0 %v4628
  %5102 = vmatpush1.msra.mxu0 %v4627
  %5103 = vmatprep.subr.mxu0 %v4630
  %5104 = vmatpush1.msra.mxu0 %v4629
  %5105 = vmatprep.subr.mxu0 %v4632
  %5106 = vmatpush1.msra.mxu0 %v4631
  %5107 = vmatprep.subr.mxu0 %v4634
  %5108 = vmatpush1.msra.mxu0 %v4633
  %5109 = vmatprep.subr.mxu0 %v4636
  %5110 = vmatpush1.msra.mxu0 %v4635
  %5111 = vmatprep.subr.mxu0 %v4638
  %5112 = vmatpush1.msra.mxu0 %v4637
  %5113 = vmatprep.subr.mxu0 %v4640
  %5114 = vmatpush1.msra.mxu0 %v4639
  %5115 = vmatprep.subr.mxu0 %v4642
  %5116 = vmatpush1.msra.mxu0 %v4641
  %5117 = vmatprep.subr.mxu0 %v4644
  %5118 = vmatpush1.msra.mxu0 %v4643
  %5119 = vmatprep.subr.mxu0 %v4646
  %5120 = vmatpush1.msra.mxu0 %v4645
  %5121 = vmatprep.subr.mxu0 %v4648
  %5122 = vmatpush1.msra.mxu0 %v4647
  %5123 = vmatprep.subr.mxu0 %v4650
  %5124 = vmatpush1.msra.mxu0 %v4649
  %5125 = vmatprep.subr.mxu0 %v4652
  %5126 = vmatpush1.msra.mxu0 %v4651
  %5127 = vmatprep.subr.mxu0 %v4654
  %5128 = vmatpush1.msra.mxu0 %v4653
  %5129 = vmatprep.subr.mxu0 %v4656
  %5130 = vmatpush1.msra.mxu0 %v4655
  %5131 = vmatprep.mubr.f32.mxu0 %v616
  %5132 = vmatmul.mubr.f32.gmra.mrb[0].mxu0 %v615
  %v5133 = vpop.f32.mrb[0].mxu0
  %v5134 = vadd.f32 %v4877, %v5133
  %v5135 = vpop.f32.mrb[0].mxu0
  %v5136 = vadd.f32 %v4879, %v5135
  %5137 = vmatprep.mubr.f32.mxu0 %v622
  %5138 = vmatmul.mubr.f32.gmra.mrb[0].mxu0 %v621
  %v5139 = vpop.f32.mrb[0].mxu0
  %v5140 = vadd.f32 %v4883, %v5139
  %v5141 = vpop.f32.mrb[0].mxu0
  %v5142 = vadd.f32 %v4885, %v5141
  %5143 = vmatprep.mubr.f32.mxu0 %v628
  %5144 = vmatmul.mubr.f32.gmra.mrb[0].mxu0 %v627
  %v5145 = vpop.f32.mrb[0].mxu0
  %v5146 = vadd.f32 %v4889, %v5145
  %v5147 = vpop.f32.mrb[0].mxu0
  %v5148 = vadd.f32 %v4891, %v5147
  %5149 = vmatprep.mubr.f32.mxu0 %v634
  %5150 = vmatmul.mubr.f32.gmra.mrb[0].mxu0 %v633
  %v5151 = vpop.f32.mrb[0].mxu0
  %v5152 = vadd.f32 %v4895, %v5151
  %v5153 = vpop.f32.mrb[0].mxu0
  %v5154 = vadd.f32 %v4897, %v5153
  %5155 = vmatprep.mubr.f32.mxu0 %v1172
  %5156 = vmatmul.mubr.f32.gmra.mrb[0].mxu0 %v1171
  %v5157 = vpop.f32.mrb[0].mxu0
  %v5158 = vadd.f32 %v4901, %v5157
  %v5159 = vpop.f32.mrb[0].mxu0
  %v5160 = vadd.f32 %v4903, %v5159
  %5161 = vmatprep.mubr.f32.mxu0 %v1178
  %5162 = vmatmul.mubr.f32.gmra.mrb[0].mxu0 %v1177
  %v5163 = vpop.f32.mrb[0].mxu0
  %v5164 = vadd.f32 %v4907, %v5163
  %v5165 = vpop.f32.mrb[0].mxu0
  %v5166 = vadd.f32 %v4909, %v5165
  %5167 = vmatprep.mubr.f32.mxu0 %v1184
  %5168 = vmatmul.mubr.f32.gmra.mrb[0].mxu0 %v1183
  %v5169 = vpop.f32.mrb[0].mxu0
  %v5170 = vadd.f32 %v4913, %v5169
  %v5171 = vpop.f32.mrb[0].mxu0
  %v5172 = vadd.f32 %v4915, %v5171
  %5173 = vmatprep.mubr.f32.mxu0 %v1190
  %5174 = vmatmul.mubr.f32.gmra.mrb[0].mxu0 %v1189
  %v5175 = vpop.f32.mrb[0].mxu0
  %v5176 = vadd.f32 %v4919, %v5175
  %v5177 = vpop.f32.mrb[0].mxu0
  %v5178 = vadd.f32 %v4921, %v5177
  %5179 = vmatprep.mubr.f32.mxu0 %v1728
  %5180 = vmatmul.mubr.f32.gmra.mrb[0].mxu0 %v1727
  %v5181 = vpop.f32.mrb[0].mxu0
  %v5182 = vadd.f32 %v4925, %v5181
  %v5183 = vpop.f32.mrb[0].mxu0
  %v5184 = vadd.f32 %v4927, %v5183
  %5185 = vmatprep.mubr.f32.mxu0 %v1734
  %5186 = vmatmul.mubr.f32.gmra.mrb[0].mxu0 %v1733
  %v5187 = vpop.f32.mrb[0].mxu0
  %v5188 = vadd.f32 %v4931, %v5187
  %v5189 = vpop.f32.mrb[0].mxu0
  %v5190 = vadd.f32 %v4933, %v5189
  %5191 = vmatprep.mubr.f32.mxu0 %v1740
  %5192 = vmatmul.mubr.f32.gmra.mrb[0].mxu0 %v1739
  %v5193 = vpop.f32.mrb[0].mxu0
  %v5194 = vadd.f32 %v4937, %v5193
  %v5195 = vpop.f32.mrb[0].mxu0
  %v5196 = vadd.f32 %v4939, %v5195
  %5197 = vmatprep.mubr.f32.mxu0 %v1746
  %5198 = vmatmul.mubr.f32.gmra.mrb[0].mxu0 %v1745
  %v5199 = vpop.f32.mrb[0].mxu0
  %v5200 = vadd.f32 %v4943, %v5199
  %v5201 = vpop.f32.mrb[0].mxu0
  %v5202 = vadd.f32 %v4945, %v5201
  %5203 = vmatprep.mubr.f32.mxu0 %v2284
  %5204 = vmatmul.mubr.f32.gmra.mrb[0].mxu0 %v2283
  %v5205 = vpop.f32.mrb[0].mxu0
  %v5206 = vadd.f32 %v4949, %v5205
  %v5207 = vpop.f32.mrb[0].mxu0
  %v5208 = vadd.f32 %v4951, %v5207
  %5209 = vmatprep.mubr.f32.mxu0 %v2290
  %5210 = vmatmul.mubr.f32.gmra.mrb[0].mxu0 %v2289
  %v5211 = vpop.f32.mrb[0].mxu0
  %v5212 = vadd.f32 %v4955, %v5211
  %v5213 = vpop.f32.mrb[0].mxu0
  %v5214 = vadd.f32 %v4957, %v5213
  %5215 = vmatprep.mubr.f32.mxu0 %v2296
  %5216 = vmatmul.mubr.f32.gmra.mrb[0].mxu0 %v2295
  %v5217 = vpop.f32.mrb[0].mxu0
  %v5218 = vadd.f32 %v4961, %v5217
  %v5219 = vpop.f32.mrb[0].mxu0
  %v5220 = vadd.f32 %v4963, %v5219
  %5221 = vmatprep.mubr.f32.mxu0 %v2302
  %5222 = vmatmul.mubr.f32.gmra.mrb[0].mxu0 %v2301
  %v5223 = vpop.f32.mrb[0].mxu0
  %v5224 = vadd.f32 %v4967, %v5223
  %v5225 = vpop.f32.mrb[0].mxu0
  %v5226 = vadd.f32 %v4969, %v5225
  %5227 = vmatprep.mubr.f32.mxu0 %v2840
  %5228 = vmatmul.mubr.f32.gmra.mrb[0].mxu0 %v2839
  %v5229 = vpop.f32.mrb[0].mxu0
  %v5230 = vadd.f32 %v4973, %v5229
  %v5231 = vpop.f32.mrb[0].mxu0
  %v5232 = vadd.f32 %v4975, %v5231
  %5233 = vmatprep.mubr.f32.mxu0 %v2846
  %5234 = vmatmul.mubr.f32.gmra.mrb[0].mxu0 %v2845
  %v5235 = vpop.f32.mrb[0].mxu0
  %v5236 = vadd.f32 %v4979, %v5235
  %v5237 = vpop.f32.mrb[0].mxu0
  %v5238 = vadd.f32 %v4981, %v5237
  %5239 = vmatprep.mubr.f32.mxu0 %v2852
  %5240 = vmatmul.mubr.f32.gmra.mrb[0].mxu0 %v2851
  %v5241 = vpop.f32.mrb[0].mxu0
  %v5242 = vadd.f32 %v4985, %v5241
  %v5243 = vpop.f32.mrb[0].mxu0
  %v5244 = vadd.f32 %v4987, %v5243
  %5245 = vmatprep.mubr.f32.mxu0 %v2858
  %5246 = vmatmul.mubr.f32.gmra.mrb[0].mxu0 %v2857
  %v5247 = vpop.f32.mrb[0].mxu0
  %v5248 = vadd.f32 %v4991, %v5247
  %v5249 = vpop.f32.mrb[0].mxu0
  %v5250 = vadd.f32 %v4993, %v5249
  %5251 = vmatprep.mubr.f32.mxu0 %v3396
  %5252 = vmatmul.mubr.f32.gmra.mrb[0].mxu0 %v3395
  %v5253 = vpop.f32.mrb[0].mxu0
  %v5254 = vadd.f32 %v4997, %v5253
  %v5255 = vpop.f32.mrb[0].mxu0
  %v5256 = vadd.f32 %v4999, %v5255
  %5257 = vmatprep.mubr.f32.mxu0 %v3402
  %5258 = vmatmul.mubr.f32.gmra.mrb[0].mxu0 %v3401
  %v5259 = vpop.f32.mrb[0].mxu0
  %v5260 = vadd.f32 %v5003, %v5259
  %v5261 = vpop.f32.mrb[0].mxu0
  %v5262 = vadd.f32 %v5005, %v5261
  %5263 = vmatprep.mubr.f32.mxu0 %v3408
  %5264 = vmatmul.mubr.f32.gmra.mrb[0].mxu0 %v3407
  %v5265 = vpop.f32.mrb[0].mxu0
  %v5266 = vadd.f32 %v5009, %v5265
  %v5267 = vpop.f32.mrb[0].mxu0
  %v5268 = vadd.f32 %v5011, %v5267
  %5269 = vmatprep.mubr.f32.mxu0 %v3414
  %5270 = vmatmul.mubr.f32.gmra.mrb[0].mxu0 %v3413
  %v5271 = vpop.f32.mrb[0].mxu0
  %v5272 = vadd.f32 %v5015, %v5271
  %v5273 = vpop.f32.mrb[0].mxu0
  %v5274 = vadd.f32 %v5017, %v5273
  %5275 = vmatprep.mubr.f32.mxu0 %v3952
  %5276 = vmatmul.mubr.f32.gmra.mrb[0].mxu0 %v3951
  %v5277 = vpop.f32.mrb[0].mxu0
  %v5278 = vadd.f32 %v5021, %v5277
  %v5279 = vpop.f32.mrb[0].mxu0
  %v5280 = vadd.f32 %v5023, %v5279
  %5281 = vmatprep.mubr.f32.mxu0 %v3958
  %5282 = vmatmul.mubr.f32.gmra.mrb[0].mxu0 %v3957
  %v5283 = vpop.f32.mrb[0].mxu0
  %v5284 = vadd.f32 %v5027, %v5283
  %v5285 = vpop.f32.mrb[0].mxu0
  %v5286 = vadd.f32 %v5029, %v5285
  %5287 = vmatprep.mubr.f32.mxu0 %v3964
  %5288 = vmatmul.mubr.f32.gmra.mrb[0].mxu0 %v3963
  %v5289 = vpop.f32.mrb[0].mxu0
  %v5290 = vadd.f32 %v5033, %v5289
  %v5291 = vpop.f32.mrb[0].mxu0
  %v5292 = vadd.f32 %v5035, %v5291
  %5293 = vmatprep.mubr.f32.mxu0 %v3970
  %5294 = vmatmul.mubr.f32.gmra.mrb[0].mxu0 %v3969
  %v5295 = vpop.f32.mrb[0].mxu0
  %v5296 = vadd.f32 %v5039, %v5295
  %v5297 = vpop.f32.mrb[0].mxu0
  %v5298 = vadd.f32 %v5041, %v5297
  %5299 = vmatprep.mubr.f32.mxu0 %v4508
  %5300 = vmatmul.mubr.f32.gmra.mrb[0].mxu0 %v4507
  %v5301 = vpop.f32.mrb[0].mxu0
  %v5302 = vadd.f32 %v5045, %v5301
  %v5303 = vpop.f32.mrb[0].mxu0
  %v5304 = vadd.f32 %v5047, %v5303
  %5305 = vmatprep.mubr.f32.mxu0 %v4514
  %5306 = vmatmul.mubr.f32.gmra.mrb[0].mxu0 %v4513
  %v5307 = vpop.f32.mrb[0].mxu0
  %v5308 = vadd.f32 %v5051, %v5307
  %v5309 = vpop.f32.mrb[0].mxu0
  %v5310 = vadd.f32 %v5053, %v5309
  %5311 = vmatprep.mubr.f32.mxu0 %v4520
  %5312 = vmatmul.mubr.f32.gmra.mrb[0].mxu0 %v4519
  %v5313 = vpop.f32.mrb[0].mxu0
  %v5314 = vadd.f32 %v5057, %v5313
  %v5315 = vpop.f32.mrb[0].mxu0
  %v5316 = vadd.f32 %v5059, %v5315
  %5317 = vmatprep.mubr.f32.mxu0 %v4526
  %5318 = vmatmul.mubr.f32.gmra.mrb[0].mxu0 %v4525
  %v5319 = vpop.f32.mrb[0].mxu0
  %v5320 = vadd.f32 %v5063, %v5319
  %v5321 = vpop.f32.mrb[0].mxu0
  %v5322 = vadd.f32 %v5065, %v5321
  %5323 = vdwg.mxu0
  %5324 = vmatprep.subr.mxu0 %v4658
  %5325 = vmatpush1.msra.mxu0 %v4657
  %5326 = vmatprep.subr.mxu0 %v4660
  %5327 = vmatpush1.msra.mxu0 %v4659
  %5328 = vmatprep.subr.mxu0 %v4662
  %5329 = vmatpush1.msra.mxu0 %v4661
  %5330 = vmatprep.subr.mxu0 %v4664
  %5331 = vmatpush1.msra.mxu0 %v4663
  %5332 = vmatprep.subr.mxu0 %v4666
  %5333 = vmatpush1.msra.mxu0 %v4665
  %5334 = vmatprep.subr.mxu0 %v4668
  %5335 = vmatpush1.msra.mxu0 %v4667
  %5336 = vmatprep.subr.mxu0 %v4670
  %5337 = vmatpush1.msra.mxu0 %v4669
  %5338 = vmatprep.subr.mxu0 %v4672
  %5339 = vmatpush1.msra.mxu0 %v4671
  %5340 = vmatprep.subr.mxu0 %v4674
  %5341 = vmatpush1.msra.mxu0 %v4673
  %5342 = vmatprep.subr.mxu0 %v4676
  %5343 = vmatpush1.msra.mxu0 %v4675
  %5344 = vmatprep.subr.mxu0 %v4678
  %5345 = vmatpush1.msra.mxu0 %v4677
  %5346 = vmatprep.subr.mxu0 %v4680
  %5347 = vmatpush1.msra.mxu0 %v4679
  %5348 = vmatprep.subr.mxu0 %v4682
  %5349 = vmatpush1.msra.mxu0 %v4681
  %5350 = vmatprep.subr.mxu0 %v4684
  %5351 = vmatpush1.msra.mxu0 %v4683
  %5352 = vmatprep.subr.mxu0 %v4686
  %5353 = vmatpush1.msra.mxu0 %v4685
  %5354 = vmatprep.subr.mxu0 %v4688
  %5355 = vmatpush1.msra.mxu0 %v4687
  %5356 = vmatprep.subr.mxu0 %v4690
  %5357 = vmatpush1.msra.mxu0 %v4689
  %5358 = vmatprep.subr.mxu0 %v4692
  %5359 = vmatpush1.msra.mxu0 %v4691
  %5360 = vmatprep.subr.mxu0 %v4694
  %5361 = vmatpush1.msra.mxu0 %v4693
  %5362 = vmatprep.subr.mxu0 %v4696
  %5363 = vmatpush1.msra.mxu0 %v4695
  %5364 = vmatprep.subr.mxu0 %v4698
  %5365 = vmatpush1.msra.mxu0 %v4697
  %5366 = vmatprep.subr.mxu0 %v4700
  %5367 = vmatpush1.msra.mxu0 %v4699
  %5368 = vmatprep.subr.mxu0 %v4702
  %5369 = vmatpush1.msra.mxu0 %v4701
  %5370 = vmatprep.subr.mxu0 %v4704
  %5371 = vmatpush1.msra.mxu0 %v4703
  %5372 = vmatprep.subr.mxu0 %v4706
  %5373 = vmatpush1.msra.mxu0 %v4705
  %5374 = vmatprep.subr.mxu0 %v4708
  %5375 = vmatpush1.msra.mxu0 %v4707
  %5376 = vmatprep.subr.mxu0 %v4710
  %5377 = vmatpush1.msra.mxu0 %v4709
  %5378 = vmatprep.subr.mxu0 %v4712
  %5379 = vmatpush1.msra.mxu0 %v4711
  %5380 = vmatprep.subr.mxu0 0.0
  %5381 = vmatpush1.msra.mxu0 0.0
  %5382 = vmatprep.subr.mxu0 0.0
  %5383 = vmatpush1.msra.mxu0 0.0
  %5384 = vmatprep.subr.mxu0 0.0
  %5385 = vmatpush1.msra.mxu0 0.0
  %5386 = vmatprep.subr.mxu0 0.0
  %5387 = vmatpush1.msra.mxu0 0.0
  %5388 = vmatprep.mubr.f32.mxu0 %v4715
  %5389 = vmatmul.mubr.f32.gmra.mrb[0].mxu0 %v617
  %v5390 = vpop.f32.mrb[0].mxu0
  %v5391 = vadd.f32 %v5134, %v5390
  %v5392 = vpop.f32.mrb[0].mxu0
  %v5393 = vadd.f32 %v5136, %v5392
  %5394 = vmatprep.mubr.f32.mxu0 %v4718
  %5395 = vmatmul.mubr.f32.gmra.mrb[0].mxu0 %v623
  %v5396 = vpop.f32.mrb[0].mxu0
  %v5397 = vadd.f32 %v5140, %v5396
  %v5398 = vpop.f32.mrb[0].mxu0
  %v5399 = vadd.f32 %v5142, %v5398
  %5400 = vmatprep.mubr.f32.mxu0 %v4721
  %5401 = vmatmul.mubr.f32.gmra.mrb[0].mxu0 %v629
  %v5402 = vpop.f32.mrb[0].mxu0
  %v5403 = vadd.f32 %v5146, %v5402
  %v5404 = vpop.f32.mrb[0].mxu0
  %v5405 = vadd.f32 %v5148, %v5404
  %5406 = vmatprep.mubr.f32.mxu0 %v4724
  %5407 = vmatmul.mubr.f32.gmra.mrb[0].mxu0 %v635
  %v5408 = vpop.f32.mrb[0].mxu0
  %v5409 = vadd.f32 %v5152, %v5408
  %v5410 = vpop.f32.mrb[0].mxu0
  %v5411 = vadd.f32 %v5154, %v5410
  %5412 = vmatprep.mubr.f32.mxu0 %v4727
  %5413 = vmatmul.mubr.f32.gmra.mrb[0].mxu0 %v1173
  %v5414 = vpop.f32.mrb[0].mxu0
  %v5415 = vadd.f32 %v5158, %v5414
  %v5416 = vpop.f32.mrb[0].mxu0
  %v5417 = vadd.f32 %v5160, %v5416
  %5418 = vmatprep.mubr.f32.mxu0 %v4730
  %5419 = vmatmul.mubr.f32.gmra.mrb[0].mxu0 %v1179
  %v5420 = vpop.f32.mrb[0].mxu0
  %v5421 = vadd.f32 %v5164, %v5420
  %v5422 = vpop.f32.mrb[0].mxu0
  %v5423 = vadd.f32 %v5166, %v5422
  %5424 = vmatprep.mubr.f32.mxu0 %v4733
  %5425 = vmatmul.mubr.f32.gmra.mrb[0].mxu0 %v1185
  %v5426 = vpop.f32.mrb[0].mxu0
  %v5427 = vadd.f32 %v5170, %v5426
  %v5428 = vpop.f32.mrb[0].mxu0
  %v5429 = vadd.f32 %v5172, %v5428
  %5430 = vmatprep.mubr.f32.mxu0 %v4736
  %5431 = vmatmul.mubr.f32.gmra.mrb[0].mxu0 %v1191
  %v5432 = vpop.f32.mrb[0].mxu0
  %v5433 = vadd.f32 %v5176, %v5432
  %v5434 = vpop.f32.mrb[0].mxu0
  %v5435 = vadd.f32 %v5178, %v5434
  %5436 = vmatprep.mubr.f32.mxu0 %v4739
  %5437 = vmatmul.mubr.f32.gmra.mrb[0].mxu0 %v1729
  %v5438 = vpop.f32.mrb[0].mxu0
  %v5439 = vadd.f32 %v5182, %v5438
  %v5440 = vpop.f32.mrb[0].mxu0
  %v5441 = vadd.f32 %v5184, %v5440
  %5442 = vmatprep.mubr.f32.mxu0 %v4742
  %5443 = vmatmul.mubr.f32.gmra.mrb[0].mxu0 %v1735
  %v5444 = vpop.f32.mrb[0].mxu0
  %v5445 = vadd.f32 %v5188, %v5444
  %v5446 = vpop.f32.mrb[0].mxu0
  %v5447 = vadd.f32 %v5190, %v5446
  %5448 = vmatprep.mubr.f32.mxu0 %v4745
  %5449 = vmatmul.mubr.f32.gmra.mrb[0].mxu0 %v1741
  %v5450 = vpop.f32.mrb[0].mxu0
  %v5451 = vadd.f32 %v5194, %v5450
  %v5452 = vpop.f32.mrb[0].mxu0
  %v5453 = vadd.f32 %v5196, %v5452
  %5454 = vmatprep.mubr.f32.mxu0 %v4748
  %5455 = vmatmul.mubr.f32.gmra.mrb[0].mxu0 %v1747
  %v5456 = vpop.f32.mrb[0].mxu0
  %v5457 = vadd.f32 %v5200, %v5456
  %v5458 = vpop.f32.mrb[0].mxu0
  %v5459 = vadd.f32 %v5202, %v5458
  %5460 = vmatprep.mubr.f32.mxu0 %v4751
  %5461 = vmatmul.mubr.f32.gmra.mrb[0].mxu0 %v2285
  %v5462 = vpop.f32.mrb[0].mxu0
  %v5463 = vadd.f32 %v5206, %v5462
  %v5464 = vpop.f32.mrb[0].mxu0
  %v5465 = vadd.f32 %v5208, %v5464
  %5466 = vmatprep.mubr.f32.mxu0 %v4754
  %5467 = vmatmul.mubr.f32.gmra.mrb[0].mxu0 %v2291
  %v5468 = vpop.f32.mrb[0].mxu0
  %v5469 = vadd.f32 %v5212, %v5468
  %v5470 = vpop.f32.mrb[0].mxu0
  %v5471 = vadd.f32 %v5214, %v5470
  %5472 = vmatprep.mubr.f32.mxu0 %v4757
  %5473 = vmatmul.mubr.f32.gmra.mrb[0].mxu0 %v2297
  %v5474 = vpop.f32.mrb[0].mxu0
  %v5475 = vadd.f32 %v5218, %v5474
  %v5476 = vpop.f32.mrb[0].mxu0
  %v5477 = vadd.f32 %v5220, %v5476
  %5478 = vmatprep.mubr.f32.mxu0 %v4760
  %5479 = vmatmul.mubr.f32.gmra.mrb[0].mxu0 %v2303
  %v5480 = vpop.f32.mrb[0].mxu0
  %v5481 = vadd.f32 %v5224, %v5480
  %v5482 = vpop.f32.mrb[0].mxu0
  %v5483 = vadd.f32 %v5226, %v5482
  %5484 = vmatprep.mubr.f32.mxu0 %v4763
  %5485 = vmatmul.mubr.f32.gmra.mrb[0].mxu0 %v2841
  %v5486 = vpop.f32.mrb[0].mxu0
  %v5487 = vadd.f32 %v5230, %v5486
  %v5488 = vpop.f32.mrb[0].mxu0
  %v5489 = vadd.f32 %v5232, %v5488
  %5490 = vmatprep.mubr.f32.mxu0 %v4766
  %5491 = vmatmul.mubr.f32.gmra.mrb[0].mxu0 %v2847
  %v5492 = vpop.f32.mrb[0].mxu0
  %v5493 = vadd.f32 %v5236, %v5492
  %v5494 = vpop.f32.mrb[0].mxu0
  %v5495 = vadd.f32 %v5238, %v5494
  %5496 = vmatprep.mubr.f32.mxu0 %v4769
  %5497 = vmatmul.mubr.f32.gmra.mrb[0].mxu0 %v2853
  %v5498 = vpop.f32.mrb[0].mxu0
  %v5499 = vadd.f32 %v5242, %v5498
  %v5500 = vpop.f32.mrb[0].mxu0
  %v5501 = vadd.f32 %v5244, %v5500
  %5502 = vmatprep.mubr.f32.mxu0 %v4772
  %5503 = vmatmul.mubr.f32.gmra.mrb[0].mxu0 %v2859
  %v5504 = vpop.f32.mrb[0].mxu0
  %v5505 = vadd.f32 %v5248, %v5504
  %v5506 = vpop.f32.mrb[0].mxu0
  %v5507 = vadd.f32 %v5250, %v5506
  %5508 = vmatprep.mubr.f32.mxu0 %v4775
  %5509 = vmatmul.mubr.f32.gmra.mrb[0].mxu0 %v3397
  %v5510 = vpop.f32.mrb[0].mxu0
  %v5511 = vadd.f32 %v5254, %v5510
  %v5512 = vpop.f32.mrb[0].mxu0
  %v5513 = vadd.f32 %v5256, %v5512
  %5514 = vmatprep.mubr.f32.mxu0 %v4778
  %5515 = vmatmul.mubr.f32.gmra.mrb[0].mxu0 %v3403
  %v5516 = vpop.f32.mrb[0].mxu0
  %v5517 = vadd.f32 %v5260, %v5516
  %v5518 = vpop.f32.mrb[0].mxu0
  %v5519 = vadd.f32 %v5262, %v5518
  %5520 = vmatprep.mubr.f32.mxu0 %v4781
  %5521 = vmatmul.mubr.f32.gmra.mrb[0].mxu0 %v3409
  %v5522 = vpop.f32.mrb[0].mxu0
  %v5523 = vadd.f32 %v5266, %v5522
  %v5524 = vpop.f32.mrb[0].mxu0
  %v5525 = vadd.f32 %v5268, %v5524
  %5526 = vmatprep.mubr.f32.mxu0 %v4784
  %5527 = vmatmul.mubr.f32.gmra.mrb[0].mxu0 %v3415
  %v5528 = vpop.f32.mrb[0].mxu0
  %v5529 = vadd.f32 %v5272, %v5528
  %v5530 = vpop.f32.mrb[0].mxu0
  %v5531 = vadd.f32 %v5274, %v5530
  %5532 = vmatprep.mubr.f32.mxu0 %v4787
  %5533 = vmatmul.mubr.f32.gmra.mrb[0].mxu0 %v3953
  %v5534 = vpop.f32.mrb[0].mxu0
  %v5535 = vadd.f32 %v5278, %v5534
  %v5536 = vpop.f32.mrb[0].mxu0
  %v5537 = vadd.f32 %v5280, %v5536
  %5538 = vmatprep.mubr.f32.mxu0 %v4790
  %5539 = vmatmul.mubr.f32.gmra.mrb[0].mxu0 %v3959
  %v5540 = vpop.f32.mrb[0].mxu0
  %v5541 = vadd.f32 %v5284, %v5540
  %v5542 = vpop.f32.mrb[0].mxu0
  %v5543 = vadd.f32 %v5286, %v5542
  %5544 = vmatprep.mubr.f32.mxu0 %v4793
  %5545 = vmatmul.mubr.f32.gmra.mrb[0].mxu0 %v3965
  %v5546 = vpop.f32.mrb[0].mxu0
  %v5547 = vadd.f32 %v5290, %v5546
  %v5548 = vpop.f32.mrb[0].mxu0
  %v5549 = vadd.f32 %v5292, %v5548
  %5550 = vmatprep.mubr.f32.mxu0 %v4796
  %5551 = vmatmul.mubr.f32.gmra.mrb[0].mxu0 %v3971
  %v5552 = vpop.f32.mrb[0].mxu0
  %v5553 = vadd.f32 %v5296, %v5552
  %v5554 = vpop.f32.mrb[0].mxu0
  %v5555 = vadd.f32 %v5298, %v5554
  %5556 = vmatprep.mubr.f32.mxu0 %v4799
  %5557 = vmatmul.mubr.f32.gmra.mrb[0].mxu0 %v4509
  %v5558 = vpop.f32.mrb[0].mxu0
  %v5559 = vadd.f32 %v5302, %v5558
  %v5560 = vpop.f32.mrb[0].mxu0
  %v5561 = vadd.f32 %v5304, %v5560
  %5562 = vmatprep.mubr.f32.mxu0 %v4802
  %5563 = vmatmul.mubr.f32.gmra.mrb[0].mxu0 %v4515
  %v5564 = vpop.f32.mrb[0].mxu0
  %v5565 = vadd.f32 %v5308, %v5564
  %v5566 = vpop.f32.mrb[0].mxu0
  %v5567 = vadd.f32 %v5310, %v5566
  %5568 = vmatprep.mubr.f32.mxu0 %v4805
  %5569 = vmatmul.mubr.f32.gmra.mrb[0].mxu0 %v4521
  %v5570 = vpop.f32.mrb[0].mxu0
  %v5571 = vadd.f32 %v5314, %v5570
  %v5572 = vpop.f32.mrb[0].mxu0
  %v5573 = vadd.f32 %v5316, %v5572
  %5574 = vmatprep.mubr.f32.mxu0 %v4808
  %5575 = vmatmul.mubr.f32.gmra.mrb[0].mxu0 %v4527
  %v5576 = vpop.f32.mrb[0].mxu0
  %v5577 = vadd.f32 %v5320, %v5576
  %v5578 = vpop.f32.mrb[0].mxu0
  %v5579 = vadd.f32 %v5322, %v5578
  %5580 = vdwg.mxu0
  %v5581 = vld [vmem:[%s4] sm:$0xff]
  %v5582 = vld [vmem:[%s4 + $0x8] sm:$0xff]
  %v5583 = vld [vmem:[%s4 + $0x10] sm:$0xff]
  %v5584 = vld [vmem:[%s4 + $0x18] sm:$0xff]
  %v5585 = vld [vmem:[%s4 + $0x20] sm:$0xff]
  %v5586 = vld [vmem:[%s4 + $0x28] sm:$0xff]
  %v5587 = vld [vmem:[%s4 + $0x30] sm:$0xff]
  %v5588 = vld [vmem:[%s4 + $0x38] sm:$0xff]
  %v5589 = vld [vmem:[%s4 + $0x40] sm:$0xff]
  %v5590 = vld [vmem:[%s4 + $0x48] sm:$0xff]
  %v5591 = vld [vmem:[%s4 + $0x50] sm:$0xff]
  %v5592 = vld [vmem:[%s4 + $0x58] sm:$0xff]
  %v5593 = vld [vmem:[%s4 + $0x60] sm:$0xff]
  %v5594 = vld [vmem:[%s4 + $0x68] sm:$0xff]
  %v5595 = vld [vmem:[%s4 + $0x70] sm:$0xff]
  %v5596 = vld [vmem:[%s4 + $0x78] sm:$0xff]
  %v5597 = vld [vmem:[%s5] sm:$0xff]
  %v5598 = vld [vmem:[%s5 + $0x8] sm:$0xff]
  %v5599 = vld [vmem:[%s5 + $0x10] sm:$0xff]
  %v5600 = vld [vmem:[%s5 + $0x18] sm:$0xff]
  %5609 = vrot.lane.b32.xlu0 %v5391, 127
  %v5610 = vpop.permute.xlu0 %5609
  %5611 = vrot.lane.b32.xlu0 %v5393, 127
  %v5612 = vpop.permute.xlu0 %5611
  %5613 = vrot.lane.b32.xlu0 %v5397, 127
  %v5614 = vpop.permute.xlu0 %5613
  %5615 = vrot.lane.b32.xlu0 %v5399, 127
  %v5616 = vpop.permute.xlu0 %5615
  %5617 = vrot.lane.b32.xlu0 %v5403, 127
  %v5618 = vpop.permute.xlu0 %5617
  %5619 = vrot.lane.b32.xlu0 %v5405, 127
  %v5620 = vpop.permute.xlu0 %5619
  %5621 = vrot.lane.b32.xlu0 %v5409, 127
  %v5622 = vpop.permute.xlu0 %5621
  %5623 = vrot.lane.b32.xlu0 %v5411, 127
  %v5624 = vpop.permute.xlu0 %5623
  %vm5625 = vcmask 1039360
  %v5626 = vsel %vm5625, %v5610, %v5612
  %v5627 = vsel %vm5625, %v5614, %v5616
  %v5628 = vsel %vm5625, %v5618, %v5620
  %v5629 = vsel %vm5625, %v5622, %v5624
  %5638 = vrot.lane.b32.xlu0 %v5391, 126
  %v5639 = vpop.permute.xlu0 %5638
  %5640 = vrot.lane.b32.xlu0 %v5393, 126
  %v5641 = vpop.permute.xlu0 %5640
  %5642 = vrot.lane.b32.xlu0 %v5397, 126
  %v5643 = vpop.permute.xlu0 %5642
  %5644 = vrot.lane.b32.xlu0 %v5399, 126
  %v5645 = vpop.permute.xlu0 %5644
  %5646 = vrot.lane.b32.xlu0 %v5403, 126
  %v5647 = vpop.permute.xlu0 %5646
  %5648 = vrot.lane.b32.xlu0 %v5405, 126
  %v5649 = vpop.permute.xlu0 %5648
  %5650 = vrot.lane.b32.xlu0 %v5409, 126
  %v5651 = vpop.permute.xlu0 %5650
  %5652 = vrot.lane.b32.xlu0 %v5411, 126
  %v5653 = vpop.permute.xlu0 %5652
  %vm5654 = vcmask 1031168
  %v5655 = vsel %vm5654, %v5639, %v5641
  %v5656 = vsel %vm5654, %v5643, %v5645
  %v5657 = vsel %vm5654, %v5647, %v5649
  %v5658 = vsel %vm5654, %v5651, %v5653
  %5667 = vrot.lane.b32.xlu0 %v5391, 125
  %v5668 = vpop.permute.xlu0 %5667
  %5669 = vrot.lane.b32.xlu0 %v5393, 125
  %v5670 = vpop.permute.xlu0 %5669
  %5671 = vrot.lane.b32.xlu0 %v5397, 125
  %v5672 = vpop.permute.xlu0 %5671
  %5673 = vrot.lane.b32.xlu0 %v5399, 125
  %v5674 = vpop.permute.xlu0 %5673
  %5675 = vrot.lane.b32.xlu0 %v5403, 125
  %v5676 = vpop.permute.xlu0 %5675
  %5677 = vrot.lane.b32.xlu0 %v5405, 125
  %v5678 = vpop.permute.xlu0 %5677
  %5679 = vrot.lane.b32.xlu0 %v5409, 125
  %v5680 = vpop.permute.xlu0 %5679
  %5681 = vrot.lane.b32.xlu0 %v5411, 125
  %v5682 = vpop.permute.xlu0 %5681
  %vm5683 = vcmask 1022976
  %v5684 = vsel %vm5683, %v5668, %v5670
  %v5685 = vsel %vm5683, %v5672, %v5674
  %v5686 = vsel %vm5683, %v5676, %v5678
  %v5687 = vsel %vm5683, %v5680, %v5682
  %5696 = vrot.lane.b32.xlu0 %v5391, 124
  %v5697 = vpop.permute.xlu0 %5696
  %5698 = vrot.lane.b32.xlu0 %v5393, 124
  %v5699 = vpop.permute.xlu0 %5698
  %5700 = vrot.lane.b32.xlu0 %v5397, 124
  %v5701 = vpop.permute.xlu0 %5700
  %5702 = vrot.lane.b32.xlu0 %v5399, 124
  %v5703 = vpop.permute.xlu0 %5702
  %5704 = vrot.lane.b32.xlu0 %v5403, 124
  %v5705 = vpop.permute.xlu0 %5704
  %5706 = vrot.lane.b32.xlu0 %v5405, 124
  %v5707 = vpop.permute.xlu0 %5706
  %5708 = vrot.lane.b32.xlu0 %v5409, 124
  %v5709 = vpop.permute.xlu0 %5708
  %5710 = vrot.lane.b32.xlu0 %v5411, 124
  %v5711 = vpop.permute.xlu0 %5710
  %vm5712 = vcmask 1014784
  %v5713 = vsel %vm5712, %v5697, %v5699
  %v5714 = vsel %vm5712, %v5701, %v5703
  %v5715 = vsel %vm5712, %v5705, %v5707
  %v5716 = vsel %vm5712, %v5709, %v5711
  %5725 = vrot.lane.b32.xlu0 %v5391, 123
  %v5726 = vpop.permute.xlu0 %5725
  %5727 = vrot.lane.b32.xlu0 %v5393, 123
  %v5728 = vpop.permute.xlu0 %5727
  %5729 = vrot.lane.b32.xlu0 %v5397, 123
  %v5730 = vpop.permute.xlu0 %5729
  %5731 = vrot.lane.b32.xlu0 %v5399, 123
  %v5732 = vpop.permute.xlu0 %5731
  %5733 = vrot.lane.b32.xlu0 %v5403, 123
  %v5734 = vpop.permute.xlu0 %5733
  %5735 = vrot.lane.b32.xlu0 %v5405, 123
  %v5736 = vpop.permute.xlu0 %5735
  %5737 = vrot.lane.b32.xlu0 %v5409, 123
  %v5738 = vpop.permute.xlu0 %5737
  %5739 = vrot.lane.b32.xlu0 %v5411, 123
  %v5740 = vpop.permute.xlu0 %5739
  %vm5741 = vcmask 1006592
  %v5742 = vsel %vm5741, %v5726, %v5728
  %v5743 = vsel %vm5741, %v5730, %v5732
  %v5744 = vsel %vm5741, %v5734, %v5736
  %v5745 = vsel %vm5741, %v5738, %v5740
  %5754 = vrot.lane.b32.xlu0 %v5391, 122
  %v5755 = vpop.permute.xlu0 %5754
  %5756 = vrot.lane.b32.xlu0 %v5393, 122
  %v5757 = vpop.permute.xlu0 %5756
  %5758 = vrot.lane.b32.xlu0 %v5397, 122
  %v5759 = vpop.permute.xlu0 %5758
  %5760 = vrot.lane.b32.xlu0 %v5399, 122
  %v5761 = vpop.permute.xlu0 %5760
  %5762 = vrot.lane.b32.xlu0 %v5403, 122
  %v5763 = vpop.permute.xlu0 %5762
  %5764 = vrot.lane.b32.xlu0 %v5405, 122
  %v5765 = vpop.permute.xlu0 %5764
  %5766 = vrot.lane.b32.xlu0 %v5409, 122
  %v5767 = vpop.permute.xlu0 %5766
  %5768 = vrot.lane.b32.xlu0 %v5411, 122
  %v5769 = vpop.permute.xlu0 %5768
  %vm5770 = vcmask 998400
  %v5771 = vsel %vm5770, %v5755, %v5757
  %v5772 = vsel %vm5770, %v5759, %v5761
  %v5773 = vsel %vm5770, %v5763, %v5765
  %v5774 = vsel %vm5770, %v5767, %v5769
  %5783 = vrot.lane.b32.xlu0 %v5391, 121
  %v5784 = vpop.permute.xlu0 %5783
  %5785 = vrot.lane.b32.xlu0 %v5393, 121
  %v5786 = vpop.permute.xlu0 %5785
  %5787 = vrot.lane.b32.xlu0 %v5397, 121
  %v5788 = vpop.permute.xlu0 %5787
  %5789 = vrot.lane.b32.xlu0 %v5399, 121
  %v5790 = vpop.permute.xlu0 %5789
  %5791 = vrot.lane.b32.xlu0 %v5403, 121
  %v5792 = vpop.permute.xlu0 %5791
  %5793 = vrot.lane.b32.xlu0 %v5405, 121
  %v5794 = vpop.permute.xlu0 %5793
  %5795 = vrot.lane.b32.xlu0 %v5409, 121
  %v5796 = vpop.permute.xlu0 %5795
  %5797 = vrot.lane.b32.xlu0 %v5411, 121
  %v5798 = vpop.permute.xlu0 %5797
  %vm5799 = vcmask 990208
  %v5800 = vsel %vm5799, %v5784, %v5786
  %v5801 = vsel %vm5799, %v5788, %v5790
  %v5802 = vsel %vm5799, %v5792, %v5794
  %v5803 = vsel %vm5799, %v5796, %v5798
  %5812 = vrot.lane.b32.xlu0 %v5391, 120
  %v5813 = vpop.permute.xlu0 %5812
  %5814 = vrot.lane.b32.xlu0 %v5393, 120
  %v5815 = vpop.permute.xlu0 %5814
  %5816 = vrot.lane.b32.xlu0 %v5397, 120
  %v5817 = vpop.permute.xlu0 %5816
  %5818 = vrot.lane.b32.xlu0 %v5399, 120
  %v5819 = vpop.permute.xlu0 %5818
  %5820 = vrot.lane.b32.xlu0 %v5403, 120
  %v5821 = vpop.permute.xlu0 %5820
  %5822 = vrot.lane.b32.xlu0 %v5405, 120
  %v5823 = vpop.permute.xlu0 %5822
  %5824 = vrot.lane.b32.xlu0 %v5409, 120
  %v5825 = vpop.permute.xlu0 %5824
  %5826 = vrot.lane.b32.xlu0 %v5411, 120
  %v5827 = vpop.permute.xlu0 %5826
  %vm5828 = vcmask 982016
  %v5829 = vsel %vm5828, %v5813, %v5815
  %v5830 = vsel %vm5828, %v5817, %v5819
  %v5831 = vsel %vm5828, %v5821, %v5823
  %v5832 = vsel %vm5828, %v5825, %v5827
  %5841 = vrot.lane.b32.xlu0 %v5391, 119
  %v5842 = vpop.permute.xlu0 %5841
  %5843 = vrot.lane.b32.xlu0 %v5393, 119
  %v5844 = vpop.permute.xlu0 %5843
  %5845 = vrot.lane.b32.xlu0 %v5397, 119
  %v5846 = vpop.permute.xlu0 %5845
  %5847 = vrot.lane.b32.xlu0 %v5399, 119
  %v5848 = vpop.permute.xlu0 %5847
  %5849 = vrot.lane.b32.xlu0 %v5403, 119
  %v5850 = vpop.permute.xlu0 %5849
  %5851 = vrot.lane.b32.xlu0 %v5405, 119
  %v5852 = vpop.permute.xlu0 %5851
  %5853 = vrot.lane.b32.xlu0 %v5409, 119
  %v5854 = vpop.permute.xlu0 %5853
  %5855 = vrot.lane.b32.xlu0 %v5411, 119
  %v5856 = vpop.permute.xlu0 %5855
  %vm5857 = vcmask 973824
  %v5858 = vsel %vm5857, %v5842, %v5844
  %v5859 = vsel %vm5857, %v5846, %v5848
  %v5860 = vsel %vm5857, %v5850, %v5852
  %v5861 = vsel %vm5857, %v5854, %v5856
  %5870 = vrot.lane.b32.xlu0 %v5391, 118
  %v5871 = vpop.permute.xlu0 %5870
  %5872 = vrot.lane.b32.xlu0 %v5393, 118
  %v5873 = vpop.permute.xlu0 %5872
  %5874 = vrot.lane.b32.xlu0 %v5397, 118
  %v5875 = vpop.permute.xlu0 %5874
  %5876 = vrot.lane.b32.xlu0 %v5399, 118
  %v5877 = vpop.permute.xlu0 %5876
  %5878 = vrot.lane.b32.xlu0 %v5403, 118
  %v5879 = vpop.permute.xlu0 %5878
  %5880 = vrot.lane.b32.xlu0 %v5405, 118
  %v5881 = vpop.permute.xlu0 %5880
  %5882 = vrot.lane.b32.xlu0 %v5409, 118
  %v5883 = vpop.permute.xlu0 %5882
  %5884 = vrot.lane.b32.xlu0 %v5411, 118
  %v5885 = vpop.permute.xlu0 %5884
  %vm5886 = vcmask 965632
  %v5887 = vsel %vm5886, %v5871, %v5873
  %v5888 = vsel %vm5886, %v5875, %v5877
  %v5889 = vsel %vm5886, %v5879, %v5881
  %v5890 = vsel %vm5886, %v5883, %v5885
  %5899 = vrot.lane.b32.xlu0 %v5391, 117
  %v5900 = vpop.permute.xlu0 %5899
  %5901 = vrot.lane.b32.xlu0 %v5393, 117
  %v5902 = vpop.permute.xlu0 %5901
  %5903 = vrot.lane.b32.xlu0 %v5397, 117
  %v5904 = vpop.permute.xlu0 %5903
  %5905 = vrot.lane.b32.xlu0 %v5399, 117
  %v5906 = vpop.permute.xlu0 %5905
  %5907 = vrot.lane.b32.xlu0 %v5403, 117
  %v5908 = vpop.permute.xlu0 %5907
  %5909 = vrot.lane.b32.xlu0 %v5405, 117
  %v5910 = vpop.permute.xlu0 %5909
  %5911 = vrot.lane.b32.xlu0 %v5409, 117
  %v5912 = vpop.permute.xlu0 %5911
  %5913 = vrot.lane.b32.xlu0 %v5411, 117
  %v5914 = vpop.permute.xlu0 %5913
  %vm5915 = vcmask 957440
  %v5916 = vsel %vm5915, %v5900, %v5902
  %v5917 = vsel %vm5915, %v5904, %v5906
  %v5918 = vsel %vm5915, %v5908, %v5910
  %v5919 = vsel %vm5915, %v5912, %v5914
  %5928 = vrot.lane.b32.xlu0 %v5391, 116
  %v5929 = vpop.permute.xlu0 %5928
  %5930 = vrot.lane.b32.xlu0 %v5393, 116
  %v5931 = vpop.permute.xlu0 %5930
  %5932 = vrot.lane.b32.xlu0 %v5397, 116
  %v5933 = vpop.permute.xlu0 %5932
  %5934 = vrot.lane.b32.xlu0 %v5399, 116
  %v5935 = vpop.permute.xlu0 %5934
  %5936 = vrot.lane.b32.xlu0 %v5403, 116
  %v5937 = vpop.permute.xlu0 %5936
  %5938 = vrot.lane.b32.xlu0 %v5405, 116
  %v5939 = vpop.permute.xlu0 %5938
  %5940 = vrot.lane.b32.xlu0 %v5409, 116
  %v5941 = vpop.permute.xlu0 %5940
  %5942 = vrot.lane.b32.xlu0 %v5411, 116
  %v5943 = vpop.permute.xlu0 %5942
  %vm5944 = vcmask 949248
  %v5945 = vsel %vm5944, %v5929, %v5931
  %v5946 = vsel %vm5944, %v5933, %v5935
  %v5947 = vsel %vm5944, %v5937, %v5939
  %v5948 = vsel %vm5944, %v5941, %v5943
  %5957 = vrot.lane.b32.xlu0 %v5391, 115
  %v5958 = vpop.permute.xlu0 %5957
  %5959 = vrot.lane.b32.xlu0 %v5393, 115
  %v5960 = vpop.permute.xlu0 %5959
  %5961 = vrot.lane.b32.xlu0 %v5397, 115
  %v5962 = vpop.permute.xlu0 %5961
  %5963 = vrot.lane.b32.xlu0 %v5399, 115
  %v5964 = vpop.permute.xlu0 %5963
  %5965 = vrot.lane.b32.xlu0 %v5403, 115
  %v5966 = vpop.permute.xlu0 %5965
  %5967 = vrot.lane.b32.xlu0 %v5405, 115
  %v5968 = vpop.permute.xlu0 %5967
  %5969 = vrot.lane.b32.xlu0 %v5409, 115
  %v5970 = vpop.permute.xlu0 %5969
  %5971 = vrot.lane.b32.xlu0 %v5411, 115
  %v5972 = vpop.permute.xlu0 %5971
  %vm5973 = vcmask 941056
  %v5974 = vsel %vm5973, %v5958, %v5960
  %v5975 = vsel %vm5973, %v5962, %v5964
  %v5976 = vsel %vm5973, %v5966, %v5968
  %v5977 = vsel %vm5973, %v5970, %v5972
  %5986 = vrot.lane.b32.xlu0 %v5391, 114
  %v5987 = vpop.permute.xlu0 %5986
  %5988 = vrot.lane.b32.xlu0 %v5393, 114
  %v5989 = vpop.permute.xlu0 %5988
  %5990 = vrot.lane.b32.xlu0 %v5397, 114
  %v5991 = vpop.permute.xlu0 %5990
  %5992 = vrot.lane.b32.xlu0 %v5399, 114
  %v5993 = vpop.permute.xlu0 %5992
  %5994 = vrot.lane.b32.xlu0 %v5403, 114
  %v5995 = vpop.permute.xlu0 %5994
  %5996 = vrot.lane.b32.xlu0 %v5405, 114
  %v5997 = vpop.permute.xlu0 %5996
  %5998 = vrot.lane.b32.xlu0 %v5409, 114
  %v5999 = vpop.permute.xlu0 %5998
  %6000 = vrot.lane.b32.xlu0 %v5411, 114
  %v6001 = vpop.permute.xlu0 %6000
  %vm6002 = vcmask 932864
  %v6003 = vsel %vm6002, %v5987, %v5989
  %v6004 = vsel %vm6002, %v5991, %v5993
  %v6005 = vsel %vm6002, %v5995, %v5997
  %v6006 = vsel %vm6002, %v5999, %v6001
  %6016 = vset.pattern.permute.xlu0 0
  %6017 = vperm.xlu0 %6016, %v5597
  %v6018 = vpop.permute.xlu0 %6017
  %6021 = vset.pattern.permute.xlu0 0
  %6022 = vperm.xlu0 %6021, %v5598
  %v6023 = vpop.permute.xlu0 %6022
  %6026 = vset.pattern.permute.xlu0 0
  %6027 = vperm.xlu0 %6026, %v5599
  %v6028 = vpop.permute.xlu0 %6027
  %6031 = vset.pattern.permute.xlu0 0
  %6032 = vperm.xlu0 %6031, %v5600
  %v6033 = vpop.permute.xlu0 %6032
  %v6036 = vsel %vm4713, %v5584, 0
  %v6039 = vsel %vm4713, %v5588, 0
  %v6042 = vsel %vm4713, %v5592, 0
  %v6045 = vsel %vm4713, %v5596, 0
  %6047 = vmatprep.subr.mxu0 %v5393
  %6048 = vmatpush1.msra.mxu0 %v5391
  %6049 = vmatprep.subr.mxu0 %v5399
  %6050 = vmatpush1.msra.mxu0 %v5397
  %6051 = vmatprep.subr.mxu0 %v5405
  %6052 = vmatpush1.msra.mxu0 %v5403
  %6053 = vmatprep.subr.mxu0 %v5411
  %6054 = vmatpush1.msra.mxu0 %v5409
  %6055 = vmatprep.subr.mxu0 %v5612
  %6056 = vmatpush1.msra.mxu0 %v5626
  %6057 = vmatprep.subr.mxu0 %v5616
  %6058 = vmatpush1.msra.mxu0 %v5627
  %6059 = vmatprep.subr.mxu0 %v5620
  %6060 = vmatpush1.msra.mxu0 %v5628
  %6061 = vmatprep.subr.mxu0 %v5624
  %6062 = vmatpush1.msra.mxu0 %v5629
  %6063 = vmatprep.subr.mxu0 %v5641
  %6064 = vmatpush1.msra.mxu0 %v5655
  %6065 = vmatprep.subr.mxu0 %v5645
  %6066 = vmatpush1.msra.mxu0 %v5656
  %6067 = vmatprep.subr.mxu0 %v5649
  %6068 = vmatpush1.msra.mxu0 %v5657
  %6069 = vmatprep.subr.mxu0 %v5653
  %6070 = vmatpush1.msra.mxu0 %v5658
  %6071 = vmatprep.subr.mxu0 %v5670
  %6072 = vmatpush1.msra.mxu0 %v5684
  %6073 = vmatprep.subr.mxu0 %v5674
  %6074 = vmatpush1.msra.mxu0 %v5685
  %6075 = vmatprep.subr.mxu0 %v5678
  %6076 = vmatpush1.msra.mxu0 %v5686
  %6077 = vmatprep.subr.mxu0 %v5682
  %6078 = vmatpush1.msra.mxu0 %v5687
  %6079 = vmatprep.subr.mxu0 %v5699
  %6080 = vmatpush1.msra.mxu0 %v5713
  %6081 = vmatprep.subr.mxu0 %v5703
  %6082 = vmatpush1.msra.mxu0 %v5714
  %6083 = vmatprep.subr.mxu0 %v5707
  %6084 = vmatpush1.msra.mxu0 %v5715
  %6085 = vmatprep.subr.mxu0 %v5711
  %6086 = vmatpush1.msra.mxu0 %v5716
  %6087 = vmatprep.subr.mxu0 %v5728
  %6088 = vmatpush1.msra.mxu0 %v5742
  %6089 = vmatprep.subr.mxu0 %v5732
  %6090 = vmatpush1.msra.mxu0 %v5743
  %6091 = vmatprep.subr.mxu0 %v5736
  %6092 = vmatpush1.msra.mxu0 %v5744
  %6093 = vmatprep.subr.mxu0 %v5740
  %6094 = vmatpush1.msra.mxu0 %v5745
  %6095 = vmatprep.subr.mxu0 %v5757
  %6096 = vmatpush1.msra.mxu0 %v5771
  %6097 = vmatprep.subr.mxu0 %v5761
  %6098 = vmatpush1.msra.mxu0 %v5772
  %6099 = vmatprep.subr.mxu0 %v5765
  %6100 = vmatpush1.msra.mxu0 %v5773
  %6101 = vmatprep.subr.mxu0 %v5769
  %6102 = vmatpush1.msra.mxu0 %v5774
  %6103 = vmatprep.subr.mxu0 %v5786
  %6104 = vmatpush1.msra.mxu0 %v5800
  %6105 = vmatprep.subr.mxu0 %v5790
  %6106 = vmatpush1.msra.mxu0 %v5801
  %6107 = vmatprep.subr.mxu0 %v5794
  %6108 = vmatpush1.msra.mxu0 %v5802
  %6109 = vmatprep.subr.mxu0 %v5798
  %6110 = vmatpush1.msra.mxu0 %v5803
  %6111 = vmatprep.mubr.f32.mxu0 %v5582
  %6112 = vmatmul.mubr.f32.gmra.mrb[0].mxu0 %v5581
  %v6113 = vpop.f32.mrb[0].mxu0
  %v6114 = vadd.f32 %v6018, %v6113
  %v6115 = vpop.f32.mrb[0].mxu0
  %v6116 = vadd.f32 %v6018, %v6115
  %6117 = vmatprep.mubr.f32.mxu0 %v5586
  %6118 = vmatmul.mubr.f32.gmra.mrb[0].mxu0 %v5585
  %v6119 = vpop.f32.mrb[0].mxu0
  %v6120 = vadd.f32 %v6023, %v6119
  %v6121 = vpop.f32.mrb[0].mxu0
  %v6122 = vadd.f32 %v6023, %v6121
  %6123 = vmatprep.mubr.f32.mxu0 %v5590
  %6124 = vmatmul.mubr.f32.gmra.mrb[0].mxu0 %v5589
  %v6125 = vpop.f32.mrb[0].mxu0
  %v6126 = vadd.f32 %v6028, %v6125
  %v6127 = vpop.f32.mrb[0].mxu0
  %v6128 = vadd.f32 %v6028, %v6127
  %6129 = vmatprep.mubr.f32.mxu0 %v5594
  %6130 = vmatmul.mubr.f32.gmra.mrb[0].mxu0 %v5593
  %v6131 = vpop.f32.mrb[0].mxu0
  %v6132 = vadd.f32 %v6033, %v6131
  %v6133 = vpop.f32.mrb[0].mxu0
  %v6134 = vadd.f32 %v6033, %v6133
  %6135 = vdwg.mxu0
  %6136 = vmatprep.subr.mxu0 %v5815
  %6137 = vmatpush1.msra.mxu0 %v5829
  %6138 = vmatprep.subr.mxu0 %v5819
  %6139 = vmatpush1.msra.mxu0 %v5830
  %6140 = vmatprep.subr.mxu0 %v5823
  %6141 = vmatpush1.msra.mxu0 %v5831
  %6142 = vmatprep.subr.mxu0 %v5827
  %6143 = vmatpush1.msra.mxu0 %v5832
  %6144 = vmatprep.subr.mxu0 %v5844
  %6145 = vmatpush1.msra.mxu0 %v5858
  %6146 = vmatprep.subr.mxu0 %v5848
  %6147 = vmatpush1.msra.mxu0 %v5859
  %6148 = vmatprep.subr.mxu0 %v5852
  %6149 = vmatpush1.msra.mxu0 %v5860
  %6150 = vmatprep.subr.mxu0 %v5856
  %6151 = vmatpush1.msra.mxu0 %v5861
  %6152 = vmatprep.subr.mxu0 %v5873
  %6153 = vmatpush1.msra.mxu0 %v5887
  %6154 = vmatprep.subr.mxu0 %v5877
  %6155 = vmatpush1.msra.mxu0 %v5888
  %6156 = vmatprep.subr.mxu0 %v5881
  %6157 = vmatpush1.msra.mxu0 %v5889
  %6158 = vmatprep.subr.mxu0 %v5885
  %6159 = vmatpush1.msra.mxu0 %v5890
  %6160 = vmatprep.subr.mxu0 %v5902
  %6161 = vmatpush1.msra.mxu0 %v5916
  %6162 = vmatprep.subr.mxu0 %v5906
  %6163 = vmatpush1.msra.mxu0 %v5917
  %6164 = vmatprep.subr.mxu0 %v5910
  %6165 = vmatpush1.msra.mxu0 %v5918
  %6166 = vmatprep.subr.mxu0 %v5914
  %6167 = vmatpush1.msra.mxu0 %v5919
  %6168 = vmatprep.subr.mxu0 %v5931
  %6169 = vmatpush1.msra.mxu0 %v5945
  %6170 = vmatprep.subr.mxu0 %v5935
  %6171 = vmatpush1.msra.mxu0 %v5946
  %6172 = vmatprep.subr.mxu0 %v5939
  %6173 = vmatpush1.msra.mxu0 %v5947
  %6174 = vmatprep.subr.mxu0 %v5943
  %6175 = vmatpush1.msra.mxu0 %v5948
  %6176 = vmatprep.subr.mxu0 %v5960
  %6177 = vmatpush1.msra.mxu0 %v5974
  %6178 = vmatprep.subr.mxu0 %v5964
  %6179 = vmatpush1.msra.mxu0 %v5975
  %6180 = vmatprep.subr.mxu0 %v5968
  %6181 = vmatpush1.msra.mxu0 %v5976
  %6182 = vmatprep.subr.mxu0 %v5972
  %6183 = vmatpush1.msra.mxu0 %v5977
  %6184 = vmatprep.subr.mxu0 %v5989
  %6185 = vmatpush1.msra.mxu0 %v6003
  %6186 = vmatprep.subr.mxu0 %v5993
  %6187 = vmatpush1.msra.mxu0 %v6004
  %6188 = vmatprep.subr.mxu0 %v5997
  %6189 = vmatpush1.msra.mxu0 %v6005
  %6190 = vmatprep.subr.mxu0 %v6001
  %6191 = vmatpush1.msra.mxu0 %v6006
  %6192 = vmatprep.subr.mxu0 0.0
  %6193 = vmatpush1.msra.mxu0 0.0
  %6194 = vmatprep.subr.mxu0 0.0
  %6195 = vmatpush1.msra.mxu0 0.0
  %6196 = vmatprep.subr.mxu0 0.0
  %6197 = vmatpush1.msra.mxu0 0.0
  %6198 = vmatprep.subr.mxu0 0.0
  %6199 = vmatpush1.msra.mxu0 0.0
  %6200 = vmatprep.mubr.f32.mxu0 %v6036
  %6201 = vmatmul.mubr.f32.gmra.mrb[0].mxu0 %v5583
  %v6202 = vpop.f32.mrb[0].mxu0
  %v6203 = vadd.f32 %v6114, %v6202
  %v6204 = vpop.f32.mrb[0].mxu0
  %v6205 = vadd.f32 %v6116, %v6204
  %6206 = vmatprep.mubr.f32.mxu0 %v6039
  %6207 = vmatmul.mubr.f32.gmra.mrb[0].mxu0 %v5587
  %v6208 = vpop.f32.mrb[0].mxu0
  %v6209 = vadd.f32 %v6120, %v6208
  %v6210 = vpop.f32.mrb[0].mxu0
  %v6211 = vadd.f32 %v6122, %v6210
  %6212 = vmatprep.mubr.f32.mxu0 %v6042
  %6213 = vmatmul.mubr.f32.gmra.mrb[0].mxu0 %v5591
  %v6214 = vpop.f32.mrb[0].mxu0
  %v6215 = vadd.f32 %v6126, %v6214
  %v6216 = vpop.f32.mrb[0].mxu0
  %v6217 = vadd.f32 %v6128, %v6216
  %6218 = vmatprep.mubr.f32.mxu0 %v6045
  %6219 = vmatmul.mubr.f32.gmra.mrb[0].mxu0 %v5595
  %v6220 = vpop.f32.mrb[0].mxu0
  %v6221 = vadd.f32 %v6132, %v6220
  %v6222 = vpop.f32.mrb[0].mxu0
  %v6223 = vadd.f32 %v6134, %v6222
  %6224 = vdwg.mxu0
  %vm6225 = vcmp.gt.f32.partialorder %v6203, 0.0
  %vm6226 = vcmp.gt.f32.partialorder %v6205, 0.0
  %vm6227 = vcmp.gt.f32.partialorder %v6209, 0.0
  %vm6228 = vcmp.gt.f32.partialorder %v6211, 0.0
  %vm6229 = vcmp.gt.f32.partialorder %v6215, 0.0
  %vm6230 = vcmp.gt.f32.partialorder %v6217, 0.0
  %vm6231 = vcmp.gt.f32.partialorder %v6221, 0.0
  %vm6232 = vcmp.gt.f32.partialorder %v6223, 0.0
  %v6233 = vmin.f32 %v6203, 0.0
  %v6234 = vmin.f32 %v6205, 0.0
  %v6235 = vmin.f32 %v6209, 0.0
  %v6236 = vmin.f32 %v6211, 0.0
  %v6237 = vmin.f32 %v6215, 0.0
  %v6238 = vmin.f32 %v6217, 0.0
  %v6239 = vmin.f32 %v6221, 0.0
  %v6240 = vmin.f32 %v6223, 0.0
  %v6241 = vmul.f32 %v6233, 1.442695
  %v6242 = vpow.pop %v6241
  %v6243 = vmul.f32 %v6234, 1.442695
  %v6244 = vpow.pop %v6243
  %v6245 = vmul.f32 %v6235, 1.442695
  %v6246 = vpow.pop %v6245
  %v6247 = vmul.f32 %v6236, 1.442695
  %v6248 = vpow.pop %v6247
  %v6249 = vmul.f32 %v6237, 1.442695
  %v6250 = vpow.pop %v6249
  %v6251 = vmul.f32 %v6238, 1.442695
  %v6252 = vpow.pop %v6251
  %v6253 = vmul.f32 %v6239, 1.442695
  %v6254 = vpow.pop %v6253
  %v6255 = vmul.f32 %v6240, 1.442695
  %v6256 = vpow.pop %v6255
  %v6257 = vsub.f32 %v6242, 1.0
  %v6258 = vsub.f32 %v6244, 1.0
  %v6259 = vsub.f32 %v6246, 1.0
  %v6260 = vsub.f32 %v6248, 1.0
  %v6261 = vsub.f32 %v6250, 1.0
  %v6262 = vsub.f32 %v6252, 1.0
  %v6263 = vsub.f32 %v6254, 1.0
  %v6264 = vsub.f32 %v6256, 1.0
  %v6265 = vsel %vm6225, %v6203, %v6257
  %v6266 = vsel %vm6226, %v6205, %v6258
  %v6267 = vsel %vm6227, %v6209, %v6259
  %v6268 = vsel %vm6228, %v6211, %v6260
  %v6269 = vsel %vm6229, %v6215, %v6261
  %v6270 = vsel %vm6230, %v6217, %v6262
  %v6271 = vsel %vm6231, %v6221, %v6263
  %v6272 = vsel %vm6232, %v6223, %v6264
  %6281 = vrot.lane.b32.xlu0 %v5415, 127
  %v6282 = vpop.permute.xlu0 %6281
  %6283 = vrot.lane.b32.xlu0 %v5417, 127
  %v6284 = vpop.permute.xlu0 %6283
  %6285 = vrot.lane.b32.xlu0 %v5421, 127
  %v6286 = vpop.permute.xlu0 %6285
  %6287 = vrot.lane.b32.xlu0 %v5423, 127
  %v6288 = vpop.permute.xlu0 %6287
  %6289 = vrot.lane.b32.xlu0 %v5427, 127
  %v6290 = vpop.permute.xlu0 %6289
  %6291 = vrot.lane.b32.xlu0 %v5429, 127
  %v6292 = vpop.permute.xlu0 %6291
  %6293 = vrot.lane.b32.xlu0 %v5433, 127
  %v6294 = vpop.permute.xlu0 %6293
  %6295 = vrot.lane.b32.xlu0 %v5435, 127
  %v6296 = vpop.permute.xlu0 %6295
  %v6297 = vsel %vm5625, %v6282, %v6284
  %v6298 = vsel %vm5625, %v6286, %v6288
  %v6299 = vsel %vm5625, %v6290, %v6292
  %v6300 = vsel %vm5625, %v6294, %v6296
  %6309 = vrot.lane.b32.xlu0 %v5415, 126
  %v6310 = vpop.permute.xlu0 %6309
  %6311 = vrot.lane.b32.xlu0 %v5417, 126
  %v6312 = vpop.permute.xlu0 %6311
  %6313 = vrot.lane.b32.xlu0 %v5421, 126
  %v6314 = vpop.permute.xlu0 %6313
  %6315 = vrot.lane.b32.xlu0 %v5423, 126
  %v6316 = vpop.permute.xlu0 %6315
  %6317 = vrot.lane.b32.xlu0 %v5427, 126
  %v6318 = vpop.permute.xlu0 %6317
  %6319 = vrot.lane.b32.xlu0 %v5429, 126
  %v6320 = vpop.permute.xlu0 %6319
  %6321 = vrot.lane.b32.xlu0 %v5433, 126
  %v6322 = vpop.permute.xlu0 %6321
  %6323 = vrot.lane.b32.xlu0 %v5435, 126
  %v6324 = vpop.permute.xlu0 %6323
  %v6325 = vsel %vm5654, %v6310, %v6312
  %v6326 = vsel %vm5654, %v6314, %v6316
  %v6327 = vsel %vm5654, %v6318, %v6320
  %v6328 = vsel %vm5654, %v6322, %v6324
  %6337 = vrot.lane.b32.xlu0 %v5415, 125
  %v6338 = vpop.permute.xlu0 %6337
  %6339 = vrot.lane.b32.xlu0 %v5417, 125
  %v6340 = vpop.permute.xlu0 %6339
  %6341 = vrot.lane.b32.xlu0 %v5421, 125
  %v6342 = vpop.permute.xlu0 %6341
  %6343 = vrot.lane.b32.xlu0 %v5423, 125
  %v6344 = vpop.permute.xlu0 %6343
  %6345 = vrot.lane.b32.xlu0 %v5427, 125
  %v6346 = vpop.permute.xlu0 %6345
  %6347 = vrot.lane.b32.xlu0 %v5429, 125
  %v6348 = vpop.permute.xlu0 %6347
  %6349 = vrot.lane.b32.xlu0 %v5433, 125
  %v6350 = vpop.permute.xlu0 %6349
  %6351 = vrot.lane.b32.xlu0 %v5435, 125
  %v6352 = vpop.permute.xlu0 %6351
  %v6353 = vsel %vm5683, %v6338, %v6340
  %v6354 = vsel %vm5683, %v6342, %v6344
  %v6355 = vsel %vm5683, %v6346, %v6348
  %v6356 = vsel %vm5683, %v6350, %v6352
  %6365 = vrot.lane.b32.xlu0 %v5415, 124
  %v6366 = vpop.permute.xlu0 %6365
  %6367 = vrot.lane.b32.xlu0 %v5417, 124
  %v6368 = vpop.permute.xlu0 %6367
  %6369 = vrot.lane.b32.xlu0 %v5421, 124
  %v6370 = vpop.permute.xlu0 %6369
  %6371 = vrot.lane.b32.xlu0 %v5423, 124
  %v6372 = vpop.permute.xlu0 %6371
  %6373 = vrot.lane.b32.xlu0 %v5427, 124
  %v6374 = vpop.permute.xlu0 %6373
  %6375 = vrot.lane.b32.xlu0 %v5429, 124
  %v6376 = vpop.permute.xlu0 %6375
  %6377 = vrot.lane.b32.xlu0 %v5433, 124
  %v6378 = vpop.permute.xlu0 %6377
  %6379 = vrot.lane.b32.xlu0 %v5435, 124
  %v6380 = vpop.permute.xlu0 %6379
  %v6381 = vsel %vm5712, %v6366, %v6368
  %v6382 = vsel %vm5712, %v6370, %v6372
  %v6383 = vsel %vm5712, %v6374, %v6376
  %v6384 = vsel %vm5712, %v6378, %v6380
  %6393 = vrot.lane.b32.xlu0 %v5415, 123
  %v6394 = vpop.permute.xlu0 %6393
  %6395 = vrot.lane.b32.xlu0 %v5417, 123
  %v6396 = vpop.permute.xlu0 %6395
  %6397 = vrot.lane.b32.xlu0 %v5421, 123
  %v6398 = vpop.permute.xlu0 %6397
  %6399 = vrot.lane.b32.xlu0 %v5423, 123
  %v6400 = vpop.permute.xlu0 %6399
  %6401 = vrot.lane.b32.xlu0 %v5427, 123
  %v6402 = vpop.permute.xlu0 %6401
  %6403 = vrot.lane.b32.xlu0 %v5429, 123
  %v6404 = vpop.permute.xlu0 %6403
  %6405 = vrot.lane.b32.xlu0 %v5433, 123
  %v6406 = vpop.permute.xlu0 %6405
  %6407 = vrot.lane.b32.xlu0 %v5435, 123
  %v6408 = vpop.permute.xlu0 %6407
  %v6409 = vsel %vm5741, %v6394, %v6396
  %v6410 = vsel %vm5741, %v6398, %v6400
  %v6411 = vsel %vm5741, %v6402, %v6404
  %v6412 = vsel %vm5741, %v6406, %v6408
  %6421 = vrot.lane.b32.xlu0 %v5415, 122
  %v6422 = vpop.permute.xlu0 %6421
  %6423 = vrot.lane.b32.xlu0 %v5417, 122
  %v6424 = vpop.permute.xlu0 %6423
  %6425 = vrot.lane.b32.xlu0 %v5421, 122
  %v6426 = vpop.permute.xlu0 %6425
  %6427 = vrot.lane.b32.xlu0 %v5423, 122
  %v6428 = vpop.permute.xlu0 %6427
  %6429 = vrot.lane.b32.xlu0 %v5427, 122
  %v6430 = vpop.permute.xlu0 %6429
  %6431 = vrot.lane.b32.xlu0 %v5429, 122
  %v6432 = vpop.permute.xlu0 %6431
  %6433 = vrot.lane.b32.xlu0 %v5433, 122
  %v6434 = vpop.permute.xlu0 %6433
  %6435 = vrot.lane.b32.xlu0 %v5435, 122
  %v6436 = vpop.permute.xlu0 %6435
  %v6437 = vsel %vm5770, %v6422, %v6424
  %v6438 = vsel %vm5770, %v6426, %v6428
  %v6439 = vsel %vm5770, %v6430, %v6432
  %v6440 = vsel %vm5770, %v6434, %v6436
  %6449 = vrot.lane.b32.xlu0 %v5415, 121
  %v6450 = vpop.permute.xlu0 %6449
  %6451 = vrot.lane.b32.xlu0 %v5417, 121
  %v6452 = vpop.permute.xlu0 %6451
  %6453 = vrot.lane.b32.xlu0 %v5421, 121
  %v6454 = vpop.permute.xlu0 %6453
  %6455 = vrot.lane.b32.xlu0 %v5423, 121
  %v6456 = vpop.permute.xlu0 %6455
  %6457 = vrot.lane.b32.xlu0 %v5427, 121
  %v6458 = vpop.permute.xlu0 %6457
  %6459 = vrot.lane.b32.xlu0 %v5429, 121
  %v6460 = vpop.permute.xlu0 %6459
  %6461 = vrot.lane.b32.xlu0 %v5433, 121
  %v6462 = vpop.permute.xlu0 %6461
  %6463 = vrot.lane.b32.xlu0 %v5435, 121
  %v6464 = vpop.permute.xlu0 %6463
  %v6465 = vsel %vm5799, %v6450, %v6452
  %v6466 = vsel %vm5799, %v6454, %v6456
  %v6467 = vsel %vm5799, %v6458, %v6460
  %v6468 = vsel %vm5799, %v6462, %v6464
  %6477 = vrot.lane.b32.xlu0 %v5415, 120
  %v6478 = vpop.permute.xlu0 %6477
  %6479 = vrot.lane.b32.xlu0 %v5417, 120
  %v6480 = vpop.permute.xlu0 %6479
  %6481 = vrot.lane.b32.xlu0 %v5421, 120
  %v6482 = vpop.permute.xlu0 %6481
  %6483 = vrot.lane.b32.xlu0 %v5423, 120
  %v6484 = vpop.permute.xlu0 %6483
  %6485 = vrot.lane.b32.xlu0 %v5427, 120
  %v6486 = vpop.permute.xlu0 %6485
  %6487 = vrot.lane.b32.xlu0 %v5429, 120
  %v6488 = vpop.permute.xlu0 %6487
  %6489 = vrot.lane.b32.xlu0 %v5433, 120
  %v6490 = vpop.permute.xlu0 %6489
  %6491 = vrot.lane.b32.xlu0 %v5435, 120
  %v6492 = vpop.permute.xlu0 %6491
  %v6493 = vsel %vm5828, %v6478, %v6480
  %v6494 = vsel %vm5828, %v6482, %v6484
  %v6495 = vsel %vm5828, %v6486, %v6488
  %v6496 = vsel %vm5828, %v6490, %v6492
  %6505 = vrot.lane.b32.xlu0 %v5415, 119
  %v6506 = vpop.permute.xlu0 %6505
  %6507 = vrot.lane.b32.xlu0 %v5417, 119
  %v6508 = vpop.permute.xlu0 %6507
  %6509 = vrot.lane.b32.xlu0 %v5421, 119
  %v6510 = vpop.permute.xlu0 %6509
  %6511 = vrot.lane.b32.xlu0 %v5423, 119
  %v6512 = vpop.permute.xlu0 %6511
  %6513 = vrot.lane.b32.xlu0 %v5427, 119
  %v6514 = vpop.permute.xlu0 %6513
  %6515 = vrot.lane.b32.xlu0 %v5429, 119
  %v6516 = vpop.permute.xlu0 %6515
  %6517 = vrot.lane.b32.xlu0 %v5433, 119
  %v6518 = vpop.permute.xlu0 %6517
  %6519 = vrot.lane.b32.xlu0 %v5435, 119
  %v6520 = vpop.permute.xlu0 %6519
  %v6521 = vsel %vm5857, %v6506, %v6508
  %v6522 = vsel %vm5857, %v6510, %v6512
  %v6523 = vsel %vm5857, %v6514, %v6516
  %v6524 = vsel %vm5857, %v6518, %v6520
  %6533 = vrot.lane.b32.xlu0 %v5415, 118
  %v6534 = vpop.permute.xlu0 %6533
  %6535 = vrot.lane.b32.xlu0 %v5417, 118
  %v6536 = vpop.permute.xlu0 %6535
  %6537 = vrot.lane.b32.xlu0 %v5421, 118
  %v6538 = vpop.permute.xlu0 %6537
  %6539 = vrot.lane.b32.xlu0 %v5423, 118
  %v6540 = vpop.permute.xlu0 %6539
  %6541 = vrot.lane.b32.xlu0 %v5427, 118
  %v6542 = vpop.permute.xlu0 %6541
  %6543 = vrot.lane.b32.xlu0 %v5429, 118
  %v6544 = vpop.permute.xlu0 %6543
  %6545 = vrot.lane.b32.xlu0 %v5433, 118
  %v6546 = vpop.permute.xlu0 %6545
  %6547 = vrot.lane.b32.xlu0 %v5435, 118
  %v6548 = vpop.permute.xlu0 %6547
  %v6549 = vsel %vm5886, %v6534, %v6536
  %v6550 = vsel %vm5886, %v6538, %v6540
  %v6551 = vsel %vm5886, %v6542, %v6544
  %v6552 = vsel %vm5886, %v6546, %v6548
  %6561 = vrot.lane.b32.xlu0 %v5415, 117
  %v6562 = vpop.permute.xlu0 %6561
  %6563 = vrot.lane.b32.xlu0 %v5417, 117
  %v6564 = vpop.permute.xlu0 %6563
  %6565 = vrot.lane.b32.xlu0 %v5421, 117
  %v6566 = vpop.permute.xlu0 %6565
  %6567 = vrot.lane.b32.xlu0 %v5423, 117
  %v6568 = vpop.permute.xlu0 %6567
  %6569 = vrot.lane.b32.xlu0 %v5427, 117
  %v6570 = vpop.permute.xlu0 %6569
  %6571 = vrot.lane.b32.xlu0 %v5429, 117
  %v6572 = vpop.permute.xlu0 %6571
  %6573 = vrot.lane.b32.xlu0 %v5433, 117
  %v6574 = vpop.permute.xlu0 %6573
  %6575 = vrot.lane.b32.xlu0 %v5435, 117
  %v6576 = vpop.permute.xlu0 %6575
  %v6577 = vsel %vm5915, %v6562, %v6564
  %v6578 = vsel %vm5915, %v6566, %v6568
  %v6579 = vsel %vm5915, %v6570, %v6572
  %v6580 = vsel %vm5915, %v6574, %v6576
  %6589 = vrot.lane.b32.xlu0 %v5415, 116
  %v6590 = vpop.permute.xlu0 %6589
  %6591 = vrot.lane.b32.xlu0 %v5417, 116
  %v6592 = vpop.permute.xlu0 %6591
  %6593 = vrot.lane.b32.xlu0 %v5421, 116
  %v6594 = vpop.permute.xlu0 %6593
  %6595 = vrot.lane.b32.xlu0 %v5423, 116
  %v6596 = vpop.permute.xlu0 %6595
  %6597 = vrot.lane.b32.xlu0 %v5427, 116
  %v6598 = vpop.permute.xlu0 %6597
  %6599 = vrot.lane.b32.xlu0 %v5429, 116
  %v6600 = vpop.permute.xlu0 %6599
  %6601 = vrot.lane.b32.xlu0 %v5433, 116
  %v6602 = vpop.permute.xlu0 %6601
  %6603 = vrot.lane.b32.xlu0 %v5435, 116
  %v6604 = vpop.permute.xlu0 %6603
  %v6605 = vsel %vm5944, %v6590, %v6592
  %v6606 = vsel %vm5944, %v6594, %v6596
  %v6607 = vsel %vm5944, %v6598, %v6600
  %v6608 = vsel %vm5944, %v6602, %v6604
  %6617 = vrot.lane.b32.xlu0 %v5415, 115
  %v6618 = vpop.permute.xlu0 %6617
  %6619 = vrot.lane.b32.xlu0 %v5417, 115
  %v6620 = vpop.permute.xlu0 %6619
  %6621 = vrot.lane.b32.xlu0 %v5421, 115
  %v6622 = vpop.permute.xlu0 %6621
  %6623 = vrot.lane.b32.xlu0 %v5423, 115
  %v6624 = vpop.permute.xlu0 %6623
  %6625 = vrot.lane.b32.xlu0 %v5427, 115
  %v6626 = vpop.permute.xlu0 %6625
  %6627 = vrot.lane.b32.xlu0 %v5429, 115
  %v6628 = vpop.permute.xlu0 %6627
  %6629 = vrot.lane.b32.xlu0 %v5433, 115
  %v6630 = vpop.permute.xlu0 %6629
  %6631 = vrot.lane.b32.xlu0 %v5435, 115
  %v6632 = vpop.permute.xlu0 %6631
  %v6633 = vsel %vm5973, %v6618, %v6620
  %v6634 = vsel %vm5973, %v6622, %v6624
  %v6635 = vsel %vm5973, %v6626, %v6628
  %v6636 = vsel %vm5973, %v6630, %v6632
  %6645 = vrot.lane.b32.xlu0 %v5415, 114
  %v6646 = vpop.permute.xlu0 %6645
  %6647 = vrot.lane.b32.xlu0 %v5417, 114
  %v6648 = vpop.permute.xlu0 %6647
  %6649 = vrot.lane.b32.xlu0 %v5421, 114
  %v6650 = vpop.permute.xlu0 %6649
  %6651 = vrot.lane.b32.xlu0 %v5423, 114
  %v6652 = vpop.permute.xlu0 %6651
  %6653 = vrot.lane.b32.xlu0 %v5427, 114
  %v6654 = vpop.permute.xlu0 %6653
  %6655 = vrot.lane.b32.xlu0 %v5429, 114
  %v6656 = vpop.permute.xlu0 %6655
  %6657 = vrot.lane.b32.xlu0 %v5433, 114
  %v6658 = vpop.permute.xlu0 %6657
  %6659 = vrot.lane.b32.xlu0 %v5435, 114
  %v6660 = vpop.permute.xlu0 %6659
  %v6661 = vsel %vm6002, %v6646, %v6648
  %v6662 = vsel %vm6002, %v6650, %v6652
  %v6663 = vsel %vm6002, %v6654, %v6656
  %v6664 = vsel %vm6002, %v6658, %v6660
  %6673 = vmatprep.subr.mxu0 %v5417
  %6674 = vmatpush1.msra.mxu0 %v5415
  %6675 = vmatprep.subr.mxu0 %v5423
  %6676 = vmatpush1.msra.mxu0 %v5421
  %6677 = vmatprep.subr.mxu0 %v5429
  %6678 = vmatpush1.msra.mxu0 %v5427
  %6679 = vmatprep.subr.mxu0 %v5435
  %6680 = vmatpush1.msra.mxu0 %v5433
  %6681 = vmatprep.subr.mxu0 %v6284
  %6682 = vmatpush1.msra.mxu0 %v6297
  %6683 = vmatprep.subr.mxu0 %v6288
  %6684 = vmatpush1.msra.mxu0 %v6298
  %6685 = vmatprep.subr.mxu0 %v6292
  %6686 = vmatpush1.msra.mxu0 %v6299
  %6687 = vmatprep.subr.mxu0 %v6296
  %6688 = vmatpush1.msra.mxu0 %v6300
  %6689 = vmatprep.subr.mxu0 %v6312
  %6690 = vmatpush1.msra.mxu0 %v6325
  %6691 = vmatprep.subr.mxu0 %v6316
  %6692 = vmatpush1.msra.mxu0 %v6326
  %6693 = vmatprep.subr.mxu0 %v6320
  %6694 = vmatpush1.msra.mxu0 %v6327
  %6695 = vmatprep.subr.mxu0 %v6324
  %6696 = vmatpush1.msra.mxu0 %v6328
  %6697 = vmatprep.subr.mxu0 %v6340
  %6698 = vmatpush1.msra.mxu0 %v6353
  %6699 = vmatprep.subr.mxu0 %v6344
  %6700 = vmatpush1.msra.mxu0 %v6354
  %6701 = vmatprep.subr.mxu0 %v6348
  %6702 = vmatpush1.msra.mxu0 %v6355
  %6703 = vmatprep.subr.mxu0 %v6352
  %6704 = vmatpush1.msra.mxu0 %v6356
  %6705 = vmatprep.subr.mxu0 %v6368
  %6706 = vmatpush1.msra.mxu0 %v6381
  %6707 = vmatprep.subr.mxu0 %v6372
  %6708 = vmatpush1.msra.mxu0 %v6382
  %6709 = vmatprep.subr.mxu0 %v6376
  %6710 = vmatpush1.msra.mxu0 %v6383
  %6711 = vmatprep.subr.mxu0 %v6380
  %6712 = vmatpush1.msra.mxu0 %v6384
  %6713 = vmatprep.subr.mxu0 %v6396
  %6714 = vmatpush1.msra.mxu0 %v6409
  %6715 = vmatprep.subr.mxu0 %v6400
  %6716 = vmatpush1.msra.mxu0 %v6410
  %6717 = vmatprep.subr.mxu0 %v6404
  %6718 = vmatpush1.msra.mxu0 %v6411
  %6719 = vmatprep.subr.mxu0 %v6408
  %6720 = vmatpush1.msra.mxu0 %v6412
  %6721 = vmatprep.subr.mxu0 %v6424
  %6722 = vmatpush1.msra.mxu0 %v6437
  %6723 = vmatprep.subr.mxu0 %v6428
  %6724 = vmatpush1.msra.mxu0 %v6438
  %6725 = vmatprep.subr.mxu0 %v6432
  %6726 = vmatpush1.msra.mxu0 %v6439
  %6727 = vmatprep.subr.mxu0 %v6436
  %6728 = vmatpush1.msra.mxu0 %v6440
  %6729 = vmatprep.subr.mxu0 %v6452
  %6730 = vmatpush1.msra.mxu0 %v6465
  %6731 = vmatprep.subr.mxu0 %v6456
  %6732 = vmatpush1.msra.mxu0 %v6466
  %6733 = vmatprep.subr.mxu0 %v6460
  %6734 = vmatpush1.msra.mxu0 %v6467
  %6735 = vmatprep.subr.mxu0 %v6464
  %6736 = vmatpush1.msra.mxu0 %v6468
  %6737 = vmatprep.mubr.f32.mxu0 %v5582
  %6738 = vmatmul.mubr.f32.gmra.mrb[0].mxu0 %v5581
  %v6739 = vpop.f32.mrb[0].mxu0
  %v6740 = vadd.f32 %v6018, %v6739
  %v6741 = vpop.f32.mrb[0].mxu0
  %v6742 = vadd.f32 %v6018, %v6741
  %6743 = vmatprep.mubr.f32.mxu0 %v5586
  %6744 = vmatmul.mubr.f32.gmra.mrb[0].mxu0 %v5585
  %v6745 = vpop.f32.mrb[0].mxu0
  %v6746 = vadd.f32 %v6023, %v6745
  %v6747 = vpop.f32.mrb[0].mxu0
  %v6748 = vadd.f32 %v6023, %v6747
  %6749 = vmatprep.mubr.f32.mxu0 %v5590
  %6750 = vmatmul.mubr.f32.gmra.mrb[0].mxu0 %v5589
  %v6751 = vpop.f32.mrb[0].mxu0
  %v6752 = vadd.f32 %v6028, %v6751
  %v6753 = vpop.f32.mrb[0].mxu0
  %v6754 = vadd.f32 %v6028, %v6753
  %6755 = vmatprep.mubr.f32.mxu0 %v5594
  %6756 = vmatmul.mubr.f32.gmra.mrb[0].mxu0 %v5593
  %v6757 = vpop.f32.mrb[0].mxu0
  %v6758 = vadd.f32 %v6033, %v6757
  %v6759 = vpop.f32.mrb[0].mxu0
  %v6760 = vadd.f32 %v6033, %v6759
  %6761 = vdwg.mxu0
  %6762 = vmatprep.subr.mxu0 %v6480
  %6763 = vmatpush1.msra.mxu0 %v6493
  %6764 = vmatprep.subr.mxu0 %v6484
  %6765 = vmatpush1.msra.mxu0 %v6494
  %6766 = vmatprep.subr.mxu0 %v6488
  %6767 = vmatpush1.msra.mxu0 %v6495
  %6768 = vmatprep.subr.mxu0 %v6492
  %6769 = vmatpush1.msra.mxu0 %v6496
  %6770 = vmatprep.subr.mxu0 %v6508
  %6771 = vmatpush1.msra.mxu0 %v6521
  %6772 = vmatprep.subr.mxu0 %v6512
  %6773 = vmatpush1.msra.mxu0 %v6522
  %6774 = vmatprep.subr.mxu0 %v6516
  %6775 = vmatpush1.msra.mxu0 %v6523
  %6776 = vmatprep.subr.mxu0 %v6520
  %6777 = vmatpush1.msra.mxu0 %v6524
  %6778 = vmatprep.subr.mxu0 %v6536
  %6779 = vmatpush1.msra.mxu0 %v6549
  %6780 = vmatprep.subr.mxu0 %v6540
  %6781 = vmatpush1.msra.mxu0 %v6550
  %6782 = vmatprep.subr.mxu0 %v6544
  %6783 = vmatpush1.msra.mxu0 %v6551
  %6784 = vmatprep.subr.mxu0 %v6548
  %6785 = vmatpush1.msra.mxu0 %v6552
  %6786 = vmatprep.subr.mxu0 %v6564
  %6787 = vmatpush1.msra.mxu0 %v6577
  %6788 = vmatprep.subr.mxu0 %v6568
  %6789 = vmatpush1.msra.mxu0 %v6578
  %6790 = vmatprep.subr.mxu0 %v6572
  %6791 = vmatpush1.msra.mxu0 %v6579
  %6792 = vmatprep.subr.mxu0 %v6576
  %6793 = vmatpush1.msra.mxu0 %v6580
  %6794 = vmatprep.subr.mxu0 %v6592
  %6795 = vmatpush1.msra.mxu0 %v6605
  %6796 = vmatprep.subr.mxu0 %v6596
  %6797 = vmatpush1.msra.mxu0 %v6606
  %6798 = vmatprep.subr.mxu0 %v6600
  %6799 = vmatpush1.msra.mxu0 %v6607
  %6800 = vmatprep.subr.mxu0 %v6604
  %6801 = vmatpush1.msra.mxu0 %v6608
  %6802 = vmatprep.subr.mxu0 %v6620
  %6803 = vmatpush1.msra.mxu0 %v6633
  %6804 = vmatprep.subr.mxu0 %v6624
  %6805 = vmatpush1.msra.mxu0 %v6634
  %6806 = vmatprep.subr.mxu0 %v6628
  %6807 = vmatpush1.msra.mxu0 %v6635
  %6808 = vmatprep.subr.mxu0 %v6632
  %6809 = vmatpush1.msra.mxu0 %v6636
  %6810 = vmatprep.subr.mxu0 %v6648
  %6811 = vmatpush1.msra.mxu0 %v6661
  %6812 = vmatprep.subr.mxu0 %v6652
  %6813 = vmatpush1.msra.mxu0 %v6662
  %6814 = vmatprep.subr.mxu0 %v6656
  %6815 = vmatpush1.msra.mxu0 %v6663
  %6816 = vmatprep.subr.mxu0 %v6660
  %6817 = vmatpush1.msra.mxu0 %v6664
  %6818 = vmatprep.subr.mxu0 0.0
  %6819 = vmatpush1.msra.mxu0 0.0
  %6820 = vmatprep.subr.mxu0 0.0
  %6821 = vmatpush1.msra.mxu0 0.0
  %6822 = vmatprep.subr.mxu0 0.0
  %6823 = vmatpush1.msra.mxu0 0.0
  %6824 = vmatprep.subr.mxu0 0.0
  %6825 = vmatpush1.msra.mxu0 0.0
  %6826 = vmatprep.mubr.f32.mxu0 %v6036
  %6827 = vmatmul.mubr.f32.gmra.mrb[0].mxu0 %v5583
  %v6828 = vpop.f32.mrb[0].mxu0
  %v6829 = vadd.f32 %v6740, %v6828
  %v6830 = vpop.f32.mrb[0].mxu0
  %v6831 = vadd.f32 %v6742, %v6830
  %6832 = vmatprep.mubr.f32.mxu0 %v6039
  %6833 = vmatmul.mubr.f32.gmra.mrb[0].mxu0 %v5587
  %v6834 = vpop.f32.mrb[0].mxu0
  %v6835 = vadd.f32 %v6746, %v6834
  %v6836 = vpop.f32.mrb[0].mxu0
  %v6837 = vadd.f32 %v6748, %v6836
  %6838 = vmatprep.mubr.f32.mxu0 %v6042
  %6839 = vmatmul.mubr.f32.gmra.mrb[0].mxu0 %v5591
  %v6840 = vpop.f32.mrb[0].mxu0
  %v6841 = vadd.f32 %v6752, %v6840
  %v6842 = vpop.f32.mrb[0].mxu0
  %v6843 = vadd.f32 %v6754, %v6842
  %6844 = vmatprep.mubr.f32.mxu0 %v6045
  %6845 = vmatmul.mubr.f32.gmra.mrb[0].mxu0 %v5595
  %v6846 = vpop.f32.mrb[0].mxu0
  %v6847 = vadd.f32 %v6758, %v6846
  %v6848 = vpop.f32.mrb[0].mxu0
  %v6849 = vadd.f32 %v6760, %v6848
  %6850 = vdwg.mxu0
  %vm6851 = vcmp.gt.f32.partialorder %v6829, 0.0
  %vm6852 = vcmp.gt.f32.partialorder %v6831, 0.0
  %vm6853 = vcmp.gt.f32.partialorder %v6835, 0.0
  %vm6854 = vcmp.gt.f32.partialorder %v6837, 0.0
  %vm6855 = vcmp.gt.f32.partialorder %v6841, 0.0
  %vm6856 = vcmp.gt.f32.partialorder %v6843, 0.0
  %vm6857 = vcmp.gt.f32.partialorder %v6847, 0.0
  %vm6858 = vcmp.gt.f32.partialorder %v6849, 0.0
  %v6859 = vmin.f32 %v6829, 0.0
  %v6860 = vmin.f32 %v6831, 0.0
  %v6861 = vmin.f32 %v6835, 0.0
  %v6862 = vmin.f32 %v6837, 0.0
  %v6863 = vmin.f32 %v6841, 0.0
  %v6864 = vmin.f32 %v6843, 0.0
  %v6865 = vmin.f32 %v6847, 0.0
  %v6866 = vmin.f32 %v6849, 0.0
  %v6867 = vmul.f32 %v6859, 1.442695
  %v6868 = vpow.pop %v6867
  %v6869 = vmul.f32 %v6860, 1.442695
  %v6870 = vpow.pop %v6869
  %v6871 = vmul.f32 %v6861, 1.442695
  %v6872 = vpow.pop %v6871
  %v6873 = vmul.f32 %v6862, 1.442695
  %v6874 = vpow.pop %v6873
  %v6875 = vmul.f32 %v6863, 1.442695
  %v6876 = vpow.pop %v6875
  %v6877 = vmul.f32 %v6864, 1.442695
  %v6878 = vpow.pop %v6877
  %v6879 = vmul.f32 %v6865, 1.442695
  %v6880 = vpow.pop %v6879
  %v6881 = vmul.f32 %v6866, 1.442695
  %v6882 = vpow.pop %v6881
  %v6883 = vsub.f32 %v6868, 1.0
  %v6884 = vsub.f32 %v6870, 1.0
  %v6885 = vsub.f32 %v6872, 1.0
  %v6886 = vsub.f32 %v6874, 1.0
  %v6887 = vsub.f32 %v6876, 1.0
  %v6888 = vsub.f32 %v6878, 1.0
  %v6889 = vsub.f32 %v6880, 1.0
  %v6890 = vsub.f32 %v6882, 1.0
  %v6891 = vsel %vm6851, %v6829, %v6883
  %v6892 = vsel %vm6852, %v6831, %v6884
  %v6893 = vsel %vm6853, %v6835, %v6885
  %v6894 = vsel %vm6854, %v6837, %v6886
  %v6895 = vsel %vm6855, %v6841, %v6887
  %v6896 = vsel %vm6856, %v6843, %v6888
  %v6897 = vsel %vm6857, %v6847, %v6889
  %v6898 = vsel %vm6858, %v6849, %v6890
  %6907 = vrot.lane.b32.xlu0 %v5439, 127
  %v6908 = vpop.permute.xlu0 %6907
  %6909 = vrot.lane.b32.xlu0 %v5441, 127
  %v6910 = vpop.permute.xlu0 %6909
  %6911 = vrot.lane.b32.xlu0 %v5445, 127
  %v6912 = vpop.permute.xlu0 %6911
  %6913 = vrot.lane.b32.xlu0 %v5447, 127
  %v6914 = vpop.permute.xlu0 %6913
  %6915 = vrot.lane.b32.xlu0 %v5451, 127
  %v6916 = vpop.permute.xlu0 %6915
  %6917 = vrot.lane.b32.xlu0 %v5453, 127
  %v6918 = vpop.permute.xlu0 %6917
  %6919 = vrot.lane.b32.xlu0 %v5457, 127
  %v6920 = vpop.permute.xlu0 %6919
  %6921 = vrot.lane.b32.xlu0 %v5459, 127
  %v6922 = vpop.permute.xlu0 %6921
  %v6923 = vsel %vm5625, %v6908, %v6910
  %v6924 = vsel %vm5625, %v6912, %v6914
  %v6925 = vsel %vm5625, %v6916, %v6918
  %v6926 = vsel %vm5625, %v6920, %v6922
  %6935 = vrot.lane.b32.xlu0 %v5439, 126
  %v6936 = vpop.permute.xlu0 %6935
  %6937 = vrot.lane.b32.xlu0 %v5441, 126
  %v6938 = vpop.permute.xlu0 %6937
  %6939 = vrot.lane.b32.xlu0 %v5445, 126
  %v6940 = vpop.permute.xlu0 %6939
  %6941 = vrot.lane.b32.xlu0 %v5447, 126
  %v6942 = vpop.permute.xlu0 %6941
  %6943 = vrot.lane.b32.xlu0 %v5451, 126
  %v6944 = vpop.permute.xlu0 %6943
  %6945 = vrot.lane.b32.xlu0 %v5453, 126
  %v6946 = vpop.permute.xlu0 %6945
  %6947 = vrot.lane.b32.xlu0 %v5457, 126
  %v6948 = vpop.permute.xlu0 %6947
  %6949 = vrot.lane.b32.xlu0 %v5459, 126
  %v6950 = vpop.permute.xlu0 %6949
  %v6951 = vsel %vm5654, %v6936, %v6938
  %v6952 = vsel %vm5654, %v6940, %v6942
  %v6953 = vsel %vm5654, %v6944, %v6946
  %v6954 = vsel %vm5654, %v6948, %v6950
  %6963 = vrot.lane.b32.xlu0 %v5439, 125
  %v6964 = vpop.permute.xlu0 %6963
  %6965 = vrot.lane.b32.xlu0 %v5441, 125
  %v6966 = vpop.permute.xlu0 %6965
  %6967 = vrot.lane.b32.xlu0 %v5445, 125
  %v6968 = vpop.permute.xlu0 %6967
  %6969 = vrot.lane.b32.xlu0 %v5447, 125
  %v6970 = vpop.permute.xlu0 %6969
  %6971 = vrot.lane.b32.xlu0 %v5451, 125
  %v6972 = vpop.permute.xlu0 %6971
  %6973 = vrot.lane.b32.xlu0 %v5453, 125
  %v6974 = vpop.permute.xlu0 %6973
  %6975 = vrot.lane.b32.xlu0 %v5457, 125
  %v6976 = vpop.permute.xlu0 %6975
  %6977 = vrot.lane.b32.xlu0 %v5459, 125
  %v6978 = vpop.permute.xlu0 %6977
  %v6979 = vsel %vm5683, %v6964, %v6966
  %v6980 = vsel %vm5683, %v6968, %v6970
  %v6981 = vsel %vm5683, %v6972, %v6974
  %v6982 = vsel %vm5683, %v6976, %v6978
  %6991 = vrot.lane.b32.xlu0 %v5439, 124
  %v6992 = vpop.permute.xlu0 %6991
  %6993 = vrot.lane.b32.xlu0 %v5441, 124
  %v6994 = vpop.permute.xlu0 %6993
  %6995 = vrot.lane.b32.xlu0 %v5445, 124
  %v6996 = vpop.permute.xlu0 %6995
  %6997 = vrot.lane.b32.xlu0 %v5447, 124
  %v6998 = vpop.permute.xlu0 %6997
  %6999 = vrot.lane.b32.xlu0 %v5451, 124
  %v7000 = vpop.permute.xlu0 %6999
  %7001 = vrot.lane.b32.xlu0 %v5453, 124
  %v7002 = vpop.permute.xlu0 %7001
  %7003 = vrot.lane.b32.xlu0 %v5457, 124
  %v7004 = vpop.permute.xlu0 %7003
  %7005 = vrot.lane.b32.xlu0 %v5459, 124
  %v7006 = vpop.permute.xlu0 %7005
  %v7007 = vsel %vm5712, %v6992, %v6994
  %v7008 = vsel %vm5712, %v6996, %v6998
  %v7009 = vsel %vm5712, %v7000, %v7002
  %v7010 = vsel %vm5712, %v7004, %v7006
  %7019 = vrot.lane.b32.xlu0 %v5439, 123
  %v7020 = vpop.permute.xlu0 %7019
  %7021 = vrot.lane.b32.xlu0 %v5441, 123
  %v7022 = vpop.permute.xlu0 %7021
  %7023 = vrot.lane.b32.xlu0 %v5445, 123
  %v7024 = vpop.permute.xlu0 %7023
  %7025 = vrot.lane.b32.xlu0 %v5447, 123
  %v7026 = vpop.permute.xlu0 %7025
  %7027 = vrot.lane.b32.xlu0 %v5451, 123
  %v7028 = vpop.permute.xlu0 %7027
  %7029 = vrot.lane.b32.xlu0 %v5453, 123
  %v7030 = vpop.permute.xlu0 %7029
  %7031 = vrot.lane.b32.xlu0 %v5457, 123
  %v7032 = vpop.permute.xlu0 %7031
  %7033 = vrot.lane.b32.xlu0 %v5459, 123
  %v7034 = vpop.permute.xlu0 %7033
  %v7035 = vsel %vm5741, %v7020, %v7022
  %v7036 = vsel %vm5741, %v7024, %v7026
  %v7037 = vsel %vm5741, %v7028, %v7030
  %v7038 = vsel %vm5741, %v7032, %v7034
  %7047 = vrot.lane.b32.xlu0 %v5439, 122
  %v7048 = vpop.permute.xlu0 %7047
  %7049 = vrot.lane.b32.xlu0 %v5441, 122
  %v7050 = vpop.permute.xlu0 %7049
  %7051 = vrot.lane.b32.xlu0 %v5445, 122
  %v7052 = vpop.permute.xlu0 %7051
  %7053 = vrot.lane.b32.xlu0 %v5447, 122
  %v7054 = vpop.permute.xlu0 %7053
  %7055 = vrot.lane.b32.xlu0 %v5451, 122
  %v7056 = vpop.permute.xlu0 %7055
  %7057 = vrot.lane.b32.xlu0 %v5453, 122
  %v7058 = vpop.permute.xlu0 %7057
  %7059 = vrot.lane.b32.xlu0 %v5457, 122
  %v7060 = vpop.permute.xlu0 %7059
  %7061 = vrot.lane.b32.xlu0 %v5459, 122
  %v7062 = vpop.permute.xlu0 %7061
  %v7063 = vsel %vm5770, %v7048, %v7050
  %v7064 = vsel %vm5770, %v7052, %v7054
  %v7065 = vsel %vm5770, %v7056, %v7058
  %v7066 = vsel %vm5770, %v7060, %v7062
  %7075 = vrot.lane.b32.xlu0 %v5439, 121
  %v7076 = vpop.permute.xlu0 %7075
  %7077 = vrot.lane.b32.xlu0 %v5441, 121
  %v7078 = vpop.permute.xlu0 %7077
  %7079 = vrot.lane.b32.xlu0 %v5445, 121
  %v7080 = vpop.permute.xlu0 %7079
  %7081 = vrot.lane.b32.xlu0 %v5447, 121
  %v7082 = vpop.permute.xlu0 %7081
  %7083 = vrot.lane.b32.xlu0 %v5451, 121
  %v7084 = vpop.permute.xlu0 %7083
  %7085 = vrot.lane.b32.xlu0 %v5453, 121
  %v7086 = vpop.permute.xlu0 %7085
  %7087 = vrot.lane.b32.xlu0 %v5457, 121
  %v7088 = vpop.permute.xlu0 %7087
  %7089 = vrot.lane.b32.xlu0 %v5459, 121
  %v7090 = vpop.permute.xlu0 %7089
  %v7091 = vsel %vm5799, %v7076, %v7078
  %v7092 = vsel %vm5799, %v7080, %v7082
  %v7093 = vsel %vm5799, %v7084, %v7086
  %v7094 = vsel %vm5799, %v7088, %v7090
  %7103 = vrot.lane.b32.xlu0 %v5439, 120
  %v7104 = vpop.permute.xlu0 %7103
  %7105 = vrot.lane.b32.xlu0 %v5441, 120
  %v7106 = vpop.permute.xlu0 %7105
  %7107 = vrot.lane.b32.xlu0 %v5445, 120
  %v7108 = vpop.permute.xlu0 %7107
  %7109 = vrot.lane.b32.xlu0 %v5447, 120
  %v7110 = vpop.permute.xlu0 %7109
  %7111 = vrot.lane.b32.xlu0 %v5451, 120
  %v7112 = vpop.permute.xlu0 %7111
  %7113 = vrot.lane.b32.xlu0 %v5453, 120
  %v7114 = vpop.permute.xlu0 %7113
  %7115 = vrot.lane.b32.xlu0 %v5457, 120
  %v7116 = vpop.permute.xlu0 %7115
  %7117 = vrot.lane.b32.xlu0 %v5459, 120
  %v7118 = vpop.permute.xlu0 %7117
  %v7119 = vsel %vm5828, %v7104, %v7106
  %v7120 = vsel %vm5828, %v7108, %v7110
  %v7121 = vsel %vm5828, %v7112, %v7114
  %v7122 = vsel %vm5828, %v7116, %v7118
  %7131 = vrot.lane.b32.xlu0 %v5439, 119
  %v7132 = vpop.permute.xlu0 %7131
  %7133 = vrot.lane.b32.xlu0 %v5441, 119
  %v7134 = vpop.permute.xlu0 %7133
  %7135 = vrot.lane.b32.xlu0 %v5445, 119
  %v7136 = vpop.permute.xlu0 %7135
  %7137 = vrot.lane.b32.xlu0 %v5447, 119
  %v7138 = vpop.permute.xlu0 %7137
  %7139 = vrot.lane.b32.xlu0 %v5451, 119
  %v7140 = vpop.permute.xlu0 %7139
  %7141 = vrot.lane.b32.xlu0 %v5453, 119
  %v7142 = vpop.permute.xlu0 %7141
  %7143 = vrot.lane.b32.xlu0 %v5457, 119
  %v7144 = vpop.permute.xlu0 %7143
  %7145 = vrot.lane.b32.xlu0 %v5459, 119
  %v7146 = vpop.permute.xlu0 %7145
  %v7147 = vsel %vm5857, %v7132, %v7134
  %v7148 = vsel %vm5857, %v7136, %v7138
  %v7149 = vsel %vm5857, %v7140, %v7142
  %v7150 = vsel %vm5857, %v7144, %v7146
  %7159 = vrot.lane.b32.xlu0 %v5439, 118
  %v7160 = vpop.permute.xlu0 %7159
  %7161 = vrot.lane.b32.xlu0 %v5441, 118
  %v7162 = vpop.permute.xlu0 %7161
  %7163 = vrot.lane.b32.xlu0 %v5445, 118
  %v7164 = vpop.permute.xlu0 %7163
  %7165 = vrot.lane.b32.xlu0 %v5447, 118
  %v7166 = vpop.permute.xlu0 %7165
  %7167 = vrot.lane.b32.xlu0 %v5451, 118
  %v7168 = vpop.permute.xlu0 %7167
  %7169 = vrot.lane.b32.xlu0 %v5453, 118
  %v7170 = vpop.permute.xlu0 %7169
  %7171 = vrot.lane.b32.xlu0 %v5457, 118
  %v7172 = vpop.permute.xlu0 %7171
  %7173 = vrot.lane.b32.xlu0 %v5459, 118
  %v7174 = vpop.permute.xlu0 %7173
  %v7175 = vsel %vm5886, %v7160, %v7162
  %v7176 = vsel %vm5886, %v7164, %v7166
  %v7177 = vsel %vm5886, %v7168, %v7170
  %v7178 = vsel %vm5886, %v7172, %v7174
  %7187 = vrot.lane.b32.xlu0 %v5439, 117
  %v7188 = vpop.permute.xlu0 %7187
  %7189 = vrot.lane.b32.xlu0 %v5441, 117
  %v7190 = vpop.permute.xlu0 %7189
  %7191 = vrot.lane.b32.xlu0 %v5445, 117
  %v7192 = vpop.permute.xlu0 %7191
  %7193 = vrot.lane.b32.xlu0 %v5447, 117
  %v7194 = vpop.permute.xlu0 %7193
  %7195 = vrot.lane.b32.xlu0 %v5451, 117
  %v7196 = vpop.permute.xlu0 %7195
  %7197 = vrot.lane.b32.xlu0 %v5453, 117
  %v7198 = vpop.permute.xlu0 %7197
  %7199 = vrot.lane.b32.xlu0 %v5457, 117
  %v7200 = vpop.permute.xlu0 %7199
  %7201 = vrot.lane.b32.xlu0 %v5459, 117
  %v7202 = vpop.permute.xlu0 %7201
  %v7203 = vsel %vm5915, %v7188, %v7190
  %v7204 = vsel %vm5915, %v7192, %v7194
  %v7205 = vsel %vm5915, %v7196, %v7198
  %v7206 = vsel %vm5915, %v7200, %v7202
  %7215 = vrot.lane.b32.xlu0 %v5439, 116
  %v7216 = vpop.permute.xlu0 %7215
  %7217 = vrot.lane.b32.xlu0 %v5441, 116
  %v7218 = vpop.permute.xlu0 %7217
  %7219 = vrot.lane.b32.xlu0 %v5445, 116
  %v7220 = vpop.permute.xlu0 %7219
  %7221 = vrot.lane.b32.xlu0 %v5447, 116
  %v7222 = vpop.permute.xlu0 %7221
  %7223 = vrot.lane.b32.xlu0 %v5451, 116
  %v7224 = vpop.permute.xlu0 %7223
  %7225 = vrot.lane.b32.xlu0 %v5453, 116
  %v7226 = vpop.permute.xlu0 %7225
  %7227 = vrot.lane.b32.xlu0 %v5457, 116
  %v7228 = vpop.permute.xlu0 %7227
  %7229 = vrot.lane.b32.xlu0 %v5459, 116
  %v7230 = vpop.permute.xlu0 %7229
  %v7231 = vsel %vm5944, %v7216, %v7218
  %v7232 = vsel %vm5944, %v7220, %v7222
  %v7233 = vsel %vm5944, %v7224, %v7226
  %v7234 = vsel %vm5944, %v7228, %v7230
  %7243 = vrot.lane.b32.xlu0 %v5439, 115
  %v7244 = vpop.permute.xlu0 %7243
  %7245 = vrot.lane.b32.xlu0 %v5441, 115
  %v7246 = vpop.permute.xlu0 %7245
  %7247 = vrot.lane.b32.xlu0 %v5445, 115
  %v7248 = vpop.permute.xlu0 %7247
  %7249 = vrot.lane.b32.xlu0 %v5447, 115
  %v7250 = vpop.permute.xlu0 %7249
  %7251 = vrot.lane.b32.xlu0 %v5451, 115
  %v7252 = vpop.permute.xlu0 %7251
  %7253 = vrot.lane.b32.xlu0 %v5453, 115
  %v7254 = vpop.permute.xlu0 %7253
  %7255 = vrot.lane.b32.xlu0 %v5457, 115
  %v7256 = vpop.permute.xlu0 %7255
  %7257 = vrot.lane.b32.xlu0 %v5459, 115
  %v7258 = vpop.permute.xlu0 %7257
  %v7259 = vsel %vm5973, %v7244, %v7246
  %v7260 = vsel %vm5973, %v7248, %v7250
  %v7261 = vsel %vm5973, %v7252, %v7254
  %v7262 = vsel %vm5973, %v7256, %v7258
  %7271 = vrot.lane.b32.xlu0 %v5439, 114
  %v7272 = vpop.permute.xlu0 %7271
  %7273 = vrot.lane.b32.xlu0 %v5441, 114
  %v7274 = vpop.permute.xlu0 %7273
  %7275 = vrot.lane.b32.xlu0 %v5445, 114
  %v7276 = vpop.permute.xlu0 %7275
  %7277 = vrot.lane.b32.xlu0 %v5447, 114
  %v7278 = vpop.permute.xlu0 %7277
  %7279 = vrot.lane.b32.xlu0 %v5451, 114
  %v7280 = vpop.permute.xlu0 %7279
  %7281 = vrot.lane.b32.xlu0 %v5453, 114
  %v7282 = vpop.permute.xlu0 %7281
  %7283 = vrot.lane.b32.xlu0 %v5457, 114
  %v7284 = vpop.permute.xlu0 %7283
  %7285 = vrot.lane.b32.xlu0 %v5459, 114
  %v7286 = vpop.permute.xlu0 %7285
  %v7287 = vsel %vm6002, %v7272, %v7274
  %v7288 = vsel %vm6002, %v7276, %v7278
  %v7289 = vsel %vm6002, %v7280, %v7282
  %v7290 = vsel %vm6002, %v7284, %v7286
  %7299 = vmatprep.subr.mxu0 %v5441
  %7300 = vmatpush1.msra.mxu0 %v5439
  %7301 = vmatprep.subr.mxu0 %v5447
  %7302 = vmatpush1.msra.mxu0 %v5445
  %7303 = vmatprep.subr.mxu0 %v5453
  %7304 = vmatpush1.msra.mxu0 %v5451
  %7305 = vmatprep.subr.mxu0 %v5459
  %7306 = vmatpush1.msra.mxu0 %v5457
  %7307 = vmatprep.subr.mxu0 %v6910
  %7308 = vmatpush1.msra.mxu0 %v6923
  %7309 = vmatprep.subr.mxu0 %v6914
  %7310 = vmatpush1.msra.mxu0 %v6924
  %7311 = vmatprep.subr.mxu0 %v6918
  %7312 = vmatpush1.msra.mxu0 %v6925
  %7313 = vmatprep.subr.mxu0 %v6922
  %7314 = vmatpush1.msra.mxu0 %v6926
  %7315 = vmatprep.subr.mxu0 %v6938
  %7316 = vmatpush1.msra.mxu0 %v6951
  %7317 = vmatprep.subr.mxu0 %v6942
  %7318 = vmatpush1.msra.mxu0 %v6952
  %7319 = vmatprep.subr.mxu0 %v6946
  %7320 = vmatpush1.msra.mxu0 %v6953
  %7321 = vmatprep.subr.mxu0 %v6950
  %7322 = vmatpush1.msra.mxu0 %v6954
  %7323 = vmatprep.subr.mxu0 %v6966
  %7324 = vmatpush1.msra.mxu0 %v6979
  %7325 = vmatprep.subr.mxu0 %v6970
  %7326 = vmatpush1.msra.mxu0 %v6980
  %7327 = vmatprep.subr.mxu0 %v6974
  %7328 = vmatpush1.msra.mxu0 %v6981
  %7329 = vmatprep.subr.mxu0 %v6978
  %7330 = vmatpush1.msra.mxu0 %v6982
  %7331 = vmatprep.subr.mxu0 %v6994
  %7332 = vmatpush1.msra.mxu0 %v7007
  %7333 = vmatprep.subr.mxu0 %v6998
  %7334 = vmatpush1.msra.mxu0 %v7008
  %7335 = vmatprep.subr.mxu0 %v7002
  %7336 = vmatpush1.msra.mxu0 %v7009
  %7337 = vmatprep.subr.mxu0 %v7006
  %7338 = vmatpush1.msra.mxu0 %v7010
  %7339 = vmatprep.subr.mxu0 %v7022
  %7340 = vmatpush1.msra.mxu0 %v7035
  %7341 = vmatprep.subr.mxu0 %v7026
  %7342 = vmatpush1.msra.mxu0 %v7036
  %7343 = vmatprep.subr.mxu0 %v7030
  %7344 = vmatpush1.msra.mxu0 %v7037
  %7345 = vmatprep.subr.mxu0 %v7034
  %7346 = vmatpush1.msra.mxu0 %v7038
  %7347 = vmatprep.subr.mxu0 %v7050
  %7348 = vmatpush1.msra.mxu0 %v7063
  %7349 = vmatprep.subr.mxu0 %v7054
  %7350 = vmatpush1.msra.mxu0 %v7064
  %7351 = vmatprep.subr.mxu0 %v7058
  %7352 = vmatpush1.msra.mxu0 %v7065
  %7353 = vmatprep.subr.mxu0 %v7062
  %7354 = vmatpush1.msra.mxu0 %v7066
  %7355 = vmatprep.subr.mxu0 %v7078
  %7356 = vmatpush1.msra.mxu0 %v7091
  %7357 = vmatprep.subr.mxu0 %v7082
  %7358 = vmatpush1.msra.mxu0 %v7092
  %7359 = vmatprep.subr.mxu0 %v7086
  %7360 = vmatpush1.msra.mxu0 %v7093
  %7361 = vmatprep.subr.mxu0 %v7090
  %7362 = vmatpush1.msra.mxu0 %v7094
  %7363 = vmatprep.mubr.f32.mxu0 %v5582
  %7364 = vmatmul.mubr.f32.gmra.mrb[0].mxu0 %v5581
  %v7365 = vpop.f32.mrb[0].mxu0
  %v7366 = vadd.f32 %v6018, %v7365
  %v7367 = vpop.f32.mrb[0].mxu0
  %v7368 = vadd.f32 %v6018, %v7367
  %7369 = vmatprep.mubr.f32.mxu0 %v5586
  %7370 = vmatmul.mubr.f32.gmra.mrb[0].mxu0 %v5585
  %v7371 = vpop.f32.mrb[0].mxu0
  %v7372 = vadd.f32 %v6023, %v7371
  %v7373 = vpop.f32.mrb[0].mxu0
  %v7374 = vadd.f32 %v6023, %v7373
  %7375 = vmatprep.mubr.f32.mxu0 %v5590
  %7376 = vmatmul.mubr.f32.gmra.mrb[0].mxu0 %v5589
  %v7377 = vpop.f32.mrb[0].mxu0
  %v7378 = vadd.f32 %v6028, %v7377
  %v7379 = vpop.f32.mrb[0].mxu0
  %v7380 = vadd.f32 %v6028, %v7379
  %7381 = vmatprep.mubr.f32.mxu0 %v5594
  %7382 = vmatmul.mubr.f32.gmra.mrb[0].mxu0 %v5593
  %v7383 = vpop.f32.mrb[0].mxu0
  %v7384 = vadd.f32 %v6033, %v7383
  %v7385 = vpop.f32.mrb[0].mxu0
  %v7386 = vadd.f32 %v6033, %v7385
  %7387 = vdwg.mxu0
  %7388 = vmatprep.subr.mxu0 %v7106
  %7389 = vmatpush1.msra.mxu0 %v7119
  %7390 = vmatprep.subr.mxu0 %v7110
  %7391 = vmatpush1.msra.mxu0 %v7120
  %7392 = vmatprep.subr.mxu0 %v7114
  %7393 = vmatpush1.msra.mxu0 %v7121
  %7394 = vmatprep.subr.mxu0 %v7118
  %7395 = vmatpush1.msra.mxu0 %v7122
  %7396 = vmatprep.subr.mxu0 %v7134
  %7397 = vmatpush1.msra.mxu0 %v7147
  %7398 = vmatprep.subr.mxu0 %v7138
  %7399 = vmatpush1.msra.mxu0 %v7148
  %7400 = vmatprep.subr.mxu0 %v7142
  %7401 = vmatpush1.msra.mxu0 %v7149
  %7402 = vmatprep.subr.mxu0 %v7146
  %7403 = vmatpush1.msra.mxu0 %v7150
  %7404 = vmatprep.subr.mxu0 %v7162
  %7405 = vmatpush1.msra.mxu0 %v7175
  %7406 = vmatprep.subr.mxu0 %v7166
  %7407 = vmatpush1.msra.mxu0 %v7176
  %7408 = vmatprep.subr.mxu0 %v7170
  %7409 = vmatpush1.msra.mxu0 %v7177
  %7410 = vmatprep.subr.mxu0 %v7174
  %7411 = vmatpush1.msra.mxu0 %v7178
  %7412 = vmatprep.subr.mxu0 %v7190
  %7413 = vmatpush1.msra.mxu0 %v7203
  %7414 = vmatprep.subr.mxu0 %v7194
  %7415 = vmatpush1.msra.mxu0 %v7204
  %7416 = vmatprep.subr.mxu0 %v7198
  %7417 = vmatpush1.msra.mxu0 %v7205
  %7418 = vmatprep.subr.mxu0 %v7202
  %7419 = vmatpush1.msra.mxu0 %v7206
  %7420 = vmatprep.subr.mxu0 %v7218
  %7421 = vmatpush1.msra.mxu0 %v7231
  %7422 = vmatprep.subr.mxu0 %v7222
  %7423 = vmatpush1.msra.mxu0 %v7232
  %7424 = vmatprep.subr.mxu0 %v7226
  %7425 = vmatpush1.msra.mxu0 %v7233
  %7426 = vmatprep.subr.mxu0 %v7230
  %7427 = vmatpush1.msra.mxu0 %v7234
  %7428 = vmatprep.subr.mxu0 %v7246
  %7429 = vmatpush1.msra.mxu0 %v7259
  %7430 = vmatprep.subr.mxu0 %v7250
  %7431 = vmatpush1.msra.mxu0 %v7260
  %7432 = vmatprep.subr.mxu0 %v7254
  %7433 = vmatpush1.msra.mxu0 %v7261
  %7434 = vmatprep.subr.mxu0 %v7258
  %7435 = vmatpush1.msra.mxu0 %v7262
  %7436 = vmatprep.subr.mxu0 %v7274
  %7437 = vmatpush1.msra.mxu0 %v7287
  %7438 = vmatprep.subr.mxu0 %v7278
  %7439 = vmatpush1.msra.mxu0 %v7288
  %7440 = vmatprep.subr.mxu0 %v7282
  %7441 = vmatpush1.msra.mxu0 %v7289
  %7442 = vmatprep.subr.mxu0 %v7286
  %7443 = vmatpush1.msra.mxu0 %v7290
  %7444 = vmatprep.subr.mxu0 0.0
  %7445 = vmatpush1.msra.mxu0 0.0
  %7446 = vmatprep.subr.mxu0 0.0
  %7447 = vmatpush1.msra.mxu0 0.0
  %7448 = vmatprep.subr.mxu0 0.0
  %7449 = vmatpush1.msra.mxu0 0.0
  %7450 = vmatprep.subr.mxu0 0.0
  %7451 = vmatpush1.msra.mxu0 0.0
  %7452 = vmatprep.mubr.f32.mxu0 %v6036
  %7453 = vmatmul.mubr.f32.gmra.mrb[0].mxu0 %v5583
  %v7454 = vpop.f32.mrb[0].mxu0
  %v7455 = vadd.f32 %v7366, %v7454
  %v7456 = vpop.f32.mrb[0].mxu0
  %v7457 = vadd.f32 %v7368, %v7456
  %7458 = vmatprep.mubr.f32.mxu0 %v6039
  %7459 = vmatmul.mubr.f32.gmra.mrb[0].mxu0 %v5587
  %v7460 = vpop.f32.mrb[0].mxu0
  %v7461 = vadd.f32 %v7372, %v7460
  %v7462 = vpop.f32.mrb[0].mxu0
  %v7463 = vadd.f32 %v7374, %v7462
  %7464 = vmatprep.mubr.f32.mxu0 %v6042
  %7465 = vmatmul.mubr.f32.gmra.mrb[0].mxu0 %v5591
  %v7466 = vpop.f32.mrb[0].mxu0
  %v7467 = vadd.f32 %v7378, %v7466
  %v7468 = vpop.f32.mrb[0].mxu0
  %v7469 = vadd.f32 %v7380, %v7468
  %7470 = vmatprep.mubr.f32.mxu0 %v6045
  %7471 = vmatmul.mubr.f32.gmra.mrb[0].mxu0 %v5595
  %v7472 = vpop.f32.mrb[0].mxu0
  %v7473 = vadd.f32 %v7384, %v7472
  %v7474 = vpop.f32.mrb[0].mxu0
  %v7475 = vadd.f32 %v7386, %v7474
  %7476 = vdwg.mxu0
  %vm7477 = vcmp.gt.f32.partialorder %v7455, 0.0
  %vm7478 = vcmp.gt.f32.partialorder %v7457, 0.0
  %vm7479 = vcmp.gt.f32.partialorder %v7461, 0.0
  %vm7480 = vcmp.gt.f32.partialorder %v7463, 0.0
  %vm7481 = vcmp.gt.f32.partialorder %v7467, 0.0
  %vm7482 = vcmp.gt.f32.partialorder %v7469, 0.0
  %vm7483 = vcmp.gt.f32.partialorder %v7473, 0.0
  %vm7484 = vcmp.gt.f32.partialorder %v7475, 0.0
  %v7485 = vmin.f32 %v7455, 0.0
  %v7486 = vmin.f32 %v7457, 0.0
  %v7487 = vmin.f32 %v7461, 0.0
  %v7488 = vmin.f32 %v7463, 0.0
  %v7489 = vmin.f32 %v7467, 0.0
  %v7490 = vmin.f32 %v7469, 0.0
  %v7491 = vmin.f32 %v7473, 0.0
  %v7492 = vmin.f32 %v7475, 0.0
  %v7493 = vmul.f32 %v7485, 1.442695
  %v7494 = vpow.pop %v7493
  %v7495 = vmul.f32 %v7486, 1.442695
  %v7496 = vpow.pop %v7495
  %v7497 = vmul.f32 %v7487, 1.442695
  %v7498 = vpow.pop %v7497
  %v7499 = vmul.f32 %v7488, 1.442695
  %v7500 = vpow.pop %v7499
  %v7501 = vmul.f32 %v7489, 1.442695
  %v7502 = vpow.pop %v7501
  %v7503 = vmul.f32 %v7490, 1.442695
  %v7504 = vpow.pop %v7503
  %v7505 = vmul.f32 %v7491, 1.442695
  %v7506 = vpow.pop %v7505
  %v7507 = vmul.f32 %v7492, 1.442695
  %v7508 = vpow.pop %v7507
  %v7509 = vsub.f32 %v7494, 1.0
  %v7510 = vsub.f32 %v7496, 1.0
  %v7511 = vsub.f32 %v7498, 1.0
  %v7512 = vsub.f32 %v7500, 1.0
  %v7513 = vsub.f32 %v7502, 1.0
  %v7514 = vsub.f32 %v7504, 1.0
  %v7515 = vsub.f32 %v7506, 1.0
  %v7516 = vsub.f32 %v7508, 1.0
  %v7517 = vsel %vm7477, %v7455, %v7509
  %v7518 = vsel %vm7478, %v7457, %v7510
  %v7519 = vsel %vm7479, %v7461, %v7511
  %v7520 = vsel %vm7480, %v7463, %v7512
  %v7521 = vsel %vm7481, %v7467, %v7513
  %v7522 = vsel %vm7482, %v7469, %v7514
  %v7523 = vsel %vm7483, %v7473, %v7515
  %v7524 = vsel %vm7484, %v7475, %v7516
  %7533 = vrot.lane.b32.xlu0 %v5463, 127
  %v7534 = vpop.permute.xlu0 %7533
  %7535 = vrot.lane.b32.xlu0 %v5465, 127
  %v7536 = vpop.permute.xlu0 %7535
  %7537 = vrot.lane.b32.xlu0 %v5469, 127
  %v7538 = vpop.permute.xlu0 %7537
  %7539 = vrot.lane.b32.xlu0 %v5471, 127
  %v7540 = vpop.permute.xlu0 %7539
  %7541 = vrot.lane.b32.xlu0 %v5475, 127
  %v7542 = vpop.permute.xlu0 %7541
  %7543 = vrot.lane.b32.xlu0 %v5477, 127
  %v7544 = vpop.permute.xlu0 %7543
  %7545 = vrot.lane.b32.xlu0 %v5481, 127
  %v7546 = vpop.permute.xlu0 %7545
  %7547 = vrot.lane.b32.xlu0 %v5483, 127
  %v7548 = vpop.permute.xlu0 %7547
  %v7549 = vsel %vm5625, %v7534, %v7536
  %v7550 = vsel %vm5625, %v7538, %v7540
  %v7551 = vsel %vm5625, %v7542, %v7544
  %v7552 = vsel %vm5625, %v7546, %v7548
  %7561 = vrot.lane.b32.xlu0 %v5463, 126
  %v7562 = vpop.permute.xlu0 %7561
  %7563 = vrot.lane.b32.xlu0 %v5465, 126
  %v7564 = vpop.permute.xlu0 %7563
  %7565 = vrot.lane.b32.xlu0 %v5469, 126
  %v7566 = vpop.permute.xlu0 %7565
  %7567 = vrot.lane.b32.xlu0 %v5471, 126
  %v7568 = vpop.permute.xlu0 %7567
  %7569 = vrot.lane.b32.xlu0 %v5475, 126
  %v7570 = vpop.permute.xlu0 %7569
  %7571 = vrot.lane.b32.xlu0 %v5477, 126
  %v7572 = vpop.permute.xlu0 %7571
  %7573 = vrot.lane.b32.xlu0 %v5481, 126
  %v7574 = vpop.permute.xlu0 %7573
  %7575 = vrot.lane.b32.xlu0 %v5483, 126
  %v7576 = vpop.permute.xlu0 %7575
  %v7577 = vsel %vm5654, %v7562, %v7564
  %v7578 = vsel %vm5654, %v7566, %v7568
  %v7579 = vsel %vm5654, %v7570, %v7572
  %v7580 = vsel %vm5654, %v7574, %v7576
  %7589 = vrot.lane.b32.xlu0 %v5463, 125
  %v7590 = vpop.permute.xlu0 %7589
  %7591 = vrot.lane.b32.xlu0 %v5465, 125
  %v7592 = vpop.permute.xlu0 %7591
  %7593 = vrot.lane.b32.xlu0 %v5469, 125
  %v7594 = vpop.permute.xlu0 %7593
  %7595 = vrot.lane.b32.xlu0 %v5471, 125
  %v7596 = vpop.permute.xlu0 %7595
  %7597 = vrot.lane.b32.xlu0 %v5475, 125
  %v7598 = vpop.permute.xlu0 %7597
  %7599 = vrot.lane.b32.xlu0 %v5477, 125
  %v7600 = vpop.permute.xlu0 %7599
  %7601 = vrot.lane.b32.xlu0 %v5481, 125
  %v7602 = vpop.permute.xlu0 %7601
  %7603 = vrot.lane.b32.xlu0 %v5483, 125
  %v7604 = vpop.permute.xlu0 %7603
  %v7605 = vsel %vm5683, %v7590, %v7592
  %v7606 = vsel %vm5683, %v7594, %v7596
  %v7607 = vsel %vm5683, %v7598, %v7600
  %v7608 = vsel %vm5683, %v7602, %v7604
  %7617 = vrot.lane.b32.xlu0 %v5463, 124
  %v7618 = vpop.permute.xlu0 %7617
  %7619 = vrot.lane.b32.xlu0 %v5465, 124
  %v7620 = vpop.permute.xlu0 %7619
  %7621 = vrot.lane.b32.xlu0 %v5469, 124
  %v7622 = vpop.permute.xlu0 %7621
  %7623 = vrot.lane.b32.xlu0 %v5471, 124
  %v7624 = vpop.permute.xlu0 %7623
  %7625 = vrot.lane.b32.xlu0 %v5475, 124
  %v7626 = vpop.permute.xlu0 %7625
  %7627 = vrot.lane.b32.xlu0 %v5477, 124
  %v7628 = vpop.permute.xlu0 %7627
  %7629 = vrot.lane.b32.xlu0 %v5481, 124
  %v7630 = vpop.permute.xlu0 %7629
  %7631 = vrot.lane.b32.xlu0 %v5483, 124
  %v7632 = vpop.permute.xlu0 %7631
  %v7633 = vsel %vm5712, %v7618, %v7620
  %v7634 = vsel %vm5712, %v7622, %v7624
  %v7635 = vsel %vm5712, %v7626, %v7628
  %v7636 = vsel %vm5712, %v7630, %v7632
  %7645 = vrot.lane.b32.xlu0 %v5463, 123
  %v7646 = vpop.permute.xlu0 %7645
  %7647 = vrot.lane.b32.xlu0 %v5465, 123
  %v7648 = vpop.permute.xlu0 %7647
  %7649 = vrot.lane.b32.xlu0 %v5469, 123
  %v7650 = vpop.permute.xlu0 %7649
  %7651 = vrot.lane.b32.xlu0 %v5471, 123
  %v7652 = vpop.permute.xlu0 %7651
  %7653 = vrot.lane.b32.xlu0 %v5475, 123
  %v7654 = vpop.permute.xlu0 %7653
  %7655 = vrot.lane.b32.xlu0 %v5477, 123
  %v7656 = vpop.permute.xlu0 %7655
  %7657 = vrot.lane.b32.xlu0 %v5481, 123
  %v7658 = vpop.permute.xlu0 %7657
  %7659 = vrot.lane.b32.xlu0 %v5483, 123
  %v7660 = vpop.permute.xlu0 %7659
  %v7661 = vsel %vm5741, %v7646, %v7648
  %v7662 = vsel %vm5741, %v7650, %v7652
  %v7663 = vsel %vm5741, %v7654, %v7656
  %v7664 = vsel %vm5741, %v7658, %v7660
  %7673 = vrot.lane.b32.xlu0 %v5463, 122
  %v7674 = vpop.permute.xlu0 %7673
  %7675 = vrot.lane.b32.xlu0 %v5465, 122
  %v7676 = vpop.permute.xlu0 %7675
  %7677 = vrot.lane.b32.xlu0 %v5469, 122
  %v7678 = vpop.permute.xlu0 %7677
  %7679 = vrot.lane.b32.xlu0 %v5471, 122
  %v7680 = vpop.permute.xlu0 %7679
  %7681 = vrot.lane.b32.xlu0 %v5475, 122
  %v7682 = vpop.permute.xlu0 %7681
  %7683 = vrot.lane.b32.xlu0 %v5477, 122
  %v7684 = vpop.permute.xlu0 %7683
  %7685 = vrot.lane.b32.xlu0 %v5481, 122
  %v7686 = vpop.permute.xlu0 %7685
  %7687 = vrot.lane.b32.xlu0 %v5483, 122
  %v7688 = vpop.permute.xlu0 %7687
  %v7689 = vsel %vm5770, %v7674, %v7676
  %v7690 = vsel %vm5770, %v7678, %v7680
  %v7691 = vsel %vm5770, %v7682, %v7684
  %v7692 = vsel %vm5770, %v7686, %v7688
  %7701 = vrot.lane.b32.xlu0 %v5463, 121
  %v7702 = vpop.permute.xlu0 %7701
  %7703 = vrot.lane.b32.xlu0 %v5465, 121
  %v7704 = vpop.permute.xlu0 %7703
  %7705 = vrot.lane.b32.xlu0 %v5469, 121
  %v7706 = vpop.permute.xlu0 %7705
  %7707 = vrot.lane.b32.xlu0 %v5471, 121
  %v7708 = vpop.permute.xlu0 %7707
  %7709 = vrot.lane.b32.xlu0 %v5475, 121
  %v7710 = vpop.permute.xlu0 %7709
  %7711 = vrot.lane.b32.xlu0 %v5477, 121
  %v7712 = vpop.permute.xlu0 %7711
  %7713 = vrot.lane.b32.xlu0 %v5481, 121
  %v7714 = vpop.permute.xlu0 %7713
  %7715 = vrot.lane.b32.xlu0 %v5483, 121
  %v7716 = vpop.permute.xlu0 %7715
  %v7717 = vsel %vm5799, %v7702, %v7704
  %v7718 = vsel %vm5799, %v7706, %v7708
  %v7719 = vsel %vm5799, %v7710, %v7712
  %v7720 = vsel %vm5799, %v7714, %v7716
  %7729 = vrot.lane.b32.xlu0 %v5463, 120
  %v7730 = vpop.permute.xlu0 %7729
  %7731 = vrot.lane.b32.xlu0 %v5465, 120
  %v7732 = vpop.permute.xlu0 %7731
  %7733 = vrot.lane.b32.xlu0 %v5469, 120
  %v7734 = vpop.permute.xlu0 %7733
  %7735 = vrot.lane.b32.xlu0 %v5471, 120
  %v7736 = vpop.permute.xlu0 %7735
  %7737 = vrot.lane.b32.xlu0 %v5475, 120
  %v7738 = vpop.permute.xlu0 %7737
  %7739 = vrot.lane.b32.xlu0 %v5477, 120
  %v7740 = vpop.permute.xlu0 %7739
  %7741 = vrot.lane.b32.xlu0 %v5481, 120
  %v7742 = vpop.permute.xlu0 %7741
  %7743 = vrot.lane.b32.xlu0 %v5483, 120
  %v7744 = vpop.permute.xlu0 %7743
  %v7745 = vsel %vm5828, %v7730, %v7732
  %v7746 = vsel %vm5828, %v7734, %v7736
  %v7747 = vsel %vm5828, %v7738, %v7740
  %v7748 = vsel %vm5828, %v7742, %v7744
  %7757 = vrot.lane.b32.xlu0 %v5463, 119
  %v7758 = vpop.permute.xlu0 %7757
  %7759 = vrot.lane.b32.xlu0 %v5465, 119
  %v7760 = vpop.permute.xlu0 %7759
  %7761 = vrot.lane.b32.xlu0 %v5469, 119
  %v7762 = vpop.permute.xlu0 %7761
  %7763 = vrot.lane.b32.xlu0 %v5471, 119
  %v7764 = vpop.permute.xlu0 %7763
  %7765 = vrot.lane.b32.xlu0 %v5475, 119
  %v7766 = vpop.permute.xlu0 %7765
  %7767 = vrot.lane.b32.xlu0 %v5477, 119
  %v7768 = vpop.permute.xlu0 %7767
  %7769 = vrot.lane.b32.xlu0 %v5481, 119
  %v7770 = vpop.permute.xlu0 %7769
  %7771 = vrot.lane.b32.xlu0 %v5483, 119
  %v7772 = vpop.permute.xlu0 %7771
  %v7773 = vsel %vm5857, %v7758, %v7760
  %v7774 = vsel %vm5857, %v7762, %v7764
  %v7775 = vsel %vm5857, %v7766, %v7768
  %v7776 = vsel %vm5857, %v7770, %v7772
  %7785 = vrot.lane.b32.xlu0 %v5463, 118
  %v7786 = vpop.permute.xlu0 %7785
  %7787 = vrot.lane.b32.xlu0 %v5465, 118
  %v7788 = vpop.permute.xlu0 %7787
  %7789 = vrot.lane.b32.xlu0 %v5469, 118
  %v7790 = vpop.permute.xlu0 %7789
  %7791 = vrot.lane.b32.xlu0 %v5471, 118
  %v7792 = vpop.permute.xlu0 %7791
  %7793 = vrot.lane.b32.xlu0 %v5475, 118
  %v7794 = vpop.permute.xlu0 %7793
  %7795 = vrot.lane.b32.xlu0 %v5477, 118
  %v7796 = vpop.permute.xlu0 %7795
  %7797 = vrot.lane.b32.xlu0 %v5481, 118
  %v7798 = vpop.permute.xlu0 %7797
  %7799 = vrot.lane.b32.xlu0 %v5483, 118
  %v7800 = vpop.permute.xlu0 %7799
  %v7801 = vsel %vm5886, %v7786, %v7788
  %v7802 = vsel %vm5886, %v7790, %v7792
  %v7803 = vsel %vm5886, %v7794, %v7796
  %v7804 = vsel %vm5886, %v7798, %v7800
  %7813 = vrot.lane.b32.xlu0 %v5463, 117
  %v7814 = vpop.permute.xlu0 %7813
  %7815 = vrot.lane.b32.xlu0 %v5465, 117
  %v7816 = vpop.permute.xlu0 %7815
  %7817 = vrot.lane.b32.xlu0 %v5469, 117
  %v7818 = vpop.permute.xlu0 %7817
  %7819 = vrot.lane.b32.xlu0 %v5471, 117
  %v7820 = vpop.permute.xlu0 %7819
  %7821 = vrot.lane.b32.xlu0 %v5475, 117
  %v7822 = vpop.permute.xlu0 %7821
  %7823 = vrot.lane.b32.xlu0 %v5477, 117
  %v7824 = vpop.permute.xlu0 %7823
  %7825 = vrot.lane.b32.xlu0 %v5481, 117
  %v7826 = vpop.permute.xlu0 %7825
  %7827 = vrot.lane.b32.xlu0 %v5483, 117
  %v7828 = vpop.permute.xlu0 %7827
  %v7829 = vsel %vm5915, %v7814, %v7816
  %v7830 = vsel %vm5915, %v7818, %v7820
  %v7831 = vsel %vm5915, %v7822, %v7824
  %v7832 = vsel %vm5915, %v7826, %v7828
  %7841 = vrot.lane.b32.xlu0 %v5463, 116
  %v7842 = vpop.permute.xlu0 %7841
  %7843 = vrot.lane.b32.xlu0 %v5465, 116
  %v7844 = vpop.permute.xlu0 %7843
  %7845 = vrot.lane.b32.xlu0 %v5469, 116
  %v7846 = vpop.permute.xlu0 %7845
  %7847 = vrot.lane.b32.xlu0 %v5471, 116
  %v7848 = vpop.permute.xlu0 %7847
  %7849 = vrot.lane.b32.xlu0 %v5475, 116
  %v7850 = vpop.permute.xlu0 %7849
  %7851 = vrot.lane.b32.xlu0 %v5477, 116
  %v7852 = vpop.permute.xlu0 %7851
  %7853 = vrot.lane.b32.xlu0 %v5481, 116
  %v7854 = vpop.permute.xlu0 %7853
  %7855 = vrot.lane.b32.xlu0 %v5483, 116
  %v7856 = vpop.permute.xlu0 %7855
  %v7857 = vsel %vm5944, %v7842, %v7844
  %v7858 = vsel %vm5944, %v7846, %v7848
  %v7859 = vsel %vm5944, %v7850, %v7852
  %v7860 = vsel %vm5944, %v7854, %v7856
  %7869 = vrot.lane.b32.xlu0 %v5463, 115
  %v7870 = vpop.permute.xlu0 %7869
  %7871 = vrot.lane.b32.xlu0 %v5465, 115
  %v7872 = vpop.permute.xlu0 %7871
  %7873 = vrot.lane.b32.xlu0 %v5469, 115
  %v7874 = vpop.permute.xlu0 %7873
  %7875 = vrot.lane.b32.xlu0 %v5471, 115
  %v7876 = vpop.permute.xlu0 %7875
  %7877 = vrot.lane.b32.xlu0 %v5475, 115
  %v7878 = vpop.permute.xlu0 %7877
  %7879 = vrot.lane.b32.xlu0 %v5477, 115
  %v7880 = vpop.permute.xlu0 %7879
  %7881 = vrot.lane.b32.xlu0 %v5481, 115
  %v7882 = vpop.permute.xlu0 %7881
  %7883 = vrot.lane.b32.xlu0 %v5483, 115
  %v7884 = vpop.permute.xlu0 %7883
  %v7885 = vsel %vm5973, %v7870, %v7872
  %v7886 = vsel %vm5973, %v7874, %v7876
  %v7887 = vsel %vm5973, %v7878, %v7880
  %v7888 = vsel %vm5973, %v7882, %v7884
  %7897 = vrot.lane.b32.xlu0 %v5463, 114
  %v7898 = vpop.permute.xlu0 %7897
  %7899 = vrot.lane.b32.xlu0 %v5465, 114
  %v7900 = vpop.permute.xlu0 %7899
  %7901 = vrot.lane.b32.xlu0 %v5469, 114
  %v7902 = vpop.permute.xlu0 %7901
  %7903 = vrot.lane.b32.xlu0 %v5471, 114
  %v7904 = vpop.permute.xlu0 %7903
  %7905 = vrot.lane.b32.xlu0 %v5475, 114
  %v7906 = vpop.permute.xlu0 %7905
  %7907 = vrot.lane.b32.xlu0 %v5477, 114
  %v7908 = vpop.permute.xlu0 %7907
  %7909 = vrot.lane.b32.xlu0 %v5481, 114
  %v7910 = vpop.permute.xlu0 %7909
  %7911 = vrot.lane.b32.xlu0 %v5483, 114
  %v7912 = vpop.permute.xlu0 %7911
  %v7913 = vsel %vm6002, %v7898, %v7900
  %v7914 = vsel %vm6002, %v7902, %v7904
  %v7915 = vsel %vm6002, %v7906, %v7908
  %v7916 = vsel %vm6002, %v7910, %v7912
  %7925 = vmatprep.subr.mxu0 %v5465
  %7926 = vmatpush1.msra.mxu0 %v5463
  %7927 = vmatprep.subr.mxu0 %v5471
  %7928 = vmatpush1.msra.mxu0 %v5469
  %7929 = vmatprep.subr.mxu0 %v5477
  %7930 = vmatpush1.msra.mxu0 %v5475
  %7931 = vmatprep.subr.mxu0 %v5483
  %7932 = vmatpush1.msra.mxu0 %v5481
  %7933 = vmatprep.subr.mxu0 %v7536
  %7934 = vmatpush1.msra.mxu0 %v7549
  %7935 = vmatprep.subr.mxu0 %v7540
  %7936 = vmatpush1.msra.mxu0 %v7550
  %7937 = vmatprep.subr.mxu0 %v7544
  %7938 = vmatpush1.msra.mxu0 %v7551
  %7939 = vmatprep.subr.mxu0 %v7548
  %7940 = vmatpush1.msra.mxu0 %v7552
  %7941 = vmatprep.subr.mxu0 %v7564
  %7942 = vmatpush1.msra.mxu0 %v7577
  %7943 = vmatprep.subr.mxu0 %v7568
  %7944 = vmatpush1.msra.mxu0 %v7578
  %7945 = vmatprep.subr.mxu0 %v7572
  %7946 = vmatpush1.msra.mxu0 %v7579
  %7947 = vmatprep.subr.mxu0 %v7576
  %7948 = vmatpush1.msra.mxu0 %v7580
  %7949 = vmatprep.subr.mxu0 %v7592
  %7950 = vmatpush1.msra.mxu0 %v7605
  %7951 = vmatprep.subr.mxu0 %v7596
  %7952 = vmatpush1.msra.mxu0 %v7606
  %7953 = vmatprep.subr.mxu0 %v7600
  %7954 = vmatpush1.msra.mxu0 %v7607
  %7955 = vmatprep.subr.mxu0 %v7604
  %7956 = vmatpush1.msra.mxu0 %v7608
  %7957 = vmatprep.subr.mxu0 %v7620
  %7958 = vmatpush1.msra.mxu0 %v7633
  %7959 = vmatprep.subr.mxu0 %v7624
  %7960 = vmatpush1.msra.mxu0 %v7634
  %7961 = vmatprep.subr.mxu0 %v7628
  %7962 = vmatpush1.msra.mxu0 %v7635
  %7963 = vmatprep.subr.mxu0 %v7632
  %7964 = vmatpush1.msra.mxu0 %v7636
  %7965 = vmatprep.subr.mxu0 %v7648
  %7966 = vmatpush1.msra.mxu0 %v7661
  %7967 = vmatprep.subr.mxu0 %v7652
  %7968 = vmatpush1.msra.mxu0 %v7662
  %7969 = vmatprep.subr.mxu0 %v7656
  %7970 = vmatpush1.msra.mxu0 %v7663
  %7971 = vmatprep.subr.mxu0 %v7660
  %7972 = vmatpush1.msra.mxu0 %v7664
  %7973 = vmatprep.subr.mxu0 %v7676
  %7974 = vmatpush1.msra.mxu0 %v7689
  %7975 = vmatprep.subr.mxu0 %v7680
  %7976 = vmatpush1.msra.mxu0 %v7690
  %7977 = vmatprep.subr.mxu0 %v7684
  %7978 = vmatpush1.msra.mxu0 %v7691
  %7979 = vmatprep.subr.mxu0 %v7688
  %7980 = vmatpush1.msra.mxu0 %v7692
  %7981 = vmatprep.subr.mxu0 %v7704
  %7982 = vmatpush1.msra.mxu0 %v7717
  %7983 = vmatprep.subr.mxu0 %v7708
  %7984 = vmatpush1.msra.mxu0 %v7718
  %7985 = vmatprep.subr.mxu0 %v7712
  %7986 = vmatpush1.msra.mxu0 %v7719
  %7987 = vmatprep.subr.mxu0 %v7716
  %7988 = vmatpush1.msra.mxu0 %v7720
  %7989 = vmatprep.mubr.f32.mxu0 %v5582
  %7990 = vmatmul.mubr.f32.gmra.mrb[0].mxu0 %v5581
  %v7991 = vpop.f32.mrb[0].mxu0
  %v7992 = vadd.f32 %v6018, %v7991
  %v7993 = vpop.f32.mrb[0].mxu0
  %v7994 = vadd.f32 %v6018, %v7993
  %7995 = vmatprep.mubr.f32.mxu0 %v5586
  %7996 = vmatmul.mubr.f32.gmra.mrb[0].mxu0 %v5585
  %v7997 = vpop.f32.mrb[0].mxu0
  %v7998 = vadd.f32 %v6023, %v7997
  %v7999 = vpop.f32.mrb[0].mxu0
  %v8000 = vadd.f32 %v6023, %v7999
  %8001 = vmatprep.mubr.f32.mxu0 %v5590
  %8002 = vmatmul.mubr.f32.gmra.mrb[0].mxu0 %v5589
  %v8003 = vpop.f32.mrb[0].mxu0
  %v8004 = vadd.f32 %v6028, %v8003
  %v8005 = vpop.f32.mrb[0].mxu0
  %v8006 = vadd.f32 %v6028, %v8005
  %8007 = vmatprep.mubr.f32.mxu0 %v5594
  %8008 = vmatmul.mubr.f32.gmra.mrb[0].mxu0 %v5593
  %v8009 = vpop.f32.mrb[0].mxu0
  %v8010 = vadd.f32 %v6033, %v8009
  %v8011 = vpop.f32.mrb[0].mxu0
  %v8012 = vadd.f32 %v6033, %v8011
  %8013 = vdwg.mxu0
  %8014 = vmatprep.subr.mxu0 %v7732
  %8015 = vmatpush1.msra.mxu0 %v7745
  %8016 = vmatprep.subr.mxu0 %v7736
  %8017 = vmatpush1.msra.mxu0 %v7746
  %8018 = vmatprep.subr.mxu0 %v7740
  %8019 = vmatpush1.msra.mxu0 %v7747
  %8020 = vmatprep.subr.mxu0 %v7744
  %8021 = vmatpush1.msra.mxu0 %v7748
  %8022 = vmatprep.subr.mxu0 %v7760
  %8023 = vmatpush1.msra.mxu0 %v7773
  %8024 = vmatprep.subr.mxu0 %v7764
  %8025 = vmatpush1.msra.mxu0 %v7774
  %8026 = vmatprep.subr.mxu0 %v7768
  %8027 = vmatpush1.msra.mxu0 %v7775
  %8028 = vmatprep.subr.mxu0 %v7772
  %8029 = vmatpush1.msra.mxu0 %v7776
  %8030 = vmatprep.subr.mxu0 %v7788
  %8031 = vmatpush1.msra.mxu0 %v7801
  %8032 = vmatprep.subr.mxu0 %v7792
  %8033 = vmatpush1.msra.mxu0 %v7802
  %8034 = vmatprep.subr.mxu0 %v7796
  %8035 = vmatpush1.msra.mxu0 %v7803
  %8036 = vmatprep.subr.mxu0 %v7800
  %8037 = vmatpush1.msra.mxu0 %v7804
  %8038 = vmatprep.subr.mxu0 %v7816
  %8039 = vmatpush1.msra.mxu0 %v7829
  %8040 = vmatprep.subr.mxu0 %v7820
  %8041 = vmatpush1.msra.mxu0 %v7830
  %8042 = vmatprep.subr.mxu0 %v7824
  %8043 = vmatpush1.msra.mxu0 %v7831
  %8044 = vmatprep.subr.mxu0 %v7828
  %8045 = vmatpush1.msra.mxu0 %v7832
  %8046 = vmatprep.subr.mxu0 %v7844
  %8047 = vmatpush1.msra.mxu0 %v7857
  %8048 = vmatprep.subr.mxu0 %v7848
  %8049 = vmatpush1.msra.mxu0 %v7858
  %8050 = vmatprep.subr.mxu0 %v7852
  %8051 = vmatpush1.msra.mxu0 %v7859
  %8052 = vmatprep.subr.mxu0 %v7856
  %8053 = vmatpush1.msra.mxu0 %v7860
  %8054 = vmatprep.subr.mxu0 %v7872
  %8055 = vmatpush1.msra.mxu0 %v7885
  %8056 = vmatprep.subr.mxu0 %v7876
  %8057 = vmatpush1.msra.mxu0 %v7886
  %8058 = vmatprep.subr.mxu0 %v7880
  %8059 = vmatpush1.msra.mxu0 %v7887
  %8060 = vmatprep.subr.mxu0 %v7884
  %8061 = vmatpush1.msra.mxu0 %v7888
  %8062 = vmatprep.subr.mxu0 %v7900
  %8063 = vmatpush1.msra.mxu0 %v7913
  %8064 = vmatprep.subr.mxu0 %v7904
  %8065 = vmatpush1.msra.mxu0 %v7914
  %8066 = vmatprep.subr.mxu0 %v7908
  %8067 = vmatpush1.msra.mxu0 %v7915
  %8068 = vmatprep.subr.mxu0 %v7912
  %8069 = vmatpush1.msra.mxu0 %v7916
  %8070 = vmatprep.subr.mxu0 0.0
  %8071 = vmatpush1.msra.mxu0 0.0
  %8072 = vmatprep.subr.mxu0 0.0
  %8073 = vmatpush1.msra.mxu0 0.0
  %8074 = vmatprep.subr.mxu0 0.0
  %8075 = vmatpush1.msra.mxu0 0.0
  %8076 = vmatprep.subr.mxu0 0.0
  %8077 = vmatpush1.msra.mxu0 0.0
  %8078 = vmatprep.mubr.f32.mxu0 %v6036
  %8079 = vmatmul.mubr.f32.gmra.mrb[0].mxu0 %v5583
  %v8080 = vpop.f32.mrb[0].mxu0
  %v8081 = vadd.f32 %v7992, %v8080
  %v8082 = vpop.f32.mrb[0].mxu0
  %v8083 = vadd.f32 %v7994, %v8082
  %8084 = vmatprep.mubr.f32.mxu0 %v6039
  %8085 = vmatmul.mubr.f32.gmra.mrb[0].mxu0 %v5587
  %v8086 = vpop.f32.mrb[0].mxu0
  %v8087 = vadd.f32 %v7998, %v8086
  %v8088 = vpop.f32.mrb[0].mxu0
  %v8089 = vadd.f32 %v8000, %v8088
  %8090 = vmatprep.mubr.f32.mxu0 %v6042
  %8091 = vmatmul.mubr.f32.gmra.mrb[0].mxu0 %v5591
  %v8092 = vpop.f32.mrb[0].mxu0
  %v8093 = vadd.f32 %v8004, %v8092
  %v8094 = vpop.f32.mrb[0].mxu0
  %v8095 = vadd.f32 %v8006, %v8094
  %8096 = vmatprep.mubr.f32.mxu0 %v6045
  %8097 = vmatmul.mubr.f32.gmra.mrb[0].mxu0 %v5595
  %v8098 = vpop.f32.mrb[0].mxu0
  %v8099 = vadd.f32 %v8010, %v8098
  %v8100 = vpop.f32.mrb[0].mxu0
  %v8101 = vadd.f32 %v8012, %v8100
  %8102 = vdwg.mxu0
  %vm8103 = vcmp.gt.f32.partialorder %v8081, 0.0
  %vm8104 = vcmp.gt.f32.partialorder %v8083, 0.0
  %vm8105 = vcmp.gt.f32.partialorder %v8087, 0.0
  %vm8106 = vcmp.gt.f32.partialorder %v8089, 0.0
  %vm8107 = vcmp.gt.f32.partialorder %v8093, 0.0
  %vm8108 = vcmp.gt.f32.partialorder %v8095, 0.0
  %vm8109 = vcmp.gt.f32.partialorder %v8099, 0.0
  %vm8110 = vcmp.gt.f32.partialorder %v8101, 0.0
  %v8111 = vmin.f32 %v8081, 0.0
  %v8112 = vmin.f32 %v8083, 0.0
  %v8113 = vmin.f32 %v8087, 0.0
  %v8114 = vmin.f32 %v8089, 0.0
  %v8115 = vmin.f32 %v8093, 0.0
  %v8116 = vmin.f32 %v8095, 0.0
  %v8117 = vmin.f32 %v8099, 0.0
  %v8118 = vmin.f32 %v8101, 0.0
  %v8119 = vmul.f32 %v8111, 1.442695
  %v8120 = vpow.pop %v8119
  %v8121 = vmul.f32 %v8112, 1.442695
  %v8122 = vpow.pop %v8121
  %v8123 = vmul.f32 %v8113, 1.442695
  %v8124 = vpow.pop %v8123
  %v8125 = vmul.f32 %v8114, 1.442695
  %v8126 = vpow.pop %v8125
  %v8127 = vmul.f32 %v8115, 1.442695
  %v8128 = vpow.pop %v8127
  %v8129 = vmul.f32 %v8116, 1.442695
  %v8130 = vpow.pop %v8129
  %v8131 = vmul.f32 %v8117, 1.442695
  %v8132 = vpow.pop %v8131
  %v8133 = vmul.f32 %v8118, 1.442695
  %v8134 = vpow.pop %v8133
  %v8135 = vsub.f32 %v8120, 1.0
  %v8136 = vsub.f32 %v8122, 1.0
  %v8137 = vsub.f32 %v8124, 1.0
  %v8138 = vsub.f32 %v8126, 1.0
  %v8139 = vsub.f32 %v8128, 1.0
  %v8140 = vsub.f32 %v8130, 1.0
  %v8141 = vsub.f32 %v8132, 1.0
  %v8142 = vsub.f32 %v8134, 1.0
  %v8143 = vsel %vm8103, %v8081, %v8135
  %v8144 = vsel %vm8104, %v8083, %v8136
  %v8145 = vsel %vm8105, %v8087, %v8137
  %v8146 = vsel %vm8106, %v8089, %v8138
  %v8147 = vsel %vm8107, %v8093, %v8139
  %v8148 = vsel %vm8108, %v8095, %v8140
  %v8149 = vsel %vm8109, %v8099, %v8141
  %v8150 = vsel %vm8110, %v8101, %v8142
  %8159 = vrot.lane.b32.xlu0 %v5487, 127
  %v8160 = vpop.permute.xlu0 %8159
  %8161 = vrot.lane.b32.xlu0 %v5489, 127
  %v8162 = vpop.permute.xlu0 %8161
  %8163 = vrot.lane.b32.xlu0 %v5493, 127
  %v8164 = vpop.permute.xlu0 %8163
  %8165 = vrot.lane.b32.xlu0 %v5495, 127
  %v8166 = vpop.permute.xlu0 %8165
  %8167 = vrot.lane.b32.xlu0 %v5499, 127
  %v8168 = vpop.permute.xlu0 %8167
  %8169 = vrot.lane.b32.xlu0 %v5501, 127
  %v8170 = vpop.permute.xlu0 %8169
  %8171 = vrot.lane.b32.xlu0 %v5505, 127
  %v8172 = vpop.permute.xlu0 %8171
  %8173 = vrot.lane.b32.xlu0 %v5507, 127
  %v8174 = vpop.permute.xlu0 %8173
  %v8175 = vsel %vm5625, %v8160, %v8162
  %v8176 = vsel %vm5625, %v8164, %v8166
  %v8177 = vsel %vm5625, %v8168, %v8170
  %v8178 = vsel %vm5625, %v8172, %v8174
  %8187 = vrot.lane.b32.xlu0 %v5487, 126
  %v8188 = vpop.permute.xlu0 %8187
  %8189 = vrot.lane.b32.xlu0 %v5489, 126
  %v8190 = vpop.permute.xlu0 %8189
  %8191 = vrot.lane.b32.xlu0 %v5493, 126
  %v8192 = vpop.permute.xlu0 %8191
  %8193 = vrot.lane.b32.xlu0 %v5495, 126
  %v8194 = vpop.permute.xlu0 %8193
  %8195 = vrot.lane.b32.xlu0 %v5499, 126
  %v8196 = vpop.permute.xlu0 %8195
  %8197 = vrot.lane.b32.xlu0 %v5501, 126
  %v8198 = vpop.permute.xlu0 %8197
  %8199 = vrot.lane.b32.xlu0 %v5505, 126
  %v8200 = vpop.permute.xlu0 %8199
  %8201 = vrot.lane.b32.xlu0 %v5507, 126
  %v8202 = vpop.permute.xlu0 %8201
  %v8203 = vsel %vm5654, %v8188, %v8190
  %v8204 = vsel %vm5654, %v8192, %v8194
  %v8205 = vsel %vm5654, %v8196, %v8198
  %v8206 = vsel %vm5654, %v8200, %v8202
  %8215 = vrot.lane.b32.xlu0 %v5487, 125
  %v8216 = vpop.permute.xlu0 %8215
  %8217 = vrot.lane.b32.xlu0 %v5489, 125
  %v8218 = vpop.permute.xlu0 %8217
  %8219 = vrot.lane.b32.xlu0 %v5493, 125
  %v8220 = vpop.permute.xlu0 %8219
  %8221 = vrot.lane.b32.xlu0 %v5495, 125
  %v8222 = vpop.permute.xlu0 %8221
  %8223 = vrot.lane.b32.xlu0 %v5499, 125
  %v8224 = vpop.permute.xlu0 %8223
  %8225 = vrot.lane.b32.xlu0 %v5501, 125
  %v8226 = vpop.permute.xlu0 %8225
  %8227 = vrot.lane.b32.xlu0 %v5505, 125
  %v8228 = vpop.permute.xlu0 %8227
  %8229 = vrot.lane.b32.xlu0 %v5507, 125
  %v8230 = vpop.permute.xlu0 %8229
  %v8231 = vsel %vm5683, %v8216, %v8218
  %v8232 = vsel %vm5683, %v8220, %v8222
  %v8233 = vsel %vm5683, %v8224, %v8226
  %v8234 = vsel %vm5683, %v8228, %v8230
  %8243 = vrot.lane.b32.xlu0 %v5487, 124
  %v8244 = vpop.permute.xlu0 %8243
  %8245 = vrot.lane.b32.xlu0 %v5489, 124
  %v8246 = vpop.permute.xlu0 %8245
  %8247 = vrot.lane.b32.xlu0 %v5493, 124
  %v8248 = vpop.permute.xlu0 %8247
  %8249 = vrot.lane.b32.xlu0 %v5495, 124
  %v8250 = vpop.permute.xlu0 %8249
  %8251 = vrot.lane.b32.xlu0 %v5499, 124
  %v8252 = vpop.permute.xlu0 %8251
  %8253 = vrot.lane.b32.xlu0 %v5501, 124
  %v8254 = vpop.permute.xlu0 %8253
  %8255 = vrot.lane.b32.xlu0 %v5505, 124
  %v8256 = vpop.permute.xlu0 %8255
  %8257 = vrot.lane.b32.xlu0 %v5507, 124
  %v8258 = vpop.permute.xlu0 %8257
  %v8259 = vsel %vm5712, %v8244, %v8246
  %v8260 = vsel %vm5712, %v8248, %v8250
  %v8261 = vsel %vm5712, %v8252, %v8254
  %v8262 = vsel %vm5712, %v8256, %v8258
  %8271 = vrot.lane.b32.xlu0 %v5487, 123
  %v8272 = vpop.permute.xlu0 %8271
  %8273 = vrot.lane.b32.xlu0 %v5489, 123
  %v8274 = vpop.permute.xlu0 %8273
  %8275 = vrot.lane.b32.xlu0 %v5493, 123
  %v8276 = vpop.permute.xlu0 %8275
  %8277 = vrot.lane.b32.xlu0 %v5495, 123
  %v8278 = vpop.permute.xlu0 %8277
  %8279 = vrot.lane.b32.xlu0 %v5499, 123
  %v8280 = vpop.permute.xlu0 %8279
  %8281 = vrot.lane.b32.xlu0 %v5501, 123
  %v8282 = vpop.permute.xlu0 %8281
  %8283 = vrot.lane.b32.xlu0 %v5505, 123
  %v8284 = vpop.permute.xlu0 %8283
  %8285 = vrot.lane.b32.xlu0 %v5507, 123
  %v8286 = vpop.permute.xlu0 %8285
  %v8287 = vsel %vm5741, %v8272, %v8274
  %v8288 = vsel %vm5741, %v8276, %v8278
  %v8289 = vsel %vm5741, %v8280, %v8282
  %v8290 = vsel %vm5741, %v8284, %v8286
  %8299 = vrot.lane.b32.xlu0 %v5487, 122
  %v8300 = vpop.permute.xlu0 %8299
  %8301 = vrot.lane.b32.xlu0 %v5489, 122
  %v8302 = vpop.permute.xlu0 %8301
  %8303 = vrot.lane.b32.xlu0 %v5493, 122
  %v8304 = vpop.permute.xlu0 %8303
  %8305 = vrot.lane.b32.xlu0 %v5495, 122
  %v8306 = vpop.permute.xlu0 %8305
  %8307 = vrot.lane.b32.xlu0 %v5499, 122
  %v8308 = vpop.permute.xlu0 %8307
  %8309 = vrot.lane.b32.xlu0 %v5501, 122
  %v8310 = vpop.permute.xlu0 %8309
  %8311 = vrot.lane.b32.xlu0 %v5505, 122
  %v8312 = vpop.permute.xlu0 %8311
  %8313 = vrot.lane.b32.xlu0 %v5507, 122
  %v8314 = vpop.permute.xlu0 %8313
  %v8315 = vsel %vm5770, %v8300, %v8302
  %v8316 = vsel %vm5770, %v8304, %v8306
  %v8317 = vsel %vm5770, %v8308, %v8310
  %v8318 = vsel %vm5770, %v8312, %v8314
  %8327 = vrot.lane.b32.xlu0 %v5487, 121
  %v8328 = vpop.permute.xlu0 %8327
  %8329 = vrot.lane.b32.xlu0 %v5489, 121
  %v8330 = vpop.permute.xlu0 %8329
  %8331 = vrot.lane.b32.xlu0 %v5493, 121
  %v8332 = vpop.permute.xlu0 %8331
  %8333 = vrot.lane.b32.xlu0 %v5495, 121
  %v8334 = vpop.permute.xlu0 %8333
  %8335 = vrot.lane.b32.xlu0 %v5499, 121
  %v8336 = vpop.permute.xlu0 %8335
  %8337 = vrot.lane.b32.xlu0 %v5501, 121
  %v8338 = vpop.permute.xlu0 %8337
  %8339 = vrot.lane.b32.xlu0 %v5505, 121
  %v8340 = vpop.permute.xlu0 %8339
  %8341 = vrot.lane.b32.xlu0 %v5507, 121
  %v8342 = vpop.permute.xlu0 %8341
  %v8343 = vsel %vm5799, %v8328, %v8330
  %v8344 = vsel %vm5799, %v8332, %v8334
  %v8345 = vsel %vm5799, %v8336, %v8338
  %v8346 = vsel %vm5799, %v8340, %v8342
  %8355 = vrot.lane.b32.xlu0 %v5487, 120
  %v8356 = vpop.permute.xlu0 %8355
  %8357 = vrot.lane.b32.xlu0 %v5489, 120
  %v8358 = vpop.permute.xlu0 %8357
  %8359 = vrot.lane.b32.xlu0 %v5493, 120
  %v8360 = vpop.permute.xlu0 %8359
  %8361 = vrot.lane.b32.xlu0 %v5495, 120
  %v8362 = vpop.permute.xlu0 %8361
  %8363 = vrot.lane.b32.xlu0 %v5499, 120
  %v8364 = vpop.permute.xlu0 %8363
  %8365 = vrot.lane.b32.xlu0 %v5501, 120
  %v8366 = vpop.permute.xlu0 %8365
  %8367 = vrot.lane.b32.xlu0 %v5505, 120
  %v8368 = vpop.permute.xlu0 %8367
  %8369 = vrot.lane.b32.xlu0 %v5507, 120
  %v8370 = vpop.permute.xlu0 %8369
  %v8371 = vsel %vm5828, %v8356, %v8358
  %v8372 = vsel %vm5828, %v8360, %v8362
  %v8373 = vsel %vm5828, %v8364, %v8366
  %v8374 = vsel %vm5828, %v8368, %v8370
  %8383 = vrot.lane.b32.xlu0 %v5487, 119
  %v8384 = vpop.permute.xlu0 %8383
  %8385 = vrot.lane.b32.xlu0 %v5489, 119
  %v8386 = vpop.permute.xlu0 %8385
  %8387 = vrot.lane.b32.xlu0 %v5493, 119
  %v8388 = vpop.permute.xlu0 %8387
  %8389 = vrot.lane.b32.xlu0 %v5495, 119
  %v8390 = vpop.permute.xlu0 %8389
  %8391 = vrot.lane.b32.xlu0 %v5499, 119
  %v8392 = vpop.permute.xlu0 %8391
  %8393 = vrot.lane.b32.xlu0 %v5501, 119
  %v8394 = vpop.permute.xlu0 %8393
  %8395 = vrot.lane.b32.xlu0 %v5505, 119
  %v8396 = vpop.permute.xlu0 %8395
  %8397 = vrot.lane.b32.xlu0 %v5507, 119
  %v8398 = vpop.permute.xlu0 %8397
  %v8399 = vsel %vm5857, %v8384, %v8386
  %v8400 = vsel %vm5857, %v8388, %v8390
  %v8401 = vsel %vm5857, %v8392, %v8394
  %v8402 = vsel %vm5857, %v8396, %v8398
  %8411 = vrot.lane.b32.xlu0 %v5487, 118
  %v8412 = vpop.permute.xlu0 %8411
  %8413 = vrot.lane.b32.xlu0 %v5489, 118
  %v8414 = vpop.permute.xlu0 %8413
  %8415 = vrot.lane.b32.xlu0 %v5493, 118
  %v8416 = vpop.permute.xlu0 %8415
  %8417 = vrot.lane.b32.xlu0 %v5495, 118
  %v8418 = vpop.permute.xlu0 %8417
  %8419 = vrot.lane.b32.xlu0 %v5499, 118
  %v8420 = vpop.permute.xlu0 %8419
  %8421 = vrot.lane.b32.xlu0 %v5501, 118
  %v8422 = vpop.permute.xlu0 %8421
  %8423 = vrot.lane.b32.xlu0 %v5505, 118
  %v8424 = vpop.permute.xlu0 %8423
  %8425 = vrot.lane.b32.xlu0 %v5507, 118
  %v8426 = vpop.permute.xlu0 %8425
  %v8427 = vsel %vm5886, %v8412, %v8414
  %v8428 = vsel %vm5886, %v8416, %v8418
  %v8429 = vsel %vm5886, %v8420, %v8422
  %v8430 = vsel %vm5886, %v8424, %v8426
  %8439 = vrot.lane.b32.xlu0 %v5487, 117
  %v8440 = vpop.permute.xlu0 %8439
  %8441 = vrot.lane.b32.xlu0 %v5489, 117
  %v8442 = vpop.permute.xlu0 %8441
  %8443 = vrot.lane.b32.xlu0 %v5493, 117
  %v8444 = vpop.permute.xlu0 %8443
  %8445 = vrot.lane.b32.xlu0 %v5495, 117
  %v8446 = vpop.permute.xlu0 %8445
  %8447 = vrot.lane.b32.xlu0 %v5499, 117
  %v8448 = vpop.permute.xlu0 %8447
  %8449 = vrot.lane.b32.xlu0 %v5501, 117
  %v8450 = vpop.permute.xlu0 %8449
  %8451 = vrot.lane.b32.xlu0 %v5505, 117
  %v8452 = vpop.permute.xlu0 %8451
  %8453 = vrot.lane.b32.xlu0 %v5507, 117
  %v8454 = vpop.permute.xlu0 %8453
  %v8455 = vsel %vm5915, %v8440, %v8442
  %v8456 = vsel %vm5915, %v8444, %v8446
  %v8457 = vsel %vm5915, %v8448, %v8450
  %v8458 = vsel %vm5915, %v8452, %v8454
  %8467 = vrot.lane.b32.xlu0 %v5487, 116
  %v8468 = vpop.permute.xlu0 %8467
  %8469 = vrot.lane.b32.xlu0 %v5489, 116
  %v8470 = vpop.permute.xlu0 %8469
  %8471 = vrot.lane.b32.xlu0 %v5493, 116
  %v8472 = vpop.permute.xlu0 %8471
  %8473 = vrot.lane.b32.xlu0 %v5495, 116
  %v8474 = vpop.permute.xlu0 %8473
  %8475 = vrot.lane.b32.xlu0 %v5499, 116
  %v8476 = vpop.permute.xlu0 %8475
  %8477 = vrot.lane.b32.xlu0 %v5501, 116
  %v8478 = vpop.permute.xlu0 %8477
  %8479 = vrot.lane.b32.xlu0 %v5505, 116
  %v8480 = vpop.permute.xlu0 %8479
  %8481 = vrot.lane.b32.xlu0 %v5507, 116
  %v8482 = vpop.permute.xlu0 %8481
  %v8483 = vsel %vm5944, %v8468, %v8470
  %v8484 = vsel %vm5944, %v8472, %v8474
  %v8485 = vsel %vm5944, %v8476, %v8478
  %v8486 = vsel %vm5944, %v8480, %v8482
  %8495 = vrot.lane.b32.xlu0 %v5487, 115
  %v8496 = vpop.permute.xlu0 %8495
  %8497 = vrot.lane.b32.xlu0 %v5489, 115
  %v8498 = vpop.permute.xlu0 %8497
  %8499 = vrot.lane.b32.xlu0 %v5493, 115
  %v8500 = vpop.permute.xlu0 %8499
  %8501 = vrot.lane.b32.xlu0 %v5495, 115
  %v8502 = vpop.permute.xlu0 %8501
  %8503 = vrot.lane.b32.xlu0 %v5499, 115
  %v8504 = vpop.permute.xlu0 %8503
  %8505 = vrot.lane.b32.xlu0 %v5501, 115
  %v8506 = vpop.permute.xlu0 %8505
  %8507 = vrot.lane.b32.xlu0 %v5505, 115
  %v8508 = vpop.permute.xlu0 %8507
  %8509 = vrot.lane.b32.xlu0 %v5507, 115
  %v8510 = vpop.permute.xlu0 %8509
  %v8511 = vsel %vm5973, %v8496, %v8498
  %v8512 = vsel %vm5973, %v8500, %v8502
  %v8513 = vsel %vm5973, %v8504, %v8506
  %v8514 = vsel %vm5973, %v8508, %v8510
  %8523 = vrot.lane.b32.xlu0 %v5487, 114
  %v8524 = vpop.permute.xlu0 %8523
  %8525 = vrot.lane.b32.xlu0 %v5489, 114
  %v8526 = vpop.permute.xlu0 %8525
  %8527 = vrot.lane.b32.xlu0 %v5493, 114
  %v8528 = vpop.permute.xlu0 %8527
  %8529 = vrot.lane.b32.xlu0 %v5495, 114
  %v8530 = vpop.permute.xlu0 %8529
  %8531 = vrot.lane.b32.xlu0 %v5499, 114
  %v8532 = vpop.permute.xlu0 %8531
  %8533 = vrot.lane.b32.xlu0 %v5501, 114
  %v8534 = vpop.permute.xlu0 %8533
  %8535 = vrot.lane.b32.xlu0 %v5505, 114
  %v8536 = vpop.permute.xlu0 %8535
  %8537 = vrot.lane.b32.xlu0 %v5507, 114
  %v8538 = vpop.permute.xlu0 %8537
  %v8539 = vsel %vm6002, %v8524, %v8526
  %v8540 = vsel %vm6002, %v8528, %v8530
  %v8541 = vsel %vm6002, %v8532, %v8534
  %v8542 = vsel %vm6002, %v8536, %v8538
  %8551 = vmatprep.subr.mxu0 %v5489
  %8552 = vmatpush1.msra.mxu0 %v5487
  %8553 = vmatprep.subr.mxu0 %v5495
  %8554 = vmatpush1.msra.mxu0 %v5493
  %8555 = vmatprep.subr.mxu0 %v5501
  %8556 = vmatpush1.msra.mxu0 %v5499
  %8557 = vmatprep.subr.mxu0 %v5507
  %8558 = vmatpush1.msra.mxu0 %v5505
  %8559 = vmatprep.subr.mxu0 %v8162
  %8560 = vmatpush1.msra.mxu0 %v8175
  %8561 = vmatprep.subr.mxu0 %v8166
  %8562 = vmatpush1.msra.mxu0 %v8176
  %8563 = vmatprep.subr.mxu0 %v8170
  %8564 = vmatpush1.msra.mxu0 %v8177
  %8565 = vmatprep.subr.mxu0 %v8174
  %8566 = vmatpush1.msra.mxu0 %v8178
  %8567 = vmatprep.subr.mxu0 %v8190
  %8568 = vmatpush1.msra.mxu0 %v8203
  %8569 = vmatprep.subr.mxu0 %v8194
  %8570 = vmatpush1.msra.mxu0 %v8204
  %8571 = vmatprep.subr.mxu0 %v8198
  %8572 = vmatpush1.msra.mxu0 %v8205
  %8573 = vmatprep.subr.mxu0 %v8202
  %8574 = vmatpush1.msra.mxu0 %v8206
  %8575 = vmatprep.subr.mxu0 %v8218
  %8576 = vmatpush1.msra.mxu0 %v8231
  %8577 = vmatprep.subr.mxu0 %v8222
  %8578 = vmatpush1.msra.mxu0 %v8232
  %8579 = vmatprep.subr.mxu0 %v8226
  %8580 = vmatpush1.msra.mxu0 %v8233
  %8581 = vmatprep.subr.mxu0 %v8230
  %8582 = vmatpush1.msra.mxu0 %v8234
  %8583 = vmatprep.subr.mxu0 %v8246
  %8584 = vmatpush1.msra.mxu0 %v8259
  %8585 = vmatprep.subr.mxu0 %v8250
  %8586 = vmatpush1.msra.mxu0 %v8260
  %8587 = vmatprep.subr.mxu0 %v8254
  %8588 = vmatpush1.msra.mxu0 %v8261
  %8589 = vmatprep.subr.mxu0 %v8258
  %8590 = vmatpush1.msra.mxu0 %v8262
  %8591 = vmatprep.subr.mxu0 %v8274
  %8592 = vmatpush1.msra.mxu0 %v8287
  %8593 = vmatprep.subr.mxu0 %v8278
  %8594 = vmatpush1.msra.mxu0 %v8288
  %8595 = vmatprep.subr.mxu0 %v8282
  %8596 = vmatpush1.msra.mxu0 %v8289
  %8597 = vmatprep.subr.mxu0 %v8286
  %8598 = vmatpush1.msra.mxu0 %v8290
  %8599 = vmatprep.subr.mxu0 %v8302
  %8600 = vmatpush1.msra.mxu0 %v8315
  %8601 = vmatprep.subr.mxu0 %v8306
  %8602 = vmatpush1.msra.mxu0 %v8316
  %8603 = vmatprep.subr.mxu0 %v8310
  %8604 = vmatpush1.msra.mxu0 %v8317
  %8605 = vmatprep.subr.mxu0 %v8314
  %8606 = vmatpush1.msra.mxu0 %v8318
  %8607 = vmatprep.subr.mxu0 %v8330
  %8608 = vmatpush1.msra.mxu0 %v8343
  %8609 = vmatprep.subr.mxu0 %v8334
  %8610 = vmatpush1.msra.mxu0 %v8344
  %8611 = vmatprep.subr.mxu0 %v8338
  %8612 = vmatpush1.msra.mxu0 %v8345
  %8613 = vmatprep.subr.mxu0 %v8342
  %8614 = vmatpush1.msra.mxu0 %v8346
  %8615 = vmatprep.mubr.f32.mxu0 %v5582
  %8616 = vmatmul.mubr.f32.gmra.mrb[0].mxu0 %v5581
  %v8617 = vpop.f32.mrb[0].mxu0
  %v8618 = vadd.f32 %v6018, %v8617
  %v8619 = vpop.f32.mrb[0].mxu0
  %v8620 = vadd.f32 %v6018, %v8619
  %8621 = vmatprep.mubr.f32.mxu0 %v5586
  %8622 = vmatmul.mubr.f32.gmra.mrb[0].mxu0 %v5585
  %v8623 = vpop.f32.mrb[0].mxu0
  %v8624 = vadd.f32 %v6023, %v8623
  %v8625 = vpop.f32.mrb[0].mxu0
  %v8626 = vadd.f32 %v6023, %v8625
  %8627 = vmatprep.mubr.f32.mxu0 %v5590
  %8628 = vmatmul.mubr.f32.gmra.mrb[0].mxu0 %v5589
  %v8629 = vpop.f32.mrb[0].mxu0
  %v8630 = vadd.f32 %v6028, %v8629
  %v8631 = vpop.f32.mrb[0].mxu0
  %v8632 = vadd.f32 %v6028, %v8631
  %8633 = vmatprep.mubr.f32.mxu0 %v5594
  %8634 = vmatmul.mubr.f32.gmra.mrb[0].mxu0 %v5593
  %v8635 = vpop.f32.mrb[0].mxu0
  %v8636 = vadd.f32 %v6033, %v8635
  %v8637 = vpop.f32.mrb[0].mxu0
  %v8638 = vadd.f32 %v6033, %v8637
  %8639 = vdwg.mxu0
  %8640 = vmatprep.subr.mxu0 %v8358
  %8641 = vmatpush1.msra.mxu0 %v8371
  %8642 = vmatprep.subr.mxu0 %v8362
  %8643 = vmatpush1.msra.mxu0 %v8372
  %8644 = vmatprep.subr.mxu0 %v8366
  %8645 = vmatpush1.msra.mxu0 %v8373
  %8646 = vmatprep.subr.mxu0 %v8370
  %8647 = vmatpush1.msra.mxu0 %v8374
  %8648 = vmatprep.subr.mxu0 %v8386
  %8649 = vmatpush1.msra.mxu0 %v8399
  %8650 = vmatprep.subr.mxu0 %v8390
  %8651 = vmatpush1.msra.mxu0 %v8400
  %8652 = vmatprep.subr.mxu0 %v8394
  %8653 = vmatpush1.msra.mxu0 %v8401
  %8654 = vmatprep.subr.mxu0 %v8398
  %8655 = vmatpush1.msra.mxu0 %v8402
  %8656 = vmatprep.subr.mxu0 %v8414
  %8657 = vmatpush1.msra.mxu0 %v8427
  %8658 = vmatprep.subr.mxu0 %v8418
  %8659 = vmatpush1.msra.mxu0 %v8428
  %8660 = vmatprep.subr.mxu0 %v8422
  %8661 = vmatpush1.msra.mxu0 %v8429
  %8662 = vmatprep.subr.mxu0 %v8426
  %8663 = vmatpush1.msra.mxu0 %v8430
  %8664 = vmatprep.subr.mxu0 %v8442
  %8665 = vmatpush1.msra.mxu0 %v8455
  %8666 = vmatprep.subr.mxu0 %v8446
  %8667 = vmatpush1.msra.mxu0 %v8456
  %8668 = vmatprep.subr.mxu0 %v8450
  %8669 = vmatpush1.msra.mxu0 %v8457
  %8670 = vmatprep.subr.mxu0 %v8454
  %8671 = vmatpush1.msra.mxu0 %v8458
  %8672 = vmatprep.subr.mxu0 %v8470
  %8673 = vmatpush1.msra.mxu0 %v8483
  %8674 = vmatprep.subr.mxu0 %v8474
  %8675 = vmatpush1.msra.mxu0 %v8484
  %8676 = vmatprep.subr.mxu0 %v8478
  %8677 = vmatpush1.msra.mxu0 %v8485
  %8678 = vmatprep.subr.mxu0 %v8482
  %8679 = vmatpush1.msra.mxu0 %v8486
  %8680 = vmatprep.subr.mxu0 %v8498
  %8681 = vmatpush1.msra.mxu0 %v8511
  %8682 = vmatprep.subr.mxu0 %v8502
  %8683 = vmatpush1.msra.mxu0 %v8512
  %8684 = vmatprep.subr.mxu0 %v8506
  %8685 = vmatpush1.msra.mxu0 %v8513
  %8686 = vmatprep.subr.mxu0 %v8510
  %8687 = vmatpush1.msra.mxu0 %v8514
  %8688 = vmatprep.subr.mxu0 %v8526
  %8689 = vmatpush1.msra.mxu0 %v8539
  %8690 = vmatprep.subr.mxu0 %v8530
  %8691 = vmatpush1.msra.mxu0 %v8540
  %8692 = vmatprep.subr.mxu0 %v8534
  %8693 = vmatpush1.msra.mxu0 %v8541
  %8694 = vmatprep.subr.mxu0 %v8538
  %8695 = vmatpush1.msra.mxu0 %v8542
  %8696 = vmatprep.subr.mxu0 0.0
  %8697 = vmatpush1.msra.mxu0 0.0
  %8698 = vmatprep.subr.mxu0 0.0
  %8699 = vmatpush1.msra.mxu0 0.0
  %8700 = vmatprep.subr.mxu0 0.0
  %8701 = vmatpush1.msra.mxu0 0.0
  %8702 = vmatprep.subr.mxu0 0.0
  %8703 = vmatpush1.msra.mxu0 0.0
  %8704 = vmatprep.mubr.f32.mxu0 %v6036
  %8705 = vmatmul.mubr.f32.gmra.mrb[0].mxu0 %v5583
  %v8706 = vpop.f32.mrb[0].mxu0
  %v8707 = vadd.f32 %v8618, %v8706
  %v8708 = vpop.f32.mrb[0].mxu0
  %v8709 = vadd.f32 %v8620, %v8708
  %8710 = vmatprep.mubr.f32.mxu0 %v6039
  %8711 = vmatmul.mubr.f32.gmra.mrb[0].mxu0 %v5587
  %v8712 = vpop.f32.mrb[0].mxu0
  %v8713 = vadd.f32 %v8624, %v8712
  %v8714 = vpop.f32.mrb[0].mxu0
  %v8715 = vadd.f32 %v8626, %v8714
  %8716 = vmatprep.mubr.f32.mxu0 %v6042
  %8717 = vmatmul.mubr.f32.gmra.mrb[0].mxu0 %v5591
  %v8718 = vpop.f32.mrb[0].mxu0
  %v8719 = vadd.f32 %v8630, %v8718
  %v8720 = vpop.f32.mrb[0].mxu0
  %v8721 = vadd.f32 %v8632, %v8720
  %8722 = vmatprep.mubr.f32.mxu0 %v6045
  %8723 = vmatmul.mubr.f32.gmra.mrb[0].mxu0 %v5595
  %v8724 = vpop.f32.mrb[0].mxu0
  %v8725 = vadd.f32 %v8636, %v8724
  %v8726 = vpop.f32.mrb[0].mxu0
  %v8727 = vadd.f32 %v8638, %v8726
  %8728 = vdwg.mxu0
  %vm8729 = vcmp.gt.f32.partialorder %v8707, 0.0
  %vm8730 = vcmp.gt.f32.partialorder %v8709, 0.0
  %vm8731 = vcmp.gt.f32.partialorder %v8713, 0.0
  %vm8732 = vcmp.gt.f32.partialorder %v8715, 0.0
  %vm8733 = vcmp.gt.f32.partialorder %v8719, 0.0
  %vm8734 = vcmp.gt.f32.partialorder %v8721, 0.0
  %vm8735 = vcmp.gt.f32.partialorder %v8725, 0.0
  %vm8736 = vcmp.gt.f32.partialorder %v8727, 0.0
  %v8737 = vmin.f32 %v8707, 0.0
  %v8738 = vmin.f32 %v8709, 0.0
  %v8739 = vmin.f32 %v8713, 0.0
  %v8740 = vmin.f32 %v8715, 0.0
  %v8741 = vmin.f32 %v8719, 0.0
  %v8742 = vmin.f32 %v8721, 0.0
  %v8743 = vmin.f32 %v8725, 0.0
  %v8744 = vmin.f32 %v8727, 0.0
  %v8745 = vmul.f32 %v8737, 1.442695
  %v8746 = vpow.pop %v8745
  %v8747 = vmul.f32 %v8738, 1.442695
  %v8748 = vpow.pop %v8747
  %v8749 = vmul.f32 %v8739, 1.442695
  %v8750 = vpow.pop %v8749
  %v8751 = vmul.f32 %v8740, 1.442695
  %v8752 = vpow.pop %v8751
  %v8753 = vmul.f32 %v8741, 1.442695
  %v8754 = vpow.pop %v8753
  %v8755 = vmul.f32 %v8742, 1.442695
  %v8756 = vpow.pop %v8755
  %v8757 = vmul.f32 %v8743, 1.442695
  %v8758 = vpow.pop %v8757
  %v8759 = vmul.f32 %v8744, 1.442695
  %v8760 = vpow.pop %v8759
  %v8761 = vsub.f32 %v8746, 1.0
  %v8762 = vsub.f32 %v8748, 1.0
  %v8763 = vsub.f32 %v8750, 1.0
  %v8764 = vsub.f32 %v8752, 1.0
  %v8765 = vsub.f32 %v8754, 1.0
  %v8766 = vsub.f32 %v8756, 1.0
  %v8767 = vsub.f32 %v8758, 1.0
  %v8768 = vsub.f32 %v8760, 1.0
  %v8769 = vsel %vm8729, %v8707, %v8761
  %v8770 = vsel %vm8730, %v8709, %v8762
  %v8771 = vsel %vm8731, %v8713, %v8763
  %v8772 = vsel %vm8732, %v8715, %v8764
  %v8773 = vsel %vm8733, %v8719, %v8765
  %v8774 = vsel %vm8734, %v8721, %v8766
  %v8775 = vsel %vm8735, %v8725, %v8767
  %v8776 = vsel %vm8736, %v8727, %v8768
  %8785 = vrot.lane.b32.xlu0 %v5511, 127
  %v8786 = vpop.permute.xlu0 %8785
  %8787 = vrot.lane.b32.xlu0 %v5513, 127
  %v8788 = vpop.permute.xlu0 %8787
  %8789 = vrot.lane.b32.xlu0 %v5517, 127
  %v8790 = vpop.permute.xlu0 %8789
  %8791 = vrot.lane.b32.xlu0 %v5519, 127
  %v8792 = vpop.permute.xlu0 %8791
  %8793 = vrot.lane.b32.xlu0 %v5523, 127
  %v8794 = vpop.permute.xlu0 %8793
  %8795 = vrot.lane.b32.xlu0 %v5525, 127
  %v8796 = vpop.permute.xlu0 %8795
  %8797 = vrot.lane.b32.xlu0 %v5529, 127
  %v8798 = vpop.permute.xlu0 %8797
  %8799 = vrot.lane.b32.xlu0 %v5531, 127
  %v8800 = vpop.permute.xlu0 %8799
  %v8801 = vsel %vm5625, %v8786, %v8788
  %v8802 = vsel %vm5625, %v8790, %v8792
  %v8803 = vsel %vm5625, %v8794, %v8796
  %v8804 = vsel %vm5625, %v8798, %v8800
  %8813 = vrot.lane.b32.xlu0 %v5511, 126
  %v8814 = vpop.permute.xlu0 %8813
  %8815 = vrot.lane.b32.xlu0 %v5513, 126
  %v8816 = vpop.permute.xlu0 %8815
  %8817 = vrot.lane.b32.xlu0 %v5517, 126
  %v8818 = vpop.permute.xlu0 %8817
  %8819 = vrot.lane.b32.xlu0 %v5519, 126
  %v8820 = vpop.permute.xlu0 %8819
  %8821 = vrot.lane.b32.xlu0 %v5523, 126
  %v8822 = vpop.permute.xlu0 %8821
  %8823 = vrot.lane.b32.xlu0 %v5525, 126
  %v8824 = vpop.permute.xlu0 %8823
  %8825 = vrot.lane.b32.xlu0 %v5529, 126
  %v8826 = vpop.permute.xlu0 %8825
  %8827 = vrot.lane.b32.xlu0 %v5531, 126
  %v8828 = vpop.permute.xlu0 %8827
  %v8829 = vsel %vm5654, %v8814, %v8816
  %v8830 = vsel %vm5654, %v8818, %v8820
  %v8831 = vsel %vm5654, %v8822, %v8824
  %v8832 = vsel %vm5654, %v8826, %v8828
  %8841 = vrot.lane.b32.xlu0 %v5511, 125
  %v8842 = vpop.permute.xlu0 %8841
  %8843 = vrot.lane.b32.xlu0 %v5513, 125
  %v8844 = vpop.permute.xlu0 %8843
  %8845 = vrot.lane.b32.xlu0 %v5517, 125
  %v8846 = vpop.permute.xlu0 %8845
  %8847 = vrot.lane.b32.xlu0 %v5519, 125
  %v8848 = vpop.permute.xlu0 %8847
  %8849 = vrot.lane.b32.xlu0 %v5523, 125
  %v8850 = vpop.permute.xlu0 %8849
  %8851 = vrot.lane.b32.xlu0 %v5525, 125
  %v8852 = vpop.permute.xlu0 %8851
  %8853 = vrot.lane.b32.xlu0 %v5529, 125
  %v8854 = vpop.permute.xlu0 %8853
  %8855 = vrot.lane.b32.xlu0 %v5531, 125
  %v8856 = vpop.permute.xlu0 %8855
  %v8857 = vsel %vm5683, %v8842, %v8844
  %v8858 = vsel %vm5683, %v8846, %v8848
  %v8859 = vsel %vm5683, %v8850, %v8852
  %v8860 = vsel %vm5683, %v8854, %v8856
  %8869 = vrot.lane.b32.xlu0 %v5511, 124
  %v8870 = vpop.permute.xlu0 %8869
  %8871 = vrot.lane.b32.xlu0 %v5513, 124
  %v8872 = vpop.permute.xlu0 %8871
  %8873 = vrot.lane.b32.xlu0 %v5517, 124
  %v8874 = vpop.permute.xlu0 %8873
  %8875 = vrot.lane.b32.xlu0 %v5519, 124
  %v8876 = vpop.permute.xlu0 %8875
  %8877 = vrot.lane.b32.xlu0 %v5523, 124
  %v8878 = vpop.permute.xlu0 %8877
  %8879 = vrot.lane.b32.xlu0 %v5525, 124
  %v8880 = vpop.permute.xlu0 %8879
  %8881 = vrot.lane.b32.xlu0 %v5529, 124
  %v8882 = vpop.permute.xlu0 %8881
  %8883 = vrot.lane.b32.xlu0 %v5531, 124
  %v8884 = vpop.permute.xlu0 %8883
  %v8885 = vsel %vm5712, %v8870, %v8872
  %v8886 = vsel %vm5712, %v8874, %v8876
  %v8887 = vsel %vm5712, %v8878, %v8880
  %v8888 = vsel %vm5712, %v8882, %v8884
  %8897 = vrot.lane.b32.xlu0 %v5511, 123
  %v8898 = vpop.permute.xlu0 %8897
  %8899 = vrot.lane.b32.xlu0 %v5513, 123
  %v8900 = vpop.permute.xlu0 %8899
  %8901 = vrot.lane.b32.xlu0 %v5517, 123
  %v8902 = vpop.permute.xlu0 %8901
  %8903 = vrot.lane.b32.xlu0 %v5519, 123
  %v8904 = vpop.permute.xlu0 %8903
  %8905 = vrot.lane.b32.xlu0 %v5523, 123
  %v8906 = vpop.permute.xlu0 %8905
  %8907 = vrot.lane.b32.xlu0 %v5525, 123
  %v8908 = vpop.permute.xlu0 %8907
  %8909 = vrot.lane.b32.xlu0 %v5529, 123
  %v8910 = vpop.permute.xlu0 %8909
  %8911 = vrot.lane.b32.xlu0 %v5531, 123
  %v8912 = vpop.permute.xlu0 %8911
  %v8913 = vsel %vm5741, %v8898, %v8900
  %v8914 = vsel %vm5741, %v8902, %v8904
  %v8915 = vsel %vm5741, %v8906, %v8908
  %v8916 = vsel %vm5741, %v8910, %v8912
  %8925 = vrot.lane.b32.xlu0 %v5511, 122
  %v8926 = vpop.permute.xlu0 %8925
  %8927 = vrot.lane.b32.xlu0 %v5513, 122
  %v8928 = vpop.permute.xlu0 %8927
  %8929 = vrot.lane.b32.xlu0 %v5517, 122
  %v8930 = vpop.permute.xlu0 %8929
  %8931 = vrot.lane.b32.xlu0 %v5519, 122
  %v8932 = vpop.permute.xlu0 %8931
  %8933 = vrot.lane.b32.xlu0 %v5523, 122
  %v8934 = vpop.permute.xlu0 %8933
  %8935 = vrot.lane.b32.xlu0 %v5525, 122
  %v8936 = vpop.permute.xlu0 %8935
  %8937 = vrot.lane.b32.xlu0 %v5529, 122
  %v8938 = vpop.permute.xlu0 %8937
  %8939 = vrot.lane.b32.xlu0 %v5531, 122
  %v8940 = vpop.permute.xlu0 %8939
  %v8941 = vsel %vm5770, %v8926, %v8928
  %v8942 = vsel %vm5770, %v8930, %v8932
  %v8943 = vsel %vm5770, %v8934, %v8936
  %v8944 = vsel %vm5770, %v8938, %v8940
  %8953 = vrot.lane.b32.xlu0 %v5511, 121
  %v8954 = vpop.permute.xlu0 %8953
  %8955 = vrot.lane.b32.xlu0 %v5513, 121
  %v8956 = vpop.permute.xlu0 %8955
  %8957 = vrot.lane.b32.xlu0 %v5517, 121
  %v8958 = vpop.permute.xlu0 %8957
  %8959 = vrot.lane.b32.xlu0 %v5519, 121
  %v8960 = vpop.permute.xlu0 %8959
  %8961 = vrot.lane.b32.xlu0 %v5523, 121
  %v8962 = vpop.permute.xlu0 %8961
  %8963 = vrot.lane.b32.xlu0 %v5525, 121
  %v8964 = vpop.permute.xlu0 %8963
  %8965 = vrot.lane.b32.xlu0 %v5529, 121
  %v8966 = vpop.permute.xlu0 %8965
  %8967 = vrot.lane.b32.xlu0 %v5531, 121
  %v8968 = vpop.permute.xlu0 %8967
  %v8969 = vsel %vm5799, %v8954, %v8956
  %v8970 = vsel %vm5799, %v8958, %v8960
  %v8971 = vsel %vm5799, %v8962, %v8964
  %v8972 = vsel %vm5799, %v8966, %v8968
  %8981 = vrot.lane.b32.xlu0 %v5511, 120
  %v8982 = vpop.permute.xlu0 %8981
  %8983 = vrot.lane.b32.xlu0 %v5513, 120
  %v8984 = vpop.permute.xlu0 %8983
  %8985 = vrot.lane.b32.xlu0 %v5517, 120
  %v8986 = vpop.permute.xlu0 %8985
  %8987 = vrot.lane.b32.xlu0 %v5519, 120
  %v8988 = vpop.permute.xlu0 %8987
  %8989 = vrot.lane.b32.xlu0 %v5523, 120
  %v8990 = vpop.permute.xlu0 %8989
  %8991 = vrot.lane.b32.xlu0 %v5525, 120
  %v8992 = vpop.permute.xlu0 %8991
  %8993 = vrot.lane.b32.xlu0 %v5529, 120
  %v8994 = vpop.permute.xlu0 %8993
  %8995 = vrot.lane.b32.xlu0 %v5531, 120
  %v8996 = vpop.permute.xlu0 %8995
  %v8997 = vsel %vm5828, %v8982, %v8984
  %v8998 = vsel %vm5828, %v8986, %v8988
  %v8999 = vsel %vm5828, %v8990, %v8992
  %v9000 = vsel %vm5828, %v8994, %v8996
  %9009 = vrot.lane.b32.xlu0 %v5511, 119
  %v9010 = vpop.permute.xlu0 %9009
  %9011 = vrot.lane.b32.xlu0 %v5513, 119
  %v9012 = vpop.permute.xlu0 %9011
  %9013 = vrot.lane.b32.xlu0 %v5517, 119
  %v9014 = vpop.permute.xlu0 %9013
  %9015 = vrot.lane.b32.xlu0 %v5519, 119
  %v9016 = vpop.permute.xlu0 %9015
  %9017 = vrot.lane.b32.xlu0 %v5523, 119
  %v9018 = vpop.permute.xlu0 %9017
  %9019 = vrot.lane.b32.xlu0 %v5525, 119
  %v9020 = vpop.permute.xlu0 %9019
  %9021 = vrot.lane.b32.xlu0 %v5529, 119
  %v9022 = vpop.permute.xlu0 %9021
  %9023 = vrot.lane.b32.xlu0 %v5531, 119
  %v9024 = vpop.permute.xlu0 %9023
  %v9025 = vsel %vm5857, %v9010, %v9012
  %v9026 = vsel %vm5857, %v9014, %v9016
  %v9027 = vsel %vm5857, %v9018, %v9020
  %v9028 = vsel %vm5857, %v9022, %v9024
  %9037 = vrot.lane.b32.xlu0 %v5511, 118
  %v9038 = vpop.permute.xlu0 %9037
  %9039 = vrot.lane.b32.xlu0 %v5513, 118
  %v9040 = vpop.permute.xlu0 %9039
  %9041 = vrot.lane.b32.xlu0 %v5517, 118
  %v9042 = vpop.permute.xlu0 %9041
  %9043 = vrot.lane.b32.xlu0 %v5519, 118
  %v9044 = vpop.permute.xlu0 %9043
  %9045 = vrot.lane.b32.xlu0 %v5523, 118
  %v9046 = vpop.permute.xlu0 %9045
  %9047 = vrot.lane.b32.xlu0 %v5525, 118
  %v9048 = vpop.permute.xlu0 %9047
  %9049 = vrot.lane.b32.xlu0 %v5529, 118
  %v9050 = vpop.permute.xlu0 %9049
  %9051 = vrot.lane.b32.xlu0 %v5531, 118
  %v9052 = vpop.permute.xlu0 %9051
  %v9053 = vsel %vm5886, %v9038, %v9040
  %v9054 = vsel %vm5886, %v9042, %v9044
  %v9055 = vsel %vm5886, %v9046, %v9048
  %v9056 = vsel %vm5886, %v9050, %v9052
  %9065 = vrot.lane.b32.xlu0 %v5511, 117
  %v9066 = vpop.permute.xlu0 %9065
  %9067 = vrot.lane.b32.xlu0 %v5513, 117
  %v9068 = vpop.permute.xlu0 %9067
  %9069 = vrot.lane.b32.xlu0 %v5517, 117
  %v9070 = vpop.permute.xlu0 %9069
  %9071 = vrot.lane.b32.xlu0 %v5519, 117
  %v9072 = vpop.permute.xlu0 %9071
  %9073 = vrot.lane.b32.xlu0 %v5523, 117
  %v9074 = vpop.permute.xlu0 %9073
  %9075 = vrot.lane.b32.xlu0 %v5525, 117
  %v9076 = vpop.permute.xlu0 %9075
  %9077 = vrot.lane.b32.xlu0 %v5529, 117
  %v9078 = vpop.permute.xlu0 %9077
  %9079 = vrot.lane.b32.xlu0 %v5531, 117
  %v9080 = vpop.permute.xlu0 %9079
  %v9081 = vsel %vm5915, %v9066, %v9068
  %v9082 = vsel %vm5915, %v9070, %v9072
  %v9083 = vsel %vm5915, %v9074, %v9076
  %v9084 = vsel %vm5915, %v9078, %v9080
  %9093 = vrot.lane.b32.xlu0 %v5511, 116
  %v9094 = vpop.permute.xlu0 %9093
  %9095 = vrot.lane.b32.xlu0 %v5513, 116
  %v9096 = vpop.permute.xlu0 %9095
  %9097 = vrot.lane.b32.xlu0 %v5517, 116
  %v9098 = vpop.permute.xlu0 %9097
  %9099 = vrot.lane.b32.xlu0 %v5519, 116
  %v9100 = vpop.permute.xlu0 %9099
  %9101 = vrot.lane.b32.xlu0 %v5523, 116
  %v9102 = vpop.permute.xlu0 %9101
  %9103 = vrot.lane.b32.xlu0 %v5525, 116
  %v9104 = vpop.permute.xlu0 %9103
  %9105 = vrot.lane.b32.xlu0 %v5529, 116
  %v9106 = vpop.permute.xlu0 %9105
  %9107 = vrot.lane.b32.xlu0 %v5531, 116
  %v9108 = vpop.permute.xlu0 %9107
  %v9109 = vsel %vm5944, %v9094, %v9096
  %v9110 = vsel %vm5944, %v9098, %v9100
  %v9111 = vsel %vm5944, %v9102, %v9104
  %v9112 = vsel %vm5944, %v9106, %v9108
  %9121 = vrot.lane.b32.xlu0 %v5511, 115
  %v9122 = vpop.permute.xlu0 %9121
  %9123 = vrot.lane.b32.xlu0 %v5513, 115
  %v9124 = vpop.permute.xlu0 %9123
  %9125 = vrot.lane.b32.xlu0 %v5517, 115
  %v9126 = vpop.permute.xlu0 %9125
  %9127 = vrot.lane.b32.xlu0 %v5519, 115
  %v9128 = vpop.permute.xlu0 %9127
  %9129 = vrot.lane.b32.xlu0 %v5523, 115
  %v9130 = vpop.permute.xlu0 %9129
  %9131 = vrot.lane.b32.xlu0 %v5525, 115
  %v9132 = vpop.permute.xlu0 %9131
  %9133 = vrot.lane.b32.xlu0 %v5529, 115
  %v9134 = vpop.permute.xlu0 %9133
  %9135 = vrot.lane.b32.xlu0 %v5531, 115
  %v9136 = vpop.permute.xlu0 %9135
  %v9137 = vsel %vm5973, %v9122, %v9124
  %v9138 = vsel %vm5973, %v9126, %v9128
  %v9139 = vsel %vm5973, %v9130, %v9132
  %v9140 = vsel %vm5973, %v9134, %v9136
  %9149 = vrot.lane.b32.xlu0 %v5511, 114
  %v9150 = vpop.permute.xlu0 %9149
  %9151 = vrot.lane.b32.xlu0 %v5513, 114
  %v9152 = vpop.permute.xlu0 %9151
  %9153 = vrot.lane.b32.xlu0 %v5517, 114
  %v9154 = vpop.permute.xlu0 %9153
  %9155 = vrot.lane.b32.xlu0 %v5519, 114
  %v9156 = vpop.permute.xlu0 %9155
  %9157 = vrot.lane.b32.xlu0 %v5523, 114
  %v9158 = vpop.permute.xlu0 %9157
  %9159 = vrot.lane.b32.xlu0 %v5525, 114
  %v9160 = vpop.permute.xlu0 %9159
  %9161 = vrot.lane.b32.xlu0 %v5529, 114
  %v9162 = vpop.permute.xlu0 %9161
  %9163 = vrot.lane.b32.xlu0 %v5531, 114
  %v9164 = vpop.permute.xlu0 %9163
  %v9165 = vsel %vm6002, %v9150, %v9152
  %v9166 = vsel %vm6002, %v9154, %v9156
  %v9167 = vsel %vm6002, %v9158, %v9160
  %v9168 = vsel %vm6002, %v9162, %v9164
  %9177 = vmatprep.subr.mxu0 %v5513
  %9178 = vmatpush1.msra.mxu0 %v5511
  %9179 = vmatprep.subr.mxu0 %v5519
  %9180 = vmatpush1.msra.mxu0 %v5517
  %9181 = vmatprep.subr.mxu0 %v5525
  %9182 = vmatpush1.msra.mxu0 %v5523
  %9183 = vmatprep.subr.mxu0 %v5531
  %9184 = vmatpush1.msra.mxu0 %v5529
  %9185 = vmatprep.subr.mxu0 %v8788
  %9186 = vmatpush1.msra.mxu0 %v8801
  %9187 = vmatprep.subr.mxu0 %v8792
  %9188 = vmatpush1.msra.mxu0 %v8802
  %9189 = vmatprep.subr.mxu0 %v8796
  %9190 = vmatpush1.msra.mxu0 %v8803
  %9191 = vmatprep.subr.mxu0 %v8800
  %9192 = vmatpush1.msra.mxu0 %v8804
  %9193 = vmatprep.subr.mxu0 %v8816
  %9194 = vmatpush1.msra.mxu0 %v8829
  %9195 = vmatprep.subr.mxu0 %v8820
  %9196 = vmatpush1.msra.mxu0 %v8830
  %9197 = vmatprep.subr.mxu0 %v8824
  %9198 = vmatpush1.msra.mxu0 %v8831
  %9199 = vmatprep.subr.mxu0 %v8828
  %9200 = vmatpush1.msra.mxu0 %v8832
  %9201 = vmatprep.subr.mxu0 %v8844
  %9202 = vmatpush1.msra.mxu0 %v8857
  %9203 = vmatprep.subr.mxu0 %v8848
  %9204 = vmatpush1.msra.mxu0 %v8858
  %9205 = vmatprep.subr.mxu0 %v8852
  %9206 = vmatpush1.msra.mxu0 %v8859
  %9207 = vmatprep.subr.mxu0 %v8856
  %9208 = vmatpush1.msra.mxu0 %v8860
  %9209 = vmatprep.subr.mxu0 %v8872
  %9210 = vmatpush1.msra.mxu0 %v8885
  %9211 = vmatprep.subr.mxu0 %v8876
  %9212 = vmatpush1.msra.mxu0 %v8886
  %9213 = vmatprep.subr.mxu0 %v8880
  %9214 = vmatpush1.msra.mxu0 %v8887
  %9215 = vmatprep.subr.mxu0 %v8884
  %9216 = vmatpush1.msra.mxu0 %v8888
  %9217 = vmatprep.subr.mxu0 %v8900
  %9218 = vmatpush1.msra.mxu0 %v8913
  %9219 = vmatprep.subr.mxu0 %v8904
  %9220 = vmatpush1.msra.mxu0 %v8914
  %9221 = vmatprep.subr.mxu0 %v8908
  %9222 = vmatpush1.msra.mxu0 %v8915
  %9223 = vmatprep.subr.mxu0 %v8912
  %9224 = vmatpush1.msra.mxu0 %v8916
  %9225 = vmatprep.subr.mxu0 %v8928
  %9226 = vmatpush1.msra.mxu0 %v8941
  %9227 = vmatprep.subr.mxu0 %v8932
  %9228 = vmatpush1.msra.mxu0 %v8942
  %9229 = vmatprep.subr.mxu0 %v8936
  %9230 = vmatpush1.msra.mxu0 %v8943
  %9231 = vmatprep.subr.mxu0 %v8940
  %9232 = vmatpush1.msra.mxu0 %v8944
  %9233 = vmatprep.subr.mxu0 %v8956
  %9234 = vmatpush1.msra.mxu0 %v8969
  %9235 = vmatprep.subr.mxu0 %v8960
  %9236 = vmatpush1.msra.mxu0 %v8970
  %9237 = vmatprep.subr.mxu0 %v8964
  %9238 = vmatpush1.msra.mxu0 %v8971
  %9239 = vmatprep.subr.mxu0 %v8968
  %9240 = vmatpush1.msra.mxu0 %v8972
  %9241 = vmatprep.mubr.f32.mxu0 %v5582
  %9242 = vmatmul.mubr.f32.gmra.mrb[0].mxu0 %v5581
  %v9243 = vpop.f32.mrb[0].mxu0
  %v9244 = vadd.f32 %v6018, %v9243
  %v9245 = vpop.f32.mrb[0].mxu0
  %v9246 = vadd.f32 %v6018, %v9245
  %9247 = vmatprep.mubr.f32.mxu0 %v5586
  %9248 = vmatmul.mubr.f32.gmra.mrb[0].mxu0 %v5585
  %v9249 = vpop.f32.mrb[0].mxu0
  %v9250 = vadd.f32 %v6023, %v9249
  %v9251 = vpop.f32.mrb[0].mxu0
  %v9252 = vadd.f32 %v6023, %v9251
  %9253 = vmatprep.mubr.f32.mxu0 %v5590
  %9254 = vmatmul.mubr.f32.gmra.mrb[0].mxu0 %v5589
  %v9255 = vpop.f32.mrb[0].mxu0
  %v9256 = vadd.f32 %v6028, %v9255
  %v9257 = vpop.f32.mrb[0].mxu0
  %v9258 = vadd.f32 %v6028, %v9257
  %9259 = vmatprep.mubr.f32.mxu0 %v5594
  %9260 = vmatmul.mubr.f32.gmra.mrb[0].mxu0 %v5593
  %v9261 = vpop.f32.mrb[0].mxu0
  %v9262 = vadd.f32 %v6033, %v9261
  %v9263 = vpop.f32.mrb[0].mxu0
  %v9264 = vadd.f32 %v6033, %v9263
  %9265 = vdwg.mxu0
  %9266 = vmatprep.subr.mxu0 %v8984
  %9267 = vmatpush1.msra.mxu0 %v8997
  %9268 = vmatprep.subr.mxu0 %v8988
  %9269 = vmatpush1.msra.mxu0 %v8998
  %9270 = vmatprep.subr.mxu0 %v8992
  %9271 = vmatpush1.msra.mxu0 %v8999
  %9272 = vmatprep.subr.mxu0 %v8996
  %9273 = vmatpush1.msra.mxu0 %v9000
  %9274 = vmatprep.subr.mxu0 %v9012
  %9275 = vmatpush1.msra.mxu0 %v9025
  %9276 = vmatprep.subr.mxu0 %v9016
  %9277 = vmatpush1.msra.mxu0 %v9026
  %9278 = vmatprep.subr.mxu0 %v9020
  %9279 = vmatpush1.msra.mxu0 %v9027
  %9280 = vmatprep.subr.mxu0 %v9024
  %9281 = vmatpush1.msra.mxu0 %v9028
  %9282 = vmatprep.subr.mxu0 %v9040
  %9283 = vmatpush1.msra.mxu0 %v9053
  %9284 = vmatprep.subr.mxu0 %v9044
  %9285 = vmatpush1.msra.mxu0 %v9054
  %9286 = vmatprep.subr.mxu0 %v9048
  %9287 = vmatpush1.msra.mxu0 %v9055
  %9288 = vmatprep.subr.mxu0 %v9052
  %9289 = vmatpush1.msra.mxu0 %v9056
  %9290 = vmatprep.subr.mxu0 %v9068
  %9291 = vmatpush1.msra.mxu0 %v9081
  %9292 = vmatprep.subr.mxu0 %v9072
  %9293 = vmatpush1.msra.mxu0 %v9082
  %9294 = vmatprep.subr.mxu0 %v9076
  %9295 = vmatpush1.msra.mxu0 %v9083
  %9296 = vmatprep.subr.mxu0 %v9080
  %9297 = vmatpush1.msra.mxu0 %v9084
  %9298 = vmatprep.subr.mxu0 %v9096
  %9299 = vmatpush1.msra.mxu0 %v9109
  %9300 = vmatprep.subr.mxu0 %v9100
  %9301 = vmatpush1.msra.mxu0 %v9110
  %9302 = vmatprep.subr.mxu0 %v9104
  %9303 = vmatpush1.msra.mxu0 %v9111
  %9304 = vmatprep.subr.mxu0 %v9108
  %9305 = vmatpush1.msra.mxu0 %v9112
  %9306 = vmatprep.subr.mxu0 %v9124
  %9307 = vmatpush1.msra.mxu0 %v9137
  %9308 = vmatprep.subr.mxu0 %v9128
  %9309 = vmatpush1.msra.mxu0 %v9138
  %9310 = vmatprep.subr.mxu0 %v9132
  %9311 = vmatpush1.msra.mxu0 %v9139
  %9312 = vmatprep.subr.mxu0 %v9136
  %9313 = vmatpush1.msra.mxu0 %v9140
  %9314 = vmatprep.subr.mxu0 %v9152
  %9315 = vmatpush1.msra.mxu0 %v9165
  %9316 = vmatprep.subr.mxu0 %v9156
  %9317 = vmatpush1.msra.mxu0 %v9166
  %9318 = vmatprep.subr.mxu0 %v9160
  %9319 = vmatpush1.msra.mxu0 %v9167
  %9320 = vmatprep.subr.mxu0 %v9164
  %9321 = vmatpush1.msra.mxu0 %v9168
  %9322 = vmatprep.subr.mxu0 0.0
  %9323 = vmatpush1.msra.mxu0 0.0
  %9324 = vmatprep.subr.mxu0 0.0
  %9325 = vmatpush1.msra.mxu0 0.0
  %9326 = vmatprep.subr.mxu0 0.0
  %9327 = vmatpush1.msra.mxu0 0.0
  %9328 = vmatprep.subr.mxu0 0.0
  %9329 = vmatpush1.msra.mxu0 0.0
  %9330 = vmatprep.mubr.f32.mxu0 %v6036
  %9331 = vmatmul.mubr.f32.gmra.mrb[0].mxu0 %v5583
  %v9332 = vpop.f32.mrb[0].mxu0
  %v9333 = vadd.f32 %v9244, %v9332
  %v9334 = vpop.f32.mrb[0].mxu0
  %v9335 = vadd.f32 %v9246, %v9334
  %9336 = vmatprep.mubr.f32.mxu0 %v6039
  %9337 = vmatmul.mubr.f32.gmra.mrb[0].mxu0 %v5587
  %v9338 = vpop.f32.mrb[0].mxu0
  %v9339 = vadd.f32 %v9250, %v9338
  %v9340 = vpop.f32.mrb[0].mxu0
  %v9341 = vadd.f32 %v9252, %v9340
  %9342 = vmatprep.mubr.f32.mxu0 %v6042
  %9343 = vmatmul.mubr.f32.gmra.mrb[0].mxu0 %v5591
  %v9344 = vpop.f32.mrb[0].mxu0
  %v9345 = vadd.f32 %v9256, %v9344
  %v9346 = vpop.f32.mrb[0].mxu0
  %v9347 = vadd.f32 %v9258, %v9346
  %9348 = vmatprep.mubr.f32.mxu0 %v6045
  %9349 = vmatmul.mubr.f32.gmra.mrb[0].mxu0 %v5595
  %v9350 = vpop.f32.mrb[0].mxu0
  %v9351 = vadd.f32 %v9262, %v9350
  %v9352 = vpop.f32.mrb[0].mxu0
  %v9353 = vadd.f32 %v9264, %v9352
  %9354 = vdwg.mxu0
  %vm9355 = vcmp.gt.f32.partialorder %v9333, 0.0
  %vm9356 = vcmp.gt.f32.partialorder %v9335, 0.0
  %vm9357 = vcmp.gt.f32.partialorder %v9339, 0.0
  %vm9358 = vcmp.gt.f32.partialorder %v9341, 0.0
  %vm9359 = vcmp.gt.f32.partialorder %v9345, 0.0
  %vm9360 = vcmp.gt.f32.partialorder %v9347, 0.0
  %vm9361 = vcmp.gt.f32.partialorder %v9351, 0.0
  %vm9362 = vcmp.gt.f32.partialorder %v9353, 0.0
  %v9363 = vmin.f32 %v9333, 0.0
  %v9364 = vmin.f32 %v9335, 0.0
  %v9365 = vmin.f32 %v9339, 0.0
  %v9366 = vmin.f32 %v9341, 0.0
  %v9367 = vmin.f32 %v9345, 0.0
  %v9368 = vmin.f32 %v9347, 0.0
  %v9369 = vmin.f32 %v9351, 0.0
  %v9370 = vmin.f32 %v9353, 0.0
  %v9371 = vmul.f32 %v9363, 1.442695
  %v9372 = vpow.pop %v9371
  %v9373 = vmul.f32 %v9364, 1.442695
  %v9374 = vpow.pop %v9373
  %v9375 = vmul.f32 %v9365, 1.442695
  %v9376 = vpow.pop %v9375
  %v9377 = vmul.f32 %v9366, 1.442695
  %v9378 = vpow.pop %v9377
  %v9379 = vmul.f32 %v9367, 1.442695
  %v9380 = vpow.pop %v9379
  %v9381 = vmul.f32 %v9368, 1.442695
  %v9382 = vpow.pop %v9381
  %v9383 = vmul.f32 %v9369, 1.442695
  %v9384 = vpow.pop %v9383
  %v9385 = vmul.f32 %v9370, 1.442695
  %v9386 = vpow.pop %v9385
  %v9387 = vsub.f32 %v9372, 1.0
  %v9388 = vsub.f32 %v9374, 1.0
  %v9389 = vsub.f32 %v9376, 1.0
  %v9390 = vsub.f32 %v9378, 1.0
  %v9391 = vsub.f32 %v9380, 1.0
  %v9392 = vsub.f32 %v9382, 1.0
  %v9393 = vsub.f32 %v9384, 1.0
  %v9394 = vsub.f32 %v9386, 1.0
  %v9395 = vsel %vm9355, %v9333, %v9387
  %v9396 = vsel %vm9356, %v9335, %v9388
  %v9397 = vsel %vm9357, %v9339, %v9389
  %v9398 = vsel %vm9358, %v9341, %v9390
  %v9399 = vsel %vm9359, %v9345, %v9391
  %v9400 = vsel %vm9360, %v9347, %v9392
  %v9401 = vsel %vm9361, %v9351, %v9393
  %v9402 = vsel %vm9362, %v9353, %v9394
  %9411 = vrot.lane.b32.xlu0 %v5535, 127
  %v9412 = vpop.permute.xlu0 %9411
  %9413 = vrot.lane.b32.xlu0 %v5537, 127
  %v9414 = vpop.permute.xlu0 %9413
  %9415 = vrot.lane.b32.xlu0 %v5541, 127
  %v9416 = vpop.permute.xlu0 %9415
  %9417 = vrot.lane.b32.xlu0 %v5543, 127
  %v9418 = vpop.permute.xlu0 %9417
  %9419 = vrot.lane.b32.xlu0 %v5547, 127
  %v9420 = vpop.permute.xlu0 %9419
  %9421 = vrot.lane.b32.xlu0 %v5549, 127
  %v9422 = vpop.permute.xlu0 %9421
  %9423 = vrot.lane.b32.xlu0 %v5553, 127
  %v9424 = vpop.permute.xlu0 %9423
  %9425 = vrot.lane.b32.xlu0 %v5555, 127
  %v9426 = vpop.permute.xlu0 %9425
  %v9427 = vsel %vm5625, %v9412, %v9414
  %v9428 = vsel %vm5625, %v9416, %v9418
  %v9429 = vsel %vm5625, %v9420, %v9422
  %v9430 = vsel %vm5625, %v9424, %v9426
  %9439 = vrot.lane.b32.xlu0 %v5535, 126
  %v9440 = vpop.permute.xlu0 %9439
  %9441 = vrot.lane.b32.xlu0 %v5537, 126
  %v9442 = vpop.permute.xlu0 %9441
  %9443 = vrot.lane.b32.xlu0 %v5541, 126
  %v9444 = vpop.permute.xlu0 %9443
  %9445 = vrot.lane.b32.xlu0 %v5543, 126
  %v9446 = vpop.permute.xlu0 %9445
  %9447 = vrot.lane.b32.xlu0 %v5547, 126
  %v9448 = vpop.permute.xlu0 %9447
  %9449 = vrot.lane.b32.xlu0 %v5549, 126
  %v9450 = vpop.permute.xlu0 %9449
  %9451 = vrot.lane.b32.xlu0 %v5553, 126
  %v9452 = vpop.permute.xlu0 %9451
  %9453 = vrot.lane.b32.xlu0 %v5555, 126
  %v9454 = vpop.permute.xlu0 %9453
  %v9455 = vsel %vm5654, %v9440, %v9442
  %v9456 = vsel %vm5654, %v9444, %v9446
  %v9457 = vsel %vm5654, %v9448, %v9450
  %v9458 = vsel %vm5654, %v9452, %v9454
  %9467 = vrot.lane.b32.xlu0 %v5535, 125
  %v9468 = vpop.permute.xlu0 %9467
  %9469 = vrot.lane.b32.xlu0 %v5537, 125
  %v9470 = vpop.permute.xlu0 %9469
  %9471 = vrot.lane.b32.xlu0 %v5541, 125
  %v9472 = vpop.permute.xlu0 %9471
  %9473 = vrot.lane.b32.xlu0 %v5543, 125
  %v9474 = vpop.permute.xlu0 %9473
  %9475 = vrot.lane.b32.xlu0 %v5547, 125
  %v9476 = vpop.permute.xlu0 %9475
  %9477 = vrot.lane.b32.xlu0 %v5549, 125
  %v9478 = vpop.permute.xlu0 %9477
  %9479 = vrot.lane.b32.xlu0 %v5553, 125
  %v9480 = vpop.permute.xlu0 %9479
  %9481 = vrot.lane.b32.xlu0 %v5555, 125
  %v9482 = vpop.permute.xlu0 %9481
  %v9483 = vsel %vm5683, %v9468, %v9470
  %v9484 = vsel %vm5683, %v9472, %v9474
  %v9485 = vsel %vm5683, %v9476, %v9478
  %v9486 = vsel %vm5683, %v9480, %v9482
  %9495 = vrot.lane.b32.xlu0 %v5535, 124
  %v9496 = vpop.permute.xlu0 %9495
  %9497 = vrot.lane.b32.xlu0 %v5537, 124
  %v9498 = vpop.permute.xlu0 %9497
  %9499 = vrot.lane.b32.xlu0 %v5541, 124
  %v9500 = vpop.permute.xlu0 %9499
  %9501 = vrot.lane.b32.xlu0 %v5543, 124
  %v9502 = vpop.permute.xlu0 %9501
  %9503 = vrot.lane.b32.xlu0 %v5547, 124
  %v9504 = vpop.permute.xlu0 %9503
  %9505 = vrot.lane.b32.xlu0 %v5549, 124
  %v9506 = vpop.permute.xlu0 %9505
  %9507 = vrot.lane.b32.xlu0 %v5553, 124
  %v9508 = vpop.permute.xlu0 %9507
  %9509 = vrot.lane.b32.xlu0 %v5555, 124
  %v9510 = vpop.permute.xlu0 %9509
  %v9511 = vsel %vm5712, %v9496, %v9498
  %v9512 = vsel %vm5712, %v9500, %v9502
  %v9513 = vsel %vm5712, %v9504, %v9506
  %v9514 = vsel %vm5712, %v9508, %v9510
  %9523 = vrot.lane.b32.xlu0 %v5535, 123
  %v9524 = vpop.permute.xlu0 %9523
  %9525 = vrot.lane.b32.xlu0 %v5537, 123
  %v9526 = vpop.permute.xlu0 %9525
  %9527 = vrot.lane.b32.xlu0 %v5541, 123
  %v9528 = vpop.permute.xlu0 %9527
  %9529 = vrot.lane.b32.xlu0 %v5543, 123
  %v9530 = vpop.permute.xlu0 %9529
  %9531 = vrot.lane.b32.xlu0 %v5547, 123
  %v9532 = vpop.permute.xlu0 %9531
  %9533 = vrot.lane.b32.xlu0 %v5549, 123
  %v9534 = vpop.permute.xlu0 %9533
  %9535 = vrot.lane.b32.xlu0 %v5553, 123
  %v9536 = vpop.permute.xlu0 %9535
  %9537 = vrot.lane.b32.xlu0 %v5555, 123
  %v9538 = vpop.permute.xlu0 %9537
  %v9539 = vsel %vm5741, %v9524, %v9526
  %v9540 = vsel %vm5741, %v9528, %v9530
  %v9541 = vsel %vm5741, %v9532, %v9534
  %v9542 = vsel %vm5741, %v9536, %v9538
  %9551 = vrot.lane.b32.xlu0 %v5535, 122
  %v9552 = vpop.permute.xlu0 %9551
  %9553 = vrot.lane.b32.xlu0 %v5537, 122
  %v9554 = vpop.permute.xlu0 %9553
  %9555 = vrot.lane.b32.xlu0 %v5541, 122
  %v9556 = vpop.permute.xlu0 %9555
  %9557 = vrot.lane.b32.xlu0 %v5543, 122
  %v9558 = vpop.permute.xlu0 %9557
  %9559 = vrot.lane.b32.xlu0 %v5547, 122
  %v9560 = vpop.permute.xlu0 %9559
  %9561 = vrot.lane.b32.xlu0 %v5549, 122
  %v9562 = vpop.permute.xlu0 %9561
  %9563 = vrot.lane.b32.xlu0 %v5553, 122
  %v9564 = vpop.permute.xlu0 %9563
  %9565 = vrot.lane.b32.xlu0 %v5555, 122
  %v9566 = vpop.permute.xlu0 %9565
  %v9567 = vsel %vm5770, %v9552, %v9554
  %v9568 = vsel %vm5770, %v9556, %v9558
  %v9569 = vsel %vm5770, %v9560, %v9562
  %v9570 = vsel %vm5770, %v9564, %v9566
  %9579 = vrot.lane.b32.xlu0 %v5535, 121
  %v9580 = vpop.permute.xlu0 %9579
  %9581 = vrot.lane.b32.xlu0 %v5537, 121
  %v9582 = vpop.permute.xlu0 %9581
  %9583 = vrot.lane.b32.xlu0 %v5541, 121
  %v9584 = vpop.permute.xlu0 %9583
  %9585 = vrot.lane.b32.xlu0 %v5543, 121
  %v9586 = vpop.permute.xlu0 %9585
  %9587 = vrot.lane.b32.xlu0 %v5547, 121
  %v9588 = vpop.permute.xlu0 %9587
  %9589 = vrot.lane.b32.xlu0 %v5549, 121
  %v9590 = vpop.permute.xlu0 %9589
  %9591 = vrot.lane.b32.xlu0 %v5553, 121
  %v9592 = vpop.permute.xlu0 %9591
  %9593 = vrot.lane.b32.xlu0 %v5555, 121
  %v9594 = vpop.permute.xlu0 %9593
  %v9595 = vsel %vm5799, %v9580, %v9582
  %v9596 = vsel %vm5799, %v9584, %v9586
  %v9597 = vsel %vm5799, %v9588, %v9590
  %v9598 = vsel %vm5799, %v9592, %v9594
  %9607 = vrot.lane.b32.xlu0 %v5535, 120
  %v9608 = vpop.permute.xlu0 %9607
  %9609 = vrot.lane.b32.xlu0 %v5537, 120
  %v9610 = vpop.permute.xlu0 %9609
  %9611 = vrot.lane.b32.xlu0 %v5541, 120
  %v9612 = vpop.permute.xlu0 %9611
  %9613 = vrot.lane.b32.xlu0 %v5543, 120
  %v9614 = vpop.permute.xlu0 %9613
  %9615 = vrot.lane.b32.xlu0 %v5547, 120
  %v9616 = vpop.permute.xlu0 %9615
  %9617 = vrot.lane.b32.xlu0 %v5549, 120
  %v9618 = vpop.permute.xlu0 %9617
  %9619 = vrot.lane.b32.xlu0 %v5553, 120
  %v9620 = vpop.permute.xlu0 %9619
  %9621 = vrot.lane.b32.xlu0 %v5555, 120
  %v9622 = vpop.permute.xlu0 %9621
  %v9623 = vsel %vm5828, %v9608, %v9610
  %v9624 = vsel %vm5828, %v9612, %v9614
  %v9625 = vsel %vm5828, %v9616, %v9618
  %v9626 = vsel %vm5828, %v9620, %v9622
  %9635 = vrot.lane.b32.xlu0 %v5535, 119
  %v9636 = vpop.permute.xlu0 %9635
  %9637 = vrot.lane.b32.xlu0 %v5537, 119
  %v9638 = vpop.permute.xlu0 %9637
  %9639 = vrot.lane.b32.xlu0 %v5541, 119
  %v9640 = vpop.permute.xlu0 %9639
  %9641 = vrot.lane.b32.xlu0 %v5543, 119
  %v9642 = vpop.permute.xlu0 %9641
  %9643 = vrot.lane.b32.xlu0 %v5547, 119
  %v9644 = vpop.permute.xlu0 %9643
  %9645 = vrot.lane.b32.xlu0 %v5549, 119
  %v9646 = vpop.permute.xlu0 %9645
  %9647 = vrot.lane.b32.xlu0 %v5553, 119
  %v9648 = vpop.permute.xlu0 %9647
  %9649 = vrot.lane.b32.xlu0 %v5555, 119
  %v9650 = vpop.permute.xlu0 %9649
  %v9651 = vsel %vm5857, %v9636, %v9638
  %v9652 = vsel %vm5857, %v9640, %v9642
  %v9653 = vsel %vm5857, %v9644, %v9646
  %v9654 = vsel %vm5857, %v9648, %v9650
  %9663 = vrot.lane.b32.xlu0 %v5535, 118
  %v9664 = vpop.permute.xlu0 %9663
  %9665 = vrot.lane.b32.xlu0 %v5537, 118
  %v9666 = vpop.permute.xlu0 %9665
  %9667 = vrot.lane.b32.xlu0 %v5541, 118
  %v9668 = vpop.permute.xlu0 %9667
  %9669 = vrot.lane.b32.xlu0 %v5543, 118
  %v9670 = vpop.permute.xlu0 %9669
  %9671 = vrot.lane.b32.xlu0 %v5547, 118
  %v9672 = vpop.permute.xlu0 %9671
  %9673 = vrot.lane.b32.xlu0 %v5549, 118
  %v9674 = vpop.permute.xlu0 %9673
  %9675 = vrot.lane.b32.xlu0 %v5553, 118
  %v9676 = vpop.permute.xlu0 %9675
  %9677 = vrot.lane.b32.xlu0 %v5555, 118
  %v9678 = vpop.permute.xlu0 %9677
  %v9679 = vsel %vm5886, %v9664, %v9666
  %v9680 = vsel %vm5886, %v9668, %v9670
  %v9681 = vsel %vm5886, %v9672, %v9674
  %v9682 = vsel %vm5886, %v9676, %v9678
  %9691 = vrot.lane.b32.xlu0 %v5535, 117
  %v9692 = vpop.permute.xlu0 %9691
  %9693 = vrot.lane.b32.xlu0 %v5537, 117
  %v9694 = vpop.permute.xlu0 %9693
  %9695 = vrot.lane.b32.xlu0 %v5541, 117
  %v9696 = vpop.permute.xlu0 %9695
  %9697 = vrot.lane.b32.xlu0 %v5543, 117
  %v9698 = vpop.permute.xlu0 %9697
  %9699 = vrot.lane.b32.xlu0 %v5547, 117
  %v9700 = vpop.permute.xlu0 %9699
  %9701 = vrot.lane.b32.xlu0 %v5549, 117
  %v9702 = vpop.permute.xlu0 %9701
  %9703 = vrot.lane.b32.xlu0 %v5553, 117
  %v9704 = vpop.permute.xlu0 %9703
  %9705 = vrot.lane.b32.xlu0 %v5555, 117
  %v9706 = vpop.permute.xlu0 %9705
  %v9707 = vsel %vm5915, %v9692, %v9694
  %v9708 = vsel %vm5915, %v9696, %v9698
  %v9709 = vsel %vm5915, %v9700, %v9702
  %v9710 = vsel %vm5915, %v9704, %v9706
  %9719 = vrot.lane.b32.xlu0 %v5535, 116
  %v9720 = vpop.permute.xlu0 %9719
  %9721 = vrot.lane.b32.xlu0 %v5537, 116
  %v9722 = vpop.permute.xlu0 %9721
  %9723 = vrot.lane.b32.xlu0 %v5541, 116
  %v9724 = vpop.permute.xlu0 %9723
  %9725 = vrot.lane.b32.xlu0 %v5543, 116
  %v9726 = vpop.permute.xlu0 %9725
  %9727 = vrot.lane.b32.xlu0 %v5547, 116
  %v9728 = vpop.permute.xlu0 %9727
  %9729 = vrot.lane.b32.xlu0 %v5549, 116
  %v9730 = vpop.permute.xlu0 %9729
  %9731 = vrot.lane.b32.xlu0 %v5553, 116
  %v9732 = vpop.permute.xlu0 %9731
  %9733 = vrot.lane.b32.xlu0 %v5555, 116
  %v9734 = vpop.permute.xlu0 %9733
  %v9735 = vsel %vm5944, %v9720, %v9722
  %v9736 = vsel %vm5944, %v9724, %v9726
  %v9737 = vsel %vm5944, %v9728, %v9730
  %v9738 = vsel %vm5944, %v9732, %v9734
  %9747 = vrot.lane.b32.xlu0 %v5535, 115
  %v9748 = vpop.permute.xlu0 %9747
  %9749 = vrot.lane.b32.xlu0 %v5537, 115
  %v9750 = vpop.permute.xlu0 %9749
  %9751 = vrot.lane.b32.xlu0 %v5541, 115
  %v9752 = vpop.permute.xlu0 %9751
  %9753 = vrot.lane.b32.xlu0 %v5543, 115
  %v9754 = vpop.permute.xlu0 %9753
  %9755 = vrot.lane.b32.xlu0 %v5547, 115
  %v9756 = vpop.permute.xlu0 %9755
  %9757 = vrot.lane.b32.xlu0 %v5549, 115
  %v9758 = vpop.permute.xlu0 %9757
  %9759 = vrot.lane.b32.xlu0 %v5553, 115
  %v9760 = vpop.permute.xlu0 %9759
  %9761 = vrot.lane.b32.xlu0 %v5555, 115
  %v9762 = vpop.permute.xlu0 %9761
  %v9763 = vsel %vm5973, %v9748, %v9750
  %v9764 = vsel %vm5973, %v9752, %v9754
  %v9765 = vsel %vm5973, %v9756, %v9758
  %v9766 = vsel %vm5973, %v9760, %v9762
  %9775 = vrot.lane.b32.xlu0 %v5535, 114
  %v9776 = vpop.permute.xlu0 %9775
  %9777 = vrot.lane.b32.xlu0 %v5537, 114
  %v9778 = vpop.permute.xlu0 %9777
  %9779 = vrot.lane.b32.xlu0 %v5541, 114
  %v9780 = vpop.permute.xlu0 %9779
  %9781 = vrot.lane.b32.xlu0 %v5543, 114
  %v9782 = vpop.permute.xlu0 %9781
  %9783 = vrot.lane.b32.xlu0 %v5547, 114
  %v9784 = vpop.permute.xlu0 %9783
  %9785 = vrot.lane.b32.xlu0 %v5549, 114
  %v9786 = vpop.permute.xlu0 %9785
  %9787 = vrot.lane.b32.xlu0 %v5553, 114
  %v9788 = vpop.permute.xlu0 %9787
  %9789 = vrot.lane.b32.xlu0 %v5555, 114
  %v9790 = vpop.permute.xlu0 %9789
  %v9791 = vsel %vm6002, %v9776, %v9778
  %v9792 = vsel %vm6002, %v9780, %v9782
  %v9793 = vsel %vm6002, %v9784, %v9786
  %v9794 = vsel %vm6002, %v9788, %v9790
  %9803 = vmatprep.subr.mxu0 %v5537
  %9804 = vmatpush1.msra.mxu0 %v5535
  %9805 = vmatprep.subr.mxu0 %v5543
  %9806 = vmatpush1.msra.mxu0 %v5541
  %9807 = vmatprep.subr.mxu0 %v5549
  %9808 = vmatpush1.msra.mxu0 %v5547
  %9809 = vmatprep.subr.mxu0 %v5555
  %9810 = vmatpush1.msra.mxu0 %v5553
  %9811 = vmatprep.subr.mxu0 %v9414
  %9812 = vmatpush1.msra.mxu0 %v9427
  %9813 = vmatprep.subr.mxu0 %v9418
  %9814 = vmatpush1.msra.mxu0 %v9428
  %9815 = vmatprep.subr.mxu0 %v9422
  %9816 = vmatpush1.msra.mxu0 %v9429
  %9817 = vmatprep.subr.mxu0 %v9426
  %9818 = vmatpush1.msra.mxu0 %v9430
  %9819 = vmatprep.subr.mxu0 %v9442
  %9820 = vmatpush1.msra.mxu0 %v9455
  %9821 = vmatprep.subr.mxu0 %v9446
  %9822 = vmatpush1.msra.mxu0 %v9456
  %9823 = vmatprep.subr.mxu0 %v9450
  %9824 = vmatpush1.msra.mxu0 %v9457
  %9825 = vmatprep.subr.mxu0 %v9454
  %9826 = vmatpush1.msra.mxu0 %v9458
  %9827 = vmatprep.subr.mxu0 %v9470
  %9828 = vmatpush1.msra.mxu0 %v9483
  %9829 = vmatprep.subr.mxu0 %v9474
  %9830 = vmatpush1.msra.mxu0 %v9484
  %9831 = vmatprep.subr.mxu0 %v9478
  %9832 = vmatpush1.msra.mxu0 %v9485
  %9833 = vmatprep.subr.mxu0 %v9482
  %9834 = vmatpush1.msra.mxu0 %v9486
  %9835 = vmatprep.subr.mxu0 %v9498
  %9836 = vmatpush1.msra.mxu0 %v9511
  %9837 = vmatprep.subr.mxu0 %v9502
  %9838 = vmatpush1.msra.mxu0 %v9512
  %9839 = vmatprep.subr.mxu0 %v9506
  %9840 = vmatpush1.msra.mxu0 %v9513
  %9841 = vmatprep.subr.mxu0 %v9510
  %9842 = vmatpush1.msra.mxu0 %v9514
  %9843 = vmatprep.subr.mxu0 %v9526
  %9844 = vmatpush1.msra.mxu0 %v9539
  %9845 = vmatprep.subr.mxu0 %v9530
  %9846 = vmatpush1.msra.mxu0 %v9540
  %9847 = vmatprep.subr.mxu0 %v9534
  %9848 = vmatpush1.msra.mxu0 %v9541
  %9849 = vmatprep.subr.mxu0 %v9538
  %9850 = vmatpush1.msra.mxu0 %v9542
  %9851 = vmatprep.subr.mxu0 %v9554
  %9852 = vmatpush1.msra.mxu0 %v9567
  %9853 = vmatprep.subr.mxu0 %v9558
  %9854 = vmatpush1.msra.mxu0 %v9568
  %9855 = vmatprep.subr.mxu0 %v9562
  %9856 = vmatpush1.msra.mxu0 %v9569
  %9857 = vmatprep.subr.mxu0 %v9566
  %9858 = vmatpush1.msra.mxu0 %v9570
  %9859 = vmatprep.subr.mxu0 %v9582
  %9860 = vmatpush1.msra.mxu0 %v9595
  %9861 = vmatprep.subr.mxu0 %v9586
  %9862 = vmatpush1.msra.mxu0 %v9596
  %9863 = vmatprep.subr.mxu0 %v9590
  %9864 = vmatpush1.msra.mxu0 %v9597
  %9865 = vmatprep.subr.mxu0 %v9594
  %9866 = vmatpush1.msra.mxu0 %v9598
  %9867 = vmatprep.mubr.f32.mxu0 %v5582
  %9868 = vmatmul.mubr.f32.gmra.mrb[0].mxu0 %v5581
  %v9869 = vpop.f32.mrb[0].mxu0
  %v9870 = vadd.f32 %v6018, %v9869
  %v9871 = vpop.f32.mrb[0].mxu0
  %v9872 = vadd.f32 %v6018, %v9871
  %9873 = vmatprep.mubr.f32.mxu0 %v5586
  %9874 = vmatmul.mubr.f32.gmra.mrb[0].mxu0 %v5585
  %v9875 = vpop.f32.mrb[0].mxu0
  %v9876 = vadd.f32 %v6023, %v9875
  %v9877 = vpop.f32.mrb[0].mxu0
  %v9878 = vadd.f32 %v6023, %v9877
  %9879 = vmatprep.mubr.f32.mxu0 %v5590
  %9880 = vmatmul.mubr.f32.gmra.mrb[0].mxu0 %v5589
  %v9881 = vpop.f32.mrb[0].mxu0
  %v9882 = vadd.f32 %v6028, %v9881
  %v9883 = vpop.f32.mrb[0].mxu0
  %v9884 = vadd.f32 %v6028, %v9883
  %9885 = vmatprep.mubr.f32.mxu0 %v5594
  %9886 = vmatmul.mubr.f32.gmra.mrb[0].mxu0 %v5593
  %v9887 = vpop.f32.mrb[0].mxu0
  %v9888 = vadd.f32 %v6033, %v9887
  %v9889 = vpop.f32.mrb[0].mxu0
  %v9890 = vadd.f32 %v6033, %v9889
  %9891 = vdwg.mxu0
  %9892 = vmatprep.subr.mxu0 %v9610
  %9893 = vmatpush1.msra.mxu0 %v9623
  %9894 = vmatprep.subr.mxu0 %v9614
  %9895 = vmatpush1.msra.mxu0 %v9624
  %9896 = vmatprep.subr.mxu0 %v9618
  %9897 = vmatpush1.msra.mxu0 %v9625
  %9898 = vmatprep.subr.mxu0 %v9622
  %9899 = vmatpush1.msra.mxu0 %v9626
  %9900 = vmatprep.subr.mxu0 %v9638
  %9901 = vmatpush1.msra.mxu0 %v9651
  %9902 = vmatprep.subr.mxu0 %v9642
  %9903 = vmatpush1.msra.mxu0 %v9652
  %9904 = vmatprep.subr.mxu0 %v9646
  %9905 = vmatpush1.msra.mxu0 %v9653
  %9906 = vmatprep.subr.mxu0 %v9650
  %9907 = vmatpush1.msra.mxu0 %v9654
  %9908 = vmatprep.subr.mxu0 %v9666
  %9909 = vmatpush1.msra.mxu0 %v9679
  %9910 = vmatprep.subr.mxu0 %v9670
  %9911 = vmatpush1.msra.mxu0 %v9680
  %9912 = vmatprep.subr.mxu0 %v9674
  %9913 = vmatpush1.msra.mxu0 %v9681
  %9914 = vmatprep.subr.mxu0 %v9678
  %9915 = vmatpush1.msra.mxu0 %v9682
  %9916 = vmatprep.subr.mxu0 %v9694
  %9917 = vmatpush1.msra.mxu0 %v9707
  %9918 = vmatprep.subr.mxu0 %v9698
  %9919 = vmatpush1.msra.mxu0 %v9708
  %9920 = vmatprep.subr.mxu0 %v9702
  %9921 = vmatpush1.msra.mxu0 %v9709
  %9922 = vmatprep.subr.mxu0 %v9706
  %9923 = vmatpush1.msra.mxu0 %v9710
  %9924 = vmatprep.subr.mxu0 %v9722
  %9925 = vmatpush1.msra.mxu0 %v9735
  %9926 = vmatprep.subr.mxu0 %v9726
  %9927 = vmatpush1.msra.mxu0 %v9736
  %9928 = vmatprep.subr.mxu0 %v9730
  %9929 = vmatpush1.msra.mxu0 %v9737
  %9930 = vmatprep.subr.mxu0 %v9734
  %9931 = vmatpush1.msra.mxu0 %v9738
  %9932 = vmatprep.subr.mxu0 %v9750
  %9933 = vmatpush1.msra.mxu0 %v9763
  %9934 = vmatprep.subr.mxu0 %v9754
  %9935 = vmatpush1.msra.mxu0 %v9764
  %9936 = vmatprep.subr.mxu0 %v9758
  %9937 = vmatpush1.msra.mxu0 %v9765
  %9938 = vmatprep.subr.mxu0 %v9762
  %9939 = vmatpush1.msra.mxu0 %v9766
  %9940 = vmatprep.subr.mxu0 %v9778
  %9941 = vmatpush1.msra.mxu0 %v9791
  %9942 = vmatprep.subr.mxu0 %v9782
  %9943 = vmatpush1.msra.mxu0 %v9792
  %9944 = vmatprep.subr.mxu0 %v9786
  %9945 = vmatpush1.msra.mxu0 %v9793
  %9946 = vmatprep.subr.mxu0 %v9790
  %9947 = vmatpush1.msra.mxu0 %v9794
  %9948 = vmatprep.subr.mxu0 0.0
  %9949 = vmatpush1.msra.mxu0 0.0
  %9950 = vmatprep.subr.mxu0 0.0
  %9951 = vmatpush1.msra.mxu0 0.0
  %9952 = vmatprep.subr.mxu0 0.0
  %9953 = vmatpush1.msra.mxu0 0.0
  %9954 = vmatprep.subr.mxu0 0.0
  %9955 = vmatpush1.msra.mxu0 0.0
  %9956 = vmatprep.mubr.f32.mxu0 %v6036
  %9957 = vmatmul.mubr.f32.gmra.mrb[0].mxu0 %v5583
  %v9958 = vpop.f32.mrb[0].mxu0
  %v9959 = vadd.f32 %v9870, %v9958
  %v9960 = vpop.f32.mrb[0].mxu0
  %v9961 = vadd.f32 %v9872, %v9960
  %9962 = vmatprep.mubr.f32.mxu0 %v6039
  %9963 = vmatmul.mubr.f32.gmra.mrb[0].mxu0 %v5587
  %v9964 = vpop.f32.mrb[0].mxu0
  %v9965 = vadd.f32 %v9876, %v9964
  %v9966 = vpop.f32.mrb[0].mxu0
  %v9967 = vadd.f32 %v9878, %v9966
  %9968 = vmatprep.mubr.f32.mxu0 %v6042
  %9969 = vmatmul.mubr.f32.gmra.mrb[0].mxu0 %v5591
  %v9970 = vpop.f32.mrb[0].mxu0
  %v9971 = vadd.f32 %v9882, %v9970
  %v9972 = vpop.f32.mrb[0].mxu0
  %v9973 = vadd.f32 %v9884, %v9972
  %9974 = vmatprep.mubr.f32.mxu0 %v6045
  %9975 = vmatmul.mubr.f32.gmra.mrb[0].mxu0 %v5595
  %v9976 = vpop.f32.mrb[0].mxu0
  %v9977 = vadd.f32 %v9888, %v9976
  %v9978 = vpop.f32.mrb[0].mxu0
  %v9979 = vadd.f32 %v9890, %v9978
  %9980 = vdwg.mxu0
  %vm9981 = vcmp.gt.f32.partialorder %v9959, 0.0
  %vm9982 = vcmp.gt.f32.partialorder %v9961, 0.0
  %vm9983 = vcmp.gt.f32.partialorder %v9965, 0.0
  %vm9984 = vcmp.gt.f32.partialorder %v9967, 0.0
  %vm9985 = vcmp.gt.f32.partialorder %v9971, 0.0
  %vm9986 = vcmp.gt.f32.partialorder %v9973, 0.0
  %vm9987 = vcmp.gt.f32.partialorder %v9977, 0.0
  %vm9988 = vcmp.gt.f32.partialorder %v9979, 0.0
  %v9989 = vmin.f32 %v9959, 0.0
  %v9990 = vmin.f32 %v9961, 0.0
  %v9991 = vmin.f32 %v9965, 0.0
  %v9992 = vmin.f32 %v9967, 0.0
  %v9993 = vmin.f32 %v9971, 0.0
  %v9994 = vmin.f32 %v9973, 0.0
  %v9995 = vmin.f32 %v9977, 0.0
  %v9996 = vmin.f32 %v9979, 0.0
  %v9997 = vmul.f32 %v9989, 1.442695
  %v9998 = vpow.pop %v9997
  %v9999 = vmul.f32 %v9990, 1.442695
  %v10000 = vpow.pop %v9999
  %v10001 = vmul.f32 %v9991, 1.442695
  %v10002 = vpow.pop %v10001
  %v10003 = vmul.f32 %v9992, 1.442695
  %v10004 = vpow.pop %v10003
  %v10005 = vmul.f32 %v9993, 1.442695
  %v10006 = vpow.pop %v10005
  %v10007 = vmul.f32 %v9994, 1.442695
  %v10008 = vpow.pop %v10007
  %v10009 = vmul.f32 %v9995, 1.442695
  %v10010 = vpow.pop %v10009
  %v10011 = vmul.f32 %v9996, 1.442695
  %v10012 = vpow.pop %v10011
  %v10013 = vsub.f32 %v9998, 1.0
  %v10014 = vsub.f32 %v10000, 1.0
  %v10015 = vsub.f32 %v10002, 1.0
  %v10016 = vsub.f32 %v10004, 1.0
  %v10017 = vsub.f32 %v10006, 1.0
  %v10018 = vsub.f32 %v10008, 1.0
  %v10019 = vsub.f32 %v10010, 1.0
  %v10020 = vsub.f32 %v10012, 1.0
  %v10021 = vsel %vm9981, %v9959, %v10013
  %v10022 = vsel %vm9982, %v9961, %v10014
  %v10023 = vsel %vm9983, %v9965, %v10015
  %v10024 = vsel %vm9984, %v9967, %v10016
  %v10025 = vsel %vm9985, %v9971, %v10017
  %v10026 = vsel %vm9986, %v9973, %v10018
  %v10027 = vsel %vm9987, %v9977, %v10019
  %v10028 = vsel %vm9988, %v9979, %v10020
  %10037 = vrot.lane.b32.xlu0 %v5559, 127
  %v10038 = vpop.permute.xlu0 %10037
  %10039 = vrot.lane.b32.xlu0 %v5561, 127
  %v10040 = vpop.permute.xlu0 %10039
  %10041 = vrot.lane.b32.xlu0 %v5565, 127
  %v10042 = vpop.permute.xlu0 %10041
  %10043 = vrot.lane.b32.xlu0 %v5567, 127
  %v10044 = vpop.permute.xlu0 %10043
  %10045 = vrot.lane.b32.xlu0 %v5571, 127
  %v10046 = vpop.permute.xlu0 %10045
  %10047 = vrot.lane.b32.xlu0 %v5573, 127
  %v10048 = vpop.permute.xlu0 %10047
  %10049 = vrot.lane.b32.xlu0 %v5577, 127
  %v10050 = vpop.permute.xlu0 %10049
  %10051 = vrot.lane.b32.xlu0 %v5579, 127
  %v10052 = vpop.permute.xlu0 %10051
  %v10053 = vsel %vm5625, %v10038, %v10040
  %v10054 = vsel %vm5625, %v10042, %v10044
  %v10055 = vsel %vm5625, %v10046, %v10048
  %v10056 = vsel %vm5625, %v10050, %v10052
  %10065 = vrot.lane.b32.xlu0 %v5559, 126
  %v10066 = vpop.permute.xlu0 %10065
  %10067 = vrot.lane.b32.xlu0 %v5561, 126
  %v10068 = vpop.permute.xlu0 %10067
  %10069 = vrot.lane.b32.xlu0 %v5565, 126
  %v10070 = vpop.permute.xlu0 %10069
  %10071 = vrot.lane.b32.xlu0 %v5567, 126
  %v10072 = vpop.permute.xlu0 %10071
  %10073 = vrot.lane.b32.xlu0 %v5571, 126
  %v10074 = vpop.permute.xlu0 %10073
  %10075 = vrot.lane.b32.xlu0 %v5573, 126
  %v10076 = vpop.permute.xlu0 %10075
  %10077 = vrot.lane.b32.xlu0 %v5577, 126
  %v10078 = vpop.permute.xlu0 %10077
  %10079 = vrot.lane.b32.xlu0 %v5579, 126
  %v10080 = vpop.permute.xlu0 %10079
  %v10081 = vsel %vm5654, %v10066, %v10068
  %v10082 = vsel %vm5654, %v10070, %v10072
  %v10083 = vsel %vm5654, %v10074, %v10076
  %v10084 = vsel %vm5654, %v10078, %v10080
  %10093 = vrot.lane.b32.xlu0 %v5559, 125
  %v10094 = vpop.permute.xlu0 %10093
  %10095 = vrot.lane.b32.xlu0 %v5561, 125
  %v10096 = vpop.permute.xlu0 %10095
  %10097 = vrot.lane.b32.xlu0 %v5565, 125
  %v10098 = vpop.permute.xlu0 %10097
  %10099 = vrot.lane.b32.xlu0 %v5567, 125
  %v10100 = vpop.permute.xlu0 %10099
  %10101 = vrot.lane.b32.xlu0 %v5571, 125
  %v10102 = vpop.permute.xlu0 %10101
  %10103 = vrot.lane.b32.xlu0 %v5573, 125
  %v10104 = vpop.permute.xlu0 %10103
  %10105 = vrot.lane.b32.xlu0 %v5577, 125
  %v10106 = vpop.permute.xlu0 %10105
  %10107 = vrot.lane.b32.xlu0 %v5579, 125
  %v10108 = vpop.permute.xlu0 %10107
  %v10109 = vsel %vm5683, %v10094, %v10096
  %v10110 = vsel %vm5683, %v10098, %v10100
  %v10111 = vsel %vm5683, %v10102, %v10104
  %v10112 = vsel %vm5683, %v10106, %v10108
  %10121 = vrot.lane.b32.xlu0 %v5559, 124
  %v10122 = vpop.permute.xlu0 %10121
  %10123 = vrot.lane.b32.xlu0 %v5561, 124
  %v10124 = vpop.permute.xlu0 %10123
  %10125 = vrot.lane.b32.xlu0 %v5565, 124
  %v10126 = vpop.permute.xlu0 %10125
  %10127 = vrot.lane.b32.xlu0 %v5567, 124
  %v10128 = vpop.permute.xlu0 %10127
  %10129 = vrot.lane.b32.xlu0 %v5571, 124
  %v10130 = vpop.permute.xlu0 %10129
  %10131 = vrot.lane.b32.xlu0 %v5573, 124
  %v10132 = vpop.permute.xlu0 %10131
  %10133 = vrot.lane.b32.xlu0 %v5577, 124
  %v10134 = vpop.permute.xlu0 %10133
  %10135 = vrot.lane.b32.xlu0 %v5579, 124
  %v10136 = vpop.permute.xlu0 %10135
  %v10137 = vsel %vm5712, %v10122, %v10124
  %v10138 = vsel %vm5712, %v10126, %v10128
  %v10139 = vsel %vm5712, %v10130, %v10132
  %v10140 = vsel %vm5712, %v10134, %v10136
  %10149 = vrot.lane.b32.xlu0 %v5559, 123
  %v10150 = vpop.permute.xlu0 %10149
  %10151 = vrot.lane.b32.xlu0 %v5561, 123
  %v10152 = vpop.permute.xlu0 %10151
  %10153 = vrot.lane.b32.xlu0 %v5565, 123
  %v10154 = vpop.permute.xlu0 %10153
  %10155 = vrot.lane.b32.xlu0 %v5567, 123
  %v10156 = vpop.permute.xlu0 %10155
  %10157 = vrot.lane.b32.xlu0 %v5571, 123
  %v10158 = vpop.permute.xlu0 %10157
  %10159 = vrot.lane.b32.xlu0 %v5573, 123
  %v10160 = vpop.permute.xlu0 %10159
  %10161 = vrot.lane.b32.xlu0 %v5577, 123
  %v10162 = vpop.permute.xlu0 %10161
  %10163 = vrot.lane.b32.xlu0 %v5579, 123
  %v10164 = vpop.permute.xlu0 %10163
  %v10165 = vsel %vm5741, %v10150, %v10152
  %v10166 = vsel %vm5741, %v10154, %v10156
  %v10167 = vsel %vm5741, %v10158, %v10160
  %v10168 = vsel %vm5741, %v10162, %v10164
  %10177 = vrot.lane.b32.xlu0 %v5559, 122
  %v10178 = vpop.permute.xlu0 %10177
  %10179 = vrot.lane.b32.xlu0 %v5561, 122
  %v10180 = vpop.permute.xlu0 %10179
  %10181 = vrot.lane.b32.xlu0 %v5565, 122
  %v10182 = vpop.permute.xlu0 %10181
  %10183 = vrot.lane.b32.xlu0 %v5567, 122
  %v10184 = vpop.permute.xlu0 %10183
  %10185 = vrot.lane.b32.xlu0 %v5571, 122
  %v10186 = vpop.permute.xlu0 %10185
  %10187 = vrot.lane.b32.xlu0 %v5573, 122
  %v10188 = vpop.permute.xlu0 %10187
  %10189 = vrot.lane.b32.xlu0 %v5577, 122
  %v10190 = vpop.permute.xlu0 %10189
  %10191 = vrot.lane.b32.xlu0 %v5579, 122
  %v10192 = vpop.permute.xlu0 %10191
  %v10193 = vsel %vm5770, %v10178, %v10180
  %v10194 = vsel %vm5770, %v10182, %v10184
  %v10195 = vsel %vm5770, %v10186, %v10188
  %v10196 = vsel %vm5770, %v10190, %v10192
  %10205 = vrot.lane.b32.xlu0 %v5559, 121
  %v10206 = vpop.permute.xlu0 %10205
  %10207 = vrot.lane.b32.xlu0 %v5561, 121
  %v10208 = vpop.permute.xlu0 %10207
  %10209 = vrot.lane.b32.xlu0 %v5565, 121
  %v10210 = vpop.permute.xlu0 %10209
  %10211 = vrot.lane.b32.xlu0 %v5567, 121
  %v10212 = vpop.permute.xlu0 %10211
  %10213 = vrot.lane.b32.xlu0 %v5571, 121
  %v10214 = vpop.permute.xlu0 %10213
  %10215 = vrot.lane.b32.xlu0 %v5573, 121
  %v10216 = vpop.permute.xlu0 %10215
  %10217 = vrot.lane.b32.xlu0 %v5577, 121
  %v10218 = vpop.permute.xlu0 %10217
  %10219 = vrot.lane.b32.xlu0 %v5579, 121
  %v10220 = vpop.permute.xlu0 %10219
  %v10221 = vsel %vm5799, %v10206, %v10208
  %v10222 = vsel %vm5799, %v10210, %v10212
  %v10223 = vsel %vm5799, %v10214, %v10216
  %v10224 = vsel %vm5799, %v10218, %v10220
  %10233 = vrot.lane.b32.xlu0 %v5559, 120
  %v10234 = vpop.permute.xlu0 %10233
  %10235 = vrot.lane.b32.xlu0 %v5561, 120
  %v10236 = vpop.permute.xlu0 %10235
  %10237 = vrot.lane.b32.xlu0 %v5565, 120
  %v10238 = vpop.permute.xlu0 %10237
  %10239 = vrot.lane.b32.xlu0 %v5567, 120
  %v10240 = vpop.permute.xlu0 %10239
  %10241 = vrot.lane.b32.xlu0 %v5571, 120
  %v10242 = vpop.permute.xlu0 %10241
  %10243 = vrot.lane.b32.xlu0 %v5573, 120
  %v10244 = vpop.permute.xlu0 %10243
  %10245 = vrot.lane.b32.xlu0 %v5577, 120
  %v10246 = vpop.permute.xlu0 %10245
  %10247 = vrot.lane.b32.xlu0 %v5579, 120
  %v10248 = vpop.permute.xlu0 %10247
  %v10249 = vsel %vm5828, %v10234, %v10236
  %v10250 = vsel %vm5828, %v10238, %v10240
  %v10251 = vsel %vm5828, %v10242, %v10244
  %v10252 = vsel %vm5828, %v10246, %v10248
  %10261 = vrot.lane.b32.xlu0 %v5559, 119
  %v10262 = vpop.permute.xlu0 %10261
  %10263 = vrot.lane.b32.xlu0 %v5561, 119
  %v10264 = vpop.permute.xlu0 %10263
  %10265 = vrot.lane.b32.xlu0 %v5565, 119
  %v10266 = vpop.permute.xlu0 %10265
  %10267 = vrot.lane.b32.xlu0 %v5567, 119
  %v10268 = vpop.permute.xlu0 %10267
  %10269 = vrot.lane.b32.xlu0 %v5571, 119
  %v10270 = vpop.permute.xlu0 %10269
  %10271 = vrot.lane.b32.xlu0 %v5573, 119
  %v10272 = vpop.permute.xlu0 %10271
  %10273 = vrot.lane.b32.xlu0 %v5577, 119
  %v10274 = vpop.permute.xlu0 %10273
  %10275 = vrot.lane.b32.xlu0 %v5579, 119
  %v10276 = vpop.permute.xlu0 %10275
  %v10277 = vsel %vm5857, %v10262, %v10264
  %v10278 = vsel %vm5857, %v10266, %v10268
  %v10279 = vsel %vm5857, %v10270, %v10272
  %v10280 = vsel %vm5857, %v10274, %v10276
  %10289 = vrot.lane.b32.xlu0 %v5559, 118
  %v10290 = vpop.permute.xlu0 %10289
  %10291 = vrot.lane.b32.xlu0 %v5561, 118
  %v10292 = vpop.permute.xlu0 %10291
  %10293 = vrot.lane.b32.xlu0 %v5565, 118
  %v10294 = vpop.permute.xlu0 %10293
  %10295 = vrot.lane.b32.xlu0 %v5567, 118
  %v10296 = vpop.permute.xlu0 %10295
  %10297 = vrot.lane.b32.xlu0 %v5571, 118
  %v10298 = vpop.permute.xlu0 %10297
  %10299 = vrot.lane.b32.xlu0 %v5573, 118
  %v10300 = vpop.permute.xlu0 %10299
  %10301 = vrot.lane.b32.xlu0 %v5577, 118
  %v10302 = vpop.permute.xlu0 %10301
  %10303 = vrot.lane.b32.xlu0 %v5579, 118
  %v10304 = vpop.permute.xlu0 %10303
  %v10305 = vsel %vm5886, %v10290, %v10292
  %v10306 = vsel %vm5886, %v10294, %v10296
  %v10307 = vsel %vm5886, %v10298, %v10300
  %v10308 = vsel %vm5886, %v10302, %v10304
  %10317 = vrot.lane.b32.xlu0 %v5559, 117
  %v10318 = vpop.permute.xlu0 %10317
  %10319 = vrot.lane.b32.xlu0 %v5561, 117
  %v10320 = vpop.permute.xlu0 %10319
  %10321 = vrot.lane.b32.xlu0 %v5565, 117
  %v10322 = vpop.permute.xlu0 %10321
  %10323 = vrot.lane.b32.xlu0 %v5567, 117
  %v10324 = vpop.permute.xlu0 %10323
  %10325 = vrot.lane.b32.xlu0 %v5571, 117
  %v10326 = vpop.permute.xlu0 %10325
  %10327 = vrot.lane.b32.xlu0 %v5573, 117
  %v10328 = vpop.permute.xlu0 %10327
  %10329 = vrot.lane.b32.xlu0 %v5577, 117
  %v10330 = vpop.permute.xlu0 %10329
  %10331 = vrot.lane.b32.xlu0 %v5579, 117
  %v10332 = vpop.permute.xlu0 %10331
  %v10333 = vsel %vm5915, %v10318, %v10320
  %v10334 = vsel %vm5915, %v10322, %v10324
  %v10335 = vsel %vm5915, %v10326, %v10328
  %v10336 = vsel %vm5915, %v10330, %v10332
  %10345 = vrot.lane.b32.xlu0 %v5559, 116
  %v10346 = vpop.permute.xlu0 %10345
  %10347 = vrot.lane.b32.xlu0 %v5561, 116
  %v10348 = vpop.permute.xlu0 %10347
  %10349 = vrot.lane.b32.xlu0 %v5565, 116
  %v10350 = vpop.permute.xlu0 %10349
  %10351 = vrot.lane.b32.xlu0 %v5567, 116
  %v10352 = vpop.permute.xlu0 %10351
  %10353 = vrot.lane.b32.xlu0 %v5571, 116
  %v10354 = vpop.permute.xlu0 %10353
  %10355 = vrot.lane.b32.xlu0 %v5573, 116
  %v10356 = vpop.permute.xlu0 %10355
  %10357 = vrot.lane.b32.xlu0 %v5577, 116
  %v10358 = vpop.permute.xlu0 %10357
  %10359 = vrot.lane.b32.xlu0 %v5579, 116
  %v10360 = vpop.permute.xlu0 %10359
  %v10361 = vsel %vm5944, %v10346, %v10348
  %v10362 = vsel %vm5944, %v10350, %v10352
  %v10363 = vsel %vm5944, %v10354, %v10356
  %v10364 = vsel %vm5944, %v10358, %v10360
  %10373 = vrot.lane.b32.xlu0 %v5559, 115
  %v10374 = vpop.permute.xlu0 %10373
  %10375 = vrot.lane.b32.xlu0 %v5561, 115
  %v10376 = vpop.permute.xlu0 %10375
  %10377 = vrot.lane.b32.xlu0 %v5565, 115
  %v10378 = vpop.permute.xlu0 %10377
  %10379 = vrot.lane.b32.xlu0 %v5567, 115
  %v10380 = vpop.permute.xlu0 %10379
  %10381 = vrot.lane.b32.xlu0 %v5571, 115
  %v10382 = vpop.permute.xlu0 %10381
  %10383 = vrot.lane.b32.xlu0 %v5573, 115
  %v10384 = vpop.permute.xlu0 %10383
  %10385 = vrot.lane.b32.xlu0 %v5577, 115
  %v10386 = vpop.permute.xlu0 %10385
  %10387 = vrot.lane.b32.xlu0 %v5579, 115
  %v10388 = vpop.permute.xlu0 %10387
  %v10389 = vsel %vm5973, %v10374, %v10376
  %v10390 = vsel %vm5973, %v10378, %v10380
  %v10391 = vsel %vm5973, %v10382, %v10384
  %v10392 = vsel %vm5973, %v10386, %v10388
  %10401 = vrot.lane.b32.xlu0 %v5559, 114
  %v10402 = vpop.permute.xlu0 %10401
  %10403 = vrot.lane.b32.xlu0 %v5561, 114
  %v10404 = vpop.permute.xlu0 %10403
  %10405 = vrot.lane.b32.xlu0 %v5565, 114
  %v10406 = vpop.permute.xlu0 %10405
  %10407 = vrot.lane.b32.xlu0 %v5567, 114
  %v10408 = vpop.permute.xlu0 %10407
  %10409 = vrot.lane.b32.xlu0 %v5571, 114
  %v10410 = vpop.permute.xlu0 %10409
  %10411 = vrot.lane.b32.xlu0 %v5573, 114
  %v10412 = vpop.permute.xlu0 %10411
  %10413 = vrot.lane.b32.xlu0 %v5577, 114
  %v10414 = vpop.permute.xlu0 %10413
  %10415 = vrot.lane.b32.xlu0 %v5579, 114
  %v10416 = vpop.permute.xlu0 %10415
  %v10417 = vsel %vm6002, %v10402, %v10404
  %v10418 = vsel %vm6002, %v10406, %v10408
  %v10419 = vsel %vm6002, %v10410, %v10412
  %v10420 = vsel %vm6002, %v10414, %v10416
  %10429 = vmatprep.subr.mxu0 %v5561
  %10430 = vmatpush1.msra.mxu0 %v5559
  %10431 = vmatprep.subr.mxu0 %v5567
  %10432 = vmatpush1.msra.mxu0 %v5565
  %10433 = vmatprep.subr.mxu0 %v5573
  %10434 = vmatpush1.msra.mxu0 %v5571
  %10435 = vmatprep.subr.mxu0 %v5579
  %10436 = vmatpush1.msra.mxu0 %v5577
  %10437 = vmatprep.subr.mxu0 %v10040
  %10438 = vmatpush1.msra.mxu0 %v10053
  %10439 = vmatprep.subr.mxu0 %v10044
  %10440 = vmatpush1.msra.mxu0 %v10054
  %10441 = vmatprep.subr.mxu0 %v10048
  %10442 = vmatpush1.msra.mxu0 %v10055
  %10443 = vmatprep.subr.mxu0 %v10052
  %10444 = vmatpush1.msra.mxu0 %v10056
  %10445 = vmatprep.subr.mxu0 %v10068
  %10446 = vmatpush1.msra.mxu0 %v10081
  %10447 = vmatprep.subr.mxu0 %v10072
  %10448 = vmatpush1.msra.mxu0 %v10082
  %10449 = vmatprep.subr.mxu0 %v10076
  %10450 = vmatpush1.msra.mxu0 %v10083
  %10451 = vmatprep.subr.mxu0 %v10080
  %10452 = vmatpush1.msra.mxu0 %v10084
  %10453 = vmatprep.subr.mxu0 %v10096
  %10454 = vmatpush1.msra.mxu0 %v10109
  %10455 = vmatprep.subr.mxu0 %v10100
  %10456 = vmatpush1.msra.mxu0 %v10110
  %10457 = vmatprep.subr.mxu0 %v10104
  %10458 = vmatpush1.msra.mxu0 %v10111
  %10459 = vmatprep.subr.mxu0 %v10108
  %10460 = vmatpush1.msra.mxu0 %v10112
  %10461 = vmatprep.subr.mxu0 %v10124
  %10462 = vmatpush1.msra.mxu0 %v10137
  %10463 = vmatprep.subr.mxu0 %v10128
  %10464 = vmatpush1.msra.mxu0 %v10138
  %10465 = vmatprep.subr.mxu0 %v10132
  %10466 = vmatpush1.msra.mxu0 %v10139
  %10467 = vmatprep.subr.mxu0 %v10136
  %10468 = vmatpush1.msra.mxu0 %v10140
  %10469 = vmatprep.subr.mxu0 %v10152
  %10470 = vmatpush1.msra.mxu0 %v10165
  %10471 = vmatprep.subr.mxu0 %v10156
  %10472 = vmatpush1.msra.mxu0 %v10166
  %10473 = vmatprep.subr.mxu0 %v10160
  %10474 = vmatpush1.msra.mxu0 %v10167
  %10475 = vmatprep.subr.mxu0 %v10164
  %10476 = vmatpush1.msra.mxu0 %v10168
  %10477 = vmatprep.subr.mxu0 %v10180
  %10478 = vmatpush1.msra.mxu0 %v10193
  %10479 = vmatprep.subr.mxu0 %v10184
  %10480 = vmatpush1.msra.mxu0 %v10194
  %10481 = vmatprep.subr.mxu0 %v10188
  %10482 = vmatpush1.msra.mxu0 %v10195
  %10483 = vmatprep.subr.mxu0 %v10192
  %10484 = vmatpush1.msra.mxu0 %v10196
  %10485 = vmatprep.subr.mxu0 %v10208
  %10486 = vmatpush1.msra.mxu0 %v10221
  %10487 = vmatprep.subr.mxu0 %v10212
  %10488 = vmatpush1.msra.mxu0 %v10222
  %10489 = vmatprep.subr.mxu0 %v10216
  %10490 = vmatpush1.msra.mxu0 %v10223
  %10491 = vmatprep.subr.mxu0 %v10220
  %10492 = vmatpush1.msra.mxu0 %v10224
  %10493 = vmatprep.mubr.f32.mxu0 %v5582
  %10494 = vmatmul.mubr.f32.gmra.mrb[0].mxu0 %v5581
  %v10495 = vpop.f32.mrb[0].mxu0
  %v10496 = vadd.f32 %v6018, %v10495
  %v10497 = vpop.f32.mrb[0].mxu0
  %v10498 = vadd.f32 %v6018, %v10497
  %10499 = vmatprep.mubr.f32.mxu0 %v5586
  %10500 = vmatmul.mubr.f32.gmra.mrb[0].mxu0 %v5585
  %v10501 = vpop.f32.mrb[0].mxu0
  %v10502 = vadd.f32 %v6023, %v10501
  %v10503 = vpop.f32.mrb[0].mxu0
  %v10504 = vadd.f32 %v6023, %v10503
  %10505 = vmatprep.mubr.f32.mxu0 %v5590
  %10506 = vmatmul.mubr.f32.gmra.mrb[0].mxu0 %v5589
  %v10507 = vpop.f32.mrb[0].mxu0
  %v10508 = vadd.f32 %v6028, %v10507
  %v10509 = vpop.f32.mrb[0].mxu0
  %v10510 = vadd.f32 %v6028, %v10509
  %10511 = vmatprep.mubr.f32.mxu0 %v5594
  %10512 = vmatmul.mubr.f32.gmra.mrb[0].mxu0 %v5593
  %v10513 = vpop.f32.mrb[0].mxu0
  %v10514 = vadd.f32 %v6033, %v10513
  %v10515 = vpop.f32.mrb[0].mxu0
  %v10516 = vadd.f32 %v6033, %v10515
  %10517 = vdwg.mxu0
  %10518 = vmatprep.subr.mxu0 %v10236
  %10519 = vmatpush1.msra.mxu0 %v10249
  %10520 = vmatprep.subr.mxu0 %v10240
  %10521 = vmatpush1.msra.mxu0 %v10250
  %10522 = vmatprep.subr.mxu0 %v10244
  %10523 = vmatpush1.msra.mxu0 %v10251
  %10524 = vmatprep.subr.mxu0 %v10248
  %10525 = vmatpush1.msra.mxu0 %v10252
  %10526 = vmatprep.subr.mxu0 %v10264
  %10527 = vmatpush1.msra.mxu0 %v10277
  %10528 = vmatprep.subr.mxu0 %v10268
  %10529 = vmatpush1.msra.mxu0 %v10278
  %10530 = vmatprep.subr.mxu0 %v10272
  %10531 = vmatpush1.msra.mxu0 %v10279
  %10532 = vmatprep.subr.mxu0 %v10276
  %10533 = vmatpush1.msra.mxu0 %v10280
  %10534 = vmatprep.subr.mxu0 %v10292
  %10535 = vmatpush1.msra.mxu0 %v10305
  %10536 = vmatprep.subr.mxu0 %v10296
  %10537 = vmatpush1.msra.mxu0 %v10306
  %10538 = vmatprep.subr.mxu0 %v10300
  %10539 = vmatpush1.msra.mxu0 %v10307
  %10540 = vmatprep.subr.mxu0 %v10304
  %10541 = vmatpush1.msra.mxu0 %v10308
  %10542 = vmatprep.subr.mxu0 %v10320
  %10543 = vmatpush1.msra.mxu0 %v10333
  %10544 = vmatprep.subr.mxu0 %v10324
  %10545 = vmatpush1.msra.mxu0 %v10334
  %10546 = vmatprep.subr.mxu0 %v10328
  %10547 = vmatpush1.msra.mxu0 %v10335
  %10548 = vmatprep.subr.mxu0 %v10332
  %10549 = vmatpush1.msra.mxu0 %v10336
  %10550 = vmatprep.subr.mxu0 %v10348
  %10551 = vmatpush1.msra.mxu0 %v10361
  %10552 = vmatprep.subr.mxu0 %v10352
  %10553 = vmatpush1.msra.mxu0 %v10362
  %10554 = vmatprep.subr.mxu0 %v10356
  %10555 = vmatpush1.msra.mxu0 %v10363
  %10556 = vmatprep.subr.mxu0 %v10360
  %10557 = vmatpush1.msra.mxu0 %v10364
  %10558 = vmatprep.subr.mxu0 %v10376
  %10559 = vmatpush1.msra.mxu0 %v10389
  %10560 = vmatprep.subr.mxu0 %v10380
  %10561 = vmatpush1.msra.mxu0 %v10390
  %10562 = vmatprep.subr.mxu0 %v10384
  %10563 = vmatpush1.msra.mxu0 %v10391
  %10564 = vmatprep.subr.mxu0 %v10388
  %10565 = vmatpush1.msra.mxu0 %v10392
  %10566 = vmatprep.subr.mxu0 %v10404
  %10567 = vmatpush1.msra.mxu0 %v10417
  %10568 = vmatprep.subr.mxu0 %v10408
  %10569 = vmatpush1.msra.mxu0 %v10418
  %10570 = vmatprep.subr.mxu0 %v10412
  %10571 = vmatpush1.msra.mxu0 %v10419
  %10572 = vmatprep.subr.mxu0 %v10416
  %10573 = vmatpush1.msra.mxu0 %v10420
  %10574 = vmatprep.subr.mxu0 0.0
  %10575 = vmatpush1.msra.mxu0 0.0
  %10576 = vmatprep.subr.mxu0 0.0
  %10577 = vmatpush1.msra.mxu0 0.0
  %10578 = vmatprep.subr.mxu0 0.0
  %10579 = vmatpush1.msra.mxu0 0.0
  %10580 = vmatprep.subr.mxu0 0.0
  %10581 = vmatpush1.msra.mxu0 0.0
  %10582 = vmatprep.mubr.f32.mxu0 %v6036
  %10583 = vmatmul.mubr.f32.gmra.mrb[0].mxu0 %v5583
  %v10584 = vpop.f32.mrb[0].mxu0
  %v10585 = vadd.f32 %v10496, %v10584
  %v10586 = vpop.f32.mrb[0].mxu0
  %v10587 = vadd.f32 %v10498, %v10586
  %10588 = vmatprep.mubr.f32.mxu0 %v6039
  %10589 = vmatmul.mubr.f32.gmra.mrb[0].mxu0 %v5587
  %v10590 = vpop.f32.mrb[0].mxu0
  %v10591 = vadd.f32 %v10502, %v10590
  %v10592 = vpop.f32.mrb[0].mxu0
  %v10593 = vadd.f32 %v10504, %v10592
  %10594 = vmatprep.mubr.f32.mxu0 %v6042
  %10595 = vmatmul.mubr.f32.gmra.mrb[0].mxu0 %v5591
  %v10596 = vpop.f32.mrb[0].mxu0
  %v10597 = vadd.f32 %v10508, %v10596
  %v10598 = vpop.f32.mrb[0].mxu0
  %v10599 = vadd.f32 %v10510, %v10598
  %10600 = vmatprep.mubr.f32.mxu0 %v6045
  %10601 = vmatmul.mubr.f32.gmra.mrb[0].mxu0 %v5595
  %v10602 = vpop.f32.mrb[0].mxu0
  %v10603 = vadd.f32 %v10514, %v10602
  %v10604 = vpop.f32.mrb[0].mxu0
  %v10605 = vadd.f32 %v10516, %v10604
  %10606 = vdwg.mxu0
  %vm10607 = vcmp.gt.f32.partialorder %v10585, 0.0
  %vm10608 = vcmp.gt.f32.partialorder %v10587, 0.0
  %vm10609 = vcmp.gt.f32.partialorder %v10591, 0.0
  %vm10610 = vcmp.gt.f32.partialorder %v10593, 0.0
  %vm10611 = vcmp.gt.f32.partialorder %v10597, 0.0
  %vm10612 = vcmp.gt.f32.partialorder %v10599, 0.0
  %vm10613 = vcmp.gt.f32.partialorder %v10603, 0.0
  %vm10614 = vcmp.gt.f32.partialorder %v10605, 0.0
  %v10615 = vmin.f32 %v10585, 0.0
  %v10616 = vmin.f32 %v10587, 0.0
  %v10617 = vmin.f32 %v10591, 0.0
  %v10618 = vmin.f32 %v10593, 0.0
  %v10619 = vmin.f32 %v10597, 0.0
  %v10620 = vmin.f32 %v10599, 0.0
  %v10621 = vmin.f32 %v10603, 0.0
  %v10622 = vmin.f32 %v10605, 0.0
  %v10623 = vmul.f32 %v10615, 1.442695
  %v10624 = vpow.pop %v10623
  %v10625 = vmul.f32 %v10616, 1.442695
  %v10626 = vpow.pop %v10625
  %v10627 = vmul.f32 %v10617, 1.442695
  %v10628 = vpow.pop %v10627
  %v10629 = vmul.f32 %v10618, 1.442695
  %v10630 = vpow.pop %v10629
  %v10631 = vmul.f32 %v10619, 1.442695
  %v10632 = vpow.pop %v10631
  %v10633 = vmul.f32 %v10620, 1.442695
  %v10634 = vpow.pop %v10633
  %v10635 = vmul.f32 %v10621, 1.442695
  %v10636 = vpow.pop %v10635
  %v10637 = vmul.f32 %v10622, 1.442695
  %v10638 = vpow.pop %v10637
  %v10639 = vsub.f32 %v10624, 1.0
  %v10640 = vsub.f32 %v10626, 1.0
  %v10641 = vsub.f32 %v10628, 1.0
  %v10642 = vsub.f32 %v10630, 1.0
  %v10643 = vsub.f32 %v10632, 1.0
  %v10644 = vsub.f32 %v10634, 1.0
  %v10645 = vsub.f32 %v10636, 1.0
  %v10646 = vsub.f32 %v10638, 1.0
  %v10647 = vsel %vm10607, %v10585, %v10639
  %v10648 = vsel %vm10608, %v10587, %v10640
  %v10649 = vsel %vm10609, %v10591, %v10641
  %v10650 = vsel %vm10610, %v10593, %v10642
  %v10651 = vsel %vm10611, %v10597, %v10643
  %v10652 = vsel %vm10612, %v10599, %v10644
  %v10653 = vsel %vm10613, %v10603, %v10645
  %v10654 = vsel %vm10614, %v10605, %v10646
  %v10655 = vld [vmem:[%s6] sm:$0xff]
  %v10656 = vld [vmem:[%s6 + $0x8] sm:$0xff]
  %v10657 = vld [vmem:[%s6 + $0x10] sm:$0xff]
  %v10658 = vld [vmem:[%s6 + $0x18] sm:$0xff]
  %v10659 = vld [vmem:[%s6 + $0x20] sm:$0xff]
  %v10660 = vld [vmem:[%s6 + $0x28] sm:$0xff]
  %v10661 = vld [vmem:[%s6 + $0x30] sm:$0xff]
  %v10662 = vld [vmem:[%s6 + $0x38] sm:$0xff]
  %v10663 = vld [vmem:[%s6 + $0x40] sm:$0xff]
  %v10664 = vld [vmem:[%s6 + $0x48] sm:$0xff]
  %v10665 = vld [vmem:[%s6 + $0x50] sm:$0xff]
  %v10666 = vld [vmem:[%s6 + $0x58] sm:$0xff]
  %v10667 = vld [vmem:[%s6 + $0x60] sm:$0xff]
  %v10668 = vld [vmem:[%s6 + $0x68] sm:$0xff]
  %v10669 = vld [vmem:[%s6 + $0x70] sm:$0xff]
  %v10670 = vld [vmem:[%s6 + $0x78] sm:$0xff]
  %v10671 = vld [vmem:[%s6 + $0x80] sm:$0xff]
  %v10672 = vld [vmem:[%s6 + $0x88] sm:$0xff]
  %v10673 = vld [vmem:[%s6 + $0x90] sm:$0xff]
  %v10674 = vld [vmem:[%s6 + $0x98] sm:$0xff]
  %v10675 = vld [vmem:[%s6 + $0xa0] sm:$0xff]
  %v10676 = vld [vmem:[%s6 + $0xa8] sm:$0xff]
  %v10677 = vld [vmem:[%s6 + $0xb0] sm:$0xff]
  %v10678 = vld [vmem:[%s6 + $0xb8] sm:$0xff]
  %v10679 = vld [vmem:[%s6 + $0xc0] sm:$0xff]
  %v10680 = vld [vmem:[%s6 + $0xc8] sm:$0xff]
  %v10681 = vld [vmem:[%s6 + $0xd0] sm:$0xff]
  %v10682 = vld [vmem:[%s6 + $0xd8] sm:$0xff]
  %v10683 = vld [vmem:[%s6 + $0xe0] sm:$0xff]
  %v10684 = vld [vmem:[%s6 + $0xe8] sm:$0xff]
  %v10685 = vld [vmem:[%s6 + $0xf0] sm:$0xff]
  %v10686 = vld [vmem:[%s6 + $0xf8] sm:$0xff]
  %v10687 = vld [vmem:[%s6 + $0x100] sm:$0xff]
  %v10688 = vld [vmem:[%s6 + $0x108] sm:$0xff]
  %v10689 = vld [vmem:[%s6 + $0x110] sm:$0xff]
  %v10690 = vld [vmem:[%s6 + $0x118] sm:$0xff]
  %v10691 = vld [vmem:[%s6 + $0x120] sm:$0xff]
  %v10692 = vld [vmem:[%s6 + $0x128] sm:$0xff]
  %v10693 = vld [vmem:[%s6 + $0x130] sm:$0xff]
  %v10694 = vld [vmem:[%s6 + $0x138] sm:$0xff]
  %v10695 = vld [vmem:[%s6 + $0x140] sm:$0xff]
  %v10696 = vld [vmem:[%s6 + $0x148] sm:$0xff]
  %v10697 = vld [vmem:[%s6 + $0x150] sm:$0xff]
  %v10698 = vld [vmem:[%s6 + $0x158] sm:$0xff]
  %v10699 = vld [vmem:[%s6 + $0x160] sm:$0xff]
  %v10700 = vld [vmem:[%s6 + $0x168] sm:$0xff]
  %v10701 = vld [vmem:[%s6 + $0x170] sm:$0xff]
  %v10702 = vld [vmem:[%s6 + $0x178] sm:$0xff]
  %v10703 = vld [vmem:[%s6 + $0x180] sm:$0xff]
  %v10704 = vld [vmem:[%s6 + $0x188] sm:$0xff]
  %v10705 = vld [vmem:[%s6 + $0x190] sm:$0xff]
  %v10706 = vld [vmem:[%s6 + $0x198] sm:$0xff]
  %v10707 = vld [vmem:[%s6 + $0x1a0] sm:$0xff]
  %v10708 = vld [vmem:[%s6 + $0x1a8] sm:$0xff]
  %v10709 = vld [vmem:[%s6 + $0x1b0] sm:$0xff]
  %v10710 = vld [vmem:[%s6 + $0x1b8] sm:$0xff]
  %v10711 = vld [vmem:[%s6 + $0x1c0] sm:$0xff]
  %v10712 = vld [vmem:[%s6 + $0x1c8] sm:$0xff]
  %v10713 = vld [vmem:[%s6 + $0x1d0] sm:$0xff]
  %v10714 = vld [vmem:[%s6 + $0x1d8] sm:$0xff]
  %v10715 = vld [vmem:[%s6 + $0x1e0] sm:$0xff]
  %v10716 = vld [vmem:[%s6 + $0x1e8] sm:$0xff]
  %v10717 = vld [vmem:[%s6 + $0x1f0] sm:$0xff]
  %v10718 = vld [vmem:[%s6 + $0x1f8] sm:$0xff]
  %v10719 = vmul.f32 %v6265, %v10655
  %v10720 = vmul.f32 %v6266, %v10656
  %v10721 = vmul.f32 %v6267, %v10657
  %v10722 = vmul.f32 %v6268, %v10658
  %v10723 = vmul.f32 %v6269, %v10659
  %v10724 = vmul.f32 %v6270, %v10660
  %v10725 = vmul.f32 %v6271, %v10661
  %v10726 = vmul.f32 %v6272, %v10662
  %v10727 = vmul.f32 %v6891, %v10663
  %v10728 = vmul.f32 %v6892, %v10664
  %v10729 = vmul.f32 %v6893, %v10665
  %v10730 = vmul.f32 %v6894, %v10666
  %v10731 = vmul.f32 %v6895, %v10667
  %v10732 = vmul.f32 %v6896, %v10668
  %v10733 = vmul.f32 %v6897, %v10669
  %v10734 = vmul.f32 %v6898, %v10670
  %v10735 = vmul.f32 %v7517, %v10671
  %v10736 = vmul.f32 %v7518, %v10672
  %v10737 = vmul.f32 %v7519, %v10673
  %v10738 = vmul.f32 %v7520, %v10674
  %v10739 = vmul.f32 %v7521, %v10675
  %v10740 = vmul.f32 %v7522, %v10676
  %v10741 = vmul.f32 %v7523, %v10677
  %v10742 = vmul.f32 %v7524, %v10678
  %v10743 = vmul.f32 %v8143, %v10679
  %v10744 = vmul.f32 %v8144, %v10680
  %v10745 = vmul.f32 %v8145, %v10681
  %v10746 = vmul.f32 %v8146, %v10682
  %v10747 = vmul.f32 %v8147, %v10683
  %v10748 = vmul.f32 %v8148, %v10684
  %v10749 = vmul.f32 %v8149, %v10685
  %v10750 = vmul.f32 %v8150, %v10686
  %v10751 = vmul.f32 %v8769, %v10687
  %v10752 = vmul.f32 %v8770, %v10688
  %v10753 = vmul.f32 %v8771, %v10689
  %v10754 = vmul.f32 %v8772, %v10690
  %v10755 = vmul.f32 %v8773, %v10691
  %v10756 = vmul.f32 %v8774, %v10692
  %v10757 = vmul.f32 %v8775, %v10693
  %v10758 = vmul.f32 %v8776, %v10694
  %v10759 = vmul.f32 %v9395, %v10695
  %v10760 = vmul.f32 %v9396, %v10696
  %v10761 = vmul.f32 %v9397, %v10697
  %v10762 = vmul.f32 %v9398, %v10698
  %v10763 = vmul.f32 %v9399, %v10699
  %v10764 = vmul.f32 %v9400, %v10700
  %v10765 = vmul.f32 %v9401, %v10701
  %v10766 = vmul.f32 %v9402, %v10702
  %v10767 = vmul.f32 %v10021, %v10703
  %v10768 = vmul.f32 %v10022, %v10704
  %v10769 = vmul.f32 %v10023, %v10705
  %v10770 = vmul.f32 %v10024, %v10706
  %v10771 = vmul.f32 %v10025, %v10707
  %v10772 = vmul.f32 %v10026, %v10708
  %v10773 = vmul.f32 %v10027, %v10709
  %v10774 = vmul.f32 %v10028, %v10710
  %v10775 = vmul.f32 %v10647, %v10711
  %v10776 = vmul.f32 %v10648, %v10712
  %v10777 = vmul.f32 %v10649, %v10713
  %v10778 = vmul.f32 %v10650, %v10714
  %v10779 = vmul.f32 %v10651, %v10715
  %v10780 = vmul.f32 %v10652, %v10716
  %v10781 = vmul.f32 %v10653, %v10717
  %v10782 = vmul.f32 %v10654, %v10718
  %vm10783 = vcmask 457728
  %v10784 = vsel %vm10783, %v10720, 0.0
  %v10785 = vadd.f32 %v10719, %v10784
  %10786 = vadd.xlane.f32.xlu0 %v10785
  %v10787 = vpop.xlane.xlu0 %10786
  %v10788 = vsel %vm10783, %v10722, 0.0
  %v10789 = vadd.f32 %v10721, %v10788
  %10790 = vadd.xlane.f32.xlu0 %v10789
  %v10791 = vpop.xlane.xlu0 %10790
  %v10792 = vsel %vm10783, %v10724, 0.0
  %v10793 = vadd.f32 %v10723, %v10792
  %10794 = vadd.xlane.f32.xlu0 %v10793
  %v10795 = vpop.xlane.xlu0 %10794
  %v10796 = vsel %vm10783, %v10726, 0.0
  %v10797 = vadd.f32 %v10725, %v10796
  %10798 = vadd.xlane.f32.xlu0 %v10797
  %v10799 = vpop.xlane.xlu0 %10798
  %v10800 = vsel %vm10783, %v10728, 0.0
  %v10801 = vadd.f32 %v10727, %v10800
  %10802 = vadd.xlane.f32.xlu0 %v10801
  %v10803 = vpop.xlane.xlu0 %10802
  %v10804 = vsel %vm10783, %v10730, 0.0
  %v10805 = vadd.f32 %v10729, %v10804
  %10806 = vadd.xlane.f32.xlu0 %v10805
  %v10807 = vpop.xlane.xlu0 %10806
  %v10808 = vsel %vm10783, %v10732, 0.0
  %v10809 = vadd.f32 %v10731, %v10808
  %10810 = vadd.xlane.f32.xlu0 %v10809
  %v10811 = vpop.xlane.xlu0 %10810
  %v10812 = vsel %vm10783, %v10734, 0.0
  %v10813 = vadd.f32 %v10733, %v10812
  %10814 = vadd.xlane.f32.xlu0 %v10813
  %v10815 = vpop.xlane.xlu0 %10814
  %v10816 = vsel %vm10783, %v10736, 0.0
  %v10817 = vadd.f32 %v10735, %v10816
  %10818 = vadd.xlane.f32.xlu0 %v10817
  %v10819 = vpop.xlane.xlu0 %10818
  %v10820 = vsel %vm10783, %v10738, 0.0
  %v10821 = vadd.f32 %v10737, %v10820
  %10822 = vadd.xlane.f32.xlu0 %v10821
  %v10823 = vpop.xlane.xlu0 %10822
  %v10824 = vsel %vm10783, %v10740, 0.0
  %v10825 = vadd.f32 %v10739, %v10824
  %10826 = vadd.xlane.f32.xlu0 %v10825
  %v10827 = vpop.xlane.xlu0 %10826
  %v10828 = vsel %vm10783, %v10742, 0.0
  %v10829 = vadd.f32 %v10741, %v10828
  %10830 = vadd.xlane.f32.xlu0 %v10829
  %v10831 = vpop.xlane.xlu0 %10830
  %v10832 = vsel %vm10783, %v10744, 0.0
  %v10833 = vadd.f32 %v10743, %v10832
  %10834 = vadd.xlane.f32.xlu0 %v10833
  %v10835 = vpop.xlane.xlu0 %10834
  %v10836 = vsel %vm10783, %v10746, 0.0
  %v10837 = vadd.f32 %v10745, %v10836
  %10838 = vadd.xlane.f32.xlu0 %v10837
  %v10839 = vpop.xlane.xlu0 %10838
  %v10840 = vsel %vm10783, %v10748, 0.0
  %v10841 = vadd.f32 %v10747, %v10840
  %10842 = vadd.xlane.f32.xlu0 %v10841
  %v10843 = vpop.xlane.xlu0 %10842
  %v10844 = vsel %vm10783, %v10750, 0.0
  %v10845 = vadd.f32 %v10749, %v10844
  %10846 = vadd.xlane.f32.xlu0 %v10845
  %v10847 = vpop.xlane.xlu0 %10846
  %v10848 = vsel %vm10783, %v10752, 0.0
  %v10849 = vadd.f32 %v10751, %v10848
  %10850 = vadd.xlane.f32.xlu0 %v10849
  %v10851 = vpop.xlane.xlu0 %10850
  %v10852 = vsel %vm10783, %v10754, 0.0
  %v10853 = vadd.f32 %v10753, %v10852
  %10854 = vadd.xlane.f32.xlu0 %v10853
  %v10855 = vpop.xlane.xlu0 %10854
  %v10856 = vsel %vm10783, %v10756, 0.0
  %v10857 = vadd.f32 %v10755, %v10856
  %10858 = vadd.xlane.f32.xlu0 %v10857
  %v10859 = vpop.xlane.xlu0 %10858
  %v10860 = vsel %vm10783, %v10758, 0.0
  %v10861 = vadd.f32 %v10757, %v10860
  %10862 = vadd.xlane.f32.xlu0 %v10861
  %v10863 = vpop.xlane.xlu0 %10862
  %v10864 = vsel %vm10783, %v10760, 0.0
  %v10865 = vadd.f32 %v10759, %v10864
  %10866 = vadd.xlane.f32.xlu0 %v10865
  %v10867 = vpop.xlane.xlu0 %10866
  %v10868 = vsel %vm10783, %v10762, 0.0
  %v10869 = vadd.f32 %v10761, %v10868
  %10870 = vadd.xlane.f32.xlu0 %v10869
  %v10871 = vpop.xlane.xlu0 %10870
  %v10872 = vsel %vm10783, %v10764, 0.0
  %v10873 = vadd.f32 %v10763, %v10872
  %10874 = vadd.xlane.f32.xlu0 %v10873
  %v10875 = vpop.xlane.xlu0 %10874
  %v10876 = vsel %vm10783, %v10766, 0.0
  %v10877 = vadd.f32 %v10765, %v10876
  %10878 = vadd.xlane.f32.xlu0 %v10877
  %v10879 = vpop.xlane.xlu0 %10878
  %v10880 = vsel %vm10783, %v10768, 0.0
  %v10881 = vadd.f32 %v10767, %v10880
  %10882 = vadd.xlane.f32.xlu0 %v10881
  %v10883 = vpop.xlane.xlu0 %10882
  %v10884 = vsel %vm10783, %v10770, 0.0
  %v10885 = vadd.f32 %v10769, %v10884
  %10886 = vadd.xlane.f32.xlu0 %v10885
  %v10887 = vpop.xlane.xlu0 %10886
  %v10888 = vsel %vm10783, %v10772, 0.0
  %v10889 = vadd.f32 %v10771, %v10888
  %10890 = vadd.xlane.f32.xlu0 %v10889
  %v10891 = vpop.xlane.xlu0 %10890
  %v10892 = vsel %vm10783, %v10774, 0.0
  %v10893 = vadd.f32 %v10773, %v10892
  %10894 = vadd.xlane.f32.xlu0 %v10893
  %v10895 = vpop.xlane.xlu0 %10894
  %v10896 = vsel %vm10783, %v10776, 0.0
  %v10897 = vadd.f32 %v10775, %v10896
  %10898 = vadd.xlane.f32.xlu0 %v10897
  %v10899 = vpop.xlane.xlu0 %10898
  %v10900 = vsel %vm10783, %v10778, 0.0
  %v10901 = vadd.f32 %v10777, %v10900
  %10902 = vadd.xlane.f32.xlu0 %v10901
  %v10903 = vpop.xlane.xlu0 %10902
  %v10904 = vsel %vm10783, %v10780, 0.0
  %v10905 = vadd.f32 %v10779, %v10904
  %10906 = vadd.xlane.f32.xlu0 %v10905
  %v10907 = vpop.xlane.xlu0 %10906
  %v10908 = vsel %vm10783, %v10782, 0.0
  %v10909 = vadd.f32 %v10781, %v10908
  %10910 = vadd.xlane.f32.xlu0 %v10909
  %v10911 = vpop.xlane.xlu0 %10910
  %v10912 = vld [vmem:[%s7] sm:$0xff]
  %v10913 = vld [vmem:[%s7 + $0x8] sm:$0xff]
  %v10914 = vld [vmem:[%s7 + $0x10] sm:$0xff]
  %v10915 = vld [vmem:[%s7 + $0x18] sm:$0xff]
  %v10916 = vld [vmem:[%s7 + $0x20] sm:$0xff]
  %v10917 = vld [vmem:[%s7 + $0x28] sm:$0xff]
  %v10918 = vld [vmem:[%s7 + $0x30] sm:$0xff]
  %v10919 = vld [vmem:[%s7 + $0x38] sm:$0xff]
  %v10920 = vld [vmem:[%s7 + $0x40] sm:$0xff]
  %v10921 = vld [vmem:[%s7 + $0x48] sm:$0xff]
  %v10922 = vld [vmem:[%s7 + $0x50] sm:$0xff]
  %v10923 = vld [vmem:[%s7 + $0x58] sm:$0xff]
  %v10924 = vld [vmem:[%s7 + $0x60] sm:$0xff]
  %v10925 = vld [vmem:[%s7 + $0x68] sm:$0xff]
  %v10926 = vld [vmem:[%s7 + $0x70] sm:$0xff]
  %v10927 = vld [vmem:[%s7 + $0x78] sm:$0xff]
  %v10928 = vld [vmem:[%s7 + $0x80] sm:$0xff]
  %v10929 = vld [vmem:[%s7 + $0x88] sm:$0xff]
  %v10930 = vld [vmem:[%s7 + $0x90] sm:$0xff]
  %v10931 = vld [vmem:[%s7 + $0x98] sm:$0xff]
  %v10932 = vld [vmem:[%s7 + $0xa0] sm:$0xff]
  %v10933 = vld [vmem:[%s7 + $0xa8] sm:$0xff]
  %v10934 = vld [vmem:[%s7 + $0xb0] sm:$0xff]
  %v10935 = vld [vmem:[%s7 + $0xb8] sm:$0xff]
  %v10936 = vld [vmem:[%s7 + $0xc0] sm:$0xff]
  %v10937 = vld [vmem:[%s7 + $0xc8] sm:$0xff]
  %v10938 = vld [vmem:[%s7 + $0xd0] sm:$0xff]
  %v10939 = vld [vmem:[%s7 + $0xd8] sm:$0xff]
  %v10940 = vld [vmem:[%s7 + $0xe0] sm:$0xff]
  %v10941 = vld [vmem:[%s7 + $0xe8] sm:$0xff]
  %v10942 = vld [vmem:[%s7 + $0xf0] sm:$0xff]
  %v10943 = vld [vmem:[%s7 + $0xf8] sm:$0xff]
  %v10944 = vld [vmem:[%s7 + $0x100] sm:$0xff]
  %v10945 = vld [vmem:[%s7 + $0x108] sm:$0xff]
  %v10946 = vld [vmem:[%s7 + $0x110] sm:$0xff]
  %v10947 = vld [vmem:[%s7 + $0x118] sm:$0xff]
  %v10948 = vld [vmem:[%s7 + $0x120] sm:$0xff]
  %v10949 = vld [vmem:[%s7 + $0x128] sm:$0xff]
  %v10950 = vld [vmem:[%s7 + $0x130] sm:$0xff]
  %v10951 = vld [vmem:[%s7 + $0x138] sm:$0xff]
  %v10952 = vld [vmem:[%s7 + $0x140] sm:$0xff]
  %v10953 = vld [vmem:[%s7 + $0x148] sm:$0xff]
  %v10954 = vld [vmem:[%s7 + $0x150] sm:$0xff]
  %v10955 = vld [vmem:[%s7 + $0x158] sm:$0xff]
  %v10956 = vld [vmem:[%s7 + $0x160] sm:$0xff]
  %v10957 = vld [vmem:[%s7 + $0x168] sm:$0xff]
  %v10958 = vld [vmem:[%s7 + $0x170] sm:$0xff]
  %v10959 = vld [vmem:[%s7 + $0x178] sm:$0xff]
  %v10960 = vld [vmem:[%s7 + $0x180] sm:$0xff]
  %v10961 = vld [vmem:[%s7 + $0x188] sm:$0xff]
  %v10962 = vld [vmem:[%s7 + $0x190] sm:$0xff]
  %v10963 = vld [vmem:[%s7 + $0x198] sm:$0xff]
  %v10964 = vld [vmem:[%s7 + $0x1a0] sm:$0xff]
  %v10965 = vld [vmem:[%s7 + $0x1a8] sm:$0xff]
  %v10966 = vld [vmem:[%s7 + $0x1b0] sm:$0xff]
  %v10967 = vld [vmem:[%s7 + $0x1b8] sm:$0xff]
  %v10968 = vld [vmem:[%s7 + $0x1c0] sm:$0xff]
  %v10969 = vld [vmem:[%s7 + $0x1c8] sm:$0xff]
  %v10970 = vld [vmem:[%s7 + $0x1d0] sm:$0xff]
  %v10971 = vld [vmem:[%s7 + $0x1d8] sm:$0xff]
  %v10972 = vld [vmem:[%s7 + $0x1e0] sm:$0xff]
  %v10973 = vld [vmem:[%s7 + $0x1e8] sm:$0xff]
  %v10974 = vld [vmem:[%s7 + $0x1f0] sm:$0xff]
  %v10975 = vld [vmem:[%s7 + $0x1f8] sm:$0xff]
  %v10976 = vmul.f32 %v6265, %v10912
  %v10977 = vmul.f32 %v6266, %v10913
  %v10978 = vmul.f32 %v6267, %v10914
  %v10979 = vmul.f32 %v6268, %v10915
  %v10980 = vmul.f32 %v6269, %v10916
  %v10981 = vmul.f32 %v6270, %v10917
  %v10982 = vmul.f32 %v6271, %v10918
  %v10983 = vmul.f32 %v6272, %v10919
  %v10984 = vmul.f32 %v6891, %v10920
  %v10985 = vmul.f32 %v6892, %v10921
  %v10986 = vmul.f32 %v6893, %v10922
  %v10987 = vmul.f32 %v6894, %v10923
  %v10988 = vmul.f32 %v6895, %v10924
  %v10989 = vmul.f32 %v6896, %v10925
  %v10990 = vmul.f32 %v6897, %v10926
  %v10991 = vmul.f32 %v6898, %v10927
  %v10992 = vmul.f32 %v7517, %v10928
  %v10993 = vmul.f32 %v7518, %v10929
  %v10994 = vmul.f32 %v7519, %v10930
  %v10995 = vmul.f32 %v7520, %v10931
  %v10996 = vmul.f32 %v7521, %v10932
  %v10997 = vmul.f32 %v7522, %v10933
  %v10998 = vmul.f32 %v7523, %v10934
  %v10999 = vmul.f32 %v7524, %v10935
  %v11000 = vmul.f32 %v8143, %v10936
  %v11001 = vmul.f32 %v8144, %v10937
  %v11002 = vmul.f32 %v8145, %v10938
  %v11003 = vmul.f32 %v8146, %v10939
  %v11004 = vmul.f32 %v8147, %v10940
  %v11005 = vmul.f32 %v8148, %v10941
  %v11006 = vmul.f32 %v8149, %v10942
  %v11007 = vmul.f32 %v8150, %v10943
  %v11008 = vmul.f32 %v8769, %v10944
  %v11009 = vmul.f32 %v8770, %v10945
  %v11010 = vmul.f32 %v8771, %v10946
  %v11011 = vmul.f32 %v8772, %v10947
  %v11012 = vmul.f32 %v8773, %v10948
  %v11013 = vmul.f32 %v8774, %v10949
  %v11014 = vmul.f32 %v8775, %v10950
  %v11015 = vmul.f32 %v8776, %v10951
  %v11016 = vmul.f32 %v9395, %v10952
  %v11017 = vmul.f32 %v9396, %v10953
  %v11018 = vmul.f32 %v9397, %v10954
  %v11019 = vmul.f32 %v9398, %v10955
  %v11020 = vmul.f32 %v9399, %v10956
  %v11021 = vmul.f32 %v9400, %v10957
  %v11022 = vmul.f32 %v9401, %v10958
  %v11023 = vmul.f32 %v9402, %v10959
  %v11024 = vmul.f32 %v10021, %v10960
  %v11025 = vmul.f32 %v10022, %v10961
  %v11026 = vmul.f32 %v10023, %v10962
  %v11027 = vmul.f32 %v10024, %v10963
  %v11028 = vmul.f32 %v10025, %v10964
  %v11029 = vmul.f32 %v10026, %v10965
  %v11030 = vmul.f32 %v10027, %v10966
  %v11031 = vmul.f32 %v10028, %v10967
  %v11032 = vmul.f32 %v10647, %v10968
  %v11033 = vmul.f32 %v10648, %v10969
  %v11034 = vmul.f32 %v10649, %v10970
  %v11035 = vmul.f32 %v10650, %v10971
  %v11036 = vmul.f32 %v10651, %v10972
  %v11037 = vmul.f32 %v10652, %v10973
  %v11038 = vmul.f32 %v10653, %v10974
  %v11039 = vmul.f32 %v10654, %v10975
  %v11040 = vsel %vm10783, %v10977, 0.0
  %v11041 = vadd.f32 %v10976, %v11040
  %11042 = vadd.xlane.f32.xlu0 %v11041
  %v11043 = vpop.xlane.xlu0 %11042
  %v11044 = vsel %vm10783, %v10979, 0.0
  %v11045 = vadd.f32 %v10978, %v11044
  %11046 = vadd.xlane.f32.xlu0 %v11045
  %v11047 = vpop.xlane.xlu0 %11046
  %v11048 = vsel %vm10783, %v10981, 0.0
  %v11049 = vadd.f32 %v10980, %v11048
  %11050 = vadd.xlane.f32.xlu0 %v11049
  %v11051 = vpop.xlane.xlu0 %11050
  %v11052 = vsel %vm10783, %v10983, 0.0
  %v11053 = vadd.f32 %v10982, %v11052
  %11054 = vadd.xlane.f32.xlu0 %v11053
  %v11055 = vpop.xlane.xlu0 %11054
  %v11056 = vsel %vm10783, %v10985, 0.0
  %v11057 = vadd.f32 %v10984, %v11056
  %11058 = vadd.xlane.f32.xlu0 %v11057
  %v11059 = vpop.xlane.xlu0 %11058
  %v11060 = vsel %vm10783, %v10987, 0.0
  %v11061 = vadd.f32 %v10986, %v11060
  %11062 = vadd.xlane.f32.xlu0 %v11061
  %v11063 = vpop.xlane.xlu0 %11062
  %v11064 = vsel %vm10783, %v10989, 0.0
  %v11065 = vadd.f32 %v10988, %v11064
  %11066 = vadd.xlane.f32.xlu0 %v11065
  %v11067 = vpop.xlane.xlu0 %11066
  %v11068 = vsel %vm10783, %v10991, 0.0
  %v11069 = vadd.f32 %v10990, %v11068
  %11070 = vadd.xlane.f32.xlu0 %v11069
  %v11071 = vpop.xlane.xlu0 %11070
  %v11072 = vsel %vm10783, %v10993, 0.0
  %v11073 = vadd.f32 %v10992, %v11072
  %11074 = vadd.xlane.f32.xlu0 %v11073
  %v11075 = vpop.xlane.xlu0 %11074
  %v11076 = vsel %vm10783, %v10995, 0.0
  %v11077 = vadd.f32 %v10994, %v11076
  %11078 = vadd.xlane.f32.xlu0 %v11077
  %v11079 = vpop.xlane.xlu0 %11078
  %v11080 = vsel %vm10783, %v10997, 0.0
  %v11081 = vadd.f32 %v10996, %v11080
  %11082 = vadd.xlane.f32.xlu0 %v11081
  %v11083 = vpop.xlane.xlu0 %11082
  %v11084 = vsel %vm10783, %v10999, 0.0
  %v11085 = vadd.f32 %v10998, %v11084
  %11086 = vadd.xlane.f32.xlu0 %v11085
  %v11087 = vpop.xlane.xlu0 %11086
  %v11088 = vsel %vm10783, %v11001, 0.0
  %v11089 = vadd.f32 %v11000, %v11088
  %11090 = vadd.xlane.f32.xlu0 %v11089
  %v11091 = vpop.xlane.xlu0 %11090
  %v11092 = vsel %vm10783, %v11003, 0.0
  %v11093 = vadd.f32 %v11002, %v11092
  %11094 = vadd.xlane.f32.xlu0 %v11093
  %v11095 = vpop.xlane.xlu0 %11094
  %v11096 = vsel %vm10783, %v11005, 0.0
  %v11097 = vadd.f32 %v11004, %v11096
  %11098 = vadd.xlane.f32.xlu0 %v11097
  %v11099 = vpop.xlane.xlu0 %11098
  %v11100 = vsel %vm10783, %v11007, 0.0
  %v11101 = vadd.f32 %v11006, %v11100
  %11102 = vadd.xlane.f32.xlu0 %v11101
  %v11103 = vpop.xlane.xlu0 %11102
  %v11104 = vsel %vm10783, %v11009, 0.0
  %v11105 = vadd.f32 %v11008, %v11104
  %11106 = vadd.xlane.f32.xlu0 %v11105
  %v11107 = vpop.xlane.xlu0 %11106
  %v11108 = vsel %vm10783, %v11011, 0.0
  %v11109 = vadd.f32 %v11010, %v11108
  %11110 = vadd.xlane.f32.xlu0 %v11109
  %v11111 = vpop.xlane.xlu0 %11110
  %v11112 = vsel %vm10783, %v11013, 0.0
  %v11113 = vadd.f32 %v11012, %v11112
  %11114 = vadd.xlane.f32.xlu0 %v11113
  %v11115 = vpop.xlane.xlu0 %11114
  %v11116 = vsel %vm10783, %v11015, 0.0
  %v11117 = vadd.f32 %v11014, %v11116
  %11118 = vadd.xlane.f32.xlu0 %v11117
  %v11119 = vpop.xlane.xlu0 %11118
  %v11120 = vsel %vm10783, %v11017, 0.0
  %v11121 = vadd.f32 %v11016, %v11120
  %11122 = vadd.xlane.f32.xlu0 %v11121
  %v11123 = vpop.xlane.xlu0 %11122
  %v11124 = vsel %vm10783, %v11019, 0.0
  %v11125 = vadd.f32 %v11018, %v11124
  %11126 = vadd.xlane.f32.xlu0 %v11125
  %v11127 = vpop.xlane.xlu0 %11126
  %v11128 = vsel %vm10783, %v11021, 0.0
  %v11129 = vadd.f32 %v11020, %v11128
  %11130 = vadd.xlane.f32.xlu0 %v11129
  %v11131 = vpop.xlane.xlu0 %11130
  %v11132 = vsel %vm10783, %v11023, 0.0
  %v11133 = vadd.f32 %v11022, %v11132
  %11134 = vadd.xlane.f32.xlu0 %v11133
  %v11135 = vpop.xlane.xlu0 %11134
  %v11136 = vsel %vm10783, %v11025, 0.0
  %v11137 = vadd.f32 %v11024, %v11136
  %11138 = vadd.xlane.f32.xlu0 %v11137
  %v11139 = vpop.xlane.xlu0 %11138
  %v11140 = vsel %vm10783, %v11027, 0.0
  %v11141 = vadd.f32 %v11026, %v11140
  %11142 = vadd.xlane.f32.xlu0 %v11141
  %v11143 = vpop.xlane.xlu0 %11142
  %v11144 = vsel %vm10783, %v11029, 0.0
  %v11145 = vadd.f32 %v11028, %v11144
  %11146 = vadd.xlane.f32.xlu0 %v11145
  %v11147 = vpop.xlane.xlu0 %11146
  %v11148 = vsel %vm10783, %v11031, 0.0
  %v11149 = vadd.f32 %v11030, %v11148
  %11150 = vadd.xlane.f32.xlu0 %v11149
  %v11151 = vpop.xlane.xlu0 %11150
  %v11152 = vsel %vm10783, %v11033, 0.0
  %v11153 = vadd.f32 %v11032, %v11152
  %11154 = vadd.xlane.f32.xlu0 %v11153
  %v11155 = vpop.xlane.xlu0 %11154
  %v11156 = vsel %vm10783, %v11035, 0.0
  %v11157 = vadd.f32 %v11034, %v11156
  %11158 = vadd.xlane.f32.xlu0 %v11157
  %v11159 = vpop.xlane.xlu0 %11158
  %v11160 = vsel %vm10783, %v11037, 0.0
  %v11161 = vadd.f32 %v11036, %v11160
  %11162 = vadd.xlane.f32.xlu0 %v11161
  %v11163 = vpop.xlane.xlu0 %11162
  %v11164 = vsel %vm10783, %v11039, 0.0
  %v11165 = vadd.f32 %v11038, %v11164
  %11166 = vadd.xlane.f32.xlu0 %v11165
  %v11167 = vpop.xlane.xlu0 %11166
  %vm11168 = vcmask 7168
  %v11169 = vsel %vm11168, %v10787, %v11043
  %v11170 = vsel %vm11168, %v10791, %v11047
  %v11171 = vsel %vm11168, %v10795, %v11051
  %v11172 = vsel %vm11168, %v10799, %v11055
  %v11173 = vsel %vm11168, %v10803, %v11059
  %v11174 = vsel %vm11168, %v10807, %v11063
  %v11175 = vsel %vm11168, %v10811, %v11067
  %v11176 = vsel %vm11168, %v10815, %v11071
  %v11177 = vsel %vm11168, %v10819, %v11075
  %v11178 = vsel %vm11168, %v10823, %v11079
  %v11179 = vsel %vm11168, %v10827, %v11083
  %v11180 = vsel %vm11168, %v10831, %v11087
  %v11181 = vsel %vm11168, %v10835, %v11091
  %v11182 = vsel %vm11168, %v10839, %v11095
  %v11183 = vsel %vm11168, %v10843, %v11099
  %v11184 = vsel %vm11168, %v10847, %v11103
  %v11185 = vsel %vm11168, %v10851, %v11107
  %v11186 = vsel %vm11168, %v10855, %v11111
  %v11187 = vsel %vm11168, %v10859, %v11115
  %v11188 = vsel %vm11168, %v10863, %v11119
  %v11189 = vsel %vm11168, %v10867, %v11123
  %v11190 = vsel %vm11168, %v10871, %v11127
  %v11191 = vsel %vm11168, %v10875, %v11131
  %v11192 = vsel %vm11168, %v10879, %v11135
  %v11193 = vsel %vm11168, %v10883, %v11139
  %v11194 = vsel %vm11168, %v10887, %v11143
  %v11195 = vsel %vm11168, %v10891, %v11147
  %v11196 = vsel %vm11168, %v10895, %v11151
  %v11197 = vsel %vm11168, %v10899, %v11155
  %v11198 = vsel %vm11168, %v10903, %v11159
  %v11199 = vsel %vm11168, %v10907, %v11163
  %v11200 = vsel %vm11168, %v10911, %v11167
  %v11201 = vld [vmem:[%s8] sm:$0xff]
  %v11202 = vld [vmem:[%s8 + $0x8] sm:$0xff]
  %v11203 = vld [vmem:[%s9] sm:$0x1]
  %v11205 = vlaneseq
  %v11206 = vshrl.u32 %v11205, 7
  %v11207 = vsub.s32 0, %v11206
  %v11208 = vrot.slane %v11203, %v11207
  %11210 = vmatprep.subr.mxu0 0.0
  %11211 = vmatpush1.msra.mxu0 %v11169
  %11212 = vmatprep.subr.mxu0 0.0
  %11213 = vmatpush1.msra.mxu0 %v11170
  %11214 = vmatprep.subr.mxu0 0.0
  %11215 = vmatpush1.msra.mxu0 %v11171
  %11216 = vmatprep.subr.mxu0 0.0
  %11217 = vmatpush1.msra.mxu0 %v11172
  %11218 = vmatprep.subr.mxu0 0.0
  %11219 = vmatpush1.msra.mxu0 %v11173
  %11220 = vmatprep.subr.mxu0 0.0
  %11221 = vmatpush1.msra.mxu0 %v11174
  %11222 = vmatprep.subr.mxu0 0.0
  %11223 = vmatpush1.msra.mxu0 %v11175
  %11224 = vmatprep.subr.mxu0 0.0
  %11225 = vmatpush1.msra.mxu0 %v11176
  %11226 = vmatprep.subr.mxu0 0.0
  %11227 = vmatpush1.msra.mxu0 %v11177
  %11228 = vmatprep.subr.mxu0 0.0
  %11229 = vmatpush1.msra.mxu0 %v11178
  %11230 = vmatprep.subr.mxu0 0.0
  %11231 = vmatpush1.msra.mxu0 %v11179
  %11232 = vmatprep.subr.mxu0 0.0
  %11233 = vmatpush1.msra.mxu0 %v11180
  %11234 = vmatprep.subr.mxu0 0.0
  %11235 = vmatpush1.msra.mxu0 %v11181
  %11236 = vmatprep.subr.mxu0 0.0
  %11237 = vmatpush1.msra.mxu0 %v11182
  %11238 = vmatprep.subr.mxu0 0.0
  %11239 = vmatpush1.msra.mxu0 %v11183
  %11240 = vmatprep.subr.mxu0 0.0
  %11241 = vmatpush1.msra.mxu0 %v11184
  %11242 = vmatprep.subr.mxu0 0.0
  %11243 = vmatpush1.msra.mxu0 %v11185
  %11244 = vmatprep.subr.mxu0 0.0
  %11245 = vmatpush1.msra.mxu0 %v11186
  %11246 = vmatprep.subr.mxu0 0.0
  %11247 = vmatpush1.msra.mxu0 %v11187
  %11248 = vmatprep.subr.mxu0 0.0
  %11249 = vmatpush1.msra.mxu0 %v11188
  %11250 = vmatprep.subr.mxu0 0.0
  %11251 = vmatpush1.msra.mxu0 %v11189
  %11252 = vmatprep.subr.mxu0 0.0
  %11253 = vmatpush1.msra.mxu0 %v11190
  %11254 = vmatprep.subr.mxu0 0.0
  %11255 = vmatpush1.msra.mxu0 %v11191
  %11256 = vmatprep.subr.mxu0 0.0
  %11257 = vmatpush1.msra.mxu0 %v11192
  %11258 = vmatprep.subr.mxu0 0.0
  %11259 = vmatpush1.msra.mxu0 %v11193
  %11260 = vmatprep.subr.mxu0 0.0
  %11261 = vmatpush1.msra.mxu0 %v11194
  %11262 = vmatprep.subr.mxu0 0.0
  %11263 = vmatpush1.msra.mxu0 %v11195
  %11264 = vmatprep.subr.mxu0 0.0
  %11265 = vmatpush1.msra.mxu0 %v11196
  %11266 = vmatprep.subr.mxu0 0.0
  %11267 = vmatpush1.msra.mxu0 %v11197
  %11268 = vmatprep.subr.mxu0 0.0
  %11269 = vmatpush1.msra.mxu0 %v11198
  %11270 = vmatprep.subr.mxu0 0.0
  %11271 = vmatpush1.msra.mxu0 %v11199
  %11272 = vmatprep.subr.mxu0 0.0
  %11273 = vmatpush1.msra.mxu0 %v11200
  %11274 = vmatprep.mubr.f32.mxu0 %v11202
  %11275 = vmatmul.mubr.f32.gmra.mrb[0].mxu0 %v11201
  %v11276 = vpop.f32.mrb[0].mxu0
  %v11277 = vadd.f32 %v11208, %v11276
  %v11278 = vpop.f32.mrb[0].mxu0
  %11279 = vdwg.mxu0
  %vm11280 = vcmask 15360
  %11281 = vst.msk [vmem:[%s10] sm:$0xff] %vm11280, %v11277
  // Predicated region
  $region42: #{tpu_custom_call.1} parent=0 // pred_check
    _
  $region43: #{tpu_custom_call.1} parent=0 // pred_check_branch
    %11283 = sbr.rel (0) target = $region45
  $region44: #{tpu_custom_call.1} parent=0 // pred_region
    _
  $region45: #{tpu_custom_call.1} parent=0 // pred_fallthru
    _
  // Predicated region
  $region46: #{tpu_custom_call.1} parent=0 // pred_check
    _
  $region47: #{tpu_custom_call.1} parent=0 // pred_check_branch
    %11285 = sbr.rel (0) target = $region49
  $region48: #{tpu_custom_call.1} parent=0 // pred_region
    _
  $region49: #{tpu_custom_call.1} parent=0 // pred_fallthru
    _

</llo_original>
